<compile_context>
chip_gen: v5e
topology: v5e:2x2
jax: 0.10.0
libtpu: 0.0.40
codegen_flags: <defaults>
</compile_context>

<pallas_src>
import functools

import jax
import jax.numpy as jnp
from jax import lax
from jax.experimental import pallas as pl
from jax.experimental.pallas import tpu as pltpu

# ---------------- small, deterministic config ----------------
B = 2                 # batch
SEQ_Q = 8             # question length
SEQ_I = 16            # image regions
TOKEN_SIZE = 20
WORD_EMBED_SIZE = 16
HIDDEN_SIZE = 32
MULTI_HEAD = 4
FF_SIZE = 64
LAYER = 2
FLAT_MLP_SIZE = 16
FLAT_GLIMPSES = 1
FLAT_OUT_SIZE = 64
IMG_FEAT_SIZE = 48
ANSWER_SIZE = 10
LN_EPS = 1e-6
MASK_FILL = -1e9

_VMEM = pl.BlockSpec(memory_space=pltpu.MemorySpace.VMEM)


# ---------------- in-kernel helpers (pure jnp, traced inside kernels) ----------------
def _ln(x, g, b):
    """MCAN LayerNorm: g * (x - mean) / (unbiased_std + eps) + b."""
    d = x.shape[-1]
    mu = jnp.mean(x, axis=-1, keepdims=True)
    var = jnp.sum((x - mu) ** 2, axis=-1, keepdims=True) * (1.0 / (d - 1))
    return g * (x - mu) / (jnp.sqrt(var) + LN_EPS) + b


def _self_attention(x, mask, wqkv, bqkv, wm, bm, n_heads):
    """Fused-QKV multi-head self-attention. x: (S, H); mask: (1, S), 1.0 == pad key."""
    S, H = x.shape
    dh = H // n_heads
    scale = 1.0 / (dh ** 0.5)
    qkv = jnp.dot(x, wqkv, preferred_element_type=jnp.float32) + bqkv       # (S, 3H)
    heads = []
    for h in range(n_heads):
        qh = qkv[:, h * dh:(h + 1) * dh]
        kh = qkv[:, H + h * dh:H + (h + 1) * dh]
        vh = qkv[:, 2 * H + h * dh:2 * H + (h + 1) * dh]
        s = lax.dot_general(qh, kh, (((1,), (1,)), ((), ())),
                            preferred_element_type=jnp.float32) * scale     # (S, S)
        s = jnp.where(mask > 0.5, MASK_FILL, s)                             # masked_fill
        p = jax.nn.softmax(s, axis=-1)
        heads.append(jnp.dot(p, vh, preferred_element_type=jnp.float32))
    atted = jnp.concatenate(heads, axis=-1)                                 # (S, H)
    return jnp.dot(atted, wm, preferred_element_type=jnp.float32) + bm


def _cross_attention(xq, ykv, mask, wq, bq, wkv, bkv, wm, bm, n_heads):
    """Multi-head cross-attention: q from xq, fused K|V from ykv; mask over keys."""
    _, H = xq.shape
    dh = H // n_heads
    scale = 1.0 / (dh ** 0.5)
    q = jnp.dot(xq, wq, preferred_element_type=jnp.float32) + bq            # (Sq, H)
    kv = jnp.dot(ykv, wkv, preferred_element_type=jnp.float32) + bkv        # (Sk, 2H)
    heads = []
    for h in range(n_heads):
        qh = q[:, h * dh:(h + 1) * dh]
        kh = kv[:, h * dh:(h + 1) * dh]
        vh = kv[:, H + h * dh:H + (h + 1) * dh]
        s = lax.dot_general(qh, kh, (((1,), (1,)), ((), ())),
                            preferred_element_type=jnp.float32) * scale     # (Sq, Sk)
        s = jnp.where(mask > 0.5, MASK_FILL, s)
        p = jax.nn.softmax(s, axis=-1)
        heads.append(jnp.dot(p, vh, preferred_element_type=jnp.float32))
    atted = jnp.concatenate(heads, axis=-1)
    return jnp.dot(atted, wm, preferred_element_type=jnp.float32) + bm


def _ffn(x, w1, b1, w2, b2):
    h = jnp.maximum(jnp.dot(x, w1, preferred_element_type=jnp.float32) + b1, 0.0)
    return jnp.dot(h, w2, preferred_element_type=jnp.float32) + b2


def _attflat(x3, m3, w1, b1, w2, b2, wm, bm):
    """AttFlat: MLP -> masked softmax over seq -> glimpse pooling -> linear merge."""
    Bb, S, H = x3.shape
    G = w2.shape[1]
    x2 = x3.reshape(Bb * S, H)
    a = jnp.maximum(jnp.dot(x2, w1, preferred_element_type=jnp.float32) + b1, 0.0)
    a = jnp.dot(a, w2, preferred_element_type=jnp.float32) + b2             # (B*S, G)
    a = a.reshape(Bb, S, G)
    mask = m3.reshape(Bb, S)[:, :, None]                                    # (B, S, 1)
    a = jnp.where(mask > 0.5, MASK_FILL, a)
    a = jax.nn.softmax(a, axis=1)                                           # over seq
    pooled = [jnp.sum(a[:, :, g:g + 1] * x3, axis=1) for g in range(G)]     # (B, H) each
    pooled = pooled[0] if G == 1 else jnp.concatenate(pooled, axis=-1)      # (B, G*H)
    return jnp.dot(pooled, wm, preferred_element_type=jnp.float32) + bm


# ---------------- Pallas kernels ----------------
def _lstm_kernel(qix_ref, x_ref, wih_ref, whh_ref, b_ref, o_ref, m_ref):
    """Single-layer LSTM over the full sequence + language pad mask.

    x: (B, S, E). The input projection is hoisted out of the recurrence; only
    h @ whh and the gate nonlinearities stay inside the fully-unrolled time loop.
    Output is lane-dense (B, S*H); mask is (B, 1, S).
    """
    Bb, S, E = x_ref.shape
    H = whh_ref.shape[0]
    whh = whh_ref[...]
    gx = jnp.dot(x_ref[...].reshape(Bb * S, E), wih_ref[...],
                 preferred_element_type=jnp.float32) + b_ref[...]           # (B*S, 4H)
    gx = gx.reshape(Bb, S, 4 * H)
    h = jnp.zeros((Bb, H), jnp.float32)
    c = jnp.zeros((Bb, H), jnp.float32)
    hs = []
    for t in range(S):                       # S=8: fully unrolled, static indices
        gates = gx[:, t, :] + jnp.dot(h, whh, preferred_element_type=jnp.float32)
        i = jax.nn.sigmoid(gates[:, 0 * H:1 * H])     # PyTorch gate order i, f, g, o
        f = jax.nn.sigmoid(gates[:, 1 * H:2 * H])
        g = jnp.tanh(gates[:, 2 * H:3 * H])
        o = jax.nn.sigmoid(gates[:, 3 * H:4 * H])
        c = f * c + i * g
        h = o * jnp.tanh(c)
        hs.append(h)
    o_ref[...] = jnp.concatenate(hs, axis=-1)                               # (B, S*H)
    m_ref[...] = (jnp.abs(qix_ref[...]) == 0.0).astype(jnp.float32)         # (B, 1, S)


def _img_proj_kernel(x_ref, w_ref, b_ref, o_ref, m_ref):
    """img_feat_linear + image pad mask in one kernel."""
    Bb, S, F = x_ref.shape
    H = w_ref.shape[1]
    x = x_ref[...]
    y = jnp.dot(x.reshape(Bb * S, F), w_ref[...],
                preferred_element_type=jnp.float32) + b_ref[...]
    o_ref[...] = y.reshape(Bb, S, H)
    m_ref[...] = (jnp.sum(jnp.abs(x), axis=-1) == 0.0).astype(jnp.float32)[:, None, :]


def _sa_layer_kernel(x_ref, m_ref,
                     wqkv_ref, bqkv_ref, wm_ref, bm_ref, ln1g_ref, ln1b_ref,
                     w1_ref, b1_ref, w2_ref, b2_ref, ln2g_ref, ln2b_ref,
                     o_ref, *, n_heads):
    """One fused SA encoder layer for one batch element (batch is the grid axis)."""
    x = x_ref[0]                                    # (S, H)
    mask = m_ref[0]                                 # (1, S)
    att = _self_attention(x, mask, wqkv_ref[...], bqkv_ref[...],
                          wm_ref[...], bm_ref[...], n_heads)
    x = _ln(x + att, ln1g_ref[...], ln1b_ref[...])
    x = _ln(x + _ffn(x, w1_ref[...], b1_ref[...], w2_ref[...], b2_ref[...]),
            ln2g_ref[...], ln2b_ref[...])
    o_ref[0] = x


def _sga_layer_kernel(x_ref, y_ref, xm_ref, ym_ref,
                      wqkv1_ref, bqkv1_ref, wm1_ref, bm1_ref, ln1g_ref, ln1b_ref,
                      wq2_ref, bq2_ref, wkv2_ref, bkv2_ref, wm2_ref, bm2_ref,
                      ln2g_ref, ln2b_ref,
                      w1_ref, b1_ref, w2_ref, b2_ref, ln3g_ref, ln3b_ref,
                      o_ref, *, n_heads):
    """One fused SGA decoder layer for one batch element (batch is the grid axis)."""
    x = x_ref[0]                                    # (Si, H) image stream
    y = y_ref[0]                                    # (Sq, H) language stream
    xm = xm_ref[0]                                  # (1, Si)
    ym = ym_ref[0]                                  # (1, Sq)
    att1 = _self_attention(x, xm, wqkv1_ref[...], bqkv1_ref[...],
                           wm1_ref[...], bm1_ref[...], n_heads)
    x = _ln(x + att1, ln1g_ref[...], ln1b_ref[...])
    att2 = _cross_attention(x, y, ym, wq2_ref[...], bq2_ref[...],
                            wkv2_ref[...], bkv2_ref[...],
                            wm2_ref[...], bm2_ref[...], n_heads)
    x = _ln(x + att2, ln2g_ref[...], ln2b_ref[...])
    x = _ln(x + _ffn(x, w1_ref[...], b1_ref[...], w2_ref[...], b2_ref[...]),
            ln3g_ref[...], ln3b_ref[...])
    o_ref[0] = x


def _head_kernel(xl_ref, ml_ref, xi_ref, mi_ref,
                 lw1_ref, lb1_ref, lw2_ref, lb2_ref, lwm_ref, lbm_ref,
                 iw1_ref, ib1_ref, iw2_ref, ib2_ref, iwm_ref, ibm_ref,
                 png_ref, pnb_ref, pw_ref, pb_ref, o_ref):
    """attflat_lang + attflat_img + add + proj LayerNorm + proj + sigmoid."""
    lang = _attflat(xl_ref[...], ml_ref[...], lw1_ref[...], lb1_ref[...],
                    lw2_ref[...], lb2_ref[...], lwm_ref[...], lbm_ref[...])
    img = _attflat(xi_ref[...], mi_ref[...], iw1_ref[...], ib1_ref[...],
                   iw2_ref[...], ib2_ref[...], iwm_ref[...], ibm_ref[...])
    fused = _ln(lang + img, png_ref[...], pnb_ref[...])
    logits = jnp.dot(fused, pw_ref[...], preferred_element_type=jnp.float32) + pb_ref[...]
    o_ref[...] = jax.nn.sigmoid(logits)


# ---------------- pallas_call wrappers ----------------
def _full_spec(arr):
    nd = arr.ndim
    return pl.BlockSpec(arr.shape, lambda b, _nd=nd: (0,) * _nd)


def lstm_and_mask(ques_ix, glove_feat, p):
    Bb, S, _ = glove_feat.shape
    H = p["whh"].shape[0]
    qix_f = ques_ix.astype(jnp.float32).reshape(Bb, 1, S)
    out, mask = pl.pallas_call(
        _lstm_kernel,
        out_shape=(jax.ShapeDtypeStruct((Bb, S * H), jnp.float32),
                   jax.ShapeDtypeStruct((Bb, 1, S), jnp.float32)),
        in_specs=[_VMEM] * 5,
        out_specs=(_VMEM, _VMEM),
    )(qix_f, glove_feat, p["wih"], p["whh"], p["b"])
    return out.reshape(Bb, S, H), mask          # free row-major reshape, no transpose


def img_proj_and_mask(img_feat, p):
    Bb, S, _ = img_feat.shape
    H = p["w"].shape[1]
    return pl.pallas_call(
        _img_proj_kernel,
        out_shape=(jax.ShapeDtypeStruct((Bb, S, H), jnp.float32),
                   jax.ShapeDtypeStruct((Bb, 1, S), jnp.float32)),
        in_specs=[_VMEM] * 3,
        out_specs=(_VMEM, _VMEM),
    )(img_feat, p["w"], p["b"])


def sa_layer(x, x_mask, p):
    Bb, S, H = x.shape
    weights = (p["wqkv"], p["bqkv"], p["wm"], p["bm"], p["ln1_g"], p["ln1_b"],
               p["w1"], p["b1"], p["w2"], p["b2"], p["ln2_g"], p["ln2_b"])
    return pl.pallas_call(
        functools.partial(_sa_layer_kernel, n_heads=MULTI_HEAD),
        out_shape=jax.ShapeDtypeStruct((Bb, S, H), jnp.float32),
        grid=(Bb,),
        in_specs=[pl.BlockSpec((1, S, H), lambda b: (b, 0, 0)),
                  pl.BlockSpec((1, 1, S), lambda b: (b, 0, 0))]
                 + [_full_spec(w) for w in weights],
        out_specs=pl.BlockSpec((1, S, H), lambda b: (b, 0, 0)),
        compiler_params=pltpu.CompilerParams(dimension_semantics=("parallel",)),
    )(x, x_mask, *weights)


def sga_layer(x, y, x_mask, y_mask, p):
    Bb, Si, H = x.shape
    Sq = y.shape[1]
    weights = (p["wqkv1"], p["bqkv1"], p["wm1"], p["bm1"], p["ln1_g"], p["ln1_b"],
               p["wq2"], p["bq2"], p["wkv2"], p["bkv2"], p["wm2"], p["bm2"],
               p["ln2_g"], p["ln2_b"],
               p["w1"], p["b1"], p["w2"], p["b2"], p["ln3_g"], p["ln3_b"])
    return pl.pallas_call(
        functools.partial(_sga_layer_kernel, n_heads=MULTI_HEAD),
        out_shape=jax.ShapeDtypeStruct((Bb, Si, H), jnp.float32),
        grid=(Bb,),
        in_specs=[pl.BlockSpec((1, Si, H), lambda b: (b, 0, 0)),
                  pl.BlockSpec((1, Sq, H), lambda b: (b, 0, 0)),
                  pl.BlockSpec((1, 1, Si), lambda b: (b, 0, 0)),
                  pl.BlockSpec((1, 1, Sq), lambda b: (b, 0, 0))]
                 + [_full_spec(w) for w in weights],
        out_specs=pl.BlockSpec((1, Si, H), lambda b: (b, 0, 0)),
        compiler_params=pltpu.CompilerParams(dimension_semantics=("parallel",)),
    )(x, y, x_mask, y_mask, *weights)


def head(lang_feat, lang_mask, img_h, img_mask, p_lang, p_img, p_norm, p_proj):
    Bb = lang_feat.shape[0]
    args = (lang_feat, lang_mask, img_h, img_mask,
            p_lang["mlp_w1"], p_lang["mlp_b1"], p_lang["mlp_w2"], p_lang["mlp_b2"],
            p_lang["merge_w"], p_lang["merge_b"],
            p_img["mlp_w1"], p_img["mlp_b1"], p_img["mlp_w2"], p_img["mlp_b2"],
            p_img["merge_w"], p_img["merge_b"],
            p_norm["g"], p_norm["b"], p_proj["w"], p_proj["b"])
    return pl.pallas_call(
        _head_kernel,
        out_shape=jax.ShapeDtypeStruct((Bb, ANSWER_SIZE), jnp.float32),
        in_specs=[_VMEM] * len(args),
        out_specs=_VMEM,
    )(*args)


# ---------------- deterministic parameter init ----------------
class KeyGen:
    def __init__(self, key):
        self.key = key

    def __call__(self):
        self.key, sub = jax.random.split(self.key)
        return sub


def _lin(kg, fi, fo, scale=0.08):
    w = jax.random.normal(kg(), (fi, fo), jnp.float32) * scale
    b = jax.random.normal(kg(), (1, fo), jnp.float32) * scale
    return w, b


def _ln_params(d):
    return jnp.ones((1, d), jnp.float32), jnp.zeros((1, d), jnp.float32)


def init_sa(kg, H, F):
    wqkv, bqkv = _lin(kg, H, 3 * H)          # fused q|k|v projection
    wm, bm = _lin(kg, H, H)
    w1, b1 = _lin(kg, H, F)
    w2, b2 = _lin(kg, F, H)
    g1, be1 = _ln_params(H)
    g2, be2 = _ln_params(H)
    return dict(wqkv=wqkv, bqkv=bqkv, wm=wm, bm=bm, ln1_g=g1, ln1_b=be1,
                w1=w1, b1=b1, w2=w2, b2=b2, ln2_g=g2, ln2_b=be2)


def init_sga(kg, H, F):
    wqkv1, bqkv1 = _lin(kg, H, 3 * H)        # fused q|k|v for self-attention
    wm1, bm1 = _lin(kg, H, H)
    wq2, bq2 = _lin(kg, H, H)
    wkv2, bkv2 = _lin(kg, H, 2 * H)          # fused k|v for cross-attention
    wm2, bm2 = _lin(kg, H, H)
    w1, b1 = _lin(kg, H, F)
    w2, b2 = _lin(kg, F, H)
    g1, be1 = _ln_params(H)
    g2, be2 = _ln_params(H)
    g3, be3 = _ln_params(H)
    return dict(wqkv1=wqkv1, bqkv1=bqkv1, wm1=wm1, bm1=bm1, ln1_g=g1, ln1_b=be1,
                wq2=wq2, bq2=bq2, wkv2=wkv2, bkv2=bkv2, wm2=wm2, bm2=bm2,
                ln2_g=g2, ln2_b=be2,
                w1=w1, b1=b1, w2=w2, b2=b2, ln3_g=g3, ln3_b=be3)


def init_attflat(kg, H, mid, G, out):
    w1, b1 = _lin(kg, H, mid)
    w2, b2 = _lin(kg, mid, G)
    wm, bm = _lin(kg, H * G, out)
    return dict(mlp_w1=w1, mlp_b1=b1, mlp_w2=w2, mlp_b2=b2, merge_w=wm, merge_b=bm)


def init_params(key):
    kg = KeyGen(key)
    p = {}
    p["embedding"] = jax.random.normal(kg(), (TOKEN_SIZE, WORD_EMBED_SIZE), jnp.float32) * 0.1
    p["lstm"] = {
        "wih": jax.random.normal(kg(), (WORD_EMBED_SIZE, 4 * HIDDEN_SIZE), jnp.float32) * 0.08,
        "whh": jax.random.normal(kg(), (HIDDEN_SIZE, 4 * HIDDEN_SIZE), jnp.float32) * 0.08,
        # single combined bias (== bias_ih + bias_hh of torch.nn.LSTM)
        "b": jax.random.normal(kg(), (1, 4 * HIDDEN_SIZE), jnp.float32) * 0.08,
    }
    wi, bi = _lin(kg, IMG_FEAT_SIZE, HIDDEN_SIZE)
    p["img_feat_linear"] = {"w": wi, "b": bi}
    p["enc"] = [init_sa(kg, HIDDEN_SIZE, FF_SIZE) for _ in range(LAYER)]
    p["dec"] = [init_sga(kg, HIDDEN_SIZE, FF_SIZE) for _ in range(LAYER)]
    p["attflat_lang"] = init_attflat(kg, HIDDEN_SIZE, FLAT_MLP_SIZE, FLAT_GLIMPSES, FLAT_OUT_SIZE)
    p["attflat_img"] = init_attflat(kg, HIDDEN_SIZE, FLAT_MLP_SIZE, FLAT_GLIMPSES, FLAT_OUT_SIZE)
    g, b = _ln_params(FLAT_OUT_SIZE)
    p["proj_norm"] = {"g": g, "b": b}
    wp, bp = _lin(kg, FLAT_OUT_SIZE, ANSWER_SIZE)
    p["proj"] = {"w": wp, "b": bp}
    return p


# ---------------- Net.forward ----------------
def net_forward(params, img_feat, ques_ix):
    # Embedding lookup stays an XLA gather (glue); everything else runs in Pallas.
    glove_feat = params["embedding"][ques_ix]                       # (B, SEQ_Q, E)
    lang_feat, lang_mask = lstm_and_mask(ques_ix, glove_feat, params["lstm"])
    img_h, img_mask = img_proj_and_mask(img_feat, params["img_feat_linear"])

    # MCA_ED backbone: SA encoder stack on language, SGA decoder stack on image
    for layer_p in params["enc"]:
        lang_feat = sa_layer(lang_feat, lang_mask, layer_p)
    for layer_p in params["dec"]:
        img_h = sga_layer(img_h, lang_feat, img_mask, lang_mask, layer_p)

    return head(lang_feat, lang_mask, img_h, img_mask,
                params["attflat_lang"], params["attflat_img"],
                params["proj_norm"], params["proj"])


if __name__ == "__main__":
    key = jax.random.PRNGKey(0)
    k1, k2, kp = jax.random.split(key, 3)

    ques_ix = jax.random.randint(k1, (B, SEQ_Q), 1, TOKEN_SIZE, dtype=jnp.int32)
    ques_ix = ques_ix.at[1, SEQ_Q - 2:].set(0)           # padding tokens -> lang mask
    img_feat = jax.random.normal(k2, (B, SEQ_I, IMG_FEAT_SIZE), jnp.float32)
    img_feat = img_feat.at[0, SEQ_I - 3:, :].set(0.0)    # empty regions -> img mask

    params = init_params(kp)
    fwd = jax.jit(net_forward)
    out = jax.block_until_ready(fwd(params, img_feat, ques_ix))

    assert out.shape == (B, ANSWER_SIZE)
    assert bool(jnp.all(jnp.isfinite(out)))
    assert bool(jnp.all((out >= 0.0) & (out <= 1.0)))    # sigmoid output
    print("KERNEL_OK")
</pallas_src>

<mosaic_0001>
module attributes {stable_mosaic.version = 11 : i64} {
  func.func @_lstm_kernel(%arg0: memref<2x1x8xf32, #tpu.memory_space<vmem>>, %arg1: memref<2x8x16xf32, #tpu.memory_space<vmem>>, %arg2: memref<16x128xf32, #tpu.memory_space<vmem>>, %arg3: memref<32x128xf32, #tpu.memory_space<vmem>>, %arg4: memref<1x128xf32, #tpu.memory_space<vmem>>, %arg5: memref<2x256xf32, #tpu.memory_space<vmem>>, %arg6: memref<2x1x8xf32, #tpu.memory_space<vmem>>) attributes {dimension_semantics = [], scalar_prefetch = 0 : i64, scratch_operands = 0 : i64, tpu.core_type = #tpu.core_type<tc>} {
    %c0 = arith.constant 0 : index
    %c0_0 = arith.constant 0 : index
    %0 = vector.load %arg3[%c0, %c0_0] : memref<32x128xf32, #tpu.memory_space<vmem>>, vector<32x128xf32>
    %c0_1 = arith.constant 0 : index
    %c0_2 = arith.constant 0 : index
    %c0_3 = arith.constant 0 : index
    %1 = vector.load %arg1[%c0_1, %c0_2, %c0_3] : memref<2x8x16xf32, #tpu.memory_space<vmem>>, vector<2x8x16xf32>
    %2 = vector.shape_cast %1 : vector<2x8x16xf32> to vector<16x16xf32>
    %c0_4 = arith.constant 0 : index
    %c0_5 = arith.constant 0 : index
    %3 = vector.load %arg2[%c0_4, %c0_5] : memref<16x128xf32, #tpu.memory_space<vmem>>, vector<16x128xf32>
    %cst = arith.constant dense<0.000000e+00> : vector<16x128xf32>
    %4 = tpu.matmul %2, %3, %cst {dimension_numbers = #tpu.dot_dimension_numbers<[1], [0], [0], [1], [0, 0, 1, 1], [], []>} : vector<16x16xf32>, vector<16x128xf32>, vector<16x128xf32> -> vector<16x128xf32>
    %c0_6 = arith.constant 0 : index
    %c0_7 = arith.constant 0 : index
    %5 = vector.load %arg4[%c0_6, %c0_7] : memref<1x128xf32, #tpu.memory_space<vmem>>, vector<1x128xf32>
    %6 = vector.broadcast %5 : vector<1x128xf32> to vector<16x128xf32>
    %7 = arith.addf %4, %6 : vector<16x128xf32>
    %8 = vector.shape_cast %7 : vector<16x128xf32> to vector<2x8x128xf32>
    %cst_8 = arith.constant 0.000000e+00 : f32
    %9 = vector.broadcast %cst_8 : f32 to vector<2x32xf32>
    %cst_9 = arith.constant 0.000000e+00 : f32
    %10 = vector.broadcast %cst_9 : f32 to vector<2x32xf32>
    %11 = vector.extract_strided_slice %8 {offsets = [0, 0, 0], sizes = [2, 1, 128], strides = [1, 1, 1]} : vector<2x8x128xf32> to vector<2x1x128xf32>
    %12 = vector.shape_cast %11 : vector<2x1x128xf32> to vector<2x128xf32>
    %cst_10 = arith.constant dense<0.000000e+00> : vector<2x128xf32>
    %13 = tpu.matmul %9, %0, %cst_10 {dimension_numbers = #tpu.dot_dimension_numbers<[1], [0], [0], [1], [0, 0, 1, 1], [], []>} : vector<2x32xf32>, vector<32x128xf32>, vector<2x128xf32> -> vector<2x128xf32>
    %14 = arith.addf %12, %13 : vector<2x128xf32>
    %15 = vector.extract_strided_slice %14 {offsets = [0, 0], sizes = [2, 32], strides = [1, 1]} : vector<2x128xf32> to vector<2x32xf32>
    %16 = arith.negf %15 : vector<2x32xf32>
    %17 = math.exp %16 : vector<2x32xf32>
    %cst_11 = arith.constant 1.000000e+00 : f32
    %18 = vector.broadcast %cst_11 : f32 to vector<2x32xf32>
    %19 = arith.addf %18, %17 : vector<2x32xf32>
    %20 = arith.divf %18, %19 : vector<2x32xf32>
    %21 = vector.extract_strided_slice %14 {offsets = [0, 32], sizes = [2, 32], strides = [1, 1]} : vector<2x128xf32> to vector<2x32xf32>
    %22 = arith.negf %21 : vector<2x32xf32>
    %23 = math.exp %22 : vector<2x32xf32>
    %cst_12 = arith.constant 1.000000e+00 : f32
    %24 = vector.broadcast %cst_12 : f32 to vector<2x32xf32>
    %25 = arith.addf %24, %23 : vector<2x32xf32>
    %26 = arith.divf %24, %25 : vector<2x32xf32>
    %27 = vector.extract_strided_slice %14 {offsets = [0, 64], sizes = [2, 32], strides = [1, 1]} : vector<2x128xf32> to vector<2x32xf32>
    %28 = math.tanh %27 : vector<2x32xf32>
    %29 = vector.extract_strided_slice %14 {offsets = [0, 96], sizes = [2, 32], strides = [1, 1]} : vector<2x128xf32> to vector<2x32xf32>
    %30 = arith.negf %29 : vector<2x32xf32>
    %31 = math.exp %30 : vector<2x32xf32>
    %cst_13 = arith.constant 1.000000e+00 : f32
    %32 = vector.broadcast %cst_13 : f32 to vector<2x32xf32>
    %33 = arith.addf %32, %31 : vector<2x32xf32>
    %34 = arith.divf %32, %33 : vector<2x32xf32>
    %35 = arith.mulf %26, %10 : vector<2x32xf32>
    %36 = arith.mulf %20, %28 : vector<2x32xf32>
    %37 = arith.addf %35, %36 : vector<2x32xf32>
    %38 = math.tanh %37 : vector<2x32xf32>
    %39 = arith.mulf %34, %38 : vector<2x32xf32>
    %40 = vector.extract_strided_slice %8 {offsets = [0, 1, 0], sizes = [2, 1, 128], strides = [1, 1, 1]} : vector<2x8x128xf32> to vector<2x1x128xf32>
    %41 = vector.shape_cast %40 : vector<2x1x128xf32> to vector<2x128xf32>
    %cst_14 = arith.constant dense<0.000000e+00> : vector<2x128xf32>
    %42 = tpu.matmul %39, %0, %cst_14 {dimension_numbers = #tpu.dot_dimension_numbers<[1], [0], [0], [1], [0, 0, 1, 1], [], []>} : vector<2x32xf32>, vector<32x128xf32>, vector<2x128xf32> -> vector<2x128xf32>
    %43 = arith.addf %41, %42 : vector<2x128xf32>
    %44 = vector.extract_strided_slice %43 {offsets = [0, 0], sizes = [2, 32], strides = [1, 1]} : vector<2x128xf32> to vector<2x32xf32>
    %45 = arith.negf %44 : vector<2x32xf32>
    %46 = math.exp %45 : vector<2x32xf32>
    %cst_15 = arith.constant 1.000000e+00 : f32
    %47 = vector.broadcast %cst_15 : f32 to vector<2x32xf32>
    %48 = arith.addf %47, %46 : vector<2x32xf32>
    %49 = arith.divf %47, %48 : vector<2x32xf32>
    %50 = vector.extract_strided_slice %43 {offsets = [0, 32], sizes = [2, 32], strides = [1, 1]} : vector<2x128xf32> to vector<2x32xf32>
    %51 = arith.negf %50 : vector<2x32xf32>
    %52 = math.exp %51 : vector<2x32xf32>
    %cst_16 = arith.constant 1.000000e+00 : f32
    %53 = vector.broadcast %cst_16 : f32 to vector<2x32xf32>
    %54 = arith.addf %53, %52 : vector<2x32xf32>
    %55 = arith.divf %53, %54 : vector<2x32xf32>
    %56 = vector.extract_strided_slice %43 {offsets = [0, 64], sizes = [2, 32], strides = [1, 1]} : vector<2x128xf32> to vector<2x32xf32>
    %57 = math.tanh %56 : vector<2x32xf32>
    %58 = vector.extract_strided_slice %43 {offsets = [0, 96], sizes = [2, 32], strides = [1, 1]} : vector<2x128xf32> to vector<2x32xf32>
    %59 = arith.negf %58 : vector<2x32xf32>
    %60 = math.exp %59 : vector<2x32xf32>
    %cst_17 = arith.constant 1.000000e+00 : f32
    %61 = vector.broadcast %cst_17 : f32 to vector<2x32xf32>
    %62 = arith.addf %61, %60 : vector<2x32xf32>
    %63 = arith.divf %61, %62 : vector<2x32xf32>
    %64 = arith.mulf %55, %37 : vector<2x32xf32>
    %65 = arith.mulf %49, %57 : vector<2x32xf32>
    %66 = arith.addf %64, %65 : vector<2x32xf32>
    %67 = math.tanh %66 : vector<2x32xf32>
    %68 = arith.mulf %63, %67 : vector<2x32xf32>
    %69 = vector.extract_strided_slice %8 {offsets = [0, 2, 0], sizes = [2, 1, 128], strides = [1, 1, 1]} : vector<2x8x128xf32> to vector<2x1x128xf32>
    %70 = vector.shape_cast %69 : vector<2x1x128xf32> to vector<2x128xf32>
    %cst_18 = arith.constant dense<0.000000e+00> : vector<2x128xf32>
    %71 = tpu.matmul %68, %0, %cst_18 {dimension_numbers = #tpu.dot_dimension_numbers<[1], [0], [0], [1], [0, 0, 1, 1], [], []>} : vector<2x32xf32>, vector<32x128xf32>, vector<2x128xf32> -> vector<2x128xf32>
    %72 = arith.addf %70, %71 : vector<2x128xf32>
    %73 = vector.extract_strided_slice %72 {offsets = [0, 0], sizes = [2, 32], strides = [1, 1]} : vector<2x128xf32> to vector<2x32xf32>
    %74 = arith.negf %73 : vector<2x32xf32>
    %75 = math.exp %74 : vector<2x32xf32>
    %cst_19 = arith.constant 1.000000e+00 : f32
    %76 = vector.broadcast %cst_19 : f32 to vector<2x32xf32>
    %77 = arith.addf %76, %75 : vector<2x32xf32>
    %78 = arith.divf %76, %77 : vector<2x32xf32>
    %79 = vector.extract_strided_slice %72 {offsets = [0, 32], sizes = [2, 32], strides = [1, 1]} : vector<2x128xf32> to vector<2x32xf32>
    %80 = arith.negf %79 : vector<2x32xf32>
    %81 = math.exp %80 : vector<2x32xf32>
    %cst_20 = arith.constant 1.000000e+00 : f32
    %82 = vector.broadcast %cst_20 : f32 to vector<2x32xf32>
    %83 = arith.addf %82, %81 : vector<2x32xf32>
    %84 = arith.divf %82, %83 : vector<2x32xf32>
    %85 = vector.extract_strided_slice %72 {offsets = [0, 64], sizes = [2, 32], strides = [1, 1]} : vector<2x128xf32> to vector<2x32xf32>
    %86 = math.tanh %85 : vector<2x32xf32>
    %87 = vector.extract_strided_slice %72 {offsets = [0, 96], sizes = [2, 32], strides = [1, 1]} : vector<2x128xf32> to vector<2x32xf32>
    %88 = arith.negf %87 : vector<2x32xf32>
    %89 = math.exp %88 : vector<2x32xf32>
    %cst_21 = arith.constant 1.000000e+00 : f32
    %90 = vector.broadcast %cst_21 : f32 to vector<2x32xf32>
    %91 = arith.addf %90, %89 : vector<2x32xf32>
    %92 = arith.divf %90, %91 : vector<2x32xf32>
    %93 = arith.mulf %84, %66 : vector<2x32xf32>
    %94 = arith.mulf %78, %86 : vector<2x32xf32>
    %95 = arith.addf %93, %94 : vector<2x32xf32>
    %96 = math.tanh %95 : vector<2x32xf32>
    %97 = arith.mulf %92, %96 : vector<2x32xf32>
    %98 = vector.extract_strided_slice %8 {offsets = [0, 3, 0], sizes = [2, 1, 128], strides = [1, 1, 1]} : vector<2x8x128xf32> to vector<2x1x128xf32>
    %99 = vector.shape_cast %98 : vector<2x1x128xf32> to vector<2x128xf32>
    %cst_22 = arith.constant dense<0.000000e+00> : vector<2x128xf32>
    %100 = tpu.matmul %97, %0, %cst_22 {dimension_numbers = #tpu.dot_dimension_numbers<[1], [0], [0], [1], [0, 0, 1, 1], [], []>} : vector<2x32xf32>, vector<32x128xf32>, vector<2x128xf32> -> vector<2x128xf32>
    %101 = arith.addf %99, %100 : vector<2x128xf32>
    %102 = vector.extract_strided_slice %101 {offsets = [0, 0], sizes = [2, 32], strides = [1, 1]} : vector<2x128xf32> to vector<2x32xf32>
    %103 = arith.negf %102 : vector<2x32xf32>
    %104 = math.exp %103 : vector<2x32xf32>
    %cst_23 = arith.constant 1.000000e+00 : f32
    %105 = vector.broadcast %cst_23 : f32 to vector<2x32xf32>
    %106 = arith.addf %105, %104 : vector<2x32xf32>
    %107 = arith.divf %105, %106 : vector<2x32xf32>
    %108 = vector.extract_strided_slice %101 {offsets = [0, 32], sizes = [2, 32], strides = [1, 1]} : vector<2x128xf32> to vector<2x32xf32>
    %109 = arith.negf %108 : vector<2x32xf32>
    %110 = math.exp %109 : vector<2x32xf32>
    %cst_24 = arith.constant 1.000000e+00 : f32
    %111 = vector.broadcast %cst_24 : f32 to vector<2x32xf32>
    %112 = arith.addf %111, %110 : vector<2x32xf32>
    %113 = arith.divf %111, %112 : vector<2x32xf32>
    %114 = vector.extract_strided_slice %101 {offsets = [0, 64], sizes = [2, 32], strides = [1, 1]} : vector<2x128xf32> to vector<2x32xf32>
    %115 = math.tanh %114 : vector<2x32xf32>
    %116 = vector.extract_strided_slice %101 {offsets = [0, 96], sizes = [2, 32], strides = [1, 1]} : vector<2x128xf32> to vector<2x32xf32>
    %117 = arith.negf %116 : vector<2x32xf32>
    %118 = math.exp %117 : vector<2x32xf32>
    %cst_25 = arith.constant 1.000000e+00 : f32
    %119 = vector.broadcast %cst_25 : f32 to vector<2x32xf32>
    %120 = arith.addf %119, %118 : vector<2x32xf32>
    %121 = arith.divf %119, %120 : vector<2x32xf32>
    %122 = arith.mulf %113, %95 : vector<2x32xf32>
    %123 = arith.mulf %107, %115 : vector<2x32xf32>
    %124 = arith.addf %122, %123 : vector<2x32xf32>
    %125 = math.tanh %124 : vector<2x32xf32>
    %126 = arith.mulf %121, %125 : vector<2x32xf32>
    %127 = vector.extract_strided_slice %8 {offsets = [0, 4, 0], sizes = [2, 1, 128], strides = [1, 1, 1]} : vector<2x8x128xf32> to vector<2x1x128xf32>
    %128 = vector.shape_cast %127 : vector<2x1x128xf32> to vector<2x128xf32>
    %cst_26 = arith.constant dense<0.000000e+00> : vector<2x128xf32>
    %129 = tpu.matmul %126, %0, %cst_26 {dimension_numbers = #tpu.dot_dimension_numbers<[1], [0], [0], [1], [0, 0, 1, 1], [], []>} : vector<2x32xf32>, vector<32x128xf32>, vector<2x128xf32> -> vector<2x128xf32>
    %130 = arith.addf %128, %129 : vector<2x128xf32>
    %131 = vector.extract_strided_slice %130 {offsets = [0, 0], sizes = [2, 32], strides = [1, 1]} : vector<2x128xf32> to vector<2x32xf32>
    %132 = arith.negf %131 : vector<2x32xf32>
    %133 = math.exp %132 : vector<2x32xf32>
    %cst_27 = arith.constant 1.000000e+00 : f32
    %134 = vector.broadcast %cst_27 : f32 to vector<2x32xf32>
    %135 = arith.addf %134, %133 : vector<2x32xf32>
    %136 = arith.divf %134, %135 : vector<2x32xf32>
    %137 = vector.extract_strided_slice %130 {offsets = [0, 32], sizes = [2, 32], strides = [1, 1]} : vector<2x128xf32> to vector<2x32xf32>
    %138 = arith.negf %137 : vector<2x32xf32>
    %139 = math.exp %138 : vector<2x32xf32>
    %cst_28 = arith.constant 1.000000e+00 : f32
    %140 = vector.broadcast %cst_28 : f32 to vector<2x32xf32>
    %141 = arith.addf %140, %139 : vector<2x32xf32>
    %142 = arith.divf %140, %141 : vector<2x32xf32>
    %143 = vector.extract_strided_slice %130 {offsets = [0, 64], sizes = [2, 32], strides = [1, 1]} : vector<2x128xf32> to vector<2x32xf32>
    %144 = math.tanh %143 : vector<2x32xf32>
    %145 = vector.extract_strided_slice %130 {offsets = [0, 96], sizes = [2, 32], strides = [1, 1]} : vector<2x128xf32> to vector<2x32xf32>
    %146 = arith.negf %145 : vector<2x32xf32>
    %147 = math.exp %146 : vector<2x32xf32>
    %cst_29 = arith.constant 1.000000e+00 : f32
    %148 = vector.broadcast %cst_29 : f32 to vector<2x32xf32>
    %149 = arith.addf %148, %147 : vector<2x32xf32>
    %150 = arith.divf %148, %149 : vector<2x32xf32>
    %151 = arith.mulf %142, %124 : vector<2x32xf32>
    %152 = arith.mulf %136, %144 : vector<2x32xf32>
    %153 = arith.addf %151, %152 : vector<2x32xf32>
    %154 = math.tanh %153 : vector<2x32xf32>
    %155 = arith.mulf %150, %154 : vector<2x32xf32>
    %156 = vector.extract_strided_slice %8 {offsets = [0, 5, 0], sizes = [2, 1, 128], strides = [1, 1, 1]} : vector<2x8x128xf32> to vector<2x1x128xf32>
    %157 = vector.shape_cast %156 : vector<2x1x128xf32> to vector<2x128xf32>
    %cst_30 = arith.constant dense<0.000000e+00> : vector<2x128xf32>
    %158 = tpu.matmul %155, %0, %cst_30 {dimension_numbers = #tpu.dot_dimension_numbers<[1], [0], [0], [1], [0, 0, 1, 1], [], []>} : vector<2x32xf32>, vector<32x128xf32>, vector<2x128xf32> -> vector<2x128xf32>
    %159 = arith.addf %157, %158 : vector<2x128xf32>
    %160 = vector.extract_strided_slice %159 {offsets = [0, 0], sizes = [2, 32], strides = [1, 1]} : vector<2x128xf32> to vector<2x32xf32>
    %161 = arith.negf %160 : vector<2x32xf32>
    %162 = math.exp %161 : vector<2x32xf32>
    %cst_31 = arith.constant 1.000000e+00 : f32
    %163 = vector.broadcast %cst_31 : f32 to vector<2x32xf32>
    %164 = arith.addf %163, %162 : vector<2x32xf32>
    %165 = arith.divf %163, %164 : vector<2x32xf32>
    %166 = vector.extract_strided_slice %159 {offsets = [0, 32], sizes = [2, 32], strides = [1, 1]} : vector<2x128xf32> to vector<2x32xf32>
    %167 = arith.negf %166 : vector<2x32xf32>
    %168 = math.exp %167 : vector<2x32xf32>
    %cst_32 = arith.constant 1.000000e+00 : f32
    %169 = vector.broadcast %cst_32 : f32 to vector<2x32xf32>
    %170 = arith.addf %169, %168 : vector<2x32xf32>
    %171 = arith.divf %169, %170 : vector<2x32xf32>
    %172 = vector.extract_strided_slice %159 {offsets = [0, 64], sizes = [2, 32], strides = [1, 1]} : vector<2x128xf32> to vector<2x32xf32>
    %173 = math.tanh %172 : vector<2x32xf32>
    %174 = vector.extract_strided_slice %159 {offsets = [0, 96], sizes = [2, 32], strides = [1, 1]} : vector<2x128xf32> to vector<2x32xf32>
    %175 = arith.negf %174 : vector<2x32xf32>
    %176 = math.exp %175 : vector<2x32xf32>
    %cst_33 = arith.constant 1.000000e+00 : f32
    %177 = vector.broadcast %cst_33 : f32 to vector<2x32xf32>
    %178 = arith.addf %177, %176 : vector<2x32xf32>
    %179 = arith.divf %177, %178 : vector<2x32xf32>
    %180 = arith.mulf %171, %153 : vector<2x32xf32>
    %181 = arith.mulf %165, %173 : vector<2x32xf32>
    %182 = arith.addf %180, %181 : vector<2x32xf32>
    %183 = math.tanh %182 : vector<2x32xf32>
    %184 = arith.mulf %179, %183 : vector<2x32xf32>
    %185 = vector.extract_strided_slice %8 {offsets = [0, 6, 0], sizes = [2, 1, 128], strides = [1, 1, 1]} : vector<2x8x128xf32> to vector<2x1x128xf32>
    %186 = vector.shape_cast %185 : vector<2x1x128xf32> to vector<2x128xf32>
    %cst_34 = arith.constant dense<0.000000e+00> : vector<2x128xf32>
    %187 = tpu.matmul %184, %0, %cst_34 {dimension_numbers = #tpu.dot_dimension_numbers<[1], [0], [0], [1], [0, 0, 1, 1], [], []>} : vector<2x32xf32>, vector<32x128xf32>, vector<2x128xf32> -> vector<2x128xf32>
    %188 = arith.addf %186, %187 : vector<2x128xf32>
    %189 = vector.extract_strided_slice %188 {offsets = [0, 0], sizes = [2, 32], strides = [1, 1]} : vector<2x128xf32> to vector<2x32xf32>
    %190 = arith.negf %189 : vector<2x32xf32>
    %191 = math.exp %190 : vector<2x32xf32>
    %cst_35 = arith.constant 1.000000e+00 : f32
    %192 = vector.broadcast %cst_35 : f32 to vector<2x32xf32>
    %193 = arith.addf %192, %191 : vector<2x32xf32>
    %194 = arith.divf %192, %193 : vector<2x32xf32>
    %195 = vector.extract_strided_slice %188 {offsets = [0, 32], sizes = [2, 32], strides = [1, 1]} : vector<2x128xf32> to vector<2x32xf32>
    %196 = arith.negf %195 : vector<2x32xf32>
    %197 = math.exp %196 : vector<2x32xf32>
    %cst_36 = arith.constant 1.000000e+00 : f32
    %198 = vector.broadcast %cst_36 : f32 to vector<2x32xf32>
    %199 = arith.addf %198, %197 : vector<2x32xf32>
    %200 = arith.divf %198, %199 : vector<2x32xf32>
    %201 = vector.extract_strided_slice %188 {offsets = [0, 64], sizes = [2, 32], strides = [1, 1]} : vector<2x128xf32> to vector<2x32xf32>
    %202 = math.tanh %201 : vector<2x32xf32>
    %203 = vector.extract_strided_slice %188 {offsets = [0, 96], sizes = [2, 32], strides = [1, 1]} : vector<2x128xf32> to vector<2x32xf32>
    %204 = arith.negf %203 : vector<2x32xf32>
    %205 = math.exp %204 : vector<2x32xf32>
    %cst_37 = arith.constant 1.000000e+00 : f32
    %206 = vector.broadcast %cst_37 : f32 to vector<2x32xf32>
    %207 = arith.addf %206, %205 : vector<2x32xf32>
    %208 = arith.divf %206, %207 : vector<2x32xf32>
    %209 = arith.mulf %200, %182 : vector<2x32xf32>
    %210 = arith.mulf %194, %202 : vector<2x32xf32>
    %211 = arith.addf %209, %210 : vector<2x32xf32>
    %212 = math.tanh %211 : vector<2x32xf32>
    %213 = arith.mulf %208, %212 : vector<2x32xf32>
    %214 = vector.extract_strided_slice %8 {offsets = [0, 7, 0], sizes = [2, 1, 128], strides = [1, 1, 1]} : vector<2x8x128xf32> to vector<2x1x128xf32>
    %215 = vector.shape_cast %214 : vector<2x1x128xf32> to vector<2x128xf32>
    %cst_38 = arith.constant dense<0.000000e+00> : vector<2x128xf32>
    %216 = tpu.matmul %213, %0, %cst_38 {dimension_numbers = #tpu.dot_dimension_numbers<[1], [0], [0], [1], [0, 0, 1, 1], [], []>} : vector<2x32xf32>, vector<32x128xf32>, vector<2x128xf32> -> vector<2x128xf32>
    %217 = arith.addf %215, %216 : vector<2x128xf32>
    %218 = vector.extract_strided_slice %217 {offsets = [0, 0], sizes = [2, 32], strides = [1, 1]} : vector<2x128xf32> to vector<2x32xf32>
    %219 = arith.negf %218 : vector<2x32xf32>
    %220 = math.exp %219 : vector<2x32xf32>
    %cst_39 = arith.constant 1.000000e+00 : f32
    %221 = vector.broadcast %cst_39 : f32 to vector<2x32xf32>
    %222 = arith.addf %221, %220 : vector<2x32xf32>
    %223 = arith.divf %221, %222 : vector<2x32xf32>
    %224 = vector.extract_strided_slice %217 {offsets = [0, 32], sizes = [2, 32], strides = [1, 1]} : vector<2x128xf32> to vector<2x32xf32>
    %225 = arith.negf %224 : vector<2x32xf32>
    %226 = math.exp %225 : vector<2x32xf32>
    %cst_40 = arith.constant 1.000000e+00 : f32
    %227 = vector.broadcast %cst_40 : f32 to vector<2x32xf32>
    %228 = arith.addf %227, %226 : vector<2x32xf32>
    %229 = arith.divf %227, %228 : vector<2x32xf32>
    %230 = vector.extract_strided_slice %217 {offsets = [0, 64], sizes = [2, 32], strides = [1, 1]} : vector<2x128xf32> to vector<2x32xf32>
    %231 = math.tanh %230 : vector<2x32xf32>
    %232 = vector.extract_strided_slice %217 {offsets = [0, 96], sizes = [2, 32], strides = [1, 1]} : vector<2x128xf32> to vector<2x32xf32>
    %233 = arith.negf %232 : vector<2x32xf32>
    %234 = math.exp %233 : vector<2x32xf32>
    %cst_41 = arith.constant 1.000000e+00 : f32
    %235 = vector.broadcast %cst_41 : f32 to vector<2x32xf32>
    %236 = arith.addf %235, %234 : vector<2x32xf32>
    %237 = arith.divf %235, %236 : vector<2x32xf32>
    %238 = arith.mulf %229, %211 : vector<2x32xf32>
    %239 = arith.mulf %223, %231 : vector<2x32xf32>
    %240 = arith.addf %238, %239 : vector<2x32xf32>
    %241 = math.tanh %240 : vector<2x32xf32>
    %242 = arith.mulf %237, %241 : vector<2x32xf32>
    %243 = tpu.concatenate %39, %68, %97, %126, %155, %184, %213, %242 in 1 : vector<2x32xf32>, vector<2x32xf32>, vector<2x32xf32>, vector<2x32xf32>, vector<2x32xf32>, vector<2x32xf32>, vector<2x32xf32>, vector<2x32xf32> -> vector<2x256xf32>
    %c0_42 = arith.constant 0 : index
    %c0_43 = arith.constant 0 : index
    %244 = vector.load %arg5[%c0_42, %c0_43] : memref<2x256xf32, #tpu.memory_space<vmem>>, vector<2x256xf32>
    tpu.vector_store %arg5[%c0_42, %c0_43], %243 {strides = array<i32>} : memref<2x256xf32, #tpu.memory_space<vmem>>, vector<2x256xf32>,
    %c0_44 = arith.constant 0 : index
    %c0_45 = arith.constant 0 : index
    %c0_46 = arith.constant 0 : index
    %245 = vector.load %arg0[%c0_44, %c0_45, %c0_46] : memref<2x1x8xf32, #tpu.memory_space<vmem>>, vector<2x1x8xf32>
    %246 = math.absf %245 : vector<2x1x8xf32>
    %cst_47 = arith.constant 0.000000e+00 : f32
    %247 = vector.broadcast %cst_47 : f32 to vector<2x1x8xf32>
    %248 = arith.cmpf oeq, %246, %247 : vector<2x1x8xf32>
    %249 = arith.extui %248 : vector<2x1x8xi1> to vector<2x1x8xi32>
    %250 = arith.sitofp %249 : vector<2x1x8xi32> to vector<2x1x8xf32>
    %c0_48 = arith.constant 0 : index
    %c0_49 = arith.constant 0 : index
    %c0_50 = arith.constant 0 : index
    %251 = vector.load %arg6[%c0_48, %c0_49, %c0_50] : memref<2x1x8xf32, #tpu.memory_space<vmem>>, vector<2x1x8xf32>
    tpu.vector_store %arg6[%c0_48, %c0_49, %c0_50], %250 {strides = array<i32>} : memref<2x1x8xf32, #tpu.memory_space<vmem>>, vector<2x1x8xf32>,
    return
  }
}

module attributes {stable_mosaic.version = 11 : i64} {
  func.func @_img_proj_kernel(%arg0: memref<2x16x48xf32, #tpu.memory_space<vmem>>, %arg1: memref<48x32xf32, #tpu.memory_space<vmem>>, %arg2: memref<1x32xf32, #tpu.memory_space<vmem>>, %arg3: memref<2x16x32xf32, #tpu.memory_space<vmem>>, %arg4: memref<2x1x16xf32, #tpu.memory_space<vmem>>) attributes {dimension_semantics = [], scalar_prefetch = 0 : i64, scratch_operands = 0 : i64, tpu.core_type = #tpu.core_type<tc>} {
    %c0 = arith.constant 0 : index
    %c0_0 = arith.constant 0 : index
    %c0_1 = arith.constant 0 : index
    %0 = vector.load %arg0[%c0, %c0_0, %c0_1] : memref<2x16x48xf32, #tpu.memory_space<vmem>>, vector<2x16x48xf32>
    %1 = vector.shape_cast %0 : vector<2x16x48xf32> to vector<32x48xf32>
    %c0_2 = arith.constant 0 : index
    %c0_3 = arith.constant 0 : index
    %2 = vector.load %arg1[%c0_2, %c0_3] : memref<48x32xf32, #tpu.memory_space<vmem>>, vector<48x32xf32>
    %cst = arith.constant dense<0.000000e+00> : vector<32x32xf32>
    %3 = tpu.matmul %1, %2, %cst {dimension_numbers = #tpu.dot_dimension_numbers<[1], [0], [0], [1], [0, 0, 1, 1], [], []>} : vector<32x48xf32>, vector<48x32xf32>, vector<32x32xf32> -> vector<32x32xf32>
    %c0_4 = arith.constant 0 : index
    %c0_5 = arith.constant 0 : index
    %4 = vector.load %arg2[%c0_4, %c0_5] : memref<1x32xf32, #tpu.memory_space<vmem>>, vector<1x32xf32>
    %5 = vector.broadcast %4 : vector<1x32xf32> to vector<32x32xf32>
    %6 = arith.addf %3, %5 : vector<32x32xf32>
    %7 = vector.shape_cast %6 : vector<32x32xf32> to vector<2x16x32xf32>
    %c0_6 = arith.constant 0 : index
    %c0_7 = arith.constant 0 : index
    %c0_8 = arith.constant 0 : index
    %8 = vector.load %arg3[%c0_6, %c0_7, %c0_8] : memref<2x16x32xf32, #tpu.memory_space<vmem>>, vector<2x16x32xf32>
    tpu.vector_store %arg3[%c0_6, %c0_7, %c0_8], %7 {strides = array<i32>} : memref<2x16x32xf32, #tpu.memory_space<vmem>>, vector<2x16x32xf32>,
    %9 = math.absf %0 : vector<2x16x48xf32>
    %cst_9 = arith.constant dense<0.000000e+00> : vector<2x16xf32>
    %10 = vector.multi_reduction <add>, %9, %cst_9 [2] : vector<2x16x48xf32> to vector<2x16xf32>
    %cst_10 = arith.constant 0.000000e+00 : f32
    %11 = vector.broadcast %cst_10 : f32 to vector<2x16xf32>
    %12 = arith.cmpf oeq, %10, %11 : vector<2x16xf32>
    %13 = arith.extui %12 : vector<2x16xi1> to vector<2x16xi32>
    %14 = arith.sitofp %13 : vector<2x16xi32> to vector<2x16xf32>
    %15 = vector.shape_cast %14 : vector<2x16xf32> to vector<2x1x16xf32>
    %c0_11 = arith.constant 0 : index
    %c0_12 = arith.constant 0 : index
    %c0_13 = arith.constant 0 : index
    %16 = vector.load %arg4[%c0_11, %c0_12, %c0_13] : memref<2x1x16xf32, #tpu.memory_space<vmem>>, vector<2x1x16xf32>
    tpu.vector_store %arg4[%c0_11, %c0_12, %c0_13], %15 {strides = array<i32>} : memref<2x1x16xf32, #tpu.memory_space<vmem>>, vector<2x1x16xf32>,
    return
  }
}

module attributes {stable_mosaic.version = 11 : i64} {
  func.func @_sa_layer_kernel(%arg0: i32, %arg1: memref<1x8x32xf32, #tpu.memory_space<vmem>>, %arg2: memref<1x1x8xf32, #tpu.memory_space<vmem>>, %arg3: memref<32x96xf32, #tpu.memory_space<vmem>>, %arg4: memref<1x96xf32, #tpu.memory_space<vmem>>, %arg5: memref<32x32xf32, #tpu.memory_space<vmem>>, %arg6: memref<1x32xf32, #tpu.memory_space<vmem>>, %arg7: memref<1x32xf32, #tpu.memory_space<vmem>>, %arg8: memref<1x32xf32, #tpu.memory_space<vmem>>, %arg9: memref<32x64xf32, #tpu.memory_space<vmem>>, %arg10: memref<1x64xf32, #tpu.memory_space<vmem>>, %arg11: memref<64x32xf32, #tpu.memory_space<vmem>>, %arg12: memref<1x32xf32, #tpu.memory_space<vmem>>, %arg13: memref<1x32xf32, #tpu.memory_space<vmem>>, %arg14: memref<1x32xf32, #tpu.memory_space<vmem>>, %arg15: memref<1x8x32xf32, #tpu.memory_space<vmem>>) attributes {dimension_semantics = [#tpu.dimension_semantics<parallel>], iteration_bounds = array<i64: 2>, scalar_prefetch = 0 : i64, scratch_operands = 0 : i64, tpu.core_type = #tpu.core_type<tc>, window_params = [{transform_indices = @transform_0, window_bounds = array<i64: 1, 8, 32>}, {transform_indices = @transform_1, window_bounds = array<i64: 1, 1, 8>}, {pipeline_mode = #tpu.pipeline_mode<synchronous>, transform_indices = @transform_2, window_bounds = array<i64: 32, 96>}, {pipeline_mode = #tpu.pipeline_mode<synchronous>, transform_indices = @transform_3, window_bounds = array<i64: 1, 96>}, {pipeline_mode = #tpu.pipeline_mode<synchronous>, transform_indices = @transform_4, window_bounds = array<i64: 32, 32>}, {pipeline_mode = #tpu.pipeline_mode<synchronous>, transform_indices = @transform_5, window_bounds = array<i64: 1, 32>}, {pipeline_mode = #tpu.pipeline_mode<synchronous>, transform_indices = @transform_6, window_bounds = array<i64: 1, 32>}, {pipeline_mode = #tpu.pipeline_mode<synchronous>, transform_indices = @transform_7, window_bounds = array<i64: 1, 32>}, {pipeline_mode = #tpu.pipeline_mode<synchronous>, transform_indices = @transform_8, window_bounds = array<i64: 32, 64>}, {pipeline_mode = #tpu.pipeline_mode<synchronous>, transform_indices = @transform_9, window_bounds = array<i64: 1, 64>}, {pipeline_mode = #tpu.pipeline_mode<synchronous>, transform_indices = @transform_10, window_bounds = array<i64: 64, 32>}, {pipeline_mode = #tpu.pipeline_mode<synchronous>, transform_indices = @transform_11, window_bounds = array<i64: 1, 32>}, {pipeline_mode = #tpu.pipeline_mode<synchronous>, transform_indices = @transform_12, window_bounds = array<i64: 1, 32>}, {pipeline_mode = #tpu.pipeline_mode<synchronous>, transform_indices = @transform_13, window_bounds = array<i64: 1, 32>}, {transform_indices = @transform_14, window_bounds = array<i64: 1, 8, 32>}]} {
    %c0 = arith.constant 0 : index
    %c0_0 = arith.constant 0 : index
    %c0_1 = arith.constant 0 : index
    %0 = vector.load %arg1[%c0, %c0_0, %c0_1] : memref<1x8x32xf32, #tpu.memory_space<vmem>>, vector<1x8x32xf32>
    %1 = vector.shape_cast %0 : vector<1x8x32xf32> to vector<8x32xf32>
    %c0_2 = arith.constant 0 : index
    %c0_3 = arith.constant 0 : index
    %c0_4 = arith.constant 0 : index
    %2 = vector.load %arg2[%c0_2, %c0_3, %c0_4] : memref<1x1x8xf32, #tpu.memory_space<vmem>>, vector<1x1x8xf32>
    %3 = vector.shape_cast %2 : vector<1x1x8xf32> to vector<1x8xf32>
    %c0_5 = arith.constant 0 : index
    %c0_6 = arith.constant 0 : index
    %4 = vector.load %arg3[%c0_5, %c0_6] : memref<32x96xf32, #tpu.memory_space<vmem>>, vector<32x96xf32>
    %c0_7 = arith.constant 0 : index
    %c0_8 = arith.constant 0 : index
    %5 = vector.load %arg4[%c0_7, %c0_8] : memref<1x96xf32, #tpu.memory_space<vmem>>, vector<1x96xf32>
    %c0_9 = arith.constant 0 : index
    %c0_10 = arith.constant 0 : index
    %6 = vector.load %arg5[%c0_9, %c0_10] : memref<32x32xf32, #tpu.memory_space<vmem>>, vector<32x32xf32>
    %c0_11 = arith.constant 0 : index
    %c0_12 = arith.constant 0 : index
    %7 = vector.load %arg6[%c0_11, %c0_12] : memref<1x32xf32, #tpu.memory_space<vmem>>, vector<1x32xf32>
    %cst = arith.constant dense<0.000000e+00> : vector<8x96xf32>
    %8 = tpu.matmul %1, %4, %cst {dimension_numbers = #tpu.dot_dimension_numbers<[1], [0], [0], [1], [0, 0, 1, 1], [], []>} : vector<8x32xf32>, vector<32x96xf32>, vector<8x96xf32> -> vector<8x96xf32>
    %9 = vector.broadcast %5 : vector<1x96xf32> to vector<8x96xf32>
    %10 = arith.addf %8, %9 : vector<8x96xf32>
    %11 = vector.extract_strided_slice %10 {offsets = [0, 0], sizes = [8, 8], strides = [1, 1]} : vector<8x96xf32> to vector<8x8xf32>
    %12 = vector.extract_strided_slice %10 {offsets = [0, 32], sizes = [8, 8], strides = [1, 1]} : vector<8x96xf32> to vector<8x8xf32>
    %13 = vector.extract_strided_slice %10 {offsets = [0, 64], sizes = [8, 8], strides = [1, 1]} : vector<8x96xf32> to vector<8x8xf32>
    %cst_13 = arith.constant dense<0.000000e+00> : vector<8x8xf32>
    %14 = tpu.matmul %11, %12, %cst_13 {dimension_numbers = #tpu.dot_dimension_numbers<[1], [1], [0], [0], [0, 0, 1, 0], [], []>} : vector<8x8xf32>, vector<8x8xf32>, vector<8x8xf32> -> vector<8x8xf32>
    %cst_14 = arith.constant 0.353553385 : f32
    %15 = vector.broadcast %cst_14 : f32 to vector<8x8xf32>
    %16 = arith.mulf %14, %15 : vector<8x8xf32>
    %cst_15 = arith.constant 5.000000e-01 : f32
    %17 = vector.broadcast %cst_15 : f32 to vector<1x8xf32>
    %18 = arith.cmpf ogt, %3, %17 : vector<1x8xf32>
    %cst_16 = arith.constant -1.000000e+09 : f32
    %19 = vector.shape_cast %18 : vector<1x8xi1> to vector<1x8xi1>
    %20 = vector.broadcast %19 : vector<1x8xi1> to vector<8x8xi1>
    %21 = vector.broadcast %cst_16 : f32 to vector<8x8xf32>
    %22 = arith.select %20, %21, %16 : vector<8x8xi1>, vector<8x8xf32>
    %cst_17 = arith.constant dense<0xFF800000> : vector<8xf32>
    %23 = vector.multi_reduction <maximumf>, %22, %cst_17 [1] : vector<8x8xf32> to vector<8xf32>
    %cst_18 = arith.constant 0xFF800000 : f32
    %24 = vector.broadcast %cst_18 : f32 to vector<8xf32>
    %25 = arith.maximumf %24, %23 : vector<8xf32>
    %26 = vector.shape_cast %25 : vector<8xf32> to vector<8x1xf32>
    %27 = vector.broadcast %26 : vector<8x1xf32> to vector<8x8xf32>
    %28 = arith.subf %22, %27 : vector<8x8xf32>
    %29 = math.exp %28 : vector<8x8xf32>
    %cst_19 = arith.constant dense<0.000000e+00> : vector<8xf32>
    %30 = vector.multi_reduction <add>, %29, %cst_19 [1] : vector<8x8xf32> to vector<8xf32>
    %31 = vector.shape_cast %30 : vector<8xf32> to vector<8x1xf32>
    %32 = vector.broadcast %31 : vector<8x1xf32> to vector<8x8xf32>
    %33 = arith.divf %29, %32 : vector<8x8xf32>
    %cst_20 = arith.constant dense<0.000000e+00> : vector<8x8xf32>
    %34 = tpu.matmul %33, %13, %cst_20 {dimension_numbers = #tpu.dot_dimension_numbers<[1], [0], [0], [1], [0, 0, 1, 1], [], []>} : vector<8x8xf32>, vector<8x8xf32>, vector<8x8xf32> -> vector<8x8xf32>
    %35 = vector.extract_strided_slice %10 {offsets = [0, 8], sizes = [8, 8], strides = [1, 1]} : vector<8x96xf32> to vector<8x8xf32>
    %36 = vector.extract_strided_slice %10 {offsets = [0, 40], sizes = [8, 8], strides = [1, 1]} : vector<8x96xf32> to vector<8x8xf32>
    %37 = vector.extract_strided_slice %10 {offsets = [0, 72], sizes = [8, 8], strides = [1, 1]} : vector<8x96xf32> to vector<8x8xf32>
    %cst_21 = arith.constant dense<0.000000e+00> : vector<8x8xf32>
    %38 = tpu.matmul %35, %36, %cst_21 {dimension_numbers = #tpu.dot_dimension_numbers<[1], [1], [0], [0], [0, 0, 1, 0], [], []>} : vector<8x8xf32>, vector<8x8xf32>, vector<8x8xf32> -> vector<8x8xf32>
    %cst_22 = arith.constant 0.353553385 : f32
    %39 = vector.broadcast %cst_22 : f32 to vector<8x8xf32>
    %40 = arith.mulf %38, %39 : vector<8x8xf32>
    %cst_23 = arith.constant 5.000000e-01 : f32
    %41 = vector.broadcast %cst_23 : f32 to vector<1x8xf32>
    %42 = arith.cmpf ogt, %3, %41 : vector<1x8xf32>
    %cst_24 = arith.constant -1.000000e+09 : f32
    %43 = vector.shape_cast %42 : vector<1x8xi1> to vector<1x8xi1>
    %44 = vector.broadcast %43 : vector<1x8xi1> to vector<8x8xi1>
    %45 = vector.broadcast %cst_24 : f32 to vector<8x8xf32>
    %46 = arith.select %44, %45, %40 : vector<8x8xi1>, vector<8x8xf32>
    %cst_25 = arith.constant dense<0xFF800000> : vector<8xf32>
    %47 = vector.multi_reduction <maximumf>, %46, %cst_25 [1] : vector<8x8xf32> to vector<8xf32>
    %cst_26 = arith.constant 0xFF800000 : f32
    %48 = vector.broadcast %cst_26 : f32 to vector<8xf32>
    %49 = arith.maximumf %48, %47 : vector<8xf32>
    %50 = vector.shape_cast %49 : vector<8xf32> to vector<8x1xf32>
    %51 = vector.broadcast %50 : vector<8x1xf32> to vector<8x8xf32>
    %52 = arith.subf %46, %51 : vector<8x8xf32>
    %53 = math.exp %52 : vector<8x8xf32>
    %cst_27 = arith.constant dense<0.000000e+00> : vector<8xf32>
    %54 = vector.multi_reduction <add>, %53, %cst_27 [1] : vector<8x8xf32> to vector<8xf32>
    %55 = vector.shape_cast %54 : vector<8xf32> to vector<8x1xf32>
    %56 = vector.broadcast %55 : vector<8x1xf32> to vector<8x8xf32>
    %57 = arith.divf %53, %56 : vector<8x8xf32>
    %cst_28 = arith.constant dense<0.000000e+00> : vector<8x8xf32>
    %58 = tpu.matmul %57, %37, %cst_28 {dimension_numbers = #tpu.dot_dimension_numbers<[1], [0], [0], [1], [0, 0, 1, 1], [], []>} : vector<8x8xf32>, vector<8x8xf32>, vector<8x8xf32> -> vector<8x8xf32>
    %59 = vector.extract_strided_slice %10 {offsets = [0, 16], sizes = [8, 8], strides = [1, 1]} : vector<8x96xf32> to vector<8x8xf32>
    %60 = vector.extract_strided_slice %10 {offsets = [0, 48], sizes = [8, 8], strides = [1, 1]} : vector<8x96xf32> to vector<8x8xf32>
    %61 = vector.extract_strided_slice %10 {offsets = [0, 80], sizes = [8, 8], strides = [1, 1]} : vector<8x96xf32> to vector<8x8xf32>
    %cst_29 = arith.constant dense<0.000000e+00> : vector<8x8xf32>
    %62 = tpu.matmul %59, %60, %cst_29 {dimension_numbers = #tpu.dot_dimension_numbers<[1], [1], [0], [0], [0, 0, 1, 0], [], []>} : vector<8x8xf32>, vector<8x8xf32>, vector<8x8xf32> -> vector<8x8xf32>
    %cst_30 = arith.constant 0.353553385 : f32
    %63 = vector.broadcast %cst_30 : f32 to vector<8x8xf32>
    %64 = arith.mulf %62, %63 : vector<8x8xf32>
    %cst_31 = arith.constant 5.000000e-01 : f32
    %65 = vector.broadcast %cst_31 : f32 to vector<1x8xf32>
    %66 = arith.cmpf ogt, %3, %65 : vector<1x8xf32>
    %cst_32 = arith.constant -1.000000e+09 : f32
    %67 = vector.shape_cast %66 : vector<1x8xi1> to vector<1x8xi1>
    %68 = vector.broadcast %67 : vector<1x8xi1> to vector<8x8xi1>
    %69 = vector.broadcast %cst_32 : f32 to vector<8x8xf32>
    %70 = arith.select %68, %69, %64 : vector<8x8xi1>, vector<8x8xf32>
    %cst_33 = arith.constant dense<0xFF800000> : vector<8xf32>
    %71 = vector.multi_reduction <maximumf>, %70, %cst_33 [1] : vector<8x8xf32> to vector<8xf32>
    %cst_34 = arith.constant 0xFF800000 : f32
    %72 = vector.broadcast %cst_34 : f32 to vector<8xf32>
    %73 = arith.maximumf %72, %71 : vector<8xf32>
    %74 = vector.shape_cast %73 : vector<8xf32> to vector<8x1xf32>
    %75 = vector.broadcast %74 : vector<8x1xf32> to vector<8x8xf32>
    %76 = arith.subf %70, %75 : vector<8x8xf32>
    %77 = math.exp %76 : vector<8x8xf32>
    %cst_35 = arith.constant dense<0.000000e+00> : vector<8xf32>
    %78 = vector.multi_reduction <add>, %77, %cst_35 [1] : vector<8x8xf32> to vector<8xf32>
    %79 = vector.shape_cast %78 : vector<8xf32> to vector<8x1xf32>
    %80 = vector.broadcast %79 : vector<8x1xf32> to vector<8x8xf32>
    %81 = arith.divf %77, %80 : vector<8x8xf32>
    %cst_36 = arith.constant dense<0.000000e+00> : vector<8x8xf32>
    %82 = tpu.matmul %81, %61, %cst_36 {dimension_numbers = #tpu.dot_dimension_numbers<[1], [0], [0], [1], [0, 0, 1, 1], [], []>} : vector<8x8xf32>, vector<8x8xf32>, vector<8x8xf32> -> vector<8x8xf32>
    %83 = vector.extract_strided_slice %10 {offsets = [0, 24], sizes = [8, 8], strides = [1, 1]} : vector<8x96xf32> to vector<8x8xf32>
    %84 = vector.extract_strided_slice %10 {offsets = [0, 56], sizes = [8, 8], strides = [1, 1]} : vector<8x96xf32> to vector<8x8xf32>
    %85 = vector.extract_strided_slice %10 {offsets = [0, 88], sizes = [8, 8], strides = [1, 1]} : vector<8x96xf32> to vector<8x8xf32>
    %cst_37 = arith.constant dense<0.000000e+00> : vector<8x8xf32>
    %86 = tpu.matmul %83, %84, %cst_37 {dimension_numbers = #tpu.dot_dimension_numbers<[1], [1], [0], [0], [0, 0, 1, 0], [], []>} : vector<8x8xf32>, vector<8x8xf32>, vector<8x8xf32> -> vector<8x8xf32>
    %cst_38 = arith.constant 0.353553385 : f32
    %87 = vector.broadcast %cst_38 : f32 to vector<8x8xf32>
    %88 = arith.mulf %86, %87 : vector<8x8xf32>
    %cst_39 = arith.constant 5.000000e-01 : f32
    %89 = vector.broadcast %cst_39 : f32 to vector<1x8xf32>
    %90 = arith.cmpf ogt, %3, %89 : vector<1x8xf32>
    %cst_40 = arith.constant -1.000000e+09 : f32
    %91 = vector.shape_cast %90 : vector<1x8xi1> to vector<1x8xi1>
    %92 = vector.broadcast %91 : vector<1x8xi1> to vector<8x8xi1>
    %93 = vector.broadcast %cst_40 : f32 to vector<8x8xf32>
    %94 = arith.select %92, %93, %88 : vector<8x8xi1>, vector<8x8xf32>
    %cst_41 = arith.constant dense<0xFF800000> : vector<8xf32>
    %95 = vector.multi_reduction <maximumf>, %94, %cst_41 [1] : vector<8x8xf32> to vector<8xf32>
    %cst_42 = arith.constant 0xFF800000 : f32
    %96 = vector.broadcast %cst_42 : f32 to vector<8xf32>
    %97 = arith.maximumf %96, %95 : vector<8xf32>
    %98 = vector.shape_cast %97 : vector<8xf32> to vector<8x1xf32>
    %99 = vector.broadcast %98 : vector<8x1xf32> to vector<8x8xf32>
    %100 = arith.subf %94, %99 : vector<8x8xf32>
    %101 = math.exp %100 : vector<8x8xf32>
    %cst_43 = arith.constant dense<0.000000e+00> : vector<8xf32>
    %102 = vector.multi_reduction <add>, %101, %cst_43 [1] : vector<8x8xf32> to vector<8xf32>
    %103 = vector.shape_cast %102 : vector<8xf32> to vector<8x1xf32>
    %104 = vector.broadcast %103 : vector<8x1xf32> to vector<8x8xf32>
    %105 = arith.divf %101, %104 : vector<8x8xf32>
    %cst_44 = arith.constant dense<0.000000e+00> : vector<8x8xf32>
    %106 = tpu.matmul %105, %85, %cst_44 {dimension_numbers = #tpu.dot_dimension_numbers<[1], [0], [0], [1], [0, 0, 1, 1], [], []>} : vector<8x8xf32>, vector<8x8xf32>, vector<8x8xf32> -> vector<8x8xf32>
    %107 = tpu.concatenate %34, %58, %82, %106 in 1 : vector<8x8xf32>, vector<8x8xf32>, vector<8x8xf32>, vector<8x8xf32> -> vector<8x32xf32>
    %cst_45 = arith.constant dense<0.000000e+00> : vector<8x32xf32>
    %108 = tpu.matmul %107, %6, %cst_45 {dimension_numbers = #tpu.dot_dimension_numbers<[1], [0], [0], [1], [0, 0, 1, 1], [], []>} : vector<8x32xf32>, vector<32x32xf32>, vector<8x32xf32> -> vector<8x32xf32>
    %109 = vector.broadcast %7 : vector<1x32xf32> to vector<8x32xf32>
    %110 = arith.addf %108, %109 : vector<8x32xf32>
    %111 = arith.addf %1, %110 : vector<8x32xf32>
    %c0_46 = arith.constant 0 : index
    %c0_47 = arith.constant 0 : index
    %112 = vector.load %arg7[%c0_46, %c0_47] : memref<1x32xf32, #tpu.memory_space<vmem>>, vector<1x32xf32>
    %c0_48 = arith.constant 0 : index
    %c0_49 = arith.constant 0 : index
    %113 = vector.load %arg8[%c0_48, %c0_49] : memref<1x32xf32, #tpu.memory_space<vmem>>, vector<1x32xf32>
    %cst_50 = arith.constant dense<0.000000e+00> : vector<8xf32>
    %114 = vector.multi_reduction <add>, %111, %cst_50 [1] : vector<8x32xf32> to vector<8xf32>
    %115 = vector.shape_cast %114 : vector<8xf32> to vector<8x1xf32>
    %cst_51 = arith.constant 3.200000e+01 : f32
    %116 = vector.broadcast %cst_51 : f32 to vector<8x1xf32>
    %117 = arith.divf %115, %116 : vector<8x1xf32>
    %118 = vector.broadcast %117 : vector<8x1xf32> to vector<8x32xf32>
    %119 = arith.subf %111, %118 : vector<8x32xf32>
    %120 = arith.mulf %119, %119 : vector<8x32xf32>
    %cst_52 = arith.constant dense<0.000000e+00> : vector<8xf32>
    %121 = vector.multi_reduction <add>, %120, %cst_52 [1] : vector<8x32xf32> to vector<8xf32>
    %122 = vector.shape_cast %121 : vector<8xf32> to vector<8x1xf32>
    %cst_53 = arith.constant 0.0322580636 : f32
    %123 = vector.broadcast %cst_53 : f32 to vector<8x1xf32>
    %124 = arith.mulf %122, %123 : vector<8x1xf32>
    %125 = vector.broadcast %117 : vector<8x1xf32> to vector<8x32xf32>
    %126 = arith.subf %111, %125 : vector<8x32xf32>
    %127 = vector.broadcast %112 : vector<1x32xf32> to vector<8x32xf32>
    %128 = arith.mulf %127, %126 : vector<8x32xf32>
    %129 = math.sqrt %124 : vector<8x1xf32>
    %cst_54 = arith.constant 9.99999997E-7 : f32
    %130 = vector.broadcast %cst_54 : f32 to vector<8x1xf32>
    %131 = arith.addf %129, %130 : vector<8x1xf32>
    %132 = vector.broadcast %131 : vector<8x1xf32> to vector<8x32xf32>
    %133 = arith.divf %128, %132 : vector<8x32xf32>
    %134 = vector.broadcast %113 : vector<1x32xf32> to vector<8x32xf32>
    %135 = arith.addf %133, %134 : vector<8x32xf32>
    %c0_55 = arith.constant 0 : index
    %c0_56 = arith.constant 0 : index
    %136 = vector.load %arg9[%c0_55, %c0_56] : memref<32x64xf32, #tpu.memory_space<vmem>>, vector<32x64xf32>
    %c0_57 = arith.constant 0 : index
    %c0_58 = arith.constant 0 : index
    %137 = vector.load %arg10[%c0_57, %c0_58] : memref<1x64xf32, #tpu.memory_space<vmem>>, vector<1x64xf32>
    %c0_59 = arith.constant 0 : index
    %c0_60 = arith.constant 0 : index
    %138 = vector.load %arg11[%c0_59, %c0_60] : memref<64x32xf32, #tpu.memory_space<vmem>>, vector<64x32xf32>
    %c0_61 = arith.constant 0 : index
    %c0_62 = arith.constant 0 : index
    %139 = vector.load %arg12[%c0_61, %c0_62] : memref<1x32xf32, #tpu.memory_space<vmem>>, vector<1x32xf32>
    %cst_63 = arith.constant dense<0.000000e+00> : vector<8x64xf32>
    %140 = tpu.matmul %135, %136, %cst_63 {dimension_numbers = #tpu.dot_dimension_numbers<[1], [0], [0], [1], [0, 0, 1, 1], [], []>} : vector<8x32xf32>, vector<32x64xf32>, vector<8x64xf32> -> vector<8x64xf32>
    %141 = vector.broadcast %137 : vector<1x64xf32> to vector<8x64xf32>
    %142 = arith.addf %140, %141 : vector<8x64xf32>
    %cst_64 = arith.constant 0.000000e+00 : f32
    %143 = vector.broadcast %cst_64 : f32 to vector<8x64xf32>
    %144 = arith.maximumf %142, %143 : vector<8x64xf32>
    %cst_65 = arith.constant dense<0.000000e+00> : vector<8x32xf32>
    %145 = tpu.matmul %144, %138, %cst_65 {dimension_numbers = #tpu.dot_dimension_numbers<[1], [0], [0], [1], [0, 0, 1, 1], [], []>} : vector<8x64xf32>, vector<64x32xf32>, vector<8x32xf32> -> vector<8x32xf32>
    %146 = vector.broadcast %139 : vector<1x32xf32> to vector<8x32xf32>
    %147 = arith.addf %145, %146 : vector<8x32xf32>
    %148 = arith.addf %135, %147 : vector<8x32xf32>
    %c0_66 = arith.constant 0 : index
    %c0_67 = arith.constant 0 : index
    %149 = vector.load %arg13[%c0_66, %c0_67] : memref<1x32xf32, #tpu.memory_space<vmem>>, vector<1x32xf32>
    %c0_68 = arith.constant 0 : index
    %c0_69 = arith.constant 0 : index
    %150 = vector.load %arg14[%c0_68, %c0_69] : memref<1x32xf32, #tpu.memory_space<vmem>>, vector<1x32xf32>
    %cst_70 = arith.constant dense<0.000000e+00> : vector<8xf32>
    %151 = vector.multi_reduction <add>, %148, %cst_70 [1] : vector<8x32xf32> to vector<8xf32>
    %152 = vector.shape_cast %151 : vector<8xf32> to vector<8x1xf32>
    %cst_71 = arith.constant 3.200000e+01 : f32
    %153 = vector.broadcast %cst_71 : f32 to vector<8x1xf32>
    %154 = arith.divf %152, %153 : vector<8x1xf32>
    %155 = vector.broadcast %154 : vector<8x1xf32> to vector<8x32xf32>
    %156 = arith.subf %148, %155 : vector<8x32xf32>
    %157 = arith.mulf %156, %156 : vector<8x32xf32>
    %cst_72 = arith.constant dense<0.000000e+00> : vector<8xf32>
    %158 = vector.multi_reduction <add>, %157, %cst_72 [1] : vector<8x32xf32> to vector<8xf32>
    %159 = vector.shape_cast %158 : vector<8xf32> to vector<8x1xf32>
    %cst_73 = arith.constant 0.0322580636 : f32
    %160 = vector.broadcast %cst_73 : f32 to vector<8x1xf32>
    %161 = arith.mulf %159, %160 : vector<8x1xf32>
    %162 = vector.broadcast %154 : vector<8x1xf32> to vector<8x32xf32>
    %163 = arith.subf %148, %162 : vector<8x32xf32>
    %164 = vector.broadcast %149 : vector<1x32xf32> to vector<8x32xf32>
    %165 = arith.mulf %164, %163 : vector<8x32xf32>
    %166 = math.sqrt %161 : vector<8x1xf32>
    %cst_74 = arith.constant 9.99999997E-7 : f32
    %167 = vector.broadcast %cst_74 : f32 to vector<8x1xf32>
    %168 = arith.addf %166, %167 : vector<8x1xf32>
    %169 = vector.broadcast %168 : vector<8x1xf32> to vector<8x32xf32>
    %170 = arith.divf %165, %169 : vector<8x32xf32>
    %171 = vector.broadcast %150 : vector<1x32xf32> to vector<8x32xf32>
    %172 = arith.addf %170, %171 : vector<8x32xf32>
    %c0_75 = arith.constant 0 : index
    %c0_76 = arith.constant 0 : index
    %c0_77 = arith.constant 0 : index
    %173 = vector.load %arg15[%c0_75, %c0_76, %c0_77] : memref<1x8x32xf32, #tpu.memory_space<vmem>>, vector<1x8x32xf32>
    %174 = vector.shape_cast %173 : vector<1x8x32xf32> to vector<8x32xf32>
    %175 = vector.shape_cast %172 : vector<8x32xf32> to vector<1x8x32xf32>
    tpu.vector_store %arg15[%c0_75, %c0_76, %c0_77], %175 {strides = array<i32>} : memref<1x8x32xf32, #tpu.memory_space<vmem>>, vector<1x8x32xf32>,
    return
  }
  func.func @transform_0(%arg0: i32) -> (i32, i32, i32) {
    %c0_i32 = arith.constant 0 : i32
    %c0_i32_0 = arith.constant 0 : i32
    %c0_i32_1 = arith.constant 0 : i32
    return %arg0, %c0_i32, %c0_i32_0 : i32, i32, i32
  }
  func.func @transform_1(%arg0: i32) -> (i32, i32, i32) {
    %c0_i32 = arith.constant 0 : i32
    %c0_i32_0 = arith.constant 0 : i32
    %c0_i32_1 = arith.constant 0 : i32
    return %arg0, %c0_i32, %c0_i32_0 : i32, i32, i32
  }
  func.func @transform_2(%arg0: i32) -> (i32, i32) {
    %c0_i32 = arith.constant 0 : i32
    %c0_i32_0 = arith.constant 0 : i32
    %c0_i32_1 = arith.constant 0 : i32
    return %c0_i32, %c0_i32_0 : i32, i32
  }
  func.func @transform_3(%arg0: i32) -> (i32, i32) {
    %c0_i32 = arith.constant 0 : i32
    %c0_i32_0 = arith.constant 0 : i32
    %c0_i32_1 = arith.constant 0 : i32
    return %c0_i32, %c0_i32_0 : i32, i32
  }
  func.func @transform_4(%arg0: i32) -> (i32, i32) {
    %c0_i32 = arith.constant 0 : i32
    %c0_i32_0 = arith.constant 0 : i32
    %c0_i32_1 = arith.constant 0 : i32
    return %c0_i32, %c0_i32_0 : i32, i32
  }
  func.func @transform_5(%arg0: i32) -> (i32, i32) {
    %c0_i32 = arith.constant 0 : i32
    %c0_i32_0 = arith.constant 0 : i32
    %c0_i32_1 = arith.constant 0 : i32
    return %c0_i32, %c0_i32_0 : i32, i32
  }
  func.func @transform_6(%arg0: i32) -> (i32, i32) {
    %c0_i32 = arith.constant 0 : i32
    %c0_i32_0 = arith.constant 0 : i32
    %c0_i32_1 = arith.constant 0 : i32
    return %c0_i32, %c0_i32_0 : i32, i32
  }
  func.func @transform_7(%arg0: i32) -> (i32, i32) {
    %c0_i32 = arith.constant 0 : i32
    %c0_i32_0 = arith.constant 0 : i32
    %c0_i32_1 = arith.constant 0 : i32
    return %c0_i32, %c0_i32_0 : i32, i32
  }
  func.func @transform_8(%arg0: i32) -> (i32, i32) {
    %c0_i32 = arith.constant 0 : i32
    %c0_i32_0 = arith.constant 0 : i32
    %c0_i32_1 = arith.constant 0 : i32
    return %c0_i32, %c0_i32_0 : i32, i32
  }
  func.func @transform_9(%arg0: i32) -> (i32, i32) {
    %c0_i32 = arith.constant 0 : i32
    %c0_i32_0 = arith.constant 0 : i32
    %c0_i32_1 = arith.constant 0 : i32
    return %c0_i32, %c0_i32_0 : i32, i32
  }
  func.func @transform_10(%arg0: i32) -> (i32, i32) {
    %c0_i32 = arith.constant 0 : i32
    %c0_i32_0 = arith.constant 0 : i32
    %c0_i32_1 = arith.constant 0 : i32
    return %c0_i32, %c0_i32_0 : i32, i32
  }
  func.func @transform_11(%arg0: i32) -> (i32, i32) {
    %c0_i32 = arith.constant 0 : i32
    %c0_i32_0 = arith.constant 0 : i32
    %c0_i32_1 = arith.constant 0 : i32
    return %c0_i32, %c0_i32_0 : i32, i32
  }
  func.func @transform_12(%arg0: i32) -> (i32, i32) {
    %c0_i32 = arith.constant 0 : i32
    %c0_i32_0 = arith.constant 0 : i32
    %c0_i32_1 = arith.constant 0 : i32
    return %c0_i32, %c0_i32_0 : i32, i32
  }
  func.func @transform_13(%arg0: i32) -> (i32, i32) {
    %c0_i32 = arith.constant 0 : i32
    %c0_i32_0 = arith.constant 0 : i32
    %c0_i32_1 = arith.constant 0 : i32
    return %c0_i32, %c0_i32_0 : i32, i32
  }
  func.func @transform_14(%arg0: i32) -> (i32, i32, i32) {
    %c0_i32 = arith.constant 0 : i32
    %c0_i32_0 = arith.constant 0 : i32
    %c0_i32_1 = arith.constant 0 : i32
    return %arg0, %c0_i32, %c0_i32_0 : i32, i32, i32
  }
}

module attributes {stable_mosaic.version = 11 : i64} {
  func.func @_sga_layer_kernel(%arg0: i32, %arg1: memref<1x16x32xf32, #tpu.memory_space<vmem>>, %arg2: memref<1x8x32xf32, #tpu.memory_space<vmem>>, %arg3: memref<1x1x16xf32, #tpu.memory_space<vmem>>, %arg4: memref<1x1x8xf32, #tpu.memory_space<vmem>>, %arg5: memref<32x96xf32, #tpu.memory_space<vmem>>, %arg6: memref<1x96xf32, #tpu.memory_space<vmem>>, %arg7: memref<32x32xf32, #tpu.memory_space<vmem>>, %arg8: memref<1x32xf32, #tpu.memory_space<vmem>>, %arg9: memref<1x32xf32, #tpu.memory_space<vmem>>, %arg10: memref<1x32xf32, #tpu.memory_space<vmem>>, %arg11: memref<32x32xf32, #tpu.memory_space<vmem>>, %arg12: memref<1x32xf32, #tpu.memory_space<vmem>>, %arg13: memref<32x64xf32, #tpu.memory_space<vmem>>, %arg14: memref<1x64xf32, #tpu.memory_space<vmem>>, %arg15: memref<32x32xf32, #tpu.memory_space<vmem>>, %arg16: memref<1x32xf32, #tpu.memory_space<vmem>>, %arg17: memref<1x32xf32, #tpu.memory_space<vmem>>, %arg18: memref<1x32xf32, #tpu.memory_space<vmem>>, %arg19: memref<32x64xf32, #tpu.memory_space<vmem>>, %arg20: memref<1x64xf32, #tpu.memory_space<vmem>>, %arg21: memref<64x32xf32, #tpu.memory_space<vmem>>, %arg22: memref<1x32xf32, #tpu.memory_space<vmem>>, %arg23: memref<1x32xf32, #tpu.memory_space<vmem>>, %arg24: memref<1x32xf32, #tpu.memory_space<vmem>>, %arg25: memref<1x16x32xf32, #tpu.memory_space<vmem>>) attributes {dimension_semantics = [#tpu.dimension_semantics<parallel>], iteration_bounds = array<i64: 2>, scalar_prefetch = 0 : i64, scratch_operands = 0 : i64, tpu.core_type = #tpu.core_type<tc>, window_params = [{transform_indices = @transform_0, window_bounds = array<i64: 1, 16, 32>}, {transform_indices = @transform_1, window_bounds = array<i64: 1, 8, 32>}, {transform_indices = @transform_2, window_bounds = array<i64: 1, 1, 16>}, {transform_indices = @transform_3, window_bounds = array<i64: 1, 1, 8>}, {pipeline_mode = #tpu.pipeline_mode<synchronous>, transform_indices = @transform_4, window_bounds = array<i64: 32, 96>}, {pipeline_mode = #tpu.pipeline_mode<synchronous>, transform_indices = @transform_5, window_bounds = array<i64: 1, 96>}, {pipeline_mode = #tpu.pipeline_mode<synchronous>, transform_indices = @transform_6, window_bounds = array<i64: 32, 32>}, {pipeline_mode = #tpu.pipeline_mode<synchronous>, transform_indices = @transform_7, window_bounds = array<i64: 1, 32>}, {pipeline_mode = #tpu.pipeline_mode<synchronous>, transform_indices = @transform_8, window_bounds = array<i64: 1, 32>}, {pipeline_mode = #tpu.pipeline_mode<synchronous>, transform_indices = @transform_9, window_bounds = array<i64: 1, 32>}, {pipeline_mode = #tpu.pipeline_mode<synchronous>, transform_indices = @transform_10, window_bounds = array<i64: 32, 32>}, {pipeline_mode = #tpu.pipeline_mode<synchronous>, transform_indices = @transform_11, window_bounds = array<i64: 1, 32>}, {pipeline_mode = #tpu.pipeline_mode<synchronous>, transform_indices = @transform_12, window_bounds = array<i64: 32, 64>}, {pipeline_mode = #tpu.pipeline_mode<synchronous>, transform_indices = @transform_13, window_bounds = array<i64: 1, 64>}, {pipeline_mode = #tpu.pipeline_mode<synchronous>, transform_indices = @transform_14, window_bounds = array<i64: 32, 32>}, {pipeline_mode = #tpu.pipeline_mode<synchronous>, transform_indices = @transform_15, window_bounds = array<i64: 1, 32>}, {pipeline_mode = #tpu.pipeline_mode<synchronous>, transform_indices = @transform_16, window_bounds = array<i64: 1, 32>}, {pipeline_mode = #tpu.pipeline_mode<synchronous>, transform_indices = @transform_17, window_bounds = array<i64: 1, 32>}, {pipeline_mode = #tpu.pipeline_mode<synchronous>, transform_indices = @transform_18, window_bounds = array<i64: 32, 64>}, {pipeline_mode = #tpu.pipeline_mode<synchronous>, transform_indices = @transform_19, window_bounds = array<i64: 1, 64>}, {pipeline_mode = #tpu.pipeline_mode<synchronous>, transform_indices = @transform_20, window_bounds = array<i64: 64, 32>}, {pipeline_mode = #tpu.pipeline_mode<synchronous>, transform_indices = @transform_21, window_bounds = array<i64: 1, 32>}, {pipeline_mode = #tpu.pipeline_mode<synchronous>, transform_indices = @transform_22, window_bounds = array<i64: 1, 32>}, {pipeline_mode = #tpu.pipeline_mode<synchronous>, transform_indices = @transform_23, window_bounds = array<i64: 1, 32>}, {transform_indices = @transform_24, window_bounds = array<i64: 1, 16, 32>}]} {
    %c0 = arith.constant 0 : index
    %c0_0 = arith.constant 0 : index
    %c0_1 = arith.constant 0 : index
    %0 = vector.load %arg1[%c0, %c0_0, %c0_1] : memref<1x16x32xf32, #tpu.memory_space<vmem>>, vector<1x16x32xf32>
    %1 = vector.shape_cast %0 : vector<1x16x32xf32> to vector<16x32xf32>
    %c0_2 = arith.constant 0 : index
    %c0_3 = arith.constant 0 : index
    %c0_4 = arith.constant 0 : index
    %2 = vector.load %arg2[%c0_2, %c0_3, %c0_4] : memref<1x8x32xf32, #tpu.memory_space<vmem>>, vector<1x8x32xf32>
    %3 = vector.shape_cast %2 : vector<1x8x32xf32> to vector<8x32xf32>
    %c0_5 = arith.constant 0 : index
    %c0_6 = arith.constant 0 : index
    %c0_7 = arith.constant 0 : index
    %4 = vector.load %arg3[%c0_5, %c0_6, %c0_7] : memref<1x1x16xf32, #tpu.memory_space<vmem>>, vector<1x1x16xf32>
    %5 = vector.shape_cast %4 : vector<1x1x16xf32> to vector<1x16xf32>
    %c0_8 = arith.constant 0 : index
    %c0_9 = arith.constant 0 : index
    %c0_10 = arith.constant 0 : index
    %6 = vector.load %arg4[%c0_8, %c0_9, %c0_10] : memref<1x1x8xf32, #tpu.memory_space<vmem>>, vector<1x1x8xf32>
    %7 = vector.shape_cast %6 : vector<1x1x8xf32> to vector<1x8xf32>
    %c0_11 = arith.constant 0 : index
    %c0_12 = arith.constant 0 : index
    %8 = vector.load %arg5[%c0_11, %c0_12] : memref<32x96xf32, #tpu.memory_space<vmem>>, vector<32x96xf32>
    %c0_13 = arith.constant 0 : index
    %c0_14 = arith.constant 0 : index
    %9 = vector.load %arg6[%c0_13, %c0_14] : memref<1x96xf32, #tpu.memory_space<vmem>>, vector<1x96xf32>
    %c0_15 = arith.constant 0 : index
    %c0_16 = arith.constant 0 : index
    %10 = vector.load %arg7[%c0_15, %c0_16] : memref<32x32xf32, #tpu.memory_space<vmem>>, vector<32x32xf32>
    %c0_17 = arith.constant 0 : index
    %c0_18 = arith.constant 0 : index
    %11 = vector.load %arg8[%c0_17, %c0_18] : memref<1x32xf32, #tpu.memory_space<vmem>>, vector<1x32xf32>
    %cst = arith.constant dense<0.000000e+00> : vector<16x96xf32>
    %12 = tpu.matmul %1, %8, %cst {dimension_numbers = #tpu.dot_dimension_numbers<[1], [0], [0], [1], [0, 0, 1, 1], [], []>} : vector<16x32xf32>, vector<32x96xf32>, vector<16x96xf32> -> vector<16x96xf32>
    %13 = vector.broadcast %9 : vector<1x96xf32> to vector<16x96xf32>
    %14 = arith.addf %12, %13 : vector<16x96xf32>
    %15 = vector.extract_strided_slice %14 {offsets = [0, 0], sizes = [16, 8], strides = [1, 1]} : vector<16x96xf32> to vector<16x8xf32>
    %16 = vector.extract_strided_slice %14 {offsets = [0, 32], sizes = [16, 8], strides = [1, 1]} : vector<16x96xf32> to vector<16x8xf32>
    %17 = vector.extract_strided_slice %14 {offsets = [0, 64], sizes = [16, 8], strides = [1, 1]} : vector<16x96xf32> to vector<16x8xf32>
    %cst_19 = arith.constant dense<0.000000e+00> : vector<16x16xf32>
    %18 = tpu.matmul %15, %16, %cst_19 {dimension_numbers = #tpu.dot_dimension_numbers<[1], [1], [0], [0], [0, 0, 1, 0], [], []>} : vector<16x8xf32>, vector<16x8xf32>, vector<16x16xf32> -> vector<16x16xf32>
    %cst_20 = arith.constant 0.353553385 : f32
    %19 = vector.broadcast %cst_20 : f32 to vector<16x16xf32>
    %20 = arith.mulf %18, %19 : vector<16x16xf32>
    %cst_21 = arith.constant 5.000000e-01 : f32
    %21 = vector.broadcast %cst_21 : f32 to vector<1x16xf32>
    %22 = arith.cmpf ogt, %5, %21 : vector<1x16xf32>
    %cst_22 = arith.constant -1.000000e+09 : f32
    %23 = vector.shape_cast %22 : vector<1x16xi1> to vector<1x16xi1>
    %24 = vector.broadcast %23 : vector<1x16xi1> to vector<16x16xi1>
    %25 = vector.broadcast %cst_22 : f32 to vector<16x16xf32>
    %26 = arith.select %24, %25, %20 : vector<16x16xi1>, vector<16x16xf32>
    %cst_23 = arith.constant dense<0xFF800000> : vector<16xf32>
    %27 = vector.multi_reduction <maximumf>, %26, %cst_23 [1] : vector<16x16xf32> to vector<16xf32>
    %cst_24 = arith.constant 0xFF800000 : f32
    %28 = vector.broadcast %cst_24 : f32 to vector<16xf32>
    %29 = arith.maximumf %28, %27 : vector<16xf32>
    %30 = vector.shape_cast %29 : vector<16xf32> to vector<16x1xf32>
    %31 = vector.broadcast %30 : vector<16x1xf32> to vector<16x16xf32>
    %32 = arith.subf %26, %31 : vector<16x16xf32>
    %33 = math.exp %32 : vector<16x16xf32>
    %cst_25 = arith.constant dense<0.000000e+00> : vector<16xf32>
    %34 = vector.multi_reduction <add>, %33, %cst_25 [1] : vector<16x16xf32> to vector<16xf32>
    %35 = vector.shape_cast %34 : vector<16xf32> to vector<16x1xf32>
    %36 = vector.broadcast %35 : vector<16x1xf32> to vector<16x16xf32>
    %37 = arith.divf %33, %36 : vector<16x16xf32>
    %cst_26 = arith.constant dense<0.000000e+00> : vector<16x8xf32>
    %38 = tpu.matmul %37, %17, %cst_26 {dimension_numbers = #tpu.dot_dimension_numbers<[1], [0], [0], [1], [0, 0, 1, 1], [], []>} : vector<16x16xf32>, vector<16x8xf32>, vector<16x8xf32> -> vector<16x8xf32>
    %39 = vector.extract_strided_slice %14 {offsets = [0, 8], sizes = [16, 8], strides = [1, 1]} : vector<16x96xf32> to vector<16x8xf32>
    %40 = vector.extract_strided_slice %14 {offsets = [0, 40], sizes = [16, 8], strides = [1, 1]} : vector<16x96xf32> to vector<16x8xf32>
    %41 = vector.extract_strided_slice %14 {offsets = [0, 72], sizes = [16, 8], strides = [1, 1]} : vector<16x96xf32> to vector<16x8xf32>
    %cst_27 = arith.constant dense<0.000000e+00> : vector<16x16xf32>
    %42 = tpu.matmul %39, %40, %cst_27 {dimension_numbers = #tpu.dot_dimension_numbers<[1], [1], [0], [0], [0, 0, 1, 0], [], []>} : vector<16x8xf32>, vector<16x8xf32>, vector<16x16xf32> -> vector<16x16xf32>
    %cst_28 = arith.constant 0.353553385 : f32
    %43 = vector.broadcast %cst_28 : f32 to vector<16x16xf32>
    %44 = arith.mulf %42, %43 : vector<16x16xf32>
    %cst_29 = arith.constant 5.000000e-01 : f32
    %45 = vector.broadcast %cst_29 : f32 to vector<1x16xf32>
    %46 = arith.cmpf ogt, %5, %45 : vector<1x16xf32>
    %cst_30 = arith.constant -1.000000e+09 : f32
    %47 = vector.shape_cast %46 : vector<1x16xi1> to vector<1x16xi1>
    %48 = vector.broadcast %47 : vector<1x16xi1> to vector<16x16xi1>
    %49 = vector.broadcast %cst_30 : f32 to vector<16x16xf32>
    %50 = arith.select %48, %49, %44 : vector<16x16xi1>, vector<16x16xf32>
    %cst_31 = arith.constant dense<0xFF800000> : vector<16xf32>
    %51 = vector.multi_reduction <maximumf>, %50, %cst_31 [1] : vector<16x16xf32> to vector<16xf32>
    %cst_32 = arith.constant 0xFF800000 : f32
    %52 = vector.broadcast %cst_32 : f32 to vector<16xf32>
    %53 = arith.maximumf %52, %51 : vector<16xf32>
    %54 = vector.shape_cast %53 : vector<16xf32> to vector<16x1xf32>
    %55 = vector.broadcast %54 : vector<16x1xf32> to vector<16x16xf32>
    %56 = arith.subf %50, %55 : vector<16x16xf32>
    %57 = math.exp %56 : vector<16x16xf32>
    %cst_33 = arith.constant dense<0.000000e+00> : vector<16xf32>
    %58 = vector.multi_reduction <add>, %57, %cst_33 [1] : vector<16x16xf32> to vector<16xf32>
    %59 = vector.shape_cast %58 : vector<16xf32> to vector<16x1xf32>
    %60 = vector.broadcast %59 : vector<16x1xf32> to vector<16x16xf32>
    %61 = arith.divf %57, %60 : vector<16x16xf32>
    %cst_34 = arith.constant dense<0.000000e+00> : vector<16x8xf32>
    %62 = tpu.matmul %61, %41, %cst_34 {dimension_numbers = #tpu.dot_dimension_numbers<[1], [0], [0], [1], [0, 0, 1, 1], [], []>} : vector<16x16xf32>, vector<16x8xf32>, vector<16x8xf32> -> vector<16x8xf32>
    %63 = vector.extract_strided_slice %14 {offsets = [0, 16], sizes = [16, 8], strides = [1, 1]} : vector<16x96xf32> to vector<16x8xf32>
    %64 = vector.extract_strided_slice %14 {offsets = [0, 48], sizes = [16, 8], strides = [1, 1]} : vector<16x96xf32> to vector<16x8xf32>
    %65 = vector.extract_strided_slice %14 {offsets = [0, 80], sizes = [16, 8], strides = [1, 1]} : vector<16x96xf32> to vector<16x8xf32>
    %cst_35 = arith.constant dense<0.000000e+00> : vector<16x16xf32>
    %66 = tpu.matmul %63, %64, %cst_35 {dimension_numbers = #tpu.dot_dimension_numbers<[1], [1], [0], [0], [0, 0, 1, 0], [], []>} : vector<16x8xf32>, vector<16x8xf32>, vector<16x16xf32> -> vector<16x16xf32>
    %cst_36 = arith.constant 0.353553385 : f32
    %67 = vector.broadcast %cst_36 : f32 to vector<16x16xf32>
    %68 = arith.mulf %66, %67 : vector<16x16xf32>
    %cst_37 = arith.constant 5.000000e-01 : f32
    %69 = vector.broadcast %cst_37 : f32 to vector<1x16xf32>
    %70 = arith.cmpf ogt, %5, %69 : vector<1x16xf32>
    %cst_38 = arith.constant -1.000000e+09 : f32
    %71 = vector.shape_cast %70 : vector<1x16xi1> to vector<1x16xi1>
    %72 = vector.broadcast %71 : vector<1x16xi1> to vector<16x16xi1>
    %73 = vector.broadcast %cst_38 : f32 to vector<16x16xf32>
    %74 = arith.select %72, %73, %68 : vector<16x16xi1>, vector<16x16xf32>
    %cst_39 = arith.constant dense<0xFF800000> : vector<16xf32>
    %75 = vector.multi_reduction <maximumf>, %74, %cst_39 [1] : vector<16x16xf32> to vector<16xf32>
    %cst_40 = arith.constant 0xFF800000 : f32
    %76 = vector.broadcast %cst_40 : f32 to vector<16xf32>
    %77 = arith.maximumf %76, %75 : vector<16xf32>
    %78 = vector.shape_cast %77 : vector<16xf32> to vector<16x1xf32>
    %79 = vector.broadcast %78 : vector<16x1xf32> to vector<16x16xf32>
    %80 = arith.subf %74, %79 : vector<16x16xf32>
    %81 = math.exp %80 : vector<16x16xf32>
    %cst_41 = arith.constant dense<0.000000e+00> : vector<16xf32>
    %82 = vector.multi_reduction <add>, %81, %cst_41 [1] : vector<16x16xf32> to vector<16xf32>
    %83 = vector.shape_cast %82 : vector<16xf32> to vector<16x1xf32>
    %84 = vector.broadcast %83 : vector<16x1xf32> to vector<16x16xf32>
    %85 = arith.divf %81, %84 : vector<16x16xf32>
    %cst_42 = arith.constant dense<0.000000e+00> : vector<16x8xf32>
    %86 = tpu.matmul %85, %65, %cst_42 {dimension_numbers = #tpu.dot_dimension_numbers<[1], [0], [0], [1], [0, 0, 1, 1], [], []>} : vector<16x16xf32>, vector<16x8xf32>, vector<16x8xf32> -> vector<16x8xf32>
    %87 = vector.extract_strided_slice %14 {offsets = [0, 24], sizes = [16, 8], strides = [1, 1]} : vector<16x96xf32> to vector<16x8xf32>
    %88 = vector.extract_strided_slice %14 {offsets = [0, 56], sizes = [16, 8], strides = [1, 1]} : vector<16x96xf32> to vector<16x8xf32>
    %89 = vector.extract_strided_slice %14 {offsets = [0, 88], sizes = [16, 8], strides = [1, 1]} : vector<16x96xf32> to vector<16x8xf32>
    %cst_43 = arith.constant dense<0.000000e+00> : vector<16x16xf32>
    %90 = tpu.matmul %87, %88, %cst_43 {dimension_numbers = #tpu.dot_dimension_numbers<[1], [1], [0], [0], [0, 0, 1, 0], [], []>} : vector<16x8xf32>, vector<16x8xf32>, vector<16x16xf32> -> vector<16x16xf32>
    %cst_44 = arith.constant 0.353553385 : f32
    %91 = vector.broadcast %cst_44 : f32 to vector<16x16xf32>
    %92 = arith.mulf %90, %91 : vector<16x16xf32>
    %cst_45 = arith.constant 5.000000e-01 : f32
    %93 = vector.broadcast %cst_45 : f32 to vector<1x16xf32>
    %94 = arith.cmpf ogt, %5, %93 : vector<1x16xf32>
    %cst_46 = arith.constant -1.000000e+09 : f32
    %95 = vector.shape_cast %94 : vector<1x16xi1> to vector<1x16xi1>
    %96 = vector.broadcast %95 : vector<1x16xi1> to vector<16x16xi1>
    %97 = vector.broadcast %cst_46 : f32 to vector<16x16xf32>
    %98 = arith.select %96, %97, %92 : vector<16x16xi1>, vector<16x16xf32>
    %cst_47 = arith.constant dense<0xFF800000> : vector<16xf32>
    %99 = vector.multi_reduction <maximumf>, %98, %cst_47 [1] : vector<16x16xf32> to vector<16xf32>
    %cst_48 = arith.constant 0xFF800000 : f32
    %100 = vector.broadcast %cst_48 : f32 to vector<16xf32>
    %101 = arith.maximumf %100, %99 : vector<16xf32>
    %102 = vector.shape_cast %101 : vector<16xf32> to vector<16x1xf32>
    %103 = vector.broadcast %102 : vector<16x1xf32> to vector<16x16xf32>
    %104 = arith.subf %98, %103 : vector<16x16xf32>
    %105 = math.exp %104 : vector<16x16xf32>
    %cst_49 = arith.constant dense<0.000000e+00> : vector<16xf32>
    %106 = vector.multi_reduction <add>, %105, %cst_49 [1] : vector<16x16xf32> to vector<16xf32>
    %107 = vector.shape_cast %106 : vector<16xf32> to vector<16x1xf32>
    %108 = vector.broadcast %107 : vector<16x1xf32> to vector<16x16xf32>
    %109 = arith.divf %105, %108 : vector<16x16xf32>
    %cst_50 = arith.constant dense<0.000000e+00> : vector<16x8xf32>
    %110 = tpu.matmul %109, %89, %cst_50 {dimension_numbers = #tpu.dot_dimension_numbers<[1], [0], [0], [1], [0, 0, 1, 1], [], []>} : vector<16x16xf32>, vector<16x8xf32>, vector<16x8xf32> -> vector<16x8xf32>
    %111 = tpu.concatenate %38, %62, %86, %110 in 1 : vector<16x8xf32>, vector<16x8xf32>, vector<16x8xf32>, vector<16x8xf32> -> vector<16x32xf32>
    %cst_51 = arith.constant dense<0.000000e+00> : vector<16x32xf32>
    %112 = tpu.matmul %111, %10, %cst_51 {dimension_numbers = #tpu.dot_dimension_numbers<[1], [0], [0], [1], [0, 0, 1, 1], [], []>} : vector<16x32xf32>, vector<32x32xf32>, vector<16x32xf32> -> vector<16x32xf32>
    %113 = vector.broadcast %11 : vector<1x32xf32> to vector<16x32xf32>
    %114 = arith.addf %112, %113 : vector<16x32xf32>
    %115 = arith.addf %1, %114 : vector<16x32xf32>
    %c0_52 = arith.constant 0 : index
    %c0_53 = arith.constant 0 : index
    %116 = vector.load %arg9[%c0_52, %c0_53] : memref<1x32xf32, #tpu.memory_space<vmem>>, vector<1x32xf32>
    %c0_54 = arith.constant 0 : index
    %c0_55 = arith.constant 0 : index
    %117 = vector.load %arg10[%c0_54, %c0_55] : memref<1x32xf32, #tpu.memory_space<vmem>>, vector<1x32xf32>
    %cst_56 = arith.constant dense<0.000000e+00> : vector<16xf32>
    %118 = vector.multi_reduction <add>, %115, %cst_56 [1] : vector<16x32xf32> to vector<16xf32>
    %119 = vector.shape_cast %118 : vector<16xf32> to vector<16x1xf32>
    %cst_57 = arith.constant 3.200000e+01 : f32
    %120 = vector.broadcast %cst_57 : f32 to vector<16x1xf32>
    %121 = arith.divf %119, %120 : vector<16x1xf32>
    %122 = vector.broadcast %121 : vector<16x1xf32> to vector<16x32xf32>
    %123 = arith.subf %115, %122 : vector<16x32xf32>
    %124 = arith.mulf %123, %123 : vector<16x32xf32>
    %cst_58 = arith.constant dense<0.000000e+00> : vector<16xf32>
    %125 = vector.multi_reduction <add>, %124, %cst_58 [1] : vector<16x32xf32> to vector<16xf32>
    %126 = vector.shape_cast %125 : vector<16xf32> to vector<16x1xf32>
    %cst_59 = arith.constant 0.0322580636 : f32
    %127 = vector.broadcast %cst_59 : f32 to vector<16x1xf32>
    %128 = arith.mulf %126, %127 : vector<16x1xf32>
    %129 = vector.broadcast %121 : vector<16x1xf32> to vector<16x32xf32>
    %130 = arith.subf %115, %129 : vector<16x32xf32>
    %131 = vector.broadcast %116 : vector<1x32xf32> to vector<16x32xf32>
    %132 = arith.mulf %131, %130 : vector<16x32xf32>
    %133 = math.sqrt %128 : vector<16x1xf32>
    %cst_60 = arith.constant 9.99999997E-7 : f32
    %134 = vector.broadcast %cst_60 : f32 to vector<16x1xf32>
    %135 = arith.addf %133, %134 : vector<16x1xf32>
    %136 = vector.broadcast %135 : vector<16x1xf32> to vector<16x32xf32>
    %137 = arith.divf %132, %136 : vector<16x32xf32>
    %138 = vector.broadcast %117 : vector<1x32xf32> to vector<16x32xf32>
    %139 = arith.addf %137, %138 : vector<16x32xf32>
    %c0_61 = arith.constant 0 : index
    %c0_62 = arith.constant 0 : index
    %140 = vector.load %arg11[%c0_61, %c0_62] : memref<32x32xf32, #tpu.memory_space<vmem>>, vector<32x32xf32>
    %c0_63 = arith.constant 0 : index
    %c0_64 = arith.constant 0 : index
    %141 = vector.load %arg12[%c0_63, %c0_64] : memref<1x32xf32, #tpu.memory_space<vmem>>, vector<1x32xf32>
    %c0_65 = arith.constant 0 : index
    %c0_66 = arith.constant 0 : index
    %142 = vector.load %arg13[%c0_65, %c0_66] : memref<32x64xf32, #tpu.memory_space<vmem>>, vector<32x64xf32>
    %c0_67 = arith.constant 0 : index
    %c0_68 = arith.constant 0 : index
    %143 = vector.load %arg14[%c0_67, %c0_68] : memref<1x64xf32, #tpu.memory_space<vmem>>, vector<1x64xf32>
    %c0_69 = arith.constant 0 : index
    %c0_70 = arith.constant 0 : index
    %144 = vector.load %arg15[%c0_69, %c0_70] : memref<32x32xf32, #tpu.memory_space<vmem>>, vector<32x32xf32>
    %c0_71 = arith.constant 0 : index
    %c0_72 = arith.constant 0 : index
    %145 = vector.load %arg16[%c0_71, %c0_72] : memref<1x32xf32, #tpu.memory_space<vmem>>, vector<1x32xf32>
    %cst_73 = arith.constant dense<0.000000e+00> : vector<16x32xf32>
    %146 = tpu.matmul %139, %140, %cst_73 {dimension_numbers = #tpu.dot_dimension_numbers<[1], [0], [0], [1], [0, 0, 1, 1], [], []>} : vector<16x32xf32>, vector<32x32xf32>, vector<16x32xf32> -> vector<16x32xf32>
    %147 = vector.broadcast %141 : vector<1x32xf32> to vector<16x32xf32>
    %148 = arith.addf %146, %147 : vector<16x32xf32>
    %cst_74 = arith.constant dense<0.000000e+00> : vector<8x64xf32>
    %149 = tpu.matmul %3, %142, %cst_74 {dimension_numbers = #tpu.dot_dimension_numbers<[1], [0], [0], [1], [0, 0, 1, 1], [], []>} : vector<8x32xf32>, vector<32x64xf32>, vector<8x64xf32> -> vector<8x64xf32>
    %150 = vector.broadcast %143 : vector<1x64xf32> to vector<8x64xf32>
    %151 = arith.addf %149, %150 : vector<8x64xf32>
    %152 = vector.extract_strided_slice %148 {offsets = [0, 0], sizes = [16, 8], strides = [1, 1]} : vector<16x32xf32> to vector<16x8xf32>
    %153 = vector.extract_strided_slice %151 {offsets = [0, 0], sizes = [8, 8], strides = [1, 1]} : vector<8x64xf32> to vector<8x8xf32>
    %154 = vector.extract_strided_slice %151 {offsets = [0, 32], sizes = [8, 8], strides = [1, 1]} : vector<8x64xf32> to vector<8x8xf32>
    %cst_75 = arith.constant dense<0.000000e+00> : vector<16x8xf32>
    %155 = tpu.matmul %152, %153, %cst_75 {dimension_numbers = #tpu.dot_dimension_numbers<[1], [1], [0], [0], [0, 0, 1, 0], [], []>} : vector<16x8xf32>, vector<8x8xf32>, vector<16x8xf32> -> vector<16x8xf32>
    %cst_76 = arith.constant 0.353553385 : f32
    %156 = vector.broadcast %cst_76 : f32 to vector<16x8xf32>
    %157 = arith.mulf %155, %156 : vector<16x8xf32>
    %cst_77 = arith.constant 5.000000e-01 : f32
    %158 = vector.broadcast %cst_77 : f32 to vector<1x8xf32>
    %159 = arith.cmpf ogt, %7, %158 : vector<1x8xf32>
    %cst_78 = arith.constant -1.000000e+09 : f32
    %160 = vector.shape_cast %159 : vector<1x8xi1> to vector<1x8xi1>
    %161 = vector.broadcast %160 : vector<1x8xi1> to vector<16x8xi1>
    %162 = vector.broadcast %cst_78 : f32 to vector<16x8xf32>
    %163 = arith.select %161, %162, %157 : vector<16x8xi1>, vector<16x8xf32>
    %cst_79 = arith.constant dense<0xFF800000> : vector<16xf32>
    %164 = vector.multi_reduction <maximumf>, %163, %cst_79 [1] : vector<16x8xf32> to vector<16xf32>
    %cst_80 = arith.constant 0xFF800000 : f32
    %165 = vector.broadcast %cst_80 : f32 to vector<16xf32>
    %166 = arith.maximumf %165, %164 : vector<16xf32>
    %167 = vector.shape_cast %166 : vector<16xf32> to vector<16x1xf32>
    %168 = vector.broadcast %167 : vector<16x1xf32> to vector<16x8xf32>
    %169 = arith.subf %163, %168 : vector<16x8xf32>
    %170 = math.exp %169 : vector<16x8xf32>
    %cst_81 = arith.constant dense<0.000000e+00> : vector<16xf32>
    %171 = vector.multi_reduction <add>, %170, %cst_81 [1] : vector<16x8xf32> to vector<16xf32>
    %172 = vector.shape_cast %171 : vector<16xf32> to vector<16x1xf32>
    %173 = vector.broadcast %172 : vector<16x1xf32> to vector<16x8xf32>
    %174 = arith.divf %170, %173 : vector<16x8xf32>
    %cst_82 = arith.constant dense<0.000000e+00> : vector<16x8xf32>
    %175 = tpu.matmul %174, %154, %cst_82 {dimension_numbers = #tpu.dot_dimension_numbers<[1], [0], [0], [1], [0, 0, 1, 1], [], []>} : vector<16x8xf32>, vector<8x8xf32>, vector<16x8xf32> -> vector<16x8xf32>
    %176 = vector.extract_strided_slice %148 {offsets = [0, 8], sizes = [16, 8], strides = [1, 1]} : vector<16x32xf32> to vector<16x8xf32>
    %177 = vector.extract_strided_slice %151 {offsets = [0, 8], sizes = [8, 8], strides = [1, 1]} : vector<8x64xf32> to vector<8x8xf32>
    %178 = vector.extract_strided_slice %151 {offsets = [0, 40], sizes = [8, 8], strides = [1, 1]} : vector<8x64xf32> to vector<8x8xf32>
    %cst_83 = arith.constant dense<0.000000e+00> : vector<16x8xf32>
    %179 = tpu.matmul %176, %177, %cst_83 {dimension_numbers = #tpu.dot_dimension_numbers<[1], [1], [0], [0], [0, 0, 1, 0], [], []>} : vector<16x8xf32>, vector<8x8xf32>, vector<16x8xf32> -> vector<16x8xf32>
    %cst_84 = arith.constant 0.353553385 : f32
    %180 = vector.broadcast %cst_84 : f32 to vector<16x8xf32>
    %181 = arith.mulf %179, %180 : vector<16x8xf32>
    %cst_85 = arith.constant 5.000000e-01 : f32
    %182 = vector.broadcast %cst_85 : f32 to vector<1x8xf32>
    %183 = arith.cmpf ogt, %7, %182 : vector<1x8xf32>
    %cst_86 = arith.constant -1.000000e+09 : f32
    %184 = vector.shape_cast %183 : vector<1x8xi1> to vector<1x8xi1>
    %185 = vector.broadcast %184 : vector<1x8xi1> to vector<16x8xi1>
    %186 = vector.broadcast %cst_86 : f32 to vector<16x8xf32>
    %187 = arith.select %185, %186, %181 : vector<16x8xi1>, vector<16x8xf32>
    %cst_87 = arith.constant dense<0xFF800000> : vector<16xf32>
    %188 = vector.multi_reduction <maximumf>, %187, %cst_87 [1] : vector<16x8xf32> to vector<16xf32>
    %cst_88 = arith.constant 0xFF800000 : f32
    %189 = vector.broadcast %cst_88 : f32 to vector<16xf32>
    %190 = arith.maximumf %189, %188 : vector<16xf32>
    %191 = vector.shape_cast %190 : vector<16xf32> to vector<16x1xf32>
    %192 = vector.broadcast %191 : vector<16x1xf32> to vector<16x8xf32>
    %193 = arith.subf %187, %192 : vector<16x8xf32>
    %194 = math.exp %193 : vector<16x8xf32>
    %cst_89 = arith.constant dense<0.000000e+00> : vector<16xf32>
    %195 = vector.multi_reduction <add>, %194, %cst_89 [1] : vector<16x8xf32> to vector<16xf32>
    %196 = vector.shape_cast %195 : vector<16xf32> to vector<16x1xf32>
    %197 = vector.broadcast %196 : vector<16x1xf32> to vector<16x8xf32>
    %198 = arith.divf %194, %197 : vector<16x8xf32>
    %cst_90 = arith.constant dense<0.000000e+00> : vector<16x8xf32>
    %199 = tpu.matmul %198, %178, %cst_90 {dimension_numbers = #tpu.dot_dimension_numbers<[1], [0], [0], [1], [0, 0, 1, 1], [], []>} : vector<16x8xf32>, vector<8x8xf32>, vector<16x8xf32> -> vector<16x8xf32>
    %200 = vector.extract_strided_slice %148 {offsets = [0, 16], sizes = [16, 8], strides = [1, 1]} : vector<16x32xf32> to vector<16x8xf32>
    %201 = vector.extract_strided_slice %151 {offsets = [0, 16], sizes = [8, 8], strides = [1, 1]} : vector<8x64xf32> to vector<8x8xf32>
    %202 = vector.extract_strided_slice %151 {offsets = [0, 48], sizes = [8, 8], strides = [1, 1]} : vector<8x64xf32> to vector<8x8xf32>
    %cst_91 = arith.constant dense<0.000000e+00> : vector<16x8xf32>
    %203 = tpu.matmul %200, %201, %cst_91 {dimension_numbers = #tpu.dot_dimension_numbers<[1], [1], [0], [0], [0, 0, 1, 0], [], []>} : vector<16x8xf32>, vector<8x8xf32>, vector<16x8xf32> -> vector<16x8xf32>
    %cst_92 = arith.constant 0.353553385 : f32
    %204 = vector.broadcast %cst_92 : f32 to vector<16x8xf32>
    %205 = arith.mulf %203, %204 : vector<16x8xf32>
    %cst_93 = arith.constant 5.000000e-01 : f32
    %206 = vector.broadcast %cst_93 : f32 to vector<1x8xf32>
    %207 = arith.cmpf ogt, %7, %206 : vector<1x8xf32>
    %cst_94 = arith.constant -1.000000e+09 : f32
    %208 = vector.shape_cast %207 : vector<1x8xi1> to vector<1x8xi1>
    %209 = vector.broadcast %208 : vector<1x8xi1> to vector<16x8xi1>
    %210 = vector.broadcast %cst_94 : f32 to vector<16x8xf32>
    %211 = arith.select %209, %210, %205 : vector<16x8xi1>, vector<16x8xf32>
    %cst_95 = arith.constant dense<0xFF800000> : vector<16xf32>
    %212 = vector.multi_reduction <maximumf>, %211, %cst_95 [1] : vector<16x8xf32> to vector<16xf32>
    %cst_96 = arith.constant 0xFF800000 : f32
    %213 = vector.broadcast %cst_96 : f32 to vector<16xf32>
    %214 = arith.maximumf %213, %212 : vector<16xf32>
    %215 = vector.shape_cast %214 : vector<16xf32> to vector<16x1xf32>
    %216 = vector.broadcast %215 : vector<16x1xf32> to vector<16x8xf32>
    %217 = arith.subf %211, %216 : vector<16x8xf32>
    %218 = math.exp %217 : vector<16x8xf32>
    %cst_97 = arith.constant dense<0.000000e+00> : vector<16xf32>
    %219 = vector.multi_reduction <add>, %218, %cst_97 [1] : vector<16x8xf32> to vector<16xf32>
    %220 = vector.shape_cast %219 : vector<16xf32> to vector<16x1xf32>
    %221 = vector.broadcast %220 : vector<16x1xf32> to vector<16x8xf32>
    %222 = arith.divf %218, %221 : vector<16x8xf32>
    %cst_98 = arith.constant dense<0.000000e+00> : vector<16x8xf32>
    %223 = tpu.matmul %222, %202, %cst_98 {dimension_numbers = #tpu.dot_dimension_numbers<[1], [0], [0], [1], [0, 0, 1, 1], [], []>} : vector<16x8xf32>, vector<8x8xf32>, vector<16x8xf32> -> vector<16x8xf32>
    %224 = vector.extract_strided_slice %148 {offsets = [0, 24], sizes = [16, 8], strides = [1, 1]} : vector<16x32xf32> to vector<16x8xf32>
    %225 = vector.extract_strided_slice %151 {offsets = [0, 24], sizes = [8, 8], strides = [1, 1]} : vector<8x64xf32> to vector<8x8xf32>
    %226 = vector.extract_strided_slice %151 {offsets = [0, 56], sizes = [8, 8], strides = [1, 1]} : vector<8x64xf32> to vector<8x8xf32>
    %cst_99 = arith.constant dense<0.000000e+00> : vector<16x8xf32>
    %227 = tpu.matmul %224, %225, %cst_99 {dimension_numbers = #tpu.dot_dimension_numbers<[1], [1], [0], [0], [0, 0, 1, 0], [], []>} : vector<16x8xf32>, vector<8x8xf32>, vector<16x8xf32> -> vector<16x8xf32>
    %cst_100 = arith.constant 0.353553385 : f32
    %228 = vector.broadcast %cst_100 : f32 to vector<16x8xf32>
    %229 = arith.mulf %227, %228 : vector<16x8xf32>
    %cst_101 = arith.constant 5.000000e-01 : f32
    %230 = vector.broadcast %cst_101 : f32 to vector<1x8xf32>
    %231 = arith.cmpf ogt, %7, %230 : vector<1x8xf32>
    %cst_102 = arith.constant -1.000000e+09 : f32
    %232 = vector.shape_cast %231 : vector<1x8xi1> to vector<1x8xi1>
    %233 = vector.broadcast %232 : vector<1x8xi1> to vector<16x8xi1>
    %234 = vector.broadcast %cst_102 : f32 to vector<16x8xf32>
    %235 = arith.select %233, %234, %229 : vector<16x8xi1>, vector<16x8xf32>
    %cst_103 = arith.constant dense<0xFF800000> : vector<16xf32>
    %236 = vector.multi_reduction <maximumf>, %235, %cst_103 [1] : vector<16x8xf32> to vector<16xf32>
    %cst_104 = arith.constant 0xFF800000 : f32
    %237 = vector.broadcast %cst_104 : f32 to vector<16xf32>
    %238 = arith.maximumf %237, %236 : vector<16xf32>
    %239 = vector.shape_cast %238 : vector<16xf32> to vector<16x1xf32>
    %240 = vector.broadcast %239 : vector<16x1xf32> to vector<16x8xf32>
    %241 = arith.subf %235, %240 : vector<16x8xf32>
    %242 = math.exp %241 : vector<16x8xf32>
    %cst_105 = arith.constant dense<0.000000e+00> : vector<16xf32>
    %243 = vector.multi_reduction <add>, %242, %cst_105 [1] : vector<16x8xf32> to vector<16xf32>
    %244 = vector.shape_cast %243 : vector<16xf32> to vector<16x1xf32>
    %245 = vector.broadcast %244 : vector<16x1xf32> to vector<16x8xf32>
    %246 = arith.divf %242, %245 : vector<16x8xf32>
    %cst_106 = arith.constant dense<0.000000e+00> : vector<16x8xf32>
    %247 = tpu.matmul %246, %226, %cst_106 {dimension_numbers = #tpu.dot_dimension_numbers<[1], [0], [0], [1], [0, 0, 1, 1], [], []>} : vector<16x8xf32>, vector<8x8xf32>, vector<16x8xf32> -> vector<16x8xf32>
    %248 = tpu.concatenate %175, %199, %223, %247 in 1 : vector<16x8xf32>, vector<16x8xf32>, vector<16x8xf32>, vector<16x8xf32> -> vector<16x32xf32>
    %cst_107 = arith.constant dense<0.000000e+00> : vector<16x32xf32>
    %249 = tpu.matmul %248, %144, %cst_107 {dimension_numbers = #tpu.dot_dimension_numbers<[1], [0], [0], [1], [0, 0, 1, 1], [], []>} : vector<16x32xf32>, vector<32x32xf32>, vector<16x32xf32> -> vector<16x32xf32>
    %250 = vector.broadcast %145 : vector<1x32xf32> to vector<16x32xf32>
    %251 = arith.addf %249, %250 : vector<16x32xf32>
    %252 = arith.addf %139, %251 : vector<16x32xf32>
    %c0_108 = arith.constant 0 : index
    %c0_109 = arith.constant 0 : index
    %253 = vector.load %arg17[%c0_108, %c0_109] : memref<1x32xf32, #tpu.memory_space<vmem>>, vector<1x32xf32>
    %c0_110 = arith.constant 0 : index
    %c0_111 = arith.constant 0 : index
    %254 = vector.load %arg18[%c0_110, %c0_111] : memref<1x32xf32, #tpu.memory_space<vmem>>, vector<1x32xf32>
    %cst_112 = arith.constant dense<0.000000e+00> : vector<16xf32>
    %255 = vector.multi_reduction <add>, %252, %cst_112 [1] : vector<16x32xf32> to vector<16xf32>
    %256 = vector.shape_cast %255 : vector<16xf32> to vector<16x1xf32>
    %cst_113 = arith.constant 3.200000e+01 : f32
    %257 = vector.broadcast %cst_113 : f32 to vector<16x1xf32>
    %258 = arith.divf %256, %257 : vector<16x1xf32>
    %259 = vector.broadcast %258 : vector<16x1xf32> to vector<16x32xf32>
    %260 = arith.subf %252, %259 : vector<16x32xf32>
    %261 = arith.mulf %260, %260 : vector<16x32xf32>
    %cst_114 = arith.constant dense<0.000000e+00> : vector<16xf32>
    %262 = vector.multi_reduction <add>, %261, %cst_114 [1] : vector<16x32xf32> to vector<16xf32>
    %263 = vector.shape_cast %262 : vector<16xf32> to vector<16x1xf32>
    %cst_115 = arith.constant 0.0322580636 : f32
    %264 = vector.broadcast %cst_115 : f32 to vector<16x1xf32>
    %265 = arith.mulf %263, %264 : vector<16x1xf32>
    %266 = vector.broadcast %258 : vector<16x1xf32> to vector<16x32xf32>
    %267 = arith.subf %252, %266 : vector<16x32xf32>
    %268 = vector.broadcast %253 : vector<1x32xf32> to vector<16x32xf32>
    %269 = arith.mulf %268, %267 : vector<16x32xf32>
    %270 = math.sqrt %265 : vector<16x1xf32>
    %cst_116 = arith.constant 9.99999997E-7 : f32
    %271 = vector.broadcast %cst_116 : f32 to vector<16x1xf32>
    %272 = arith.addf %270, %271 : vector<16x1xf32>
    %273 = vector.broadcast %272 : vector<16x1xf32> to vector<16x32xf32>
    %274 = arith.divf %269, %273 : vector<16x32xf32>
    %275 = vector.broadcast %254 : vector<1x32xf32> to vector<16x32xf32>
    %276 = arith.addf %274, %275 : vector<16x32xf32>
    %c0_117 = arith.constant 0 : index
    %c0_118 = arith.constant 0 : index
    %277 = vector.load %arg19[%c0_117, %c0_118] : memref<32x64xf32, #tpu.memory_space<vmem>>, vector<32x64xf32>
    %c0_119 = arith.constant 0 : index
    %c0_120 = arith.constant 0 : index
    %278 = vector.load %arg20[%c0_119, %c0_120] : memref<1x64xf32, #tpu.memory_space<vmem>>, vector<1x64xf32>
    %c0_121 = arith.constant 0 : index
    %c0_122 = arith.constant 0 : index
    %279 = vector.load %arg21[%c0_121, %c0_122] : memref<64x32xf32, #tpu.memory_space<vmem>>, vector<64x32xf32>
    %c0_123 = arith.constant 0 : index
    %c0_124 = arith.constant 0 : index
    %280 = vector.load %arg22[%c0_123, %c0_124] : memref<1x32xf32, #tpu.memory_space<vmem>>, vector<1x32xf32>
    %cst_125 = arith.constant dense<0.000000e+00> : vector<16x64xf32>
    %281 = tpu.matmul %276, %277, %cst_125 {dimension_numbers = #tpu.dot_dimension_numbers<[1], [0], [0], [1], [0, 0, 1, 1], [], []>} : vector<16x32xf32>, vector<32x64xf32>, vector<16x64xf32> -> vector<16x64xf32>
    %282 = vector.broadcast %278 : vector<1x64xf32> to vector<16x64xf32>
    %283 = arith.addf %281, %282 : vector<16x64xf32>
    %cst_126 = arith.constant 0.000000e+00 : f32
    %284 = vector.broadcast %cst_126 : f32 to vector<16x64xf32>
    %285 = arith.maximumf %283, %284 : vector<16x64xf32>
    %cst_127 = arith.constant dense<0.000000e+00> : vector<16x32xf32>
    %286 = tpu.matmul %285, %279, %cst_127 {dimension_numbers = #tpu.dot_dimension_numbers<[1], [0], [0], [1], [0, 0, 1, 1], [], []>} : vector<16x64xf32>, vector<64x32xf32>, vector<16x32xf32> -> vector<16x32xf32>
    %287 = vector.broadcast %280 : vector<1x32xf32> to vector<16x32xf32>
    %288 = arith.addf %286, %287 : vector<16x32xf32>
    %289 = arith.addf %276, %288 : vector<16x32xf32>
    %c0_128 = arith.constant 0 : index
    %c0_129 = arith.constant 0 : index
    %290 = vector.load %arg23[%c0_128, %c0_129] : memref<1x32xf32, #tpu.memory_space<vmem>>, vector<1x32xf32>
    %c0_130 = arith.constant 0 : index
    %c0_131 = arith.constant 0 : index
    %291 = vector.load %arg24[%c0_130, %c0_131] : memref<1x32xf32, #tpu.memory_space<vmem>>, vector<1x32xf32>
    %cst_132 = arith.constant dense<0.000000e+00> : vector<16xf32>
    %292 = vector.multi_reduction <add>, %289, %cst_132 [1] : vector<16x32xf32> to vector<16xf32>
    %293 = vector.shape_cast %292 : vector<16xf32> to vector<16x1xf32>
    %cst_133 = arith.constant 3.200000e+01 : f32
    %294 = vector.broadcast %cst_133 : f32 to vector<16x1xf32>
    %295 = arith.divf %293, %294 : vector<16x1xf32>
    %296 = vector.broadcast %295 : vector<16x1xf32> to vector<16x32xf32>
    %297 = arith.subf %289, %296 : vector<16x32xf32>
    %298 = arith.mulf %297, %297 : vector<16x32xf32>
    %cst_134 = arith.constant dense<0.000000e+00> : vector<16xf32>
    %299 = vector.multi_reduction <add>, %298, %cst_134 [1] : vector<16x32xf32> to vector<16xf32>
    %300 = vector.shape_cast %299 : vector<16xf32> to vector<16x1xf32>
    %cst_135 = arith.constant 0.0322580636 : f32
    %301 = vector.broadcast %cst_135 : f32 to vector<16x1xf32>
    %302 = arith.mulf %300, %301 : vector<16x1xf32>
    %303 = vector.broadcast %295 : vector<16x1xf32> to vector<16x32xf32>
    %304 = arith.subf %289, %303 : vector<16x32xf32>
    %305 = vector.broadcast %290 : vector<1x32xf32> to vector<16x32xf32>
    %306 = arith.mulf %305, %304 : vector<16x32xf32>
    %307 = math.sqrt %302 : vector<16x1xf32>
    %cst_136 = arith.constant 9.99999997E-7 : f32
    %308 = vector.broadcast %cst_136 : f32 to vector<16x1xf32>
    %309 = arith.addf %307, %308 : vector<16x1xf32>
    %310 = vector.broadcast %309 : vector<16x1xf32> to vector<16x32xf32>
    %311 = arith.divf %306, %310 : vector<16x32xf32>
    %312 = vector.broadcast %291 : vector<1x32xf32> to vector<16x32xf32>
    %313 = arith.addf %311, %312 : vector<16x32xf32>
    %c0_137 = arith.constant 0 : index
    %c0_138 = arith.constant 0 : index
    %c0_139 = arith.constant 0 : index
    %314 = vector.load %arg25[%c0_137, %c0_138, %c0_139] : memref<1x16x32xf32, #tpu.memory_space<vmem>>, vector<1x16x32xf32>
    %315 = vector.shape_cast %314 : vector<1x16x32xf32> to vector<16x32xf32>
    %316 = vector.shape_cast %313 : vector<16x32xf32> to vector<1x16x32xf32>
    tpu.vector_store %arg25[%c0_137, %c0_138, %c0_139], %316 {strides = array<i32>} : memref<1x16x32xf32, #tpu.memory_space<vmem>>, vector<1x16x32xf32>,
    return
  }
  func.func @transform_0(%arg0: i32) -> (i32, i32, i32) {
    %c0_i32 = arith.constant 0 : i32
    %c0_i32_0 = arith.constant 0 : i32
    %c0_i32_1 = arith.constant 0 : i32
    return %arg0, %c0_i32, %c0_i32_0 : i32, i32, i32
  }
  func.func @transform_1(%arg0: i32) -> (i32, i32, i32) {
    %c0_i32 = arith.constant 0 : i32
    %c0_i32_0 = arith.constant 0 : i32
    %c0_i32_1 = arith.constant 0 : i32
    return %arg0, %c0_i32, %c0_i32_0 : i32, i32, i32
  }
  func.func @transform_2(%arg0: i32) -> (i32, i32, i32) {
    %c0_i32 = arith.constant 0 : i32
    %c0_i32_0 = arith.constant 0 : i32
    %c0_i32_1 = arith.constant 0 : i32
    return %arg0, %c0_i32, %c0_i32_0 : i32, i32, i32
  }
  func.func @transform_3(%arg0: i32) -> (i32, i32, i32) {
    %c0_i32 = arith.constant 0 : i32
    %c0_i32_0 = arith.constant 0 : i32
    %c0_i32_1 = arith.constant 0 : i32
    return %arg0, %c0_i32, %c0_i32_0 : i32, i32, i32
  }
  func.func @transform_4(%arg0: i32) -> (i32, i32) {
    %c0_i32 = arith.constant 0 : i32
    %c0_i32_0 = arith.constant 0 : i32
    %c0_i32_1 = arith.constant 0 : i32
    return %c0_i32, %c0_i32_0 : i32, i32
  }
  func.func @transform_5(%arg0: i32) -> (i32, i32) {
    %c0_i32 = arith.constant 0 : i32
    %c0_i32_0 = arith.constant 0 : i32
    %c0_i32_1 = arith.constant 0 : i32
    return %c0_i32, %c0_i32_0 : i32, i32
  }
  func.func @transform_6(%arg0: i32) -> (i32, i32) {
    %c0_i32 = arith.constant 0 : i32
    %c0_i32_0 = arith.constant 0 : i32
    %c0_i32_1 = arith.constant 0 : i32
    return %c0_i32, %c0_i32_0 : i32, i32
  }
  func.func @transform_7(%arg0: i32) -> (i32, i32) {
    %c0_i32 = arith.constant 0 : i32
    %c0_i32_0 = arith.constant 0 : i32
    %c0_i32_1 = arith.constant 0 : i32
    return %c0_i32, %c0_i32_0 : i32, i32
  }
  func.func @transform_8(%arg0: i32) -> (i32, i32) {
    %c0_i32 = arith.constant 0 : i32
    %c0_i32_0 = arith.constant 0 : i32
    %c0_i32_1 = arith.constant 0 : i32
    return %c0_i32, %c0_i32_0 : i32, i32
  }
  func.func @transform_9(%arg0: i32) -> (i32, i32) {
    %c0_i32 = arith.constant 0 : i32
    %c0_i32_0 = arith.constant 0 : i32
    %c0_i32_1 = arith.constant 0 : i32
    return %c0_i32, %c0_i32_0 : i32, i32
  }
  func.func @transform_10(%arg0: i32) -> (i32, i32) {
    %c0_i32 = arith.constant 0 : i32
    %c0_i32_0 = arith.constant 0 : i32
    %c0_i32_1 = arith.constant 0 : i32
    return %c0_i32, %c0_i32_0 : i32, i32
  }
  func.func @transform_11(%arg0: i32) -> (i32, i32) {
    %c0_i32 = arith.constant 0 : i32
    %c0_i32_0 = arith.constant 0 : i32
    %c0_i32_1 = arith.constant 0 : i32
    return %c0_i32, %c0_i32_0 : i32, i32
  }
  func.func @transform_12(%arg0: i32) -> (i32, i32) {
    %c0_i32 = arith.constant 0 : i32
    %c0_i32_0 = arith.constant 0 : i32
    %c0_i32_1 = arith.constant 0 : i32
    return %c0_i32, %c0_i32_0 : i32, i32
  }
  func.func @transform_13(%arg0: i32) -> (i32, i32) {
    %c0_i32 = arith.constant 0 : i32
    %c0_i32_0 = arith.constant 0 : i32
    %c0_i32_1 = arith.constant 0 : i32
    return %c0_i32, %c0_i32_0 : i32, i32
  }
  func.func @transform_14(%arg0: i32) -> (i32, i32) {
    %c0_i32 = arith.constant 0 : i32
    %c0_i32_0 = arith.constant 0 : i32
    %c0_i32_1 = arith.constant 0 : i32
    return %c0_i32, %c0_i32_0 : i32, i32
  }
  func.func @transform_15(%arg0: i32) -> (i32, i32) {
    %c0_i32 = arith.constant 0 : i32
    %c0_i32_0 = arith.constant 0 : i32
    %c0_i32_1 = arith.constant 0 : i32
    return %c0_i32, %c0_i32_0 : i32, i32
  }
  func.func @transform_16(%arg0: i32) -> (i32, i32) {
    %c0_i32 = arith.constant 0 : i32
    %c0_i32_0 = arith.constant 0 : i32
    %c0_i32_1 = arith.constant 0 : i32
    return %c0_i32, %c0_i32_0 : i32, i32
  }
  func.func @transform_17(%arg0: i32) -> (i32, i32) {
    %c0_i32 = arith.constant 0 : i32
    %c0_i32_0 = arith.constant 0 : i32
    %c0_i32_1 = arith.constant 0 : i32
    return %c0_i32, %c0_i32_0 : i32, i32
  }
  func.func @transform_18(%arg0: i32) -> (i32, i32) {
    %c0_i32 = arith.constant 0 : i32
    %c0_i32_0 = arith.constant 0 : i32
    %c0_i32_1 = arith.constant 0 : i32
    return %c0_i32, %c0_i32_0 : i32, i32
  }
  func.func @transform_19(%arg0: i32) -> (i32, i32) {
    %c0_i32 = arith.constant 0 : i32
    %c0_i32_0 = arith.constant 0 : i32
    %c0_i32_1 = arith.constant 0 : i32
    return %c0_i32, %c0_i32_0 : i32, i32
  }
  func.func @transform_20(%arg0: i32) -> (i32, i32) {
    %c0_i32 = arith.constant 0 : i32
    %c0_i32_0 = arith.constant 0 : i32
    %c0_i32_1 = arith.constant 0 : i32
    return %c0_i32, %c0_i32_0 : i32, i32
  }
  func.func @transform_21(%arg0: i32) -> (i32, i32) {
    %c0_i32 = arith.constant 0 : i32
    %c0_i32_0 = arith.constant 0 : i32
    %c0_i32_1 = arith.constant 0 : i32
    return %c0_i32, %c0_i32_0 : i32, i32
  }
  func.func @transform_22(%arg0: i32) -> (i32, i32) {
    %c0_i32 = arith.constant 0 : i32
    %c0_i32_0 = arith.constant 0 : i32
    %c0_i32_1 = arith.constant 0 : i32
    return %c0_i32, %c0_i32_0 : i32, i32
  }
  func.func @transform_23(%arg0: i32) -> (i32, i32) {
    %c0_i32 = arith.constant 0 : i32
    %c0_i32_0 = arith.constant 0 : i32
    %c0_i32_1 = arith.constant 0 : i32
    return %c0_i32, %c0_i32_0 : i32, i32
  }
  func.func @transform_24(%arg0: i32) -> (i32, i32, i32) {
    %c0_i32 = arith.constant 0 : i32
    %c0_i32_0 = arith.constant 0 : i32
    %c0_i32_1 = arith.constant 0 : i32
    return %arg0, %c0_i32, %c0_i32_0 : i32, i32, i32
  }
}

module attributes {stable_mosaic.version = 11 : i64} {
  func.func @_sga_layer_kernel(%arg0: i32, %arg1: memref<1x16x32xf32, #tpu.memory_space<vmem>>, %arg2: memref<1x8x32xf32, #tpu.memory_space<vmem>>, %arg3: memref<1x1x16xf32, #tpu.memory_space<vmem>>, %arg4: memref<1x1x8xf32, #tpu.memory_space<vmem>>, %arg5: memref<32x96xf32, #tpu.memory_space<vmem>>, %arg6: memref<1x96xf32, #tpu.memory_space<vmem>>, %arg7: memref<32x32xf32, #tpu.memory_space<vmem>>, %arg8: memref<1x32xf32, #tpu.memory_space<vmem>>, %arg9: memref<1x32xf32, #tpu.memory_space<vmem>>, %arg10: memref<1x32xf32, #tpu.memory_space<vmem>>, %arg11: memref<32x32xf32, #tpu.memory_space<vmem>>, %arg12: memref<1x32xf32, #tpu.memory_space<vmem>>, %arg13: memref<32x64xf32, #tpu.memory_space<vmem>>, %arg14: memref<1x64xf32, #tpu.memory_space<vmem>>, %arg15: memref<32x32xf32, #tpu.memory_space<vmem>>, %arg16: memref<1x32xf32, #tpu.memory_space<vmem>>, %arg17: memref<1x32xf32, #tpu.memory_space<vmem>>, %arg18: memref<1x32xf32, #tpu.memory_space<vmem>>, %arg19: memref<32x64xf32, #tpu.memory_space<vmem>>, %arg20: memref<1x64xf32, #tpu.memory_space<vmem>>, %arg21: memref<64x32xf32, #tpu.memory_space<vmem>>, %arg22: memref<1x32xf32, #tpu.memory_space<vmem>>, %arg23: memref<1x32xf32, #tpu.memory_space<vmem>>, %arg24: memref<1x32xf32, #tpu.memory_space<vmem>>, %arg25: memref<1x16x32xf32, #tpu.memory_space<vmem>>) attributes {dimension_semantics = [#tpu.dimension_semantics<parallel>], iteration_bounds = array<i64: 2>, scalar_prefetch = 0 : i64, scratch_operands = 0 : i64, tpu.core_type = #tpu.core_type<tc>, window_params = [{transform_indices = @transform_0, window_bounds = array<i64: 1, 16, 32>}, {transform_indices = @transform_1, window_bounds = array<i64: 1, 8, 32>}, {transform_indices = @transform_2, window_bounds = array<i64: 1, 1, 16>}, {transform_indices = @transform_3, window_bounds = array<i64: 1, 1, 8>}, {pipeline_mode = #tpu.pipeline_mode<synchronous>, transform_indices = @transform_4, window_bounds = array<i64: 32, 96>}, {pipeline_mode = #tpu.pipeline_mode<synchronous>, transform_indices = @transform_5, window_bounds = array<i64: 1, 96>}, {pipeline_mode = #tpu.pipeline_mode<synchronous>, transform_indices = @transform_6, window_bounds = array<i64: 32, 32>}, {pipeline_mode = #tpu.pipeline_mode<synchronous>, transform_indices = @transform_7, window_bounds = array<i64: 1, 32>}, {pipeline_mode = #tpu.pipeline_mode<synchronous>, transform_indices = @transform_8, window_bounds = array<i64: 1, 32>}, {pipeline_mode = #tpu.pipeline_mode<synchronous>, transform_indices = @transform_9, window_bounds = array<i64: 1, 32>}, {pipeline_mode = #tpu.pipeline_mode<synchronous>, transform_indices = @transform_10, window_bounds = array<i64: 32, 32>}, {pipeline_mode = #tpu.pipeline_mode<synchronous>, transform_indices = @transform_11, window_bounds = array<i64: 1, 32>}, {pipeline_mode = #tpu.pipeline_mode<synchronous>, transform_indices = @transform_12, window_bounds = array<i64: 32, 64>}, {pipeline_mode = #tpu.pipeline_mode<synchronous>, transform_indices = @transform_13, window_bounds = array<i64: 1, 64>}, {pipeline_mode = #tpu.pipeline_mode<synchronous>, transform_indices = @transform_14, window_bounds = array<i64: 32, 32>}, {pipeline_mode = #tpu.pipeline_mode<synchronous>, transform_indices = @transform_15, window_bounds = array<i64: 1, 32>}, {pipeline_mode = #tpu.pipeline_mode<synchronous>, transform_indices = @transform_16, window_bounds = array<i64: 1, 32>}, {pipeline_mode = #tpu.pipeline_mode<synchronous>, transform_indices = @transform_17, window_bounds = array<i64: 1, 32>}, {pipeline_mode = #tpu.pipeline_mode<synchronous>, transform_indices = @transform_18, window_bounds = array<i64: 32, 64>}, {pipeline_mode = #tpu.pipeline_mode<synchronous>, transform_indices = @transform_19, window_bounds = array<i64: 1, 64>}, {pipeline_mode = #tpu.pipeline_mode<synchronous>, transform_indices = @transform_20, window_bounds = array<i64: 64, 32>}, {pipeline_mode = #tpu.pipeline_mode<synchronous>, transform_indices = @transform_21, window_bounds = array<i64: 1, 32>}, {pipeline_mode = #tpu.pipeline_mode<synchronous>, transform_indices = @transform_22, window_bounds = array<i64: 1, 32>}, {pipeline_mode = #tpu.pipeline_mode<synchronous>, transform_indices = @transform_23, window_bounds = array<i64: 1, 32>}, {transform_indices = @transform_24, window_bounds = array<i64: 1, 16, 32>}]} {
    %c0 = arith.constant 0 : index
    %c0_0 = arith.constant 0 : index
    %c0_1 = arith.constant 0 : index
    %0 = vector.load %arg1[%c0, %c0_0, %c0_1] : memref<1x16x32xf32, #tpu.memory_space<vmem>>, vector<1x16x32xf32>
    %1 = vector.shape_cast %0 : vector<1x16x32xf32> to vector<16x32xf32>
    %c0_2 = arith.constant 0 : index
    %c0_3 = arith.constant 0 : index
    %c0_4 = arith.constant 0 : index
    %2 = vector.load %arg2[%c0_2, %c0_3, %c0_4] : memref<1x8x32xf32, #tpu.memory_space<vmem>>, vector<1x8x32xf32>
    %3 = vector.shape_cast %2 : vector<1x8x32xf32> to vector<8x32xf32>
    %c0_5 = arith.constant 0 : index
    %c0_6 = arith.constant 0 : index
    %c0_7 = arith.constant 0 : index
    %4 = vector.load %arg3[%c0_5, %c0_6, %c0_7] : memref<1x1x16xf32, #tpu.memory_space<vmem>>, vector<1x1x16xf32>
    %5 = vector.shape_cast %4 : vector<1x1x16xf32> to vector<1x16xf32>
    %c0_8 = arith.constant 0 : index
    %c0_9 = arith.constant 0 : index
    %c0_10 = arith.constant 0 : index
    %6 = vector.load %arg4[%c0_8, %c0_9, %c0_10] : memref<1x1x8xf32, #tpu.memory_space<vmem>>, vector<1x1x8xf32>
    %7 = vector.shape_cast %6 : vector<1x1x8xf32> to vector<1x8xf32>
    %c0_11 = arith.constant 0 : index
    %c0_12 = arith.constant 0 : index
    %8 = vector.load %arg5[%c0_11, %c0_12] : memref<32x96xf32, #tpu.memory_space<vmem>>, vector<32x96xf32>
    %c0_13 = arith.constant 0 : index
    %c0_14 = arith.constant 0 : index
    %9 = vector.load %arg6[%c0_13, %c0_14] : memref<1x96xf32, #tpu.memory_space<vmem>>, vector<1x96xf32>
    %c0_15 = arith.constant 0 : index
    %c0_16 = arith.constant 0 : index
    %10 = vector.load %arg7[%c0_15, %c0_16] : memref<32x32xf32, #tpu.memory_space<vmem>>, vector<32x32xf32>
    %c0_17 = arith.constant 0 : index
    %c0_18 = arith.constant 0 : index
    %11 = vector.load %arg8[%c0_17, %c0_18] : memref<1x32xf32, #tpu.memory_space<vmem>>, vector<1x32xf32>
    %cst = arith.constant dense<0.000000e+00> : vector<16x96xf32>
    %12 = tpu.matmul %1, %8, %cst {dimension_numbers = #tpu.dot_dimension_numbers<[1], [0], [0], [1], [0, 0, 1, 1], [], []>} : vector<16x32xf32>, vector<32x96xf32>, vector<16x96xf32> -> vector<16x96xf32>
    %13 = vector.broadcast %9 : vector<1x96xf32> to vector<16x96xf32>
    %14 = arith.addf %12, %13 : vector<16x96xf32>
    %15 = vector.extract_strided_slice %14 {offsets = [0, 0], sizes = [16, 8], strides = [1, 1]} : vector<16x96xf32> to vector<16x8xf32>
    %16 = vector.extract_strided_slice %14 {offsets = [0, 32], sizes = [16, 8], strides = [1, 1]} : vector<16x96xf32> to vector<16x8xf32>
    %17 = vector.extract_strided_slice %14 {offsets = [0, 64], sizes = [16, 8], strides = [1, 1]} : vector<16x96xf32> to vector<16x8xf32>
    %cst_19 = arith.constant dense<0.000000e+00> : vector<16x16xf32>
    %18 = tpu.matmul %15, %16, %cst_19 {dimension_numbers = #tpu.dot_dimension_numbers<[1], [1], [0], [0], [0, 0, 1, 0], [], []>} : vector<16x8xf32>, vector<16x8xf32>, vector<16x16xf32> -> vector<16x16xf32>
    %cst_20 = arith.constant 0.353553385 : f32
    %19 = vector.broadcast %cst_20 : f32 to vector<16x16xf32>
    %20 = arith.mulf %18, %19 : vector<16x16xf32>
    %cst_21 = arith.constant 5.000000e-01 : f32
    %21 = vector.broadcast %cst_21 : f32 to vector<1x16xf32>
    %22 = arith.cmpf ogt, %5, %21 : vector<1x16xf32>
    %cst_22 = arith.constant -1.000000e+09 : f32
    %23 = vector.shape_cast %22 : vector<1x16xi1> to vector<1x16xi1>
    %24 = vector.broadcast %23 : vector<1x16xi1> to vector<16x16xi1>
    %25 = vector.broadcast %cst_22 : f32 to vector<16x16xf32>
    %26 = arith.select %24, %25, %20 : vector<16x16xi1>, vector<16x16xf32>
    %cst_23 = arith.constant dense<0xFF800000> : vector<16xf32>
    %27 = vector.multi_reduction <maximumf>, %26, %cst_23 [1] : vector<16x16xf32> to vector<16xf32>
    %cst_24 = arith.constant 0xFF800000 : f32
    %28 = vector.broadcast %cst_24 : f32 to vector<16xf32>
    %29 = arith.maximumf %28, %27 : vector<16xf32>
    %30 = vector.shape_cast %29 : vector<16xf32> to vector<16x1xf32>
    %31 = vector.broadcast %30 : vector<16x1xf32> to vector<16x16xf32>
    %32 = arith.subf %26, %31 : vector<16x16xf32>
    %33 = math.exp %32 : vector<16x16xf32>
    %cst_25 = arith.constant dense<0.000000e+00> : vector<16xf32>
    %34 = vector.multi_reduction <add>, %33, %cst_25 [1] : vector<16x16xf32> to vector<16xf32>
    %35 = vector.shape_cast %34 : vector<16xf32> to vector<16x1xf32>
    %36 = vector.broadcast %35 : vector<16x1xf32> to vector<16x16xf32>
    %37 = arith.divf %33, %36 : vector<16x16xf32>
    %cst_26 = arith.constant dense<0.000000e+00> : vector<16x8xf32>
    %38 = tpu.matmul %37, %17, %cst_26 {dimension_numbers = #tpu.dot_dimension_numbers<[1], [0], [0], [1], [0, 0, 1, 1], [], []>} : vector<16x16xf32>, vector<16x8xf32>, vector<16x8xf32> -> vector<16x8xf32>
    %39 = vector.extract_strided_slice %14 {offsets = [0, 8], sizes = [16, 8], strides = [1, 1]} : vector<16x96xf32> to vector<16x8xf32>
    %40 = vector.extract_strided_slice %14 {offsets = [0, 40], sizes = [16, 8], strides = [1, 1]} : vector<16x96xf32> to vector<16x8xf32>
    %41 = vector.extract_strided_slice %14 {offsets = [0, 72], sizes = [16, 8], strides = [1, 1]} : vector<16x96xf32> to vector<16x8xf32>
    %cst_27 = arith.constant dense<0.000000e+00> : vector<16x16xf32>
    %42 = tpu.matmul %39, %40, %cst_27 {dimension_numbers = #tpu.dot_dimension_numbers<[1], [1], [0], [0], [0, 0, 1, 0], [], []>} : vector<16x8xf32>, vector<16x8xf32>, vector<16x16xf32> -> vector<16x16xf32>
    %cst_28 = arith.constant 0.353553385 : f32
    %43 = vector.broadcast %cst_28 : f32 to vector<16x16xf32>
    %44 = arith.mulf %42, %43 : vector<16x16xf32>
    %cst_29 = arith.constant 5.000000e-01 : f32
    %45 = vector.broadcast %cst_29 : f32 to vector<1x16xf32>
    %46 = arith.cmpf ogt, %5, %45 : vector<1x16xf32>
    %cst_30 = arith.constant -1.000000e+09 : f32
    %47 = vector.shape_cast %46 : vector<1x16xi1> to vector<1x16xi1>
    %48 = vector.broadcast %47 : vector<1x16xi1> to vector<16x16xi1>
    %49 = vector.broadcast %cst_30 : f32 to vector<16x16xf32>
    %50 = arith.select %48, %49, %44 : vector<16x16xi1>, vector<16x16xf32>
    %cst_31 = arith.constant dense<0xFF800000> : vector<16xf32>
    %51 = vector.multi_reduction <maximumf>, %50, %cst_31 [1] : vector<16x16xf32> to vector<16xf32>
    %cst_32 = arith.constant 0xFF800000 : f32
    %52 = vector.broadcast %cst_32 : f32 to vector<16xf32>
    %53 = arith.maximumf %52, %51 : vector<16xf32>
    %54 = vector.shape_cast %53 : vector<16xf32> to vector<16x1xf32>
    %55 = vector.broadcast %54 : vector<16x1xf32> to vector<16x16xf32>
    %56 = arith.subf %50, %55 : vector<16x16xf32>
    %57 = math.exp %56 : vector<16x16xf32>
    %cst_33 = arith.constant dense<0.000000e+00> : vector<16xf32>
    %58 = vector.multi_reduction <add>, %57, %cst_33 [1] : vector<16x16xf32> to vector<16xf32>
    %59 = vector.shape_cast %58 : vector<16xf32> to vector<16x1xf32>
    %60 = vector.broadcast %59 : vector<16x1xf32> to vector<16x16xf32>
    %61 = arith.divf %57, %60 : vector<16x16xf32>
    %cst_34 = arith.constant dense<0.000000e+00> : vector<16x8xf32>
    %62 = tpu.matmul %61, %41, %cst_34 {dimension_numbers = #tpu.dot_dimension_numbers<[1], [0], [0], [1], [0, 0, 1, 1], [], []>} : vector<16x16xf32>, vector<16x8xf32>, vector<16x8xf32> -> vector<16x8xf32>
    %63 = vector.extract_strided_slice %14 {offsets = [0, 16], sizes = [16, 8], strides = [1, 1]} : vector<16x96xf32> to vector<16x8xf32>
    %64 = vector.extract_strided_slice %14 {offsets = [0, 48], sizes = [16, 8], strides = [1, 1]} : vector<16x96xf32> to vector<16x8xf32>
    %65 = vector.extract_strided_slice %14 {offsets = [0, 80], sizes = [16, 8], strides = [1, 1]} : vector<16x96xf32> to vector<16x8xf32>
    %cst_35 = arith.constant dense<0.000000e+00> : vector<16x16xf32>
    %66 = tpu.matmul %63, %64, %cst_35 {dimension_numbers = #tpu.dot_dimension_numbers<[1], [1], [0], [0], [0, 0, 1, 0], [], []>} : vector<16x8xf32>, vector<16x8xf32>, vector<16x16xf32> -> vector<16x16xf32>
    %cst_36 = arith.constant 0.353553385 : f32
    %67 = vector.broadcast %cst_36 : f32 to vector<16x16xf32>
    %68 = arith.mulf %66, %67 : vector<16x16xf32>
    %cst_37 = arith.constant 5.000000e-01 : f32
    %69 = vector.broadcast %cst_37 : f32 to vector<1x16xf32>
    %70 = arith.cmpf ogt, %5, %69 : vector<1x16xf32>
    %cst_38 = arith.constant -1.000000e+09 : f32
    %71 = vector.shape_cast %70 : vector<1x16xi1> to vector<1x16xi1>
    %72 = vector.broadcast %71 : vector<1x16xi1> to vector<16x16xi1>
    %73 = vector.broadcast %cst_38 : f32 to vector<16x16xf32>
    %74 = arith.select %72, %73, %68 : vector<16x16xi1>, vector<16x16xf32>
    %cst_39 = arith.constant dense<0xFF800000> : vector<16xf32>
    %75 = vector.multi_reduction <maximumf>, %74, %cst_39 [1] : vector<16x16xf32> to vector<16xf32>
    %cst_40 = arith.constant 0xFF800000 : f32
    %76 = vector.broadcast %cst_40 : f32 to vector<16xf32>
    %77 = arith.maximumf %76, %75 : vector<16xf32>
    %78 = vector.shape_cast %77 : vector<16xf32> to vector<16x1xf32>
    %79 = vector.broadcast %78 : vector<16x1xf32> to vector<16x16xf32>
    %80 = arith.subf %74, %79 : vector<16x16xf32>
    %81 = math.exp %80 : vector<16x16xf32>
    %cst_41 = arith.constant dense<0.000000e+00> : vector<16xf32>
    %82 = vector.multi_reduction <add>, %81, %cst_41 [1] : vector<16x16xf32> to vector<16xf32>
    %83 = vector.shape_cast %82 : vector<16xf32> to vector<16x1xf32>
    %84 = vector.broadcast %83 : vector<16x1xf32> to vector<16x16xf32>
    %85 = arith.divf %81, %84 : vector<16x16xf32>
    %cst_42 = arith.constant dense<0.000000e+00> : vector<16x8xf32>
    %86 = tpu.matmul %85, %65, %cst_42 {dimension_numbers = #tpu.dot_dimension_numbers<[1], [0], [0], [1], [0, 0, 1, 1], [], []>} : vector<16x16xf32>, vector<16x8xf32>, vector<16x8xf32> -> vector<16x8xf32>
    %87 = vector.extract_strided_slice %14 {offsets = [0, 24], sizes = [16, 8], strides = [1, 1]} : vector<16x96xf32> to vector<16x8xf32>
    %88 = vector.extract_strided_slice %14 {offsets = [0, 56], sizes = [16, 8], strides = [1, 1]} : vector<16x96xf32> to vector<16x8xf32>
    %89 = vector.extract_strided_slice %14 {offsets = [0, 88], sizes = [16, 8], strides = [1, 1]} : vector<16x96xf32> to vector<16x8xf32>
    %cst_43 = arith.constant dense<0.000000e+00> : vector<16x16xf32>
    %90 = tpu.matmul %87, %88, %cst_43 {dimension_numbers = #tpu.dot_dimension_numbers<[1], [1], [0], [0], [0, 0, 1, 0], [], []>} : vector<16x8xf32>, vector<16x8xf32>, vector<16x16xf32> -> vector<16x16xf32>
    %cst_44 = arith.constant 0.353553385 : f32
    %91 = vector.broadcast %cst_44 : f32 to vector<16x16xf32>
    %92 = arith.mulf %90, %91 : vector<16x16xf32>
    %cst_45 = arith.constant 5.000000e-01 : f32
    %93 = vector.broadcast %cst_45 : f32 to vector<1x16xf32>
    %94 = arith.cmpf ogt, %5, %93 : vector<1x16xf32>
    %cst_46 = arith.constant -1.000000e+09 : f32
    %95 = vector.shape_cast %94 : vector<1x16xi1> to vector<1x16xi1>
    %96 = vector.broadcast %95 : vector<1x16xi1> to vector<16x16xi1>
    %97 = vector.broadcast %cst_46 : f32 to vector<16x16xf32>
    %98 = arith.select %96, %97, %92 : vector<16x16xi1>, vector<16x16xf32>
    %cst_47 = arith.constant dense<0xFF800000> : vector<16xf32>
    %99 = vector.multi_reduction <maximumf>, %98, %cst_47 [1] : vector<16x16xf32> to vector<16xf32>
    %cst_48 = arith.constant 0xFF800000 : f32
    %100 = vector.broadcast %cst_48 : f32 to vector<16xf32>
    %101 = arith.maximumf %100, %99 : vector<16xf32>
    %102 = vector.shape_cast %101 : vector<16xf32> to vector<16x1xf32>
    %103 = vector.broadcast %102 : vector<16x1xf32> to vector<16x16xf32>
    %104 = arith.subf %98, %103 : vector<16x16xf32>
    %105 = math.exp %104 : vector<16x16xf32>
    %cst_49 = arith.constant dense<0.000000e+00> : vector<16xf32>
    %106 = vector.multi_reduction <add>, %105, %cst_49 [1] : vector<16x16xf32> to vector<16xf32>
    %107 = vector.shape_cast %106 : vector<16xf32> to vector<16x1xf32>
    %108 = vector.broadcast %107 : vector<16x1xf32> to vector<16x16xf32>
    %109 = arith.divf %105, %108 : vector<16x16xf32>
    %cst_50 = arith.constant dense<0.000000e+00> : vector<16x8xf32>
    %110 = tpu.matmul %109, %89, %cst_50 {dimension_numbers = #tpu.dot_dimension_numbers<[1], [0], [0], [1], [0, 0, 1, 1], [], []>} : vector<16x16xf32>, vector<16x8xf32>, vector<16x8xf32> -> vector<16x8xf32>
    %111 = tpu.concatenate %38, %62, %86, %110 in 1 : vector<16x8xf32>, vector<16x8xf32>, vector<16x8xf32>, vector<16x8xf32> -> vector<16x32xf32>
    %cst_51 = arith.constant dense<0.000000e+00> : vector<16x32xf32>
    %112 = tpu.matmul %111, %10, %cst_51 {dimension_numbers = #tpu.dot_dimension_numbers<[1], [0], [0], [1], [0, 0, 1, 1], [], []>} : vector<16x32xf32>, vector<32x32xf32>, vector<16x32xf32> -> vector<16x32xf32>
    %113 = vector.broadcast %11 : vector<1x32xf32> to vector<16x32xf32>
    %114 = arith.addf %112, %113 : vector<16x32xf32>
    %115 = arith.addf %1, %114 : vector<16x32xf32>
    %c0_52 = arith.constant 0 : index
    %c0_53 = arith.constant 0 : index
    %116 = vector.load %arg9[%c0_52, %c0_53] : memref<1x32xf32, #tpu.memory_space<vmem>>, vector<1x32xf32>
    %c0_54 = arith.constant 0 : index
    %c0_55 = arith.constant 0 : index
    %117 = vector.load %arg10[%c0_54, %c0_55] : memref<1x32xf32, #tpu.memory_space<vmem>>, vector<1x32xf32>
    %cst_56 = arith.constant dense<0.000000e+00> : vector<16xf32>
    %118 = vector.multi_reduction <add>, %115, %cst_56 [1] : vector<16x32xf32> to vector<16xf32>
    %119 = vector.shape_cast %118 : vector<16xf32> to vector<16x1xf32>
    %cst_57 = arith.constant 3.200000e+01 : f32
    %120 = vector.broadcast %cst_57 : f32 to vector<16x1xf32>
    %121 = arith.divf %119, %120 : vector<16x1xf32>
    %122 = vector.broadcast %121 : vector<16x1xf32> to vector<16x32xf32>
    %123 = arith.subf %115, %122 : vector<16x32xf32>
    %124 = arith.mulf %123, %123 : vector<16x32xf32>
    %cst_58 = arith.constant dense<0.000000e+00> : vector<16xf32>
    %125 = vector.multi_reduction <add>, %124, %cst_58 [1] : vector<16x32xf32> to vector<16xf32>
    %126 = vector.shape_cast %125 : vector<16xf32> to vector<16x1xf32>
    %cst_59 = arith.constant 0.0322580636 : f32
    %127 = vector.broadcast %cst_59 : f32 to vector<16x1xf32>
    %128 = arith.mulf %126, %127 : vector<16x1xf32>
    %129 = vector.broadcast %121 : vector<16x1xf32> to vector<16x32xf32>
    %130 = arith.subf %115, %129 : vector<16x32xf32>
    %131 = vector.broadcast %116 : vector<1x32xf32> to vector<16x32xf32>
    %132 = arith.mulf %131, %130 : vector<16x32xf32>
    %133 = math.sqrt %128 : vector<16x1xf32>
    %cst_60 = arith.constant 9.99999997E-7 : f32
    %134 = vector.broadcast %cst_60 : f32 to vector<16x1xf32>
    %135 = arith.addf %133, %134 : vector<16x1xf32>
    %136 = vector.broadcast %135 : vector<16x1xf32> to vector<16x32xf32>
    %137 = arith.divf %132, %136 : vector<16x32xf32>
    %138 = vector.broadcast %117 : vector<1x32xf32> to vector<16x32xf32>
    %139 = arith.addf %137, %138 : vector<16x32xf32>
    %c0_61 = arith.constant 0 : index
    %c0_62 = arith.constant 0 : index
    %140 = vector.load %arg11[%c0_61, %c0_62] : memref<32x32xf32, #tpu.memory_space<vmem>>, vector<32x32xf32>
    %c0_63 = arith.constant 0 : index
    %c0_64 = arith.constant 0 : index
    %141 = vector.load %arg12[%c0_63, %c0_64] : memref<1x32xf32, #tpu.memory_space<vmem>>, vector<1x32xf32>
    %c0_65 = arith.constant 0 : index
    %c0_66 = arith.constant 0 : index
    %142 = vector.load %arg13[%c0_65, %c0_66] : memref<32x64xf32, #tpu.memory_space<vmem>>, vector<32x64xf32>
    %c0_67 = arith.constant 0 : index
    %c0_68 = arith.constant 0 : index
    %143 = vector.load %arg14[%c0_67, %c0_68] : memref<1x64xf32, #tpu.memory_space<vmem>>, vector<1x64xf32>
    %c0_69 = arith.constant 0 : index
    %c0_70 = arith.constant 0 : index
    %144 = vector.load %arg15[%c0_69, %c0_70] : memref<32x32xf32, #tpu.memory_space<vmem>>, vector<32x32xf32>
    %c0_71 = arith.constant 0 : index
    %c0_72 = arith.constant 0 : index
    %145 = vector.load %arg16[%c0_71, %c0_72] : memref<1x32xf32, #tpu.memory_space<vmem>>, vector<1x32xf32>
    %cst_73 = arith.constant dense<0.000000e+00> : vector<16x32xf32>
    %146 = tpu.matmul %139, %140, %cst_73 {dimension_numbers = #tpu.dot_dimension_numbers<[1], [0], [0], [1], [0, 0, 1, 1], [], []>} : vector<16x32xf32>, vector<32x32xf32>, vector<16x32xf32> -> vector<16x32xf32>
    %147 = vector.broadcast %141 : vector<1x32xf32> to vector<16x32xf32>
    %148 = arith.addf %146, %147 : vector<16x32xf32>
    %cst_74 = arith.constant dense<0.000000e+00> : vector<8x64xf32>
    %149 = tpu.matmul %3, %142, %cst_74 {dimension_numbers = #tpu.dot_dimension_numbers<[1], [0], [0], [1], [0, 0, 1, 1], [], []>} : vector<8x32xf32>, vector<32x64xf32>, vector<8x64xf32> -> vector<8x64xf32>
    %150 = vector.broadcast %143 : vector<1x64xf32> to vector<8x64xf32>
    %151 = arith.addf %149, %150 : vector<8x64xf32>
    %152 = vector.extract_strided_slice %148 {offsets = [0, 0], sizes = [16, 8], strides = [1, 1]} : vector<16x32xf32> to vector<16x8xf32>
    %153 = vector.extract_strided_slice %151 {offsets = [0, 0], sizes = [8, 8], strides = [1, 1]} : vector<8x64xf32> to vector<8x8xf32>
    %154 = vector.extract_strided_slice %151 {offsets = [0, 32], sizes = [8, 8], strides = [1, 1]} : vector<8x64xf32> to vector<8x8xf32>
    %cst_75 = arith.constant dense<0.000000e+00> : vector<16x8xf32>
    %155 = tpu.matmul %152, %153, %cst_75 {dimension_numbers = #tpu.dot_dimension_numbers<[1], [1], [0], [0], [0, 0, 1, 0], [], []>} : vector<16x8xf32>, vector<8x8xf32>, vector<16x8xf32> -> vector<16x8xf32>
    %cst_76 = arith.constant 0.353553385 : f32
    %156 = vector.broadcast %cst_76 : f32 to vector<16x8xf32>
    %157 = arith.mulf %155, %156 : vector<16x8xf32>
    %cst_77 = arith.constant 5.000000e-01 : f32
    %158 = vector.broadcast %cst_77 : f32 to vector<1x8xf32>
    %159 = arith.cmpf ogt, %7, %158 : vector<1x8xf32>
    %cst_78 = arith.constant -1.000000e+09 : f32
    %160 = vector.shape_cast %159 : vector<1x8xi1> to vector<1x8xi1>
    %161 = vector.broadcast %160 : vector<1x8xi1> to vector<16x8xi1>
    %162 = vector.broadcast %cst_78 : f32 to vector<16x8xf32>
    %163 = arith.select %161, %162, %157 : vector<16x8xi1>, vector<16x8xf32>
    %cst_79 = arith.constant dense<0xFF800000> : vector<16xf32>
    %164 = vector.multi_reduction <maximumf>, %163, %cst_79 [1] : vector<16x8xf32> to vector<16xf32>
    %cst_80 = arith.constant 0xFF800000 : f32
    %165 = vector.broadcast %cst_80 : f32 to vector<16xf32>
    %166 = arith.maximumf %165, %164 : vector<16xf32>
    %167 = vector.shape_cast %166 : vector<16xf32> to vector<16x1xf32>
    %168 = vector.broadcast %167 : vector<16x1xf32> to vector<16x8xf32>
    %169 = arith.subf %163, %168 : vector<16x8xf32>
    %170 = math.exp %169 : vector<16x8xf32>
    %cst_81 = arith.constant dense<0.000000e+00> : vector<16xf32>
    %171 = vector.multi_reduction <add>, %170, %cst_81 [1] : vector<16x8xf32> to vector<16xf32>
    %172 = vector.shape_cast %171 : vector<16xf32> to vector<16x1xf32>
    %173 = vector.broadcast %172 : vector<16x1xf32> to vector<16x8xf32>
    %174 = arith.divf %170, %173 : vector<16x8xf32>
    %cst_82 = arith.constant dense<0.000000e+00> : vector<16x8xf32>
    %175 = tpu.matmul %174, %154, %cst_82 {dimension_numbers = #tpu.dot_dimension_numbers<[1], [0], [0], [1], [0, 0, 1, 1], [], []>} : vector<16x8xf32>, vector<8x8xf32>, vector<16x8xf32> -> vector<16x8xf32>
    %176 = vector.extract_strided_slice %148 {offsets = [0, 8], sizes = [16, 8], strides = [1, 1]} : vector<16x32xf32> to vector<16x8xf32>
    %177 = vector.extract_strided_slice %151 {offsets = [0, 8], sizes = [8, 8], strides = [1, 1]} : vector<8x64xf32> to vector<8x8xf32>
    %178 = vector.extract_strided_slice %151 {offsets = [0, 40], sizes = [8, 8], strides = [1, 1]} : vector<8x64xf32> to vector<8x8xf32>
    %cst_83 = arith.constant dense<0.000000e+00> : vector<16x8xf32>
    %179 = tpu.matmul %176, %177, %cst_83 {dimension_numbers = #tpu.dot_dimension_numbers<[1], [1], [0], [0], [0, 0, 1, 0], [], []>} : vector<16x8xf32>, vector<8x8xf32>, vector<16x8xf32> -> vector<16x8xf32>
    %cst_84 = arith.constant 0.353553385 : f32
    %180 = vector.broadcast %cst_84 : f32 to vector<16x8xf32>
    %181 = arith.mulf %179, %180 : vector<16x8xf32>
    %cst_85 = arith.constant 5.000000e-01 : f32
    %182 = vector.broadcast %cst_85 : f32 to vector<1x8xf32>
    %183 = arith.cmpf ogt, %7, %182 : vector<1x8xf32>
    %cst_86 = arith.constant -1.000000e+09 : f32
    %184 = vector.shape_cast %183 : vector<1x8xi1> to vector<1x8xi1>
    %185 = vector.broadcast %184 : vector<1x8xi1> to vector<16x8xi1>
    %186 = vector.broadcast %cst_86 : f32 to vector<16x8xf32>
    %187 = arith.select %185, %186, %181 : vector<16x8xi1>, vector<16x8xf32>
    %cst_87 = arith.constant dense<0xFF800000> : vector<16xf32>
    %188 = vector.multi_reduction <maximumf>, %187, %cst_87 [1] : vector<16x8xf32> to vector<16xf32>
    %cst_88 = arith.constant 0xFF800000 : f32
    %189 = vector.broadcast %cst_88 : f32 to vector<16xf32>
    %190 = arith.maximumf %189, %188 : vector<16xf32>
    %191 = vector.shape_cast %190 : vector<16xf32> to vector<16x1xf32>
    %192 = vector.broadcast %191 : vector<16x1xf32> to vector<16x8xf32>
    %193 = arith.subf %187, %192 : vector<16x8xf32>
    %194 = math.exp %193 : vector<16x8xf32>
    %cst_89 = arith.constant dense<0.000000e+00> : vector<16xf32>
    %195 = vector.multi_reduction <add>, %194, %cst_89 [1] : vector<16x8xf32> to vector<16xf32>
    %196 = vector.shape_cast %195 : vector<16xf32> to vector<16x1xf32>
    %197 = vector.broadcast %196 : vector<16x1xf32> to vector<16x8xf32>
    %198 = arith.divf %194, %197 : vector<16x8xf32>
    %cst_90 = arith.constant dense<0.000000e+00> : vector<16x8xf32>
    %199 = tpu.matmul %198, %178, %cst_90 {dimension_numbers = #tpu.dot_dimension_numbers<[1], [0], [0], [1], [0, 0, 1, 1], [], []>} : vector<16x8xf32>, vector<8x8xf32>, vector<16x8xf32> -> vector<16x8xf32>
    %200 = vector.extract_strided_slice %148 {offsets = [0, 16], sizes = [16, 8], strides = [1, 1]} : vector<16x32xf32> to vector<16x8xf32>
    %201 = vector.extract_strided_slice %151 {offsets = [0, 16], sizes = [8, 8], strides = [1, 1]} : vector<8x64xf32> to vector<8x8xf32>
    %202 = vector.extract_strided_slice %151 {offsets = [0, 48], sizes = [8, 8], strides = [1, 1]} : vector<8x64xf32> to vector<8x8xf32>
    %cst_91 = arith.constant dense<0.000000e+00> : vector<16x8xf32>
    %203 = tpu.matmul %200, %201, %cst_91 {dimension_numbers = #tpu.dot_dimension_numbers<[1], [1], [0], [0], [0, 0, 1, 0], [], []>} : vector<16x8xf32>, vector<8x8xf32>, vector<16x8xf32> -> vector<16x8xf32>
    %cst_92 = arith.constant 0.353553385 : f32
    %204 = vector.broadcast %cst_92 : f32 to vector<16x8xf32>
    %205 = arith.mulf %203, %204 : vector<16x8xf32>
    %cst_93 = arith.constant 5.000000e-01 : f32
    %206 = vector.broadcast %cst_93 : f32 to vector<1x8xf32>
    %207 = arith.cmpf ogt, %7, %206 : vector<1x8xf32>
    %cst_94 = arith.constant -1.000000e+09 : f32
    %208 = vector.shape_cast %207 : vector<1x8xi1> to vector<1x8xi1>
    %209 = vector.broadcast %208 : vector<1x8xi1> to vector<16x8xi1>
    %210 = vector.broadcast %cst_94 : f32 to vector<16x8xf32>
    %211 = arith.select %209, %210, %205 : vector<16x8xi1>, vector<16x8xf32>
    %cst_95 = arith.constant dense<0xFF800000> : vector<16xf32>
    %212 = vector.multi_reduction <maximumf>, %211, %cst_95 [1] : vector<16x8xf32> to vector<16xf32>
    %cst_96 = arith.constant 0xFF800000 : f32
    %213 = vector.broadcast %cst_96 : f32 to vector<16xf32>
    %214 = arith.maximumf %213, %212 : vector<16xf32>
    %215 = vector.shape_cast %214 : vector<16xf32> to vector<16x1xf32>
    %216 = vector.broadcast %215 : vector<16x1xf32> to vector<16x8xf32>
    %217 = arith.subf %211, %216 : vector<16x8xf32>
    %218 = math.exp %217 : vector<16x8xf32>
    %cst_97 = arith.constant dense<0.000000e+00> : vector<16xf32>
    %219 = vector.multi_reduction <add>, %218, %cst_97 [1] : vector<16x8xf32> to vector<16xf32>
    %220 = vector.shape_cast %219 : vector<16xf32> to vector<16x1xf32>
    %221 = vector.broadcast %220 : vector<16x1xf32> to vector<16x8xf32>
    %222 = arith.divf %218, %221 : vector<16x8xf32>
    %cst_98 = arith.constant dense<0.000000e+00> : vector<16x8xf32>
    %223 = tpu.matmul %222, %202, %cst_98 {dimension_numbers = #tpu.dot_dimension_numbers<[1], [0], [0], [1], [0, 0, 1, 1], [], []>} : vector<16x8xf32>, vector<8x8xf32>, vector<16x8xf32> -> vector<16x8xf32>
    %224 = vector.extract_strided_slice %148 {offsets = [0, 24], sizes = [16, 8], strides = [1, 1]} : vector<16x32xf32> to vector<16x8xf32>
    %225 = vector.extract_strided_slice %151 {offsets = [0, 24], sizes = [8, 8], strides = [1, 1]} : vector<8x64xf32> to vector<8x8xf32>
    %226 = vector.extract_strided_slice %151 {offsets = [0, 56], sizes = [8, 8], strides = [1, 1]} : vector<8x64xf32> to vector<8x8xf32>
    %cst_99 = arith.constant dense<0.000000e+00> : vector<16x8xf32>
    %227 = tpu.matmul %224, %225, %cst_99 {dimension_numbers = #tpu.dot_dimension_numbers<[1], [1], [0], [0], [0, 0, 1, 0], [], []>} : vector<16x8xf32>, vector<8x8xf32>, vector<16x8xf32> -> vector<16x8xf32>
    %cst_100 = arith.constant 0.353553385 : f32
    %228 = vector.broadcast %cst_100 : f32 to vector<16x8xf32>
    %229 = arith.mulf %227, %228 : vector<16x8xf32>
    %cst_101 = arith.constant 5.000000e-01 : f32
    %230 = vector.broadcast %cst_101 : f32 to vector<1x8xf32>
    %231 = arith.cmpf ogt, %7, %230 : vector<1x8xf32>
    %cst_102 = arith.constant -1.000000e+09 : f32
    %232 = vector.shape_cast %231 : vector<1x8xi1> to vector<1x8xi1>
    %233 = vector.broadcast %232 : vector<1x8xi1> to vector<16x8xi1>
    %234 = vector.broadcast %cst_102 : f32 to vector<16x8xf32>
    %235 = arith.select %233, %234, %229 : vector<16x8xi1>, vector<16x8xf32>
    %cst_103 = arith.constant dense<0xFF800000> : vector<16xf32>
    %236 = vector.multi_reduction <maximumf>, %235, %cst_103 [1] : vector<16x8xf32> to vector<16xf32>
    %cst_104 = arith.constant 0xFF800000 : f32
    %237 = vector.broadcast %cst_104 : f32 to vector<16xf32>
    %238 = arith.maximumf %237, %236 : vector<16xf32>
    %239 = vector.shape_cast %238 : vector<16xf32> to vector<16x1xf32>
    %240 = vector.broadcast %239 : vector<16x1xf32> to vector<16x8xf32>
    %241 = arith.subf %235, %240 : vector<16x8xf32>
    %242 = math.exp %241 : vector<16x8xf32>
    %cst_105 = arith.constant dense<0.000000e+00> : vector<16xf32>
    %243 = vector.multi_reduction <add>, %242, %cst_105 [1] : vector<16x8xf32> to vector<16xf32>
    %244 = vector.shape_cast %243 : vector<16xf32> to vector<16x1xf32>
    %245 = vector.broadcast %244 : vector<16x1xf32> to vector<16x8xf32>
    %246 = arith.divf %242, %245 : vector<16x8xf32>
    %cst_106 = arith.constant dense<0.000000e+00> : vector<16x8xf32>
    %247 = tpu.matmul %246, %226, %cst_106 {dimension_numbers = #tpu.dot_dimension_numbers<[1], [0], [0], [1], [0, 0, 1, 1], [], []>} : vector<16x8xf32>, vector<8x8xf32>, vector<16x8xf32> -> vector<16x8xf32>
    %248 = tpu.concatenate %175, %199, %223, %247 in 1 : vector<16x8xf32>, vector<16x8xf32>, vector<16x8xf32>, vector<16x8xf32> -> vector<16x32xf32>
    %cst_107 = arith.constant dense<0.000000e+00> : vector<16x32xf32>
    %249 = tpu.matmul %248, %144, %cst_107 {dimension_numbers = #tpu.dot_dimension_numbers<[1], [0], [0], [1], [0, 0, 1, 1], [], []>} : vector<16x32xf32>, vector<32x32xf32>, vector<16x32xf32> -> vector<16x32xf32>
    %250 = vector.broadcast %145 : vector<1x32xf32> to vector<16x32xf32>
    %251 = arith.addf %249, %250 : vector<16x32xf32>
    %252 = arith.addf %139, %251 : vector<16x32xf32>
    %c0_108 = arith.constant 0 : index
    %c0_109 = arith.constant 0 : index
    %253 = vector.load %arg17[%c0_108, %c0_109] : memref<1x32xf32, #tpu.memory_space<vmem>>, vector<1x32xf32>
    %c0_110 = arith.constant 0 : index
    %c0_111 = arith.constant 0 : index
    %254 = vector.load %arg18[%c0_110, %c0_111] : memref<1x32xf32, #tpu.memory_space<vmem>>, vector<1x32xf32>
    %cst_112 = arith.constant dense<0.000000e+00> : vector<16xf32>
    %255 = vector.multi_reduction <add>, %252, %cst_112 [1] : vector<16x32xf32> to vector<16xf32>
    %256 = vector.shape_cast %255 : vector<16xf32> to vector<16x1xf32>
    %cst_113 = arith.constant 3.200000e+01 : f32
    %257 = vector.broadcast %cst_113 : f32 to vector<16x1xf32>
    %258 = arith.divf %256, %257 : vector<16x1xf32>
    %259 = vector.broadcast %258 : vector<16x1xf32> to vector<16x32xf32>
    %260 = arith.subf %252, %259 : vector<16x32xf32>
    %261 = arith.mulf %260, %260 : vector<16x32xf32>
    %cst_114 = arith.constant dense<0.000000e+00> : vector<16xf32>
    %262 = vector.multi_reduction <add>, %261, %cst_114 [1] : vector<16x32xf32> to vector<16xf32>
    %263 = vector.shape_cast %262 : vector<16xf32> to vector<16x1xf32>
    %cst_115 = arith.constant 0.0322580636 : f32
    %264 = vector.broadcast %cst_115 : f32 to vector<16x1xf32>
    %265 = arith.mulf %263, %264 : vector<16x1xf32>
    %266 = vector.broadcast %258 : vector<16x1xf32> to vector<16x32xf32>
    %267 = arith.subf %252, %266 : vector<16x32xf32>
    %268 = vector.broadcast %253 : vector<1x32xf32> to vector<16x32xf32>
    %269 = arith.mulf %268, %267 : vector<16x32xf32>
    %270 = math.sqrt %265 : vector<16x1xf32>
    %cst_116 = arith.constant 9.99999997E-7 : f32
    %271 = vector.broadcast %cst_116 : f32 to vector<16x1xf32>
    %272 = arith.addf %270, %271 : vector<16x1xf32>
    %273 = vector.broadcast %272 : vector<16x1xf32> to vector<16x32xf32>
    %274 = arith.divf %269, %273 : vector<16x32xf32>
    %275 = vector.broadcast %254 : vector<1x32xf32> to vector<16x32xf32>
    %276 = arith.addf %274, %275 : vector<16x32xf32>
    %c0_117 = arith.constant 0 : index
    %c0_118 = arith.constant 0 : index
    %277 = vector.load %arg19[%c0_117, %c0_118] : memref<32x64xf32, #tpu.memory_space<vmem>>, vector<32x64xf32>
    %c0_119 = arith.constant 0 : index
    %c0_120 = arith.constant 0 : index
    %278 = vector.load %arg20[%c0_119, %c0_120] : memref<1x64xf32, #tpu.memory_space<vmem>>, vector<1x64xf32>
    %c0_121 = arith.constant 0 : index
    %c0_122 = arith.constant 0 : index
    %279 = vector.load %arg21[%c0_121, %c0_122] : memref<64x32xf32, #tpu.memory_space<vmem>>, vector<64x32xf32>
    %c0_123 = arith.constant 0 : index
    %c0_124 = arith.constant 0 : index
    %280 = vector.load %arg22[%c0_123, %c0_124] : memref<1x32xf32, #tpu.memory_space<vmem>>, vector<1x32xf32>
    %cst_125 = arith.constant dense<0.000000e+00> : vector<16x64xf32>
    %281 = tpu.matmul %276, %277, %cst_125 {dimension_numbers = #tpu.dot_dimension_numbers<[1], [0], [0], [1], [0, 0, 1, 1], [], []>} : vector<16x32xf32>, vector<32x64xf32>, vector<16x64xf32> -> vector<16x64xf32>
    %282 = vector.broadcast %278 : vector<1x64xf32> to vector<16x64xf32>
    %283 = arith.addf %281, %282 : vector<16x64xf32>
    %cst_126 = arith.constant 0.000000e+00 : f32
    %284 = vector.broadcast %cst_126 : f32 to vector<16x64xf32>
    %285 = arith.maximumf %283, %284 : vector<16x64xf32>
    %cst_127 = arith.constant dense<0.000000e+00> : vector<16x32xf32>
    %286 = tpu.matmul %285, %279, %cst_127 {dimension_numbers = #tpu.dot_dimension_numbers<[1], [0], [0], [1], [0, 0, 1, 1], [], []>} : vector<16x64xf32>, vector<64x32xf32>, vector<16x32xf32> -> vector<16x32xf32>
    %287 = vector.broadcast %280 : vector<1x32xf32> to vector<16x32xf32>
    %288 = arith.addf %286, %287 : vector<16x32xf32>
    %289 = arith.addf %276, %288 : vector<16x32xf32>
    %c0_128 = arith.constant 0 : index
    %c0_129 = arith.constant 0 : index
    %290 = vector.load %arg23[%c0_128, %c0_129] : memref<1x32xf32, #tpu.memory_space<vmem>>, vector<1x32xf32>
    %c0_130 = arith.constant 0 : index
    %c0_131 = arith.constant 0 : index
    %291 = vector.load %arg24[%c0_130, %c0_131] : memref<1x32xf32, #tpu.memory_space<vmem>>, vector<1x32xf32>
    %cst_132 = arith.constant dense<0.000000e+00> : vector<16xf32>
    %292 = vector.multi_reduction <add>, %289, %cst_132 [1] : vector<16x32xf32> to vector<16xf32>
    %293 = vector.shape_cast %292 : vector<16xf32> to vector<16x1xf32>
    %cst_133 = arith.constant 3.200000e+01 : f32
    %294 = vector.broadcast %cst_133 : f32 to vector<16x1xf32>
    %295 = arith.divf %293, %294 : vector<16x1xf32>
    %296 = vector.broadcast %295 : vector<16x1xf32> to vector<16x32xf32>
    %297 = arith.subf %289, %296 : vector<16x32xf32>
    %298 = arith.mulf %297, %297 : vector<16x32xf32>
    %cst_134 = arith.constant dense<0.000000e+00> : vector<16xf32>
    %299 = vector.multi_reduction <add>, %298, %cst_134 [1] : vector<16x32xf32> to vector<16xf32>
    %300 = vector.shape_cast %299 : vector<16xf32> to vector<16x1xf32>
    %cst_135 = arith.constant 0.0322580636 : f32
    %301 = vector.broadcast %cst_135 : f32 to vector<16x1xf32>
    %302 = arith.mulf %300, %301 : vector<16x1xf32>
    %303 = vector.broadcast %295 : vector<16x1xf32> to vector<16x32xf32>
    %304 = arith.subf %289, %303 : vector<16x32xf32>
    %305 = vector.broadcast %290 : vector<1x32xf32> to vector<16x32xf32>
    %306 = arith.mulf %305, %304 : vector<16x32xf32>
    %307 = math.sqrt %302 : vector<16x1xf32>
    %cst_136 = arith.constant 9.99999997E-7 : f32
    %308 = vector.broadcast %cst_136 : f32 to vector<16x1xf32>
    %309 = arith.addf %307, %308 : vector<16x1xf32>
    %310 = vector.broadcast %309 : vector<16x1xf32> to vector<16x32xf32>
    %311 = arith.divf %306, %310 : vector<16x32xf32>
    %312 = vector.broadcast %291 : vector<1x32xf32> to vector<16x32xf32>
    %313 = arith.addf %311, %312 : vector<16x32xf32>
    %c0_137 = arith.constant 0 : index
    %c0_138 = arith.constant 0 : index
    %c0_139 = arith.constant 0 : index
    %314 = vector.load %arg25[%c0_137, %c0_138, %c0_139] : memref<1x16x32xf32, #tpu.memory_space<vmem>>, vector<1x16x32xf32>
    %315 = vector.shape_cast %314 : vector<1x16x32xf32> to vector<16x32xf32>
    %316 = vector.shape_cast %313 : vector<16x32xf32> to vector<1x16x32xf32>
    tpu.vector_store %arg25[%c0_137, %c0_138, %c0_139], %316 {strides = array<i32>} : memref<1x16x32xf32, #tpu.memory_space<vmem>>, vector<1x16x32xf32>,
    return
  }
  func.func @transform_0(%arg0: i32) -> (i32, i32, i32) {
    %c0_i32 = arith.constant 0 : i32
    %c0_i32_0 = arith.constant 0 : i32
    %c0_i32_1 = arith.constant 0 : i32
    return %arg0, %c0_i32, %c0_i32_0 : i32, i32, i32
  }
  func.func @transform_1(%arg0: i32) -> (i32, i32, i32) {
    %c0_i32 = arith.constant 0 : i32
    %c0_i32_0 = arith.constant 0 : i32
    %c0_i32_1 = arith.constant 0 : i32
    return %arg0, %c0_i32, %c0_i32_0 : i32, i32, i32
  }
  func.func @transform_2(%arg0: i32) -> (i32, i32, i32) {
    %c0_i32 = arith.constant 0 : i32
    %c0_i32_0 = arith.constant 0 : i32
    %c0_i32_1 = arith.constant 0 : i32
    return %arg0, %c0_i32, %c0_i32_0 : i32, i32, i32
  }
  func.func @transform_3(%arg0: i32) -> (i32, i32, i32) {
    %c0_i32 = arith.constant 0 : i32
    %c0_i32_0 = arith.constant 0 : i32
    %c0_i32_1 = arith.constant 0 : i32
    return %arg0, %c0_i32, %c0_i32_0 : i32, i32, i32
  }
  func.func @transform_4(%arg0: i32) -> (i32, i32) {
    %c0_i32 = arith.constant 0 : i32
    %c0_i32_0 = arith.constant 0 : i32
    %c0_i32_1 = arith.constant 0 : i32
    return %c0_i32, %c0_i32_0 : i32, i32
  }
  func.func @transform_5(%arg0: i32) -> (i32, i32) {
    %c0_i32 = arith.constant 0 : i32
    %c0_i32_0 = arith.constant 0 : i32
    %c0_i32_1 = arith.constant 0 : i32
    return %c0_i32, %c0_i32_0 : i32, i32
  }
  func.func @transform_6(%arg0: i32) -> (i32, i32) {
    %c0_i32 = arith.constant 0 : i32
    %c0_i32_0 = arith.constant 0 : i32
    %c0_i32_1 = arith.constant 0 : i32
    return %c0_i32, %c0_i32_0 : i32, i32
  }
  func.func @transform_7(%arg0: i32) -> (i32, i32) {
    %c0_i32 = arith.constant 0 : i32
    %c0_i32_0 = arith.constant 0 : i32
    %c0_i32_1 = arith.constant 0 : i32
    return %c0_i32, %c0_i32_0 : i32, i32
  }
  func.func @transform_8(%arg0: i32) -> (i32, i32) {
    %c0_i32 = arith.constant 0 : i32
    %c0_i32_0 = arith.constant 0 : i32
    %c0_i32_1 = arith.constant 0 : i32
    return %c0_i32, %c0_i32_0 : i32, i32
  }
  func.func @transform_9(%arg0: i32) -> (i32, i32) {
    %c0_i32 = arith.constant 0 : i32
    %c0_i32_0 = arith.constant 0 : i32
    %c0_i32_1 = arith.constant 0 : i32
    return %c0_i32, %c0_i32_0 : i32, i32
  }
  func.func @transform_10(%arg0: i32) -> (i32, i32) {
    %c0_i32 = arith.constant 0 : i32
    %c0_i32_0 = arith.constant 0 : i32
    %c0_i32_1 = arith.constant 0 : i32
    return %c0_i32, %c0_i32_0 : i32, i32
  }
  func.func @transform_11(%arg0: i32) -> (i32, i32) {
    %c0_i32 = arith.constant 0 : i32
    %c0_i32_0 = arith.constant 0 : i32
    %c0_i32_1 = arith.constant 0 : i32
    return %c0_i32, %c0_i32_0 : i32, i32
  }
  func.func @transform_12(%arg0: i32) -> (i32, i32) {
    %c0_i32 = arith.constant 0 : i32
    %c0_i32_0 = arith.constant 0 : i32
    %c0_i32_1 = arith.constant 0 : i32
    return %c0_i32, %c0_i32_0 : i32, i32
  }
  func.func @transform_13(%arg0: i32) -> (i32, i32) {
    %c0_i32 = arith.constant 0 : i32
    %c0_i32_0 = arith.constant 0 : i32
    %c0_i32_1 = arith.constant 0 : i32
    return %c0_i32, %c0_i32_0 : i32, i32
  }
  func.func @transform_14(%arg0: i32) -> (i32, i32) {
    %c0_i32 = arith.constant 0 : i32
    %c0_i32_0 = arith.constant 0 : i32
    %c0_i32_1 = arith.constant 0 : i32
    return %c0_i32, %c0_i32_0 : i32, i32
  }
  func.func @transform_15(%arg0: i32) -> (i32, i32) {
    %c0_i32 = arith.constant 0 : i32
    %c0_i32_0 = arith.constant 0 : i32
    %c0_i32_1 = arith.constant 0 : i32
    return %c0_i32, %c0_i32_0 : i32, i32
  }
  func.func @transform_16(%arg0: i32) -> (i32, i32) {
    %c0_i32 = arith.constant 0 : i32
    %c0_i32_0 = arith.constant 0 : i32
    %c0_i32_1 = arith.constant 0 : i32
    return %c0_i32, %c0_i32_0 : i32, i32
  }
  func.func @transform_17(%arg0: i32) -> (i32, i32) {
    %c0_i32 = arith.constant 0 : i32
    %c0_i32_0 = arith.constant 0 : i32
    %c0_i32_1 = arith.constant 0 : i32
    return %c0_i32, %c0_i32_0 : i32, i32
  }
  func.func @transform_18(%arg0: i32) -> (i32, i32) {
    %c0_i32 = arith.constant 0 : i32
    %c0_i32_0 = arith.constant 0 : i32
    %c0_i32_1 = arith.constant 0 : i32
    return %c0_i32, %c0_i32_0 : i32, i32
  }
  func.func @transform_19(%arg0: i32) -> (i32, i32) {
    %c0_i32 = arith.constant 0 : i32
    %c0_i32_0 = arith.constant 0 : i32
    %c0_i32_1 = arith.constant 0 : i32
    return %c0_i32, %c0_i32_0 : i32, i32
  }
  func.func @transform_20(%arg0: i32) -> (i32, i32) {
    %c0_i32 = arith.constant 0 : i32
    %c0_i32_0 = arith.constant 0 : i32
    %c0_i32_1 = arith.constant 0 : i32
    return %c0_i32, %c0_i32_0 : i32, i32
  }
  func.func @transform_21(%arg0: i32) -> (i32, i32) {
    %c0_i32 = arith.constant 0 : i32
    %c0_i32_0 = arith.constant 0 : i32
    %c0_i32_1 = arith.constant 0 : i32
    return %c0_i32, %c0_i32_0 : i32, i32
  }
  func.func @transform_22(%arg0: i32) -> (i32, i32) {
    %c0_i32 = arith.constant 0 : i32
    %c0_i32_0 = arith.constant 0 : i32
    %c0_i32_1 = arith.constant 0 : i32
    return %c0_i32, %c0_i32_0 : i32, i32
  }
  func.func @transform_23(%arg0: i32) -> (i32, i32) {
    %c0_i32 = arith.constant 0 : i32
    %c0_i32_0 = arith.constant 0 : i32
    %c0_i32_1 = arith.constant 0 : i32
    return %c0_i32, %c0_i32_0 : i32, i32
  }
  func.func @transform_24(%arg0: i32) -> (i32, i32, i32) {
    %c0_i32 = arith.constant 0 : i32
    %c0_i32_0 = arith.constant 0 : i32
    %c0_i32_1 = arith.constant 0 : i32
    return %arg0, %c0_i32, %c0_i32_0 : i32, i32, i32
  }
}

module attributes {stable_mosaic.version = 11 : i64} {
  func.func @_head_kernel(%arg0: memref<2x8x32xf32, #tpu.memory_space<vmem>>, %arg1: memref<2x1x8xf32, #tpu.memory_space<vmem>>, %arg2: memref<2x16x32xf32, #tpu.memory_space<vmem>>, %arg3: memref<2x1x16xf32, #tpu.memory_space<vmem>>, %arg4: memref<32x16xf32, #tpu.memory_space<vmem>>, %arg5: memref<1x16xf32, #tpu.memory_space<vmem>>, %arg6: memref<16x1xf32, #tpu.memory_space<vmem>>, %arg7: memref<1x1xf32, #tpu.memory_space<vmem>>, %arg8: memref<32x64xf32, #tpu.memory_space<vmem>>, %arg9: memref<1x64xf32, #tpu.memory_space<vmem>>, %arg10: memref<32x16xf32, #tpu.memory_space<vmem>>, %arg11: memref<1x16xf32, #tpu.memory_space<vmem>>, %arg12: memref<16x1xf32, #tpu.memory_space<vmem>>, %arg13: memref<1x1xf32, #tpu.memory_space<vmem>>, %arg14: memref<32x64xf32, #tpu.memory_space<vmem>>, %arg15: memref<1x64xf32, #tpu.memory_space<vmem>>, %arg16: memref<1x64xf32, #tpu.memory_space<vmem>>, %arg17: memref<1x64xf32, #tpu.memory_space<vmem>>, %arg18: memref<64x10xf32, #tpu.memory_space<vmem>>, %arg19: memref<1x10xf32, #tpu.memory_space<vmem>>, %arg20: memref<2x10xf32, #tpu.memory_space<vmem>>) attributes {dimension_semantics = [], scalar_prefetch = 0 : i64, scratch_operands = 0 : i64, tpu.core_type = #tpu.core_type<tc>} {
    %c0 = arith.constant 0 : index
    %c0_0 = arith.constant 0 : index
    %c0_1 = arith.constant 0 : index
    %0 = vector.load %arg0[%c0, %c0_0, %c0_1] : memref<2x8x32xf32, #tpu.memory_space<vmem>>, vector<2x8x32xf32>
    %c0_2 = arith.constant 0 : index
    %c0_3 = arith.constant 0 : index
    %c0_4 = arith.constant 0 : index
    %1 = vector.load %arg1[%c0_2, %c0_3, %c0_4] : memref<2x1x8xf32, #tpu.memory_space<vmem>>, vector<2x1x8xf32>
    %c0_5 = arith.constant 0 : index
    %c0_6 = arith.constant 0 : index
    %2 = vector.load %arg4[%c0_5, %c0_6] : memref<32x16xf32, #tpu.memory_space<vmem>>, vector<32x16xf32>
    %c0_7 = arith.constant 0 : index
    %c0_8 = arith.constant 0 : index
    %3 = vector.load %arg5[%c0_7, %c0_8] : memref<1x16xf32, #tpu.memory_space<vmem>>, vector<1x16xf32>
    %c0_9 = arith.constant 0 : index
    %c0_10 = arith.constant 0 : index
    %4 = vector.load %arg6[%c0_9, %c0_10] : memref<16x1xf32, #tpu.memory_space<vmem>>, vector<16x1xf32>
    %c0_11 = arith.constant 0 : index
    %c0_12 = arith.constant 0 : index
    %5 = vector.load %arg7[%c0_11, %c0_12] : memref<1x1xf32, #tpu.memory_space<vmem>>, vector<1x1xf32>
    %c0_13 = arith.constant 0 : index
    %c0_14 = arith.constant 0 : index
    %6 = vector.load %arg8[%c0_13, %c0_14] : memref<32x64xf32, #tpu.memory_space<vmem>>, vector<32x64xf32>
    %c0_15 = arith.constant 0 : index
    %c0_16 = arith.constant 0 : index
    %7 = vector.load %arg9[%c0_15, %c0_16] : memref<1x64xf32, #tpu.memory_space<vmem>>, vector<1x64xf32>
    %8 = vector.shape_cast %0 : vector<2x8x32xf32> to vector<16x32xf32>
    %cst = arith.constant dense<0.000000e+00> : vector<16x16xf32>
    %9 = tpu.matmul %8, %2, %cst {dimension_numbers = #tpu.dot_dimension_numbers<[1], [0], [0], [1], [0, 0, 1, 1], [], []>} : vector<16x32xf32>, vector<32x16xf32>, vector<16x16xf32> -> vector<16x16xf32>
    %10 = vector.broadcast %3 : vector<1x16xf32> to vector<16x16xf32>
    %11 = arith.addf %9, %10 : vector<16x16xf32>
    %cst_17 = arith.constant 0.000000e+00 : f32
    %12 = vector.broadcast %cst_17 : f32 to vector<16x16xf32>
    %13 = arith.maximumf %11, %12 : vector<16x16xf32>
    %cst_18 = arith.constant dense<0.000000e+00> : vector<16x1xf32>
    %14 = tpu.matmul %13, %4, %cst_18 {dimension_numbers = #tpu.dot_dimension_numbers<[1], [0], [0], [1], [0, 0, 1, 1], [], []>} : vector<16x16xf32>, vector<16x1xf32>, vector<16x1xf32> -> vector<16x1xf32>
    %15 = vector.broadcast %5 : vector<1x1xf32> to vector<16x1xf32>
    %16 = arith.addf %14, %15 : vector<16x1xf32>
    %17 = vector.shape_cast %16 : vector<16x1xf32> to vector<2x8x1xf32>
    %18 = vector.shape_cast %1 : vector<2x1x8xf32> to vector<2x8xf32>
    %19 = vector.shape_cast %18 : vector<2x8xf32> to vector<2x8x1xf32>
    %cst_19 = arith.constant 5.000000e-01 : f32
    %20 = vector.broadcast %cst_19 : f32 to vector<2x8x1xf32>
    %21 = arith.cmpf ogt, %19, %20 : vector<2x8x1xf32>
    %cst_20 = arith.constant -1.000000e+09 : f32
    %22 = vector.broadcast %cst_20 : f32 to vector<2x8x1xf32>
    %23 = arith.select %21, %22, %17 : vector<2x8x1xi1>, vector<2x8x1xf32>
    %cst_21 = arith.constant dense<0xFF800000> : vector<2x1xf32>
    %24 = vector.multi_reduction <maximumf>, %23, %cst_21 [1] : vector<2x8x1xf32> to vector<2x1xf32>
    %cst_22 = arith.constant 0xFF800000 : f32
    %25 = vector.broadcast %cst_22 : f32 to vector<2x1xf32>
    %26 = arith.maximumf %25, %24 : vector<2x1xf32>
    %27 = vector.shape_cast %26 : vector<2x1xf32> to vector<2x1x1xf32>
    %28 = vector.broadcast %27 : vector<2x1x1xf32> to vector<2x8x1xf32>
    %29 = arith.subf %23, %28 : vector<2x8x1xf32>
    %30 = math.exp %29 : vector<2x8x1xf32>
    %cst_23 = arith.constant dense<0.000000e+00> : vector<2x1xf32>
    %31 = vector.multi_reduction <add>, %30, %cst_23 [1] : vector<2x8x1xf32> to vector<2x1xf32>
    %32 = vector.shape_cast %31 : vector<2x1xf32> to vector<2x1x1xf32>
    %33 = vector.broadcast %32 : vector<2x1x1xf32> to vector<2x8x1xf32>
    %34 = arith.divf %30, %33 : vector<2x8x1xf32>
    %35 = vector.broadcast %34 : vector<2x8x1xf32> to vector<2x8x32xf32>
    %36 = arith.mulf %35, %0 : vector<2x8x32xf32>
    %cst_24 = arith.constant dense<0.000000e+00> : vector<2x32xf32>
    %37 = vector.multi_reduction <add>, %36, %cst_24 [1] : vector<2x8x32xf32> to vector<2x32xf32>
    %cst_25 = arith.constant dense<0.000000e+00> : vector<2x64xf32>
    %38 = tpu.matmul %37, %6, %cst_25 {dimension_numbers = #tpu.dot_dimension_numbers<[1], [0], [0], [1], [0, 0, 1, 1], [], []>} : vector<2x32xf32>, vector<32x64xf32>, vector<2x64xf32> -> vector<2x64xf32>
    %39 = vector.broadcast %7 : vector<1x64xf32> to vector<2x64xf32>
    %40 = arith.addf %38, %39 : vector<2x64xf32>
    %c0_26 = arith.constant 0 : index
    %c0_27 = arith.constant 0 : index
    %c0_28 = arith.constant 0 : index
    %41 = vector.load %arg2[%c0_26, %c0_27, %c0_28] : memref<2x16x32xf32, #tpu.memory_space<vmem>>, vector<2x16x32xf32>
    %c0_29 = arith.constant 0 : index
    %c0_30 = arith.constant 0 : index
    %c0_31 = arith.constant 0 : index
    %42 = vector.load %arg3[%c0_29, %c0_30, %c0_31] : memref<2x1x16xf32, #tpu.memory_space<vmem>>, vector<2x1x16xf32>
    %c0_32 = arith.constant 0 : index
    %c0_33 = arith.constant 0 : index
    %43 = vector.load %arg10[%c0_32, %c0_33] : memref<32x16xf32, #tpu.memory_space<vmem>>, vector<32x16xf32>
    %c0_34 = arith.constant 0 : index
    %c0_35 = arith.constant 0 : index
    %44 = vector.load %arg11[%c0_34, %c0_35] : memref<1x16xf32, #tpu.memory_space<vmem>>, vector<1x16xf32>
    %c0_36 = arith.constant 0 : index
    %c0_37 = arith.constant 0 : index
    %45 = vector.load %arg12[%c0_36, %c0_37] : memref<16x1xf32, #tpu.memory_space<vmem>>, vector<16x1xf32>
    %c0_38 = arith.constant 0 : index
    %c0_39 = arith.constant 0 : index
    %46 = vector.load %arg13[%c0_38, %c0_39] : memref<1x1xf32, #tpu.memory_space<vmem>>, vector<1x1xf32>
    %c0_40 = arith.constant 0 : index
    %c0_41 = arith.constant 0 : index
    %47 = vector.load %arg14[%c0_40, %c0_41] : memref<32x64xf32, #tpu.memory_space<vmem>>, vector<32x64xf32>
    %c0_42 = arith.constant 0 : index
    %c0_43 = arith.constant 0 : index
    %48 = vector.load %arg15[%c0_42, %c0_43] : memref<1x64xf32, #tpu.memory_space<vmem>>, vector<1x64xf32>
    %49 = vector.shape_cast %41 : vector<2x16x32xf32> to vector<32x32xf32>
    %cst_44 = arith.constant dense<0.000000e+00> : vector<32x16xf32>
    %50 = tpu.matmul %49, %43, %cst_44 {dimension_numbers = #tpu.dot_dimension_numbers<[1], [0], [0], [1], [0, 0, 1, 1], [], []>} : vector<32x32xf32>, vector<32x16xf32>, vector<32x16xf32> -> vector<32x16xf32>
    %51 = vector.broadcast %44 : vector<1x16xf32> to vector<32x16xf32>
    %52 = arith.addf %50, %51 : vector<32x16xf32>
    %cst_45 = arith.constant 0.000000e+00 : f32
    %53 = vector.broadcast %cst_45 : f32 to vector<32x16xf32>
    %54 = arith.maximumf %52, %53 : vector<32x16xf32>
    %cst_46 = arith.constant dense<0.000000e+00> : vector<32x1xf32>
    %55 = tpu.matmul %54, %45, %cst_46 {dimension_numbers = #tpu.dot_dimension_numbers<[1], [0], [0], [1], [0, 0, 1, 1], [], []>} : vector<32x16xf32>, vector<16x1xf32>, vector<32x1xf32> -> vector<32x1xf32>
    %56 = vector.broadcast %46 : vector<1x1xf32> to vector<32x1xf32>
    %57 = arith.addf %55, %56 : vector<32x1xf32>
    %58 = vector.shape_cast %57 : vector<32x1xf32> to vector<2x16x1xf32>
    %59 = vector.shape_cast %42 : vector<2x1x16xf32> to vector<2x16xf32>
    %60 = vector.shape_cast %59 : vector<2x16xf32> to vector<2x16x1xf32>
    %cst_47 = arith.constant 5.000000e-01 : f32
    %61 = vector.broadcast %cst_47 : f32 to vector<2x16x1xf32>
    %62 = arith.cmpf ogt, %60, %61 : vector<2x16x1xf32>
    %cst_48 = arith.constant -1.000000e+09 : f32
    %63 = vector.broadcast %cst_48 : f32 to vector<2x16x1xf32>
    %64 = arith.select %62, %63, %58 : vector<2x16x1xi1>, vector<2x16x1xf32>
    %cst_49 = arith.constant dense<0xFF800000> : vector<2x1xf32>
    %65 = vector.multi_reduction <maximumf>, %64, %cst_49 [1] : vector<2x16x1xf32> to vector<2x1xf32>
    %cst_50 = arith.constant 0xFF800000 : f32
    %66 = vector.broadcast %cst_50 : f32 to vector<2x1xf32>
    %67 = arith.maximumf %66, %65 : vector<2x1xf32>
    %68 = vector.shape_cast %67 : vector<2x1xf32> to vector<2x1x1xf32>
    %69 = vector.broadcast %68 : vector<2x1x1xf32> to vector<2x16x1xf32>
    %70 = arith.subf %64, %69 : vector<2x16x1xf32>
    %71 = math.exp %70 : vector<2x16x1xf32>
    %cst_51 = arith.constant dense<0.000000e+00> : vector<2x1xf32>
    %72 = vector.multi_reduction <add>, %71, %cst_51 [1] : vector<2x16x1xf32> to vector<2x1xf32>
    %73 = vector.shape_cast %72 : vector<2x1xf32> to vector<2x1x1xf32>
    %74 = vector.broadcast %73 : vector<2x1x1xf32> to vector<2x16x1xf32>
    %75 = arith.divf %71, %74 : vector<2x16x1xf32>
    %76 = vector.broadcast %75 : vector<2x16x1xf32> to vector<2x16x32xf32>
    %77 = arith.mulf %76, %41 : vector<2x16x32xf32>
    %cst_52 = arith.constant dense<0.000000e+00> : vector<2x32xf32>
    %78 = vector.multi_reduction <add>, %77, %cst_52 [1] : vector<2x16x32xf32> to vector<2x32xf32>
    %cst_53 = arith.constant dense<0.000000e+00> : vector<2x64xf32>
    %79 = tpu.matmul %78, %47, %cst_53 {dimension_numbers = #tpu.dot_dimension_numbers<[1], [0], [0], [1], [0, 0, 1, 1], [], []>} : vector<2x32xf32>, vector<32x64xf32>, vector<2x64xf32> -> vector<2x64xf32>
    %80 = vector.broadcast %48 : vector<1x64xf32> to vector<2x64xf32>
    %81 = arith.addf %79, %80 : vector<2x64xf32>
    %82 = arith.addf %40, %81 : vector<2x64xf32>
    %c0_54 = arith.constant 0 : index
    %c0_55 = arith.constant 0 : index
    %83 = vector.load %arg16[%c0_54, %c0_55] : memref<1x64xf32, #tpu.memory_space<vmem>>, vector<1x64xf32>
    %c0_56 = arith.constant 0 : index
    %c0_57 = arith.constant 0 : index
    %84 = vector.load %arg17[%c0_56, %c0_57] : memref<1x64xf32, #tpu.memory_space<vmem>>, vector<1x64xf32>
    %cst_58 = arith.constant dense<0.000000e+00> : vector<2xf32>
    %85 = vector.multi_reduction <add>, %82, %cst_58 [1] : vector<2x64xf32> to vector<2xf32>
    %86 = vector.shape_cast %85 : vector<2xf32> to vector<2x1xf32>
    %cst_59 = arith.constant 6.400000e+01 : f32
    %87 = vector.broadcast %cst_59 : f32 to vector<2x1xf32>
    %88 = arith.divf %86, %87 : vector<2x1xf32>
    %89 = vector.broadcast %88 : vector<2x1xf32> to vector<2x64xf32>
    %90 = arith.subf %82, %89 : vector<2x64xf32>
    %91 = arith.mulf %90, %90 : vector<2x64xf32>
    %cst_60 = arith.constant dense<0.000000e+00> : vector<2xf32>
    %92 = vector.multi_reduction <add>, %91, %cst_60 [1] : vector<2x64xf32> to vector<2xf32>
    %93 = vector.shape_cast %92 : vector<2xf32> to vector<2x1xf32>
    %cst_61 = arith.constant 0.0158730168 : f32
    %94 = vector.broadcast %cst_61 : f32 to vector<2x1xf32>
    %95 = arith.mulf %93, %94 : vector<2x1xf32>
    %96 = vector.broadcast %88 : vector<2x1xf32> to vector<2x64xf32>
    %97 = arith.subf %82, %96 : vector<2x64xf32>
    %98 = vector.broadcast %83 : vector<1x64xf32> to vector<2x64xf32>
    %99 = arith.mulf %98, %97 : vector<2x64xf32>
    %100 = math.sqrt %95 : vector<2x1xf32>
    %cst_62 = arith.constant 9.99999997E-7 : f32
    %101 = vector.broadcast %cst_62 : f32 to vector<2x1xf32>
    %102 = arith.addf %100, %101 : vector<2x1xf32>
    %103 = vector.broadcast %102 : vector<2x1xf32> to vector<2x64xf32>
    %104 = arith.divf %99, %103 : vector<2x64xf32>
    %105 = vector.broadcast %84 : vector<1x64xf32> to vector<2x64xf32>
    %106 = arith.addf %104, %105 : vector<2x64xf32>
    %c0_63 = arith.constant 0 : index
    %c0_64 = arith.constant 0 : index
    %107 = vector.load %arg18[%c0_63, %c0_64] : memref<64x10xf32, #tpu.memory_space<vmem>>, vector<64x10xf32>
    %cst_65 = arith.constant dense<0.000000e+00> : vector<2x10xf32>
    %108 = tpu.matmul %106, %107, %cst_65 {dimension_numbers = #tpu.dot_dimension_numbers<[1], [0], [0], [1], [0, 0, 1, 1], [], []>} : vector<2x64xf32>, vector<64x10xf32>, vector<2x10xf32> -> vector<2x10xf32>
    %c0_66 = arith.constant 0 : index
    %c0_67 = arith.constant 0 : index
    %109 = vector.load %arg19[%c0_66, %c0_67] : memref<1x10xf32, #tpu.memory_space<vmem>>, vector<1x10xf32>
    %110 = vector.broadcast %109 : vector<1x10xf32> to vector<2x10xf32>
    %111 = arith.addf %108, %110 : vector<2x10xf32>
    %112 = arith.negf %111 : vector<2x10xf32>
    %113 = math.exp %112 : vector<2x10xf32>
    %cst_68 = arith.constant 1.000000e+00 : f32
    %114 = vector.broadcast %cst_68 : f32 to vector<2x10xf32>
    %115 = arith.addf %114, %113 : vector<2x10xf32>
    %116 = arith.divf %114, %115 : vector<2x10xf32>
    %c0_69 = arith.constant 0 : index
    %c0_70 = arith.constant 0 : index
    %117 = vector.load %arg20[%c0_69, %c0_70] : memref<2x10xf32, #tpu.memory_space<vmem>>, vector<2x10xf32>
    tpu.vector_store %arg20[%c0_69, %c0_70], %116 {strides = array<i32>} : memref<2x10xf32, #tpu.memory_space<vmem>>, vector<2x10xf32>,
    return
  }
}

</mosaic_0001>

<llo_original>
// kernel: net_forward.8
$region0: #{net_forward.8}
  #allocation0 [shape = 'u32[]', space=smem, size = 0x4, offset = 0x4, fixed_abs, tag = 'smem constant byte address 0x4 - core index']
  #allocation1 [shape = 'u32[72,128]{1,0:T(1,128)}', space=vmem, size = 0x9000, scoped, tag = 'internal scratch']
  %s0 = inlined_call_operand.vmem [shape: f32[2,16,48], index: 0, kind: input, shape index: {}]
  %s1 = inlined_call_operand.vmem [shape: f32[48,32], index: 1, kind: input, shape index: {}]
  %s2 = inlined_call_operand.vmem [shape: f32[1,32], index: 2, kind: input, shape index: {}]
  %s3 = inlined_call_operand.vmem [shape: f32[2,16,32], index: 3, kind: output, shape index: {0}]
  %s4 = inlined_call_operand.vmem [shape: f32[2,1,16], index: 4, kind: output, shape index: {1}]
  %5 = xla_tuple %s3, %s4
  %s6 = sld [smem:[#allocation0]]
  $region30: #{net_forward.8} parent=0
    _
  %s8 = ssub.s32 1, %s6
  %s9 = scalar_select 0, %s8, %s6
  // Predicated region
  $region2: #{net_forward.8} parent=0 // pred_check
    _
  $region3: #{net_forward.8} parent=0 // pred_check_branch
    %11 = sbr.rel (0) target = $region5
  $region4: #{net_forward.8} parent=0 // pred_region
    _
  $region5: #{net_forward.8} parent=0 // pred_fallthru
    _
  // Predicated region
  $region6: #{net_forward.8} parent=0 // pred_check
    _
  $region7: #{net_forward.8} parent=0 // pred_check_branch
    %13 = sbr.rel (0) target = $region9
  $region8: #{net_forward.8} parent=0 // pred_region
    _
  $region9: #{net_forward.8} parent=0 // pred_fallthru
    _
  // Predicated region
  $region10: #{net_forward.8} parent=0 // pred_check
    _
  $region11: #{net_forward.8} parent=0 // pred_check_branch
    %15 = sbr.rel (0) target = $region13
  $region12: #{net_forward.8} parent=0 // pred_region
    _
  $region13: #{net_forward.8} parent=0 // pred_fallthru
    _
  %v16 = vld [vmem:[%s0] sm:$0xff]
  %v17 = vld [vmem:[%s0 + $0x8] sm:$0xff]
  %v18 = vld [vmem:[%s0 + $0x10] sm:$0xff]
  %v19 = vld [vmem:[%s0 + $0x18] sm:$0xff]
  %v20 = vld [vmem:[%s1] sm:$0xff]
  %v21 = vld [vmem:[%s1 + $0x8] sm:$0xff]
  %v22 = vld [vmem:[%s1 + $0x10] sm:$0xff]
  %v23 = vld [vmem:[%s1 + $0x18] sm:$0xff]
  %v24 = vld [vmem:[%s1 + $0x20] sm:$0xff]
  %v25 = vld [vmem:[%s1 + $0x28] sm:$0xff]
  %v26 = vld [vmem:[%s2] sm:$0x1]
  %v28 = vperm.slane %v26, 0
  %vm30 = vcmask 392192
  %v32 = vsel %vm30, %v16, 0
  %v35 = vsel %vm30, %v17, 0
  %v38 = vsel %vm30, %v18, 0
  %v41 = vsel %vm30, %v19, 0
  %43 = vmatpush.msra.mxu0 0.0
  %44 = vmatpush.msra.mxu0 0.0
  %45 = vmatpush.msra.mxu0 0.0
  %46 = vmatpush.msra.mxu0 0.0
  %47 = vmatpush.msra.mxu0 0.0
  %48 = vmatpush.msra.mxu0 0.0
  %49 = vmatpush.msra.mxu0 0.0
  %50 = vmatpush.msra.mxu0 0.0
  %51 = vmatpush.msra.mxu0 0.0
  %52 = vmatpush.msra.mxu0 0.0
  %53 = vmatpush.msra.mxu0 %v25
  %54 = vmatpush.msra.mxu0 %v24
  %55 = vmatpush.msra.mxu0 %v23
  %56 = vmatpush.msra.mxu0 %v22
  %57 = vmatpush.msra.mxu0 %v21
  %58 = vmatpush.msra.mxu0 %v20
  %59 = vmatmul.f32.gmra.mxu0 %v32
  %v60 = vpop.f32.mrf.mxu0
  %v61 = vadd.f32 %v28, %v60
  %62 = vmatmul.f32.gmra.mxu0 %v35
  %v63 = vpop.f32.mrf.mxu0
  %v64 = vadd.f32 %v28, %v63
  %65 = vmatmul.f32.gmra.mxu0 %v38
  %v66 = vpop.f32.mrf.mxu0
  %v67 = vadd.f32 %v28, %v66
  %68 = vmatmul.f32.gmra.mxu0 %v41
  %v69 = vpop.f32.mrf.mxu0
  %v70 = vadd.f32 %v28, %v69
  %71 = vdwg.mxu0
  %vm72 = vcmask 261120
  %73 = vst.msk [vmem:[%s3] sm:$0xff] %vm72, %v61
  %74 = vst.msk [vmem:[%s3 + $0x8] sm:$0xff] %vm72, %v64
  %75 = vst.msk [vmem:[%s3 + $0x10] sm:$0xff] %vm72, %v67
  %76 = vst.msk [vmem:[%s3 + $0x18] sm:$0xff] %vm72, %v70
  %v77 = vand.u32 2147483647, %v16
  %v78 = vand.u32 2147483647, %v17
  %v79 = vand.u32 2147483647, %v18
  %v80 = vand.u32 2147483647, %v19
  %v81 = vsel %vm30, %v77, 0.0
  %82 = vadd.xlane.f32.xlu0 %v81
  %v83 = vpop.xlane.xlu0 %82
  %v84 = vsel %vm30, %v78, 0.0
  %85 = vadd.xlane.f32.xlu0 %v84
  %v86 = vpop.xlane.xlu0 %85
  %v87 = vsel %vm30, %v79, 0.0
  %88 = vadd.xlane.f32.xlu0 %v87
  %v89 = vpop.xlane.xlu0 %88
  %v90 = vsel %vm30, %v80, 0.0
  %91 = vadd.xlane.f32.xlu0 %v90
  %v92 = vpop.xlane.xlu0 %91
  %vm93 = vcmp.eq.f32.partialorder %v83, 0.0
  %vm94 = vcmp.eq.f32.partialorder %v86, 0.0
  %vm95 = vcmp.eq.f32.partialorder %v89, 0.0
  %vm96 = vcmp.eq.f32.partialorder %v92, 0.0
  %v97 = vsel %vm93, 1, 0
  %v98 = vsel %vm94, 1, 0
  %v99 = vsel %vm95, 1, 0
  %v100 = vsel %vm96, 1, 0
  %v101 = vcvt.s32.f32 %v97
  %v102 = vcvt.s32.f32 %v98
  %v103 = vcvt.s32.f32 %v99
  %v104 = vcvt.s32.f32 %v100
  %v109 = vlaneseq
  %v110 = vand.u32 %v109, 127
  %v111 = vperm.slane %v101, %v110
  %v112 = vadd.s32 %v110, 4294967288
  %v113 = vperm.slane %v102, %v112
  %vm114 = vcmask 130112
  %v115 = vsel %vm114, %v113, %v111
  %v116 = vperm.slane %v103, %v110
  %v117 = vperm.slane %v104, %v112
  %v118 = vsel %vm114, %v117, %v116
  %vm121 = vcmask 122880
  %122 = vst.msk [vmem:[%s4] sm:$0x1] %vm121, %v115
  %123 = vst.msk [vmem:[%s4 + $0x1] sm:$0x1] %vm121, %v118
  // Predicated region
  $region14: #{net_forward.8} parent=0 // pred_check
    _
  $region15: #{net_forward.8} parent=0 // pred_check_branch
    %125 = sbr.rel (0) target = $region17
  $region16: #{net_forward.8} parent=0 // pred_region
    _
  $region17: #{net_forward.8} parent=0 // pred_fallthru
    _
  // Predicated region
  $region18: #{net_forward.8} parent=0 // pred_check
    _
  $region19: #{net_forward.8} parent=0 // pred_check_branch
    %127 = sbr.rel (0) target = $region21
  $region20: #{net_forward.8} parent=0 // pred_region
    _
  $region21: #{net_forward.8} parent=0 // pred_fallthru
    _
  // Predicated region
  $region22: #{net_forward.8} parent=0 // pred_check
    _
  $region23: #{net_forward.8} parent=0 // pred_check_branch
    %129 = sbr.rel (0) target = $region25
  $region24: #{net_forward.8} parent=0 // pred_region
    _
  $region25: #{net_forward.8} parent=0 // pred_fallthru
    _
  // Predicated region
  $region26: #{net_forward.8} parent=0 // pred_check
    _
  $region27: #{net_forward.8} parent=0 // pred_check_branch
    %131 = sbr.rel (0) target = $region29
  $region28: #{net_forward.8} parent=0 // pred_region
    _
  $region29: #{net_forward.8} parent=0 // pred_fallthru
    _

// kernel: net_forward.9
$region0: #{net_forward.9}
  #allocation0 [shape = 'u32[]', space=smem, size = 0x4, offset = 0x4, fixed_abs, tag = 'smem constant byte address 0x4 - core index']
  #allocation1 [shape = 'u32[72,128]{1,0:T(1,128)}', space=vmem, size = 0x9000, scoped, tag = 'internal scratch']
  %s0 = inlined_call_operand.vmem [shape: f32[2,8,32], index: 0, kind: input, shape index: {}]
  %s1 = inlined_call_operand.vmem [shape: f32[2,1,8], index: 1, kind: input, shape index: {}]
  %s2 = inlined_call_operand.vmem [shape: f32[32,96], index: 2, kind: input, shape index: {}]
  %s3 = inlined_call_operand.vmem [shape: f32[1,96], index: 3, kind: input, shape index: {}]
  %s4 = inlined_call_operand.vmem [shape: f32[32,32], index: 4, kind: input, shape index: {}]
  %s5 = inlined_call_operand.vmem [shape: f32[1,32], index: 5, kind: input, shape index: {}]
  %s6 = inlined_call_operand.vmem [shape: f32[1,32], index: 6, kind: input, shape index: {}]
  %s7 = inlined_call_operand.vmem [shape: f32[1,32], index: 7, kind: input, shape index: {}]
  %s8 = inlined_call_operand.vmem [shape: f32[32,64], index: 8, kind: input, shape index: {}]
  %s9 = inlined_call_operand.vmem [shape: f32[1,64], index: 9, kind: input, shape index: {}]
  %s10 = inlined_call_operand.vmem [shape: f32[64,32], index: 10, kind: input, shape index: {}]
  %s11 = inlined_call_operand.vmem [shape: f32[1,32], index: 11, kind: input, shape index: {}]
  %s12 = inlined_call_operand.vmem [shape: f32[1,32], index: 12, kind: input, shape index: {}]
  %s13 = inlined_call_operand.vmem [shape: f32[1,32], index: 13, kind: input, shape index: {}]
  %s14 = inlined_call_operand.vmem [shape: f32[2,8,32], index: 14, kind: output, shape index: {}]
  %s15 = sld [smem:[#allocation0]]
  $region89: #{net_forward.9} parent=0
    _
  %s17 = ssub.s32 1, %s15
  %s18 = scalar_select 0, %s17, %s15
  loop: start=0, step=1, limit=4
  $region2: #{net_forward.9} parent=0 // loop_pre_header
    _
  $region3: #{net_forward.9} parent=0 // loop_header
    %s20 = sphi 0, %s24
    %p21 = scmp.ge.s32.totalorder %s20, 4
    %s30 = sphi 0, %s32
    %s33 = sphi 0, %s30
    %s34 = sphi 0, %s33
    %s50 = sphi 0, %s34
    %s56 = sphi 0, %s58
    %s59 = sphi 0, %s56
    %s60 = sphi 0, %s59
    %s76 = sphi 0, %s60
    %s80 = sphi 0, %s80
    %s82 = sphi 0, %s80
    %s83 = sphi 0, %s82
    %s97 = sphi 0, %s83
    %s101 = sphi 0, %s101
    %s103 = sphi 0, %s101
    %s104 = sphi 0, %s103
    %s118 = sphi 0, %s104
    %s122 = sphi 0, %s122
    %s124 = sphi 0, %s122
    %s125 = sphi 0, %s124
    %s139 = sphi 0, %s125
    %s143 = sphi 0, %s143
    %s145 = sphi 0, %s143
    %s146 = sphi 0, %s145
    %s160 = sphi 0, %s146
    %s164 = sphi 0, %s164
    %s166 = sphi 0, %s164
    %s167 = sphi 0, %s166
    %s181 = sphi 0, %s167
    %s185 = sphi 0, %s185
    %s187 = sphi 0, %s185
    %s188 = sphi 0, %s187
    %s202 = sphi 0, %s188
    %s206 = sphi 0, %s206
    %s208 = sphi 0, %s206
    %s209 = sphi 0, %s208
    %s223 = sphi 0, %s209
    %s227 = sphi 0, %s227
    %s229 = sphi 0, %s227
    %s230 = sphi 0, %s229
    %s244 = sphi 0, %s230
    %s248 = sphi 0, %s248
    %s250 = sphi 0, %s248
    %s251 = sphi 0, %s250
    %s265 = sphi 0, %s251
    %s269 = sphi 0, %s269
    %s271 = sphi 0, %s269
    %s272 = sphi 0, %s271
    %s286 = sphi 0, %s272
    %s290 = sphi 0, %s290
    %s292 = sphi 0, %s290
    %s293 = sphi 0, %s292
    %s307 = sphi 0, %s293
    %s311 = sphi 0, %s311
    %s313 = sphi 0, %s311
    %s314 = sphi 0, %s313
    %s328 = sphi 0, %s314
    %s334 = sphi 0, %s336
    %s337 = sphi 0, %s334
    %s338 = sphi 0, %s337
    %s354 = sphi 0, %s338
  $region4: #{net_forward.9} parent=0 // loop_header_branch
    %23 = sbr.rel (%p21) target = $region8
  $region5: #{net_forward.9} parent=0 // loop_body
    %s25 = ssub.s32 %s20, 1
    %s26 = ssub.s32 %s20, 2
    %s27 = sadd.s32 %s20, 1
    %s28 = ssub.s32 %s20, %s27
    %p29 = scmp.eq.s32.totalorder %s28, 0
    %s31 = sadd.s32 %s30, 1
    %s32 = scalar_select %p29, %s30, %s31
    %p35 = pneg %p29
    %p36 = scmp.eq.s32.totalorder %s20, 1
    %p37 = por %p35, %p36
    %p38 = scmp.ne.s32.totalorder %s30, %s33
    %p39 = scmp.eq.s32.totalorder %s20, 0
    %p40 = por %p38, %p39
    %p41 = scmp.ne.s32.totalorder %s30, %s33
    %p42 = scmp.eq.s32.totalorder %s25, 1
    %p43 = por %p41, %p42
    %p44 = scmp.ne.s32.totalorder %s33, %s34
    %p45 = scmp.eq.s32.totalorder %s25, 0
    %p46 = por %p44, %p45
    %p47 = scmp.ne.s32.totalorder %s33, %s34
    %p48 = scmp.eq.s32.totalorder %s26, 1
    %p49 = por %p47, %p48
    %p51 = scmp.ne.s32.totalorder %s34, %s50
    %p52 = scmp.eq.s32.totalorder %s26, 0
    %p53 = por %p51, %p52
    %s54 = ssub.s32 %s20, %s27
    %p55 = scmp.eq.s32.totalorder %s54, 0
    %s57 = sadd.s32 %s56, 1
    %s58 = scalar_select %p55, %s56, %s57
    %p61 = pneg %p55
    %p62 = scmp.eq.s32.totalorder %s20, 1
    %p63 = por %p61, %p62
    %p64 = scmp.ne.s32.totalorder %s56, %s59
    %p65 = scmp.eq.s32.totalorder %s20, 0
    %p66 = por %p64, %p65
    %p67 = scmp.ne.s32.totalorder %s56, %s59
    %p68 = scmp.eq.s32.totalorder %s25, 1
    %p69 = por %p67, %p68
    %p70 = scmp.ne.s32.totalorder %s59, %s60
    %p71 = scmp.eq.s32.totalorder %s25, 0
    %p72 = por %p70, %p71
    %p73 = scmp.ne.s32.totalorder %s59, %s60
    %p74 = scmp.eq.s32.totalorder %s26, 1
    %p75 = por %p73, %p74
    %p77 = scmp.ne.s32.totalorder %s60, %s76
    %p78 = scmp.eq.s32.totalorder %s26, 0
    %p79 = por %p77, %p78
    %s81 = sadd.s32 %s80, 1
    %p84 = scmp.eq.s32.totalorder %s20, 1
    %p85 = scmp.ne.s32.totalorder %s80, %s82
    %p86 = scmp.eq.s32.totalorder %s20, 0
    %p87 = por %p85, %p86
    %p88 = scmp.ne.s32.totalorder %s80, %s82
    %p89 = scmp.eq.s32.totalorder %s25, 1
    %p90 = por %p88, %p89
    %p91 = scmp.ne.s32.totalorder %s82, %s83
    %p92 = scmp.eq.s32.totalorder %s25, 0
    %p93 = por %p91, %p92
    %p94 = scmp.ne.s32.totalorder %s82, %s83
    %p95 = scmp.eq.s32.totalorder %s26, 1
    %p96 = por %p94, %p95
    %p98 = scmp.ne.s32.totalorder %s83, %s97
    %p99 = scmp.eq.s32.totalorder %s26, 0
    %p100 = por %p98, %p99
    %s102 = sadd.s32 %s101, 1
    %p105 = scmp.eq.s32.totalorder %s20, 1
    %p106 = scmp.ne.s32.totalorder %s101, %s103
    %p107 = scmp.eq.s32.totalorder %s20, 0
    %p108 = por %p106, %p107
    %p109 = scmp.ne.s32.totalorder %s101, %s103
    %p110 = scmp.eq.s32.totalorder %s25, 1
    %p111 = por %p109, %p110
    %p112 = scmp.ne.s32.totalorder %s103, %s104
    %p113 = scmp.eq.s32.totalorder %s25, 0
    %p114 = por %p112, %p113
    %p115 = scmp.ne.s32.totalorder %s103, %s104
    %p116 = scmp.eq.s32.totalorder %s26, 1
    %p117 = por %p115, %p116
    %p119 = scmp.ne.s32.totalorder %s104, %s118
    %p120 = scmp.eq.s32.totalorder %s26, 0
    %p121 = por %p119, %p120
    %s123 = sadd.s32 %s122, 1
    %p126 = scmp.eq.s32.totalorder %s20, 1
    %p127 = scmp.ne.s32.totalorder %s122, %s124
    %p128 = scmp.eq.s32.totalorder %s20, 0
    %p129 = por %p127, %p128
    %p130 = scmp.ne.s32.totalorder %s122, %s124
    %p131 = scmp.eq.s32.totalorder %s25, 1
    %p132 = por %p130, %p131
    %p133 = scmp.ne.s32.totalorder %s124, %s125
    %p134 = scmp.eq.s32.totalorder %s25, 0
    %p135 = por %p133, %p134
    %p136 = scmp.ne.s32.totalorder %s124, %s125
    %p137 = scmp.eq.s32.totalorder %s26, 1
    %p138 = por %p136, %p137
    %p140 = scmp.ne.s32.totalorder %s125, %s139
    %p141 = scmp.eq.s32.totalorder %s26, 0
    %p142 = por %p140, %p141
    %s144 = sadd.s32 %s143, 1
    %p147 = scmp.eq.s32.totalorder %s20, 1
    %p148 = scmp.ne.s32.totalorder %s143, %s145
    %p149 = scmp.eq.s32.totalorder %s20, 0
    %p150 = por %p148, %p149
    %p151 = scmp.ne.s32.totalorder %s143, %s145
    %p152 = scmp.eq.s32.totalorder %s25, 1
    %p153 = por %p151, %p152
    %p154 = scmp.ne.s32.totalorder %s145, %s146
    %p155 = scmp.eq.s32.totalorder %s25, 0
    %p156 = por %p154, %p155
    %p157 = scmp.ne.s32.totalorder %s145, %s146
    %p158 = scmp.eq.s32.totalorder %s26, 1
    %p159 = por %p157, %p158
    %p161 = scmp.ne.s32.totalorder %s146, %s160
    %p162 = scmp.eq.s32.totalorder %s26, 0
    %p163 = por %p161, %p162
    %s165 = sadd.s32 %s164, 1
    %p168 = scmp.eq.s32.totalorder %s20, 1
    %p169 = scmp.ne.s32.totalorder %s164, %s166
    %p170 = scmp.eq.s32.totalorder %s20, 0
    %p171 = por %p169, %p170
    %p172 = scmp.ne.s32.totalorder %s164, %s166
    %p173 = scmp.eq.s32.totalorder %s25, 1
    %p174 = por %p172, %p173
    %p175 = scmp.ne.s32.totalorder %s166, %s167
    %p176 = scmp.eq.s32.totalorder %s25, 0
    %p177 = por %p175, %p176
    %p178 = scmp.ne.s32.totalorder %s166, %s167
    %p179 = scmp.eq.s32.totalorder %s26, 1
    %p180 = por %p178, %p179
    %p182 = scmp.ne.s32.totalorder %s167, %s181
    %p183 = scmp.eq.s32.totalorder %s26, 0
    %p184 = por %p182, %p183
    %s186 = sadd.s32 %s185, 1
    %p189 = scmp.eq.s32.totalorder %s20, 1
    %p190 = scmp.ne.s32.totalorder %s185, %s187
    %p191 = scmp.eq.s32.totalorder %s20, 0
    %p192 = por %p190, %p191
    %p193 = scmp.ne.s32.totalorder %s185, %s187
    %p194 = scmp.eq.s32.totalorder %s25, 1
    %p195 = por %p193, %p194
    %p196 = scmp.ne.s32.totalorder %s187, %s188
    %p197 = scmp.eq.s32.totalorder %s25, 0
    %p198 = por %p196, %p197
    %p199 = scmp.ne.s32.totalorder %s187, %s188
    %p200 = scmp.eq.s32.totalorder %s26, 1
    %p201 = por %p199, %p200
    %p203 = scmp.ne.s32.totalorder %s188, %s202
    %p204 = scmp.eq.s32.totalorder %s26, 0
    %p205 = por %p203, %p204
    %s207 = sadd.s32 %s206, 1
    %p210 = scmp.eq.s32.totalorder %s20, 1
    %p211 = scmp.ne.s32.totalorder %s206, %s208
    %p212 = scmp.eq.s32.totalorder %s20, 0
    %p213 = por %p211, %p212
    %p214 = scmp.ne.s32.totalorder %s206, %s208
    %p215 = scmp.eq.s32.totalorder %s25, 1
    %p216 = por %p214, %p215
    %p217 = scmp.ne.s32.totalorder %s208, %s209
    %p218 = scmp.eq.s32.totalorder %s25, 0
    %p219 = por %p217, %p218
    %p220 = scmp.ne.s32.totalorder %s208, %s209
    %p221 = scmp.eq.s32.totalorder %s26, 1
    %p222 = por %p220, %p221
    %p224 = scmp.ne.s32.totalorder %s209, %s223
    %p225 = scmp.eq.s32.totalorder %s26, 0
    %p226 = por %p224, %p225
    %s228 = sadd.s32 %s227, 1
    %p231 = scmp.eq.s32.totalorder %s20, 1
    %p232 = scmp.ne.s32.totalorder %s227, %s229
    %p233 = scmp.eq.s32.totalorder %s20, 0
    %p234 = por %p232, %p233
    %p235 = scmp.ne.s32.totalorder %s227, %s229
    %p236 = scmp.eq.s32.totalorder %s25, 1
    %p237 = por %p235, %p236
    %p238 = scmp.ne.s32.totalorder %s229, %s230
    %p239 = scmp.eq.s32.totalorder %s25, 0
    %p240 = por %p238, %p239
    %p241 = scmp.ne.s32.totalorder %s229, %s230
    %p242 = scmp.eq.s32.totalorder %s26, 1
    %p243 = por %p241, %p242
    %p245 = scmp.ne.s32.totalorder %s230, %s244
    %p246 = scmp.eq.s32.totalorder %s26, 0
    %p247 = por %p245, %p246
    %s249 = sadd.s32 %s248, 1
    %p252 = scmp.eq.s32.totalorder %s20, 1
    %p253 = scmp.ne.s32.totalorder %s248, %s250
    %p254 = scmp.eq.s32.totalorder %s20, 0
    %p255 = por %p253, %p254
    %p256 = scmp.ne.s32.totalorder %s248, %s250
    %p257 = scmp.eq.s32.totalorder %s25, 1
    %p258 = por %p256, %p257
    %p259 = scmp.ne.s32.totalorder %s250, %s251
    %p260 = scmp.eq.s32.totalorder %s25, 0
    %p261 = por %p259, %p260
    %p262 = scmp.ne.s32.totalorder %s250, %s251
    %p263 = scmp.eq.s32.totalorder %s26, 1
    %p264 = por %p262, %p263
    %p266 = scmp.ne.s32.totalorder %s251, %s265
    %p267 = scmp.eq.s32.totalorder %s26, 0
    %p268 = por %p266, %p267
    %s270 = sadd.s32 %s269, 1
    %p273 = scmp.eq.s32.totalorder %s20, 1
    %p274 = scmp.ne.s32.totalorder %s269, %s271
    %p275 = scmp.eq.s32.totalorder %s20, 0
    %p276 = por %p274, %p275
    %p277 = scmp.ne.s32.totalorder %s269, %s271
    %p278 = scmp.eq.s32.totalorder %s25, 1
    %p279 = por %p277, %p278
    %p280 = scmp.ne.s32.totalorder %s271, %s272
    %p281 = scmp.eq.s32.totalorder %s25, 0
    %p282 = por %p280, %p281
    %p283 = scmp.ne.s32.totalorder %s271, %s272
    %p284 = scmp.eq.s32.totalorder %s26, 1
    %p285 = por %p283, %p284
    %p287 = scmp.ne.s32.totalorder %s272, %s286
    %p288 = scmp.eq.s32.totalorder %s26, 0
    %p289 = por %p287, %p288
    %s291 = sadd.s32 %s290, 1
    %p294 = scmp.eq.s32.totalorder %s20, 1
    %p295 = scmp.ne.s32.totalorder %s290, %s292
    %p296 = scmp.eq.s32.totalorder %s20, 0
    %p297 = por %p295, %p296
    %p298 = scmp.ne.s32.totalorder %s290, %s292
    %p299 = scmp.eq.s32.totalorder %s25, 1
    %p300 = por %p298, %p299
    %p301 = scmp.ne.s32.totalorder %s292, %s293
    %p302 = scmp.eq.s32.totalorder %s25, 0
    %p303 = por %p301, %p302
    %p304 = scmp.ne.s32.totalorder %s292, %s293
    %p305 = scmp.eq.s32.totalorder %s26, 1
    %p306 = por %p304, %p305
    %p308 = scmp.ne.s32.totalorder %s293, %s307
    %p309 = scmp.eq.s32.totalorder %s26, 0
    %p310 = por %p308, %p309
    %s312 = sadd.s32 %s311, 1
    %p315 = scmp.eq.s32.totalorder %s20, 1
    %p316 = scmp.ne.s32.totalorder %s311, %s313
    %p317 = scmp.eq.s32.totalorder %s20, 0
    %p318 = por %p316, %p317
    %p319 = scmp.ne.s32.totalorder %s311, %s313
    %p320 = scmp.eq.s32.totalorder %s25, 1
    %p321 = por %p319, %p320
    %p322 = scmp.ne.s32.totalorder %s313, %s314
    %p323 = scmp.eq.s32.totalorder %s25, 0
    %p324 = por %p322, %p323
    %p325 = scmp.ne.s32.totalorder %s313, %s314
    %p326 = scmp.eq.s32.totalorder %s26, 1
    %p327 = por %p325, %p326
    %p329 = scmp.ne.s32.totalorder %s314, %s328
    %p330 = scmp.eq.s32.totalorder %s26, 0
    %p331 = por %p329, %p330
    %s332 = ssub.s32 %s20, %s27
    %p333 = scmp.eq.s32.totalorder %s332, 0
    %s335 = sadd.s32 %s334, 1
    %s336 = scalar_select %p333, %s334, %s335
    %p339 = pneg %p333
    %p340 = scmp.eq.s32.totalorder %s20, 1
    %p341 = por %p339, %p340
    %p342 = scmp.ne.s32.totalorder %s334, %s337
    %p343 = scmp.eq.s32.totalorder %s20, 0
    %p344 = por %p342, %p343
    %p345 = scmp.ne.s32.totalorder %s334, %s337
    %p346 = scmp.eq.s32.totalorder %s25, 1
    %p347 = por %p345, %p346
    %p348 = scmp.ne.s32.totalorder %s337, %s338
    %p349 = scmp.eq.s32.totalorder %s25, 0
    %p350 = por %p348, %p349
    %p351 = scmp.ne.s32.totalorder %s337, %s338
    %p352 = scmp.eq.s32.totalorder %s26, 1
    %p353 = por %p351, %p352
    %p355 = scmp.ne.s32.totalorder %s338, %s354
    %p356 = scmp.eq.s32.totalorder %s26, 0
    %p357 = por %p355, %p356
    %p358 = scmp.le.s32.totalorder 1, %s20
    %p359 = scmp.lt.s32.totalorder %s20, 3
    %p360 = pnand %p358, %p359
    %p361 = pneg %p360
    // Predicated region
    $region9: #{net_forward.9} parent=5 // pred_check
      _
    $region10: #{net_forward.9} parent=5 // pred_check_branch
      %363 = sbr.rel (%p360) target = $region12
    $region11: #{net_forward.9} parent=5 // pred_region
      %s364 = ssub.s32 %s20, 1
      // Predicated region
      $region13: #{net_forward.9} parent=11 // pred_check
        %p365 = pneg %p93
      $region14: #{net_forward.9} parent=11 // pred_check_branch
        %367 = sbr.rel (%p365) target = $region16
      $region15: #{net_forward.9} parent=11 // pred_region
        _
      $region16: #{net_forward.9} parent=11 // pred_fallthru
        _
      // Predicated region
      $region17: #{net_forward.9} parent=11 // pred_check
        %p368 = pneg %p114
      $region18: #{net_forward.9} parent=11 // pred_check_branch
        %370 = sbr.rel (%p368) target = $region20
      $region19: #{net_forward.9} parent=11 // pred_region
        _
      $region20: #{net_forward.9} parent=11 // pred_fallthru
        _
      // Predicated region
      $region21: #{net_forward.9} parent=11 // pred_check
        %p371 = pneg %p135
      $region22: #{net_forward.9} parent=11 // pred_check_branch
        %373 = sbr.rel (%p371) target = $region24
      $region23: #{net_forward.9} parent=11 // pred_region
        _
      $region24: #{net_forward.9} parent=11 // pred_fallthru
        _
      // Predicated region
      $region25: #{net_forward.9} parent=11 // pred_check
        %p374 = pneg %p156
      $region26: #{net_forward.9} parent=11 // pred_check_branch
        %376 = sbr.rel (%p374) target = $region28
      $region27: #{net_forward.9} parent=11 // pred_region
        _
      $region28: #{net_forward.9} parent=11 // pred_fallthru
        _
      // Predicated region
      $region29: #{net_forward.9} parent=11 // pred_check
        %p377 = pneg %p177
      $region30: #{net_forward.9} parent=11 // pred_check_branch
        %379 = sbr.rel (%p377) target = $region32
      $region31: #{net_forward.9} parent=11 // pred_region
        _
      $region32: #{net_forward.9} parent=11 // pred_fallthru
        _
      // Predicated region
      $region33: #{net_forward.9} parent=11 // pred_check
        %p380 = pneg %p198
      $region34: #{net_forward.9} parent=11 // pred_check_branch
        %382 = sbr.rel (%p380) target = $region36
      $region35: #{net_forward.9} parent=11 // pred_region
        _
      $region36: #{net_forward.9} parent=11 // pred_fallthru
        _
      // Predicated region
      $region37: #{net_forward.9} parent=11 // pred_check
        %p383 = pneg %p219
      $region38: #{net_forward.9} parent=11 // pred_check_branch
        %385 = sbr.rel (%p383) target = $region40
      $region39: #{net_forward.9} parent=11 // pred_region
        _
      $region40: #{net_forward.9} parent=11 // pred_fallthru
        _
      // Predicated region
      $region41: #{net_forward.9} parent=11 // pred_check
        %p386 = pneg %p240
      $region42: #{net_forward.9} parent=11 // pred_check_branch
        %388 = sbr.rel (%p386) target = $region44
      $region43: #{net_forward.9} parent=11 // pred_region
        _
      $region44: #{net_forward.9} parent=11 // pred_fallthru
        _
      // Predicated region
      $region45: #{net_forward.9} parent=11 // pred_check
        %p389 = pneg %p261
      $region46: #{net_forward.9} parent=11 // pred_check_branch
        %391 = sbr.rel (%p389) target = $region48
      $region47: #{net_forward.9} parent=11 // pred_region
        _
      $region48: #{net_forward.9} parent=11 // pred_fallthru
        _
      // Predicated region
      $region49: #{net_forward.9} parent=11 // pred_check
        %p392 = pneg %p282
      $region50: #{net_forward.9} parent=11 // pred_check_branch
        %394 = sbr.rel (%p392) target = $region52
      $region51: #{net_forward.9} parent=11 // pred_region
        _
      $region52: #{net_forward.9} parent=11 // pred_fallthru
        _
      // Predicated region
      $region53: #{net_forward.9} parent=11 // pred_check
        %p395 = pneg %p303
      $region54: #{net_forward.9} parent=11 // pred_check_branch
        %397 = sbr.rel (%p395) target = $region56
      $region55: #{net_forward.9} parent=11 // pred_region
        _
      $region56: #{net_forward.9} parent=11 // pred_fallthru
        _
      // Predicated region
      $region57: #{net_forward.9} parent=11 // pred_check
        %p398 = pneg %p324
      $region58: #{net_forward.9} parent=11 // pred_check_branch
        %400 = sbr.rel (%p398) target = $region60
      $region59: #{net_forward.9} parent=11 // pred_region
        _
      $region60: #{net_forward.9} parent=11 // pred_fallthru
        _
    $region12: #{net_forward.9} parent=5 // pred_fallthru
      _
    %p401 = scmp.lt.s32.totalorder %s20, 2
    // Predicated region
    $region61: #{net_forward.9} parent=5 // pred_check
      %p402 = pneg %p401
    $region62: #{net_forward.9} parent=5 // pred_check_branch
      %404 = sbr.rel (%p402) target = $region64
    $region63: #{net_forward.9} parent=5 // pred_region
      // Predicated region
      $region65: #{net_forward.9} parent=63 // pred_check
        %p405 = pneg %p40
      $region66: #{net_forward.9} parent=63 // pred_check_branch
        %407 = sbr.rel (%p405) target = $region68
      $region67: #{net_forward.9} parent=63 // pred_region
        %p408 = scmp.lt.s32.totalorder %s20, 1
        %s409 = scalar_select %p408, %s20, 1
        %s410 = smul.addr %s409, 8
        %s411 = scalar_lea.vmem %s0, %s410
      $region68: #{net_forward.9} parent=63 // pred_fallthru
        _
      // Predicated region
      $region69: #{net_forward.9} parent=63 // pred_check
        %p412 = pneg %p66
      $region70: #{net_forward.9} parent=63 // pred_check_branch
        %414 = sbr.rel (%p412) target = $region72
      $region71: #{net_forward.9} parent=63 // pred_region
        %p415 = scmp.lt.s32.totalorder %s20, 1
        %s416 = scalar_select %p415, %s20, 1
        %s417 = scalar_lea.vmem %s1, %s416
      $region72: #{net_forward.9} parent=63 // pred_fallthru
        _
    $region64: #{net_forward.9} parent=5 // pred_fallthru
      _
    %p418 = scmp.le.s32.totalorder 1, %s20
    %p419 = scmp.lt.s32.totalorder %s20, 3
    %p420 = pnand %p418, %p419
    %p421 = pneg %p420
    // Predicated region
    $region73: #{net_forward.9} parent=5 // pred_check
      _
    $region74: #{net_forward.9} parent=5 // pred_check_branch
      %423 = sbr.rel (%p420) target = $region76
    $region75: #{net_forward.9} parent=5 // pred_region
      %s424 = ssub.s32 %s20, 1
      %p425 = scmp.lt.s32.totalorder %s25, 1
      %s426 = scalar_select %p425, %s25, 1
      %s427 = smul.addr %s426, 8
      %s428 = scalar_lea.vmem %s0, %s427
      %p429 = pneg %p46
      %p430 = pneg %p43
      %p431 = scmp.lt.s32.totalorder %s25, 1
      %s432 = scalar_select %p431, %s25, 1
      %s433 = scalar_lea.vmem %s1, %s432
      %p434 = pneg %p72
      %p435 = pneg %p69
      %p436 = pneg %p93
      %p437 = pneg %p90
      %p438 = pneg %p114
      %p439 = pneg %p111
      %p440 = pneg %p135
      %p441 = pneg %p132
      %p442 = pneg %p156
      %p443 = pneg %p153
      %p444 = pneg %p177
      %p445 = pneg %p174
      %p446 = pneg %p198
      %p447 = pneg %p195
      %p448 = pneg %p219
      %p449 = pneg %p216
      %p450 = pneg %p240
      %p451 = pneg %p237
      %p452 = pneg %p261
      %p453 = pneg %p258
      %p454 = pneg %p282
      %p455 = pneg %p279
      %p456 = pneg %p303
      %p457 = pneg %p300
      %p458 = pneg %p324
      %p459 = pneg %p321
      %p460 = pneg %p350
      %p461 = pneg %p347
      %p462 = scmp.lt.s32.totalorder %s25, 1
      %s463 = scalar_select %p462, %s25, 1
      %s464 = smul.addr %s463, 8
      %s465 = scalar_lea.vmem %s14, %s464
      %p466 = scmp.lt.s32.totalorder %s25, 1
      %s467 = scalar_select %p466, %s25, 1
      %s468 = smul.addr %s467, 8
      %s469 = scalar_lea.vmem %s0, %s468
      %p470 = scmp.lt.s32.totalorder %s25, 1
      %s471 = scalar_select %p470, %s25, 1
      %s472 = scalar_lea.vmem %s1, %s471
      %p473 = scmp.lt.s32.totalorder %s25, 1
      %s474 = scalar_select %p473, %s25, 1
      %s475 = smul.addr %s474, 8
      %s476 = scalar_lea.vmem %s14, %s475
      %v477 = vld [vmem:[%s469] sm:$0xff]
      %v478 = vld [vmem:[%s472] sm:$0x1]
      %v479 = vld [vmem:[%s2] sm:$0xff]
      %v480 = vld [vmem:[%s2 + $0x8] sm:$0xff]
      %v481 = vld [vmem:[%s2 + $0x10] sm:$0xff]
      %v482 = vld [vmem:[%s2 + $0x18] sm:$0xff]
      %v483 = vld [vmem:[%s3] sm:$0x1]
      %v484 = vld [vmem:[%s4] sm:$0xff]
      %v485 = vld [vmem:[%s4 + $0x8] sm:$0xff]
      %v486 = vld [vmem:[%s4 + $0x10] sm:$0xff]
      %v487 = vld [vmem:[%s4 + $0x18] sm:$0xff]
      %v488 = vld [vmem:[%s5] sm:$0x1]
      %v490 = vperm.slane %v483, 0
      %vm492 = vcmask 261120
      %v494 = vsel %vm492, %v477, 0
      %496 = vmatpush.msra.mxu0 0.0
      %497 = vmatpush.msra.mxu0 0.0
      %498 = vmatpush.msra.mxu0 0.0
      %499 = vmatpush.msra.mxu0 0.0
      %500 = vmatpush.msra.mxu0 0.0
      %501 = vmatpush.msra.mxu0 0.0
      %502 = vmatpush.msra.mxu0 0.0
      %503 = vmatpush.msra.mxu0 0.0
      %504 = vmatpush.msra.mxu0 0.0
      %505 = vmatpush.msra.mxu0 0.0
      %506 = vmatpush.msra.mxu0 0.0
      %507 = vmatpush.msra.mxu0 0.0
      %508 = vmatpush.msra.mxu0 %v482
      %509 = vmatpush.msra.mxu0 %v481
      %510 = vmatpush.msra.mxu0 %v480
      %511 = vmatpush.msra.mxu0 %v479
      %512 = vmatmul.f32.gmra.mxu0 %v494
      %v513 = vpop.f32.mrf.mxu0
      %v514 = vadd.f32 %v490, %v513
      %515 = vdwg.mxu0
      %517 = vrot.lane.b32.xlu0 %v514, 96
      %v518 = vpop.permute.xlu0 %517
      %vm519 = vcmask 64512
      %v520 = vsel %vm519, %v514, 0
      %v522 = vsel %vm519, %v518, 0
      %524 = vmatpush.xpose.msra.mxu0 0.0
      %525 = vmatpush.xpose.msra.mxu0 0.0
      %526 = vmatpush.xpose.msra.mxu0 0.0
      %527 = vmatpush.xpose.msra.mxu0 0.0
      %528 = vmatpush.xpose.msra.mxu0 0.0
      %529 = vmatpush.xpose.msra.mxu0 0.0
      %530 = vmatpush.xpose.msra.mxu0 0.0
      %531 = vmatpush.xpose.msra.mxu0 0.0
      %532 = vmatpush.xpose.msra.mxu0 0.0
      %533 = vmatpush.xpose.msra.mxu0 0.0
      %534 = vmatpush.xpose.msra.mxu0 0.0
      %535 = vmatpush.xpose.msra.mxu0 0.0
      %536 = vmatpush.xpose.msra.mxu0 0.0
      %537 = vmatpush.xpose.msra.mxu0 0.0
      %538 = vmatpush.xpose.msra.mxu0 0.0
      %539 = vmatpush.xpose.msra.mxu0 %v522
      %540 = vmatmul.f32.gmra.mxu0 %v520
      %v541 = vpop.f32.mrf.mxu0
      %v542 = vadd.f32 0.0, %v541
      %543 = vdwg.mxu0
      %v544 = vmul.f32 %v542, 0.35355338
      %vm545 = vcmp.gt.f32.partialorder %v478, 0.5
      %v546 = vsel %vm545, 1, 0
      %v547 = vperm.slane %v546, 0
      %vm548 = vcmp.eq.s32.totalorder %v547, 1
      %v549 = vsel %vm548, -1e+09, %v544
      %v550 = vsel %vm519, %v549, -inf
      %551 = vmax.xlane.f32.xlu0 %v550
      %v552 = vpop.xlane.xlu0 %551
      %v553 = vsub.f32 %v549, %v552
      %v554 = vmul.f32 %v553, 1.442695
      %v555 = vpow.pop %v554
      %v556 = vsel %vm519, %v555, 0.0
      %557 = vadd.xlane.f32.xlu0 %v556
      %v558 = vpop.xlane.xlu0 %557
      %v559 = vrcp.pop %v558
      %v560 = vmul.f32 %v558, %v559
      %v561 = vsub.f32 1.0, %v560
      %v562 = vmul.f32 %v559, %v561
      %v563 = vadd.f32 %v559, %v562
      %vm564 = vweird.f32 %v558
      %vm565 = vweird.f32 %v559
      %vm566 = vmor %vm564, %vm565
      %v567 = vsel %vm566, %v559, %v563
      %v568 = vand.u32 2147483647, %v558
      %vm569 = vcmp.eq.f32.partialorder %v568, 8.507059e+37
      %v570 = vand.u32 %v558, 2147483648
      %v571 = vor.u32 1.1754944e-38, %v570
      %v572 = vsel %vm569, %v571, %v567
      %v573 = vmul.f32 %v555, %v572
      %574 = vrot.lane.b32.xlu0 %v514, 64
      %v575 = vpop.permute.xlu0 %574
      %v578 = vsel %vm519, %v573, 0
      %580 = vmatpush.msra.mxu0 0.0
      %581 = vmatpush.msra.mxu0 0.0
      %582 = vmatpush.msra.mxu0 0.0
      %583 = vmatpush.msra.mxu0 0.0
      %584 = vmatpush.msra.mxu0 0.0
      %585 = vmatpush.msra.mxu0 0.0
      %586 = vmatpush.msra.mxu0 0.0
      %587 = vmatpush.msra.mxu0 0.0
      %588 = vmatpush.msra.mxu0 0.0
      %589 = vmatpush.msra.mxu0 0.0
      %590 = vmatpush.msra.mxu0 0.0
      %591 = vmatpush.msra.mxu0 0.0
      %592 = vmatpush.msra.mxu0 0.0
      %593 = vmatpush.msra.mxu0 0.0
      %594 = vmatpush.msra.mxu0 0.0
      %595 = vmatpush.msra.mxu0 %v575
      %596 = vmatmul.f32.gmra.mxu0 %v578
      %v597 = vpop.f32.mrf.mxu0
      %v598 = vadd.f32 0.0, %v597
      %599 = vdwg.mxu0
      %600 = vrot.lane.b32.xlu0 %v514, 120
      %v601 = vpop.permute.xlu0 %600
      %602 = vrot.lane.b32.xlu0 %v514, 88
      %v603 = vpop.permute.xlu0 %602
      %v604 = vsel %vm519, %v601, 0
      %v606 = vsel %vm519, %v603, 0
      %608 = vmatpush.xpose.msra.mxu0 0.0
      %609 = vmatpush.xpose.msra.mxu0 0.0
      %610 = vmatpush.xpose.msra.mxu0 0.0
      %611 = vmatpush.xpose.msra.mxu0 0.0
      %612 = vmatpush.xpose.msra.mxu0 0.0
      %613 = vmatpush.xpose.msra.mxu0 0.0
      %614 = vmatpush.xpose.msra.mxu0 0.0
      %615 = vmatpush.xpose.msra.mxu0 0.0
      %616 = vmatpush.xpose.msra.mxu0 0.0
      %617 = vmatpush.xpose.msra.mxu0 0.0
      %618 = vmatpush.xpose.msra.mxu0 0.0
      %619 = vmatpush.xpose.msra.mxu0 0.0
      %620 = vmatpush.xpose.msra.mxu0 0.0
      %621 = vmatpush.xpose.msra.mxu0 0.0
      %622 = vmatpush.xpose.msra.mxu0 0.0
      %623 = vmatpush.xpose.msra.mxu0 %v606
      %624 = vmatmul.f32.gmra.mxu0 %v604
      %v625 = vpop.f32.mrf.mxu0
      %v626 = vadd.f32 0.0, %v625
      %627 = vdwg.mxu0
      %v628 = vmul.f32 %v626, 0.35355338
      %v629 = vsel %vm548, -1e+09, %v628
      %v630 = vsel %vm519, %v629, -inf
      %631 = vmax.xlane.f32.xlu0 %v630
      %v632 = vpop.xlane.xlu0 %631
      %v633 = vsub.f32 %v629, %v632
      %v634 = vmul.f32 %v633, 1.442695
      %v635 = vpow.pop %v634
      %v636 = vsel %vm519, %v635, 0.0
      %637 = vadd.xlane.f32.xlu0 %v636
      %v638 = vpop.xlane.xlu0 %637
      %v639 = vrcp.pop %v638
      %v640 = vmul.f32 %v638, %v639
      %v641 = vsub.f32 1.0, %v640
      %v642 = vmul.f32 %v639, %v641
      %v643 = vadd.f32 %v639, %v642
      %vm644 = vweird.f32 %v638
      %vm645 = vweird.f32 %v639
      %vm646 = vmor %vm644, %vm645
      %v647 = vsel %vm646, %v639, %v643
      %v648 = vand.u32 2147483647, %v638
      %vm649 = vcmp.eq.f32.partialorder %v648, 8.507059e+37
      %v650 = vand.u32 %v638, 2147483648
      %v651 = vor.u32 1.1754944e-38, %v650
      %v652 = vsel %vm649, %v651, %v647
      %v653 = vmul.f32 %v635, %v652
      %654 = vrot.lane.b32.xlu0 %v514, 56
      %v655 = vpop.permute.xlu0 %654
      %v658 = vsel %vm519, %v653, 0
      %660 = vmatpush.msra.mxu0 0.0
      %661 = vmatpush.msra.mxu0 0.0
      %662 = vmatpush.msra.mxu0 0.0
      %663 = vmatpush.msra.mxu0 0.0
      %664 = vmatpush.msra.mxu0 0.0
      %665 = vmatpush.msra.mxu0 0.0
      %666 = vmatpush.msra.mxu0 0.0
      %667 = vmatpush.msra.mxu0 0.0
      %668 = vmatpush.msra.mxu0 0.0
      %669 = vmatpush.msra.mxu0 0.0
      %670 = vmatpush.msra.mxu0 0.0
      %671 = vmatpush.msra.mxu0 0.0
      %672 = vmatpush.msra.mxu0 0.0
      %673 = vmatpush.msra.mxu0 0.0
      %674 = vmatpush.msra.mxu0 0.0
      %675 = vmatpush.msra.mxu0 %v655
      %676 = vmatmul.f32.gmra.mxu0 %v658
      %v677 = vpop.f32.mrf.mxu0
      %v678 = vadd.f32 0.0, %v677
      %679 = vdwg.mxu0
      %680 = vrot.lane.b32.xlu0 %v514, 112
      %v681 = vpop.permute.xlu0 %680
      %682 = vrot.lane.b32.xlu0 %v514, 80
      %v683 = vpop.permute.xlu0 %682
      %v684 = vsel %vm519, %v681, 0
      %v686 = vsel %vm519, %v683, 0
      %688 = vmatpush.xpose.msra.mxu0 0.0
      %689 = vmatpush.xpose.msra.mxu0 0.0
      %690 = vmatpush.xpose.msra.mxu0 0.0
      %691 = vmatpush.xpose.msra.mxu0 0.0
      %692 = vmatpush.xpose.msra.mxu0 0.0
      %693 = vmatpush.xpose.msra.mxu0 0.0
      %694 = vmatpush.xpose.msra.mxu0 0.0
      %695 = vmatpush.xpose.msra.mxu0 0.0
      %696 = vmatpush.xpose.msra.mxu0 0.0
      %697 = vmatpush.xpose.msra.mxu0 0.0
      %698 = vmatpush.xpose.msra.mxu0 0.0
      %699 = vmatpush.xpose.msra.mxu0 0.0
      %700 = vmatpush.xpose.msra.mxu0 0.0
      %701 = vmatpush.xpose.msra.mxu0 0.0
      %702 = vmatpush.xpose.msra.mxu0 0.0
      %703 = vmatpush.xpose.msra.mxu0 %v686
      %704 = vmatmul.f32.gmra.mxu0 %v684
      %v705 = vpop.f32.mrf.mxu0
      %v706 = vadd.f32 0.0, %v705
      %707 = vdwg.mxu0
      %v708 = vmul.f32 %v706, 0.35355338
      %v709 = vsel %vm548, -1e+09, %v708
      %v710 = vsel %vm519, %v709, -inf
      %711 = vmax.xlane.f32.xlu0 %v710
      %v712 = vpop.xlane.xlu0 %711
      %v713 = vsub.f32 %v709, %v712
      %v714 = vmul.f32 %v713, 1.442695
      %v715 = vpow.pop %v714
      %v716 = vsel %vm519, %v715, 0.0
      %717 = vadd.xlane.f32.xlu0 %v716
      %v718 = vpop.xlane.xlu0 %717
      %v719 = vrcp.pop %v718
      %v720 = vmul.f32 %v718, %v719
      %v721 = vsub.f32 1.0, %v720
      %v722 = vmul.f32 %v719, %v721
      %v723 = vadd.f32 %v719, %v722
      %vm724 = vweird.f32 %v718
      %vm725 = vweird.f32 %v719
      %vm726 = vmor %vm724, %vm725
      %v727 = vsel %vm726, %v719, %v723
      %v728 = vand.u32 2147483647, %v718
      %vm729 = vcmp.eq.f32.partialorder %v728, 8.507059e+37
      %v730 = vand.u32 %v718, 2147483648
      %v731 = vor.u32 1.1754944e-38, %v730
      %v732 = vsel %vm729, %v731, %v727
      %v733 = vmul.f32 %v715, %v732
      %734 = vrot.lane.b32.xlu0 %v514, 48
      %v735 = vpop.permute.xlu0 %734
      %v738 = vsel %vm519, %v733, 0
      %740 = vmatpush.msra.mxu0 0.0
      %741 = vmatpush.msra.mxu0 0.0
      %742 = vmatpush.msra.mxu0 0.0
      %743 = vmatpush.msra.mxu0 0.0
      %744 = vmatpush.msra.mxu0 0.0
      %745 = vmatpush.msra.mxu0 0.0
      %746 = vmatpush.msra.mxu0 0.0
      %747 = vmatpush.msra.mxu0 0.0
      %748 = vmatpush.msra.mxu0 0.0
      %749 = vmatpush.msra.mxu0 0.0
      %750 = vmatpush.msra.mxu0 0.0
      %751 = vmatpush.msra.mxu0 0.0
      %752 = vmatpush.msra.mxu0 0.0
      %753 = vmatpush.msra.mxu0 0.0
      %754 = vmatpush.msra.mxu0 0.0
      %755 = vmatpush.msra.mxu0 %v735
      %756 = vmatmul.f32.gmra.mxu0 %v738
      %v757 = vpop.f32.mrf.mxu0
      %v758 = vadd.f32 0.0, %v757
      %759 = vdwg.mxu0
      %760 = vrot.lane.b32.xlu0 %v514, 104
      %v761 = vpop.permute.xlu0 %760
      %762 = vrot.lane.b32.xlu0 %v514, 72
      %v763 = vpop.permute.xlu0 %762
      %v764 = vsel %vm519, %v761, 0
      %v766 = vsel %vm519, %v763, 0
      %768 = vmatpush.xpose.msra.mxu0 0.0
      %769 = vmatpush.xpose.msra.mxu0 0.0
      %770 = vmatpush.xpose.msra.mxu0 0.0
      %771 = vmatpush.xpose.msra.mxu0 0.0
      %772 = vmatpush.xpose.msra.mxu0 0.0
      %773 = vmatpush.xpose.msra.mxu0 0.0
      %774 = vmatpush.xpose.msra.mxu0 0.0
      %775 = vmatpush.xpose.msra.mxu0 0.0
      %776 = vmatpush.xpose.msra.mxu0 0.0
      %777 = vmatpush.xpose.msra.mxu0 0.0
      %778 = vmatpush.xpose.msra.mxu0 0.0
      %779 = vmatpush.xpose.msra.mxu0 0.0
      %780 = vmatpush.xpose.msra.mxu0 0.0
      %781 = vmatpush.xpose.msra.mxu0 0.0
      %782 = vmatpush.xpose.msra.mxu0 0.0
      %783 = vmatpush.xpose.msra.mxu0 %v766
      %784 = vmatmul.f32.gmra.mxu0 %v764
      %v785 = vpop.f32.mrf.mxu0
      %v786 = vadd.f32 0.0, %v785
      %787 = vdwg.mxu0
      %v788 = vmul.f32 %v786, 0.35355338
      %v789 = vsel %vm548, -1e+09, %v788
      %v790 = vsel %vm519, %v789, -inf
      %791 = vmax.xlane.f32.xlu0 %v790
      %v792 = vpop.xlane.xlu0 %791
      %v793 = vsub.f32 %v789, %v792
      %v794 = vmul.f32 %v793, 1.442695
      %v795 = vpow.pop %v794
      %v796 = vsel %vm519, %v795, 0.0
      %797 = vadd.xlane.f32.xlu0 %v796
      %v798 = vpop.xlane.xlu0 %797
      %v799 = vrcp.pop %v798
      %v800 = vmul.f32 %v798, %v799
      %v801 = vsub.f32 1.0, %v800
      %v802 = vmul.f32 %v799, %v801
      %v803 = vadd.f32 %v799, %v802
      %vm804 = vweird.f32 %v798
      %vm805 = vweird.f32 %v799
      %vm806 = vmor %vm804, %vm805
      %v807 = vsel %vm806, %v799, %v803
      %v808 = vand.u32 2147483647, %v798
      %vm809 = vcmp.eq.f32.partialorder %v808, 8.507059e+37
      %v810 = vand.u32 %v798, 2147483648
      %v811 = vor.u32 1.1754944e-38, %v810
      %v812 = vsel %vm809, %v811, %v807
      %v813 = vmul.f32 %v795, %v812
      %814 = vrot.lane.b32.xlu0 %v514, 40
      %v815 = vpop.permute.xlu0 %814
      %v818 = vsel %vm519, %v813, 0
      %820 = vmatpush.msra.mxu0 0.0
      %821 = vmatpush.msra.mxu0 0.0
      %822 = vmatpush.msra.mxu0 0.0
      %823 = vmatpush.msra.mxu0 0.0
      %824 = vmatpush.msra.mxu0 0.0
      %825 = vmatpush.msra.mxu0 0.0
      %826 = vmatpush.msra.mxu0 0.0
      %827 = vmatpush.msra.mxu0 0.0
      %828 = vmatpush.msra.mxu0 0.0
      %829 = vmatpush.msra.mxu0 0.0
      %830 = vmatpush.msra.mxu0 0.0
      %831 = vmatpush.msra.mxu0 0.0
      %832 = vmatpush.msra.mxu0 0.0
      %833 = vmatpush.msra.mxu0 0.0
      %834 = vmatpush.msra.mxu0 0.0
      %835 = vmatpush.msra.mxu0 %v815
      %836 = vmatmul.f32.gmra.mxu0 %v818
      %v837 = vpop.f32.mrf.mxu0
      %v838 = vadd.f32 0.0, %v837
      %839 = vdwg.mxu0
      %841 = vrot.lane.b32.xlu0 %v678, 8
      %v842 = vpop.permute.xlu0 %841
      %845 = vrot.lane.b32.xlu0 %v758, 16
      %v846 = vpop.permute.xlu0 %845
      %849 = vrot.lane.b32.xlu0 %v838, 24
      %v850 = vpop.permute.xlu0 %849
      %v852 = vsel %vm519, %v598, %v842
      %vm853 = vcmask 130048
      %v854 = vsel %vm853, %v852, %v846
      %vm855 = vcmask 195584
      %v856 = vsel %vm855, %v854, %v850
      %v858 = vperm.slane %v488, 0
      %v861 = vsel %vm492, %v856, 0
      %863 = vmatpush.msra.mxu0 0.0
      %864 = vmatpush.msra.mxu0 0.0
      %865 = vmatpush.msra.mxu0 0.0
      %866 = vmatpush.msra.mxu0 0.0
      %867 = vmatpush.msra.mxu0 0.0
      %868 = vmatpush.msra.mxu0 0.0
      %869 = vmatpush.msra.mxu0 0.0
      %870 = vmatpush.msra.mxu0 0.0
      %871 = vmatpush.msra.mxu0 0.0
      %872 = vmatpush.msra.mxu0 0.0
      %873 = vmatpush.msra.mxu0 0.0
      %874 = vmatpush.msra.mxu0 0.0
      %875 = vmatpush.msra.mxu0 %v487
      %876 = vmatpush.msra.mxu0 %v486
      %877 = vmatpush.msra.mxu0 %v485
      %878 = vmatpush.msra.mxu0 %v484
      %879 = vmatmul.f32.gmra.mxu0 %v861
      %v880 = vpop.f32.mrf.mxu0
      %v881 = vadd.f32 %v858, %v880
      %882 = vdwg.mxu0
      %v883 = vadd.f32 %v477, %v881
      %v884 = vld [vmem:[%s6] sm:$0x1]
      %v885 = vld [vmem:[%s7] sm:$0x1]
      %v886 = vsel %vm492, %v883, 0.0
      %887 = vadd.xlane.f32.xlu0 %v886
      %v888 = vpop.xlane.xlu0 %887
      %v889 = vrcp.pop 32.0
      %v890 = vmul.f32 32.0, %v889
      %v891 = vsub.f32 1.0, %v890
      %v892 = vmul.f32 %v889, %v891
      %v893 = vadd.f32 %v889, %v892
      %vm894 = vweird.f32 %v889
      %v895 = vsel %vm894, %v889, %v893
      %v896 = vmul.f32 %v888, %v895
      %v897 = vsub.f32 %v883, %v896
      %v898 = vmul.f32 %v897, %v897
      %v899 = vsel %vm492, %v898, 0.0
      %900 = vadd.xlane.f32.xlu0 %v899
      %v901 = vpop.xlane.xlu0 %900
      %v902 = vmul.f32 %v901, 0.032258064
      %v904 = vperm.slane %v884, 0
      %v906 = vmul.f32 %v904, %v897
      %v907 = vrsqrt.pop %v902
      %v908 = vmul.f32 %v907, %v902
      %v909 = vmul.f32 %v908, %v907
      %v910 = vmul.f32 0.5, %v909
      %v911 = vsub.f32 1.5, %v910
      %v912 = vmul.f32 %v907, %v911
      %v913 = vmul.f32 %v902, %v912
      %vm914 = vcmp.eq.f32.partialorder %v902, inf
      %v915 = vsel %vm914, %v902, %v913
      %vm916 = vcmp.eq.f32.partialorder %v902, 0.0
      %v917 = vand.u32 %v902, 2147483648
      %v918 = vsel %vm916, %v917, %v915
      %v919 = vadd.f32 %v918, 1e-06
      %v920 = vrcp.pop %v919
      %v921 = vmul.f32 %v919, %v920
      %v922 = vsub.f32 1.0, %v921
      %v923 = vmul.f32 %v920, %v922
      %v924 = vadd.f32 %v920, %v923
      %vm925 = vweird.f32 %v919
      %vm926 = vweird.f32 %v920
      %vm927 = vmor %vm925, %vm926
      %v928 = vsel %vm927, %v920, %v924
      %v929 = vand.u32 2147483647, %v919
      %vm930 = vcmp.eq.f32.partialorder %v929, 8.507059e+37
      %v931 = vand.u32 %v919, 2147483648
      %v932 = vor.u32 1.1754944e-38, %v931
      %v933 = vsel %vm930, %v932, %v928
      %v934 = vmul.f32 %v906, %v933
      %v936 = vperm.slane %v885, 0
      %v938 = vadd.f32 %v934, %v936
      %v939 = vld [vmem:[%s8] sm:$0xff]
      %v940 = vld [vmem:[%s8 + $0x8] sm:$0xff]
      %v941 = vld [vmem:[%s8 + $0x10] sm:$0xff]
      %v942 = vld [vmem:[%s8 + $0x18] sm:$0xff]
      %v943 = vld [vmem:[%s9] sm:$0x1]
      %v944 = vld [vmem:[%s10] sm:$0xff]
      %v945 = vld [vmem:[%s10 + $0x8] sm:$0xff]
      %v946 = vld [vmem:[%s10 + $0x10] sm:$0xff]
      %v947 = vld [vmem:[%s10 + $0x18] sm:$0xff]
      %v948 = vld [vmem:[%s10 + $0x20] sm:$0xff]
      %v949 = vld [vmem:[%s10 + $0x28] sm:$0xff]
      %v950 = vld [vmem:[%s10 + $0x30] sm:$0xff]
      %v951 = vld [vmem:[%s10 + $0x38] sm:$0xff]
      %v952 = vld [vmem:[%s11] sm:$0x1]
      %v954 = vperm.slane %v943, 0
      %v957 = vsel %vm492, %v938, 0
      %959 = vmatpush.msra.mxu0 0.0
      %960 = vmatpush.msra.mxu0 0.0
      %961 = vmatpush.msra.mxu0 0.0
      %962 = vmatpush.msra.mxu0 0.0
      %963 = vmatpush.msra.mxu0 0.0
      %964 = vmatpush.msra.mxu0 0.0
      %965 = vmatpush.msra.mxu0 0.0
      %966 = vmatpush.msra.mxu0 0.0
      %967 = vmatpush.msra.mxu0 0.0
      %968 = vmatpush.msra.mxu0 0.0
      %969 = vmatpush.msra.mxu0 0.0
      %970 = vmatpush.msra.mxu0 0.0
      %971 = vmatpush.msra.mxu0 %v942
      %972 = vmatpush.msra.mxu0 %v941
      %973 = vmatpush.msra.mxu0 %v940
      %974 = vmatpush.msra.mxu0 %v939
      %975 = vmatmul.f32.gmra.mxu0 %v957
      %v976 = vpop.f32.mrf.mxu0
      %v977 = vadd.f32 %v954, %v976
      %978 = vdwg.mxu0
      %v979 = vmax.f32 %v977, 0.0
      %v981 = vperm.slane %v952, 0
      %vm983 = vcmask 523264
      %v985 = vsel %vm983, %v979, 0
      %987 = vmatpush.msra.mxu0 0.0
      %988 = vmatpush.msra.mxu0 0.0
      %989 = vmatpush.msra.mxu0 0.0
      %990 = vmatpush.msra.mxu0 0.0
      %991 = vmatpush.msra.mxu0 0.0
      %992 = vmatpush.msra.mxu0 0.0
      %993 = vmatpush.msra.mxu0 0.0
      %994 = vmatpush.msra.mxu0 0.0
      %995 = vmatpush.msra.mxu0 %v951
      %996 = vmatpush.msra.mxu0 %v950
      %997 = vmatpush.msra.mxu0 %v949
      %998 = vmatpush.msra.mxu0 %v948
      %999 = vmatpush.msra.mxu0 %v947
      %1000 = vmatpush.msra.mxu0 %v946
      %1001 = vmatpush.msra.mxu0 %v945
      %1002 = vmatpush.msra.mxu0 %v944
      %1003 = vmatmul.f32.gmra.mxu0 %v985
      %v1004 = vpop.f32.mrf.mxu0
      %v1005 = vadd.f32 %v981, %v1004
      %1006 = vdwg.mxu0
      %v1007 = vadd.f32 %v938, %v1005
      %v1008 = vld [vmem:[%s12] sm:$0x1]
      %v1009 = vld [vmem:[%s13] sm:$0x1]
      %v1010 = vsel %vm492, %v1007, 0.0
      %1011 = vadd.xlane.f32.xlu0 %v1010
      %v1012 = vpop.xlane.xlu0 %1011
      %v1013 = vmul.f32 %v1012, %v895
      %v1014 = vsub.f32 %v1007, %v1013
      %v1015 = vmul.f32 %v1014, %v1014
      %v1016 = vsel %vm492, %v1015, 0.0
      %1017 = vadd.xlane.f32.xlu0 %v1016
      %v1018 = vpop.xlane.xlu0 %1017
      %v1019 = vmul.f32 %v1018, 0.032258064
      %v1021 = vperm.slane %v1008, 0
      %v1023 = vmul.f32 %v1021, %v1014
      %v1024 = vrsqrt.pop %v1019
      %v1025 = vmul.f32 %v1024, %v1019
      %v1026 = vmul.f32 %v1025, %v1024
      %v1027 = vmul.f32 0.5, %v1026
      %v1028 = vsub.f32 1.5, %v1027
      %v1029 = vmul.f32 %v1024, %v1028
      %v1030 = vmul.f32 %v1019, %v1029
      %vm1031 = vcmp.eq.f32.partialorder %v1019, inf
      %v1032 = vsel %vm1031, %v1019, %v1030
      %vm1033 = vcmp.eq.f32.partialorder %v1019, 0.0
      %v1034 = vand.u32 %v1019, 2147483648
      %v1035 = vsel %vm1033, %v1034, %v1032
      %v1036 = vadd.f32 %v1035, 1e-06
      %v1037 = vrcp.pop %v1036
      %v1038 = vmul.f32 %v1036, %v1037
      %v1039 = vsub.f32 1.0, %v1038
      %v1040 = vmul.f32 %v1037, %v1039
      %v1041 = vadd.f32 %v1037, %v1040
      %vm1042 = vweird.f32 %v1036
      %vm1043 = vweird.f32 %v1037
      %vm1044 = vmor %vm1042, %vm1043
      %v1045 = vsel %vm1044, %v1037, %v1041
      %v1046 = vand.u32 2147483647, %v1036
      %vm1047 = vcmp.eq.f32.partialorder %v1046, 8.507059e+37
      %v1048 = vand.u32 %v1036, 2147483648
      %v1049 = vor.u32 1.1754944e-38, %v1048
      %v1050 = vsel %vm1047, %v1049, %v1045
      %v1051 = vmul.f32 %v1023, %v1050
      %v1053 = vperm.slane %v1009, 0
      %v1055 = vadd.f32 %v1051, %v1053
      %1056 = vst.msk [vmem:[%s476] sm:$0xff] %vm492, %v1055
      %p1057 = scmp.lt.s32.totalorder %s25, 1
      %s1058 = scalar_select %p1057, %s25, 1
      %s1059 = smul.addr %s1058, 8
      %s1060 = scalar_lea.vmem %s14, %s1059
      // Predicated region
      $region77: #{net_forward.9} parent=75 // pred_check
        %p1061 = pneg %p347
      $region78: #{net_forward.9} parent=75 // pred_check_branch
        %1063 = sbr.rel (%p1061) target = $region80
      $region79: #{net_forward.9} parent=75 // pred_region
        _
      $region80: #{net_forward.9} parent=75 // pred_fallthru
        _
    $region76: #{net_forward.9} parent=5 // pred_fallthru
      _
    %p1064 = scmp.le.s32.totalorder 2, %s20
    // Predicated region
    $region81: #{net_forward.9} parent=5 // pred_check
      %p1065 = pneg %p1064
    $region82: #{net_forward.9} parent=5 // pred_check_branch
      %1067 = sbr.rel (%p1065) target = $region84
    $region83: #{net_forward.9} parent=5 // pred_region
      %s1068 = ssub.s32 %s20, 2
      // Predicated region
      $region85: #{net_forward.9} parent=83 // pred_check
        %p1069 = pneg %p353
      $region86: #{net_forward.9} parent=83 // pred_check_branch
        %1071 = sbr.rel (%p1069) target = $region88
      $region87: #{net_forward.9} parent=83 // pred_region
        %p1072 = scmp.lt.s32.totalorder %s26, 1
        %s1073 = scalar_select %p1072, %s26, 1
        %s1074 = smul.addr %s1073, 8
        %s1075 = scalar_lea.vmem %s14, %s1074
      $region88: #{net_forward.9} parent=83 // pred_fallthru
        _
    $region84: #{net_forward.9} parent=5 // pred_fallthru
      _
  $region6: #{net_forward.9} parent=0 // loop_footer
    %s24 = sadd.s32 1, %s20
  $region7: #{net_forward.9} parent=0 // loop_footer_branch
    %19 = sbr.rel target = $region3
  $region8: #{net_forward.9} parent=0 // loop_exit
    _

// kernel: net_forward.7
$region0: #{net_forward.7}
  #allocation0 [shape = 'u32[]', space=smem, size = 0x4, offset = 0x4, fixed_abs, tag = 'smem constant byte address 0x4 - core index']
  #allocation1 [shape = 'u32[72,128]{1,0:T(1,128)}', space=vmem, size = 0x9000, scoped, tag = 'internal scratch']
  %s0 = inlined_call_operand.vmem [shape: f32[2,1,8], index: 0, kind: input, shape index: {}]
  %s1 = inlined_call_operand.vmem [shape: f32[2,8,16], index: 1, kind: input, shape index: {}]
  %s2 = inlined_call_operand.vmem [shape: f32[16,128], index: 2, kind: input, shape index: {}]
  %s3 = inlined_call_operand.vmem [shape: f32[32,128], index: 3, kind: input, shape index: {}]
  %s4 = inlined_call_operand.vmem [shape: f32[1,128], index: 4, kind: input, shape index: {}]
  %s5 = inlined_call_operand.vmem [shape: f32[2,256], index: 5, kind: output, shape index: {0}]
  %s6 = inlined_call_operand.vmem [shape: f32[2,1,8], index: 6, kind: output, shape index: {1}]
  %7 = xla_tuple %s5, %s6
  %s8 = sld [smem:[#allocation0]]
  $region38: #{net_forward.7} parent=0
    _
  %s10 = ssub.s32 1, %s8
  %s11 = scalar_select 0, %s10, %s8
  // Predicated region
  $region2: #{net_forward.7} parent=0 // pred_check
    _
  $region3: #{net_forward.7} parent=0 // pred_check_branch
    %13 = sbr.rel (0) target = $region5
  $region4: #{net_forward.7} parent=0 // pred_region
    _
  $region5: #{net_forward.7} parent=0 // pred_fallthru
    _
  // Predicated region
  $region6: #{net_forward.7} parent=0 // pred_check
    _
  $region7: #{net_forward.7} parent=0 // pred_check_branch
    %15 = sbr.rel (0) target = $region9
  $region8: #{net_forward.7} parent=0 // pred_region
    _
  $region9: #{net_forward.7} parent=0 // pred_fallthru
    _
  // Predicated region
  $region10: #{net_forward.7} parent=0 // pred_check
    _
  $region11: #{net_forward.7} parent=0 // pred_check_branch
    %17 = sbr.rel (0) target = $region13
  $region12: #{net_forward.7} parent=0 // pred_region
    _
  $region13: #{net_forward.7} parent=0 // pred_fallthru
    _
  // Predicated region
  $region14: #{net_forward.7} parent=0 // pred_check
    _
  $region15: #{net_forward.7} parent=0 // pred_check_branch
    %19 = sbr.rel (0) target = $region17
  $region16: #{net_forward.7} parent=0 // pred_region
    _
  $region17: #{net_forward.7} parent=0 // pred_fallthru
    _
  // Predicated region
  $region18: #{net_forward.7} parent=0 // pred_check
    _
  $region19: #{net_forward.7} parent=0 // pred_check_branch
    %21 = sbr.rel (0) target = $region21
  $region20: #{net_forward.7} parent=0 // pred_region
    _
  $region21: #{net_forward.7} parent=0 // pred_fallthru
    _
  %v22 = vld [vmem:[%s3] sm:$0xff]
  %v23 = vld [vmem:[%s3 + $0x8] sm:$0xff]
  %v24 = vld [vmem:[%s3 + $0x10] sm:$0xff]
  %v25 = vld [vmem:[%s3 + $0x18] sm:$0xff]
  %v26 = vld [vmem:[%s1] sm:$0xff]
  %v27 = vld [vmem:[%s1 + $0x8] sm:$0xff]
  %v28 = vld [vmem:[%s2] sm:$0xff]
  %v29 = vld [vmem:[%s2 + $0x8] sm:$0xff]
  %v30 = vld [vmem:[%s4] sm:$0x1]
  %v32 = vperm.slane %v30, 0
  %vm34 = vcmask 130048
  %v36 = vsel %vm34, %v26, 0
  %v39 = vsel %vm34, %v27, 0
  %41 = vmatpush.msra.mxu0 0.0
  %42 = vmatpush.msra.mxu0 0.0
  %43 = vmatpush.msra.mxu0 0.0
  %44 = vmatpush.msra.mxu0 0.0
  %45 = vmatpush.msra.mxu0 0.0
  %46 = vmatpush.msra.mxu0 0.0
  %47 = vmatpush.msra.mxu0 0.0
  %48 = vmatpush.msra.mxu0 0.0
  %49 = vmatpush.msra.mxu0 0.0
  %50 = vmatpush.msra.mxu0 0.0
  %51 = vmatpush.msra.mxu0 0.0
  %52 = vmatpush.msra.mxu0 0.0
  %53 = vmatpush.msra.mxu0 0.0
  %54 = vmatpush.msra.mxu0 0.0
  %55 = vmatpush.msra.mxu0 %v29
  %56 = vmatpush.msra.mxu0 %v28
  %57 = vmatmul.f32.gmra.mxu0 %v36
  %v58 = vpop.f32.mrf.mxu0
  %v59 = vadd.f32 %v32, %v58
  %60 = vmatmul.f32.gmra.mxu0 %v39
  %v61 = vpop.f32.mrf.mxu0
  %v62 = vadd.f32 %v32, %v61
  %63 = vdwg.mxu0
  %vm64 = vcmask 261120
  %v66 = vsel %vm64, 0.0, 0
  %68 = vmatpush.msra.mxu0 0.0
  %69 = vmatpush.msra.mxu0 0.0
  %70 = vmatpush.msra.mxu0 0.0
  %71 = vmatpush.msra.mxu0 0.0
  %72 = vmatpush.msra.mxu0 0.0
  %73 = vmatpush.msra.mxu0 0.0
  %74 = vmatpush.msra.mxu0 0.0
  %75 = vmatpush.msra.mxu0 0.0
  %76 = vmatpush.msra.mxu0 0.0
  %77 = vmatpush.msra.mxu0 0.0
  %78 = vmatpush.msra.mxu0 0.0
  %79 = vmatpush.msra.mxu0 0.0
  %80 = vmatpush.msra.mxu0 %v25
  %81 = vmatpush.msra.mxu0 %v24
  %82 = vmatpush.msra.mxu0 %v23
  %83 = vmatpush.msra.mxu0 %v22
  %84 = vmatmul.f32.gmra.mxu0 %v66
  %v85 = vpop.f32.mrf.mxu0
  %v86 = vadd.f32 0.0, %v85
  %87 = vdwg.mxu0
  %v89 = vrot.slane %v86, 1
  %v92 = vadd.f32 %v59, %v86
  %v93 = vadd.f32 %v62, %v89
  %v94 = vxor.u32 %v92, 2147483648
  %v95 = vxor.u32 %v93, 2147483648
  %v96 = vmul.f32 %v94, 1.442695
  %v97 = vpow.pop %v96
  %v98 = vmul.f32 %v95, 1.442695
  %v99 = vpow.pop %v98
  %v100 = vadd.f32 %v97, 1.0
  %v101 = vadd.f32 %v99, 1.0
  %v102 = vrcp.pop %v100
  %v103 = vmul.f32 %v100, %v102
  %v104 = vsub.f32 1.0, %v103
  %v105 = vmul.f32 %v102, %v104
  %v106 = vadd.f32 %v102, %v105
  %vm107 = vweird.f32 %v100
  %vm108 = vweird.f32 %v102
  %vm109 = vmor %vm107, %vm108
  %v110 = vsel %vm109, %v102, %v106
  %v111 = vand.u32 2147483647, %v100
  %vm112 = vcmp.eq.f32.partialorder %v111, 8.507059e+37
  %v113 = vand.u32 %v100, 2147483648
  %v114 = vor.u32 1.1754944e-38, %v113
  %v115 = vsel %vm112, %v114, %v110
  %v116 = vmul.f32 1.0, %v115
  %v117 = vrcp.pop %v101
  %v118 = vmul.f32 %v101, %v117
  %v119 = vsub.f32 1.0, %v118
  %v120 = vmul.f32 %v117, %v119
  %v121 = vadd.f32 %v117, %v120
  %vm122 = vweird.f32 %v101
  %vm123 = vweird.f32 %v117
  %vm124 = vmor %vm122, %vm123
  %v125 = vsel %vm124, %v117, %v121
  %v126 = vand.u32 2147483647, %v101
  %vm127 = vcmp.eq.f32.partialorder %v126, 8.507059e+37
  %v128 = vand.u32 %v101, 2147483648
  %v129 = vor.u32 1.1754944e-38, %v128
  %v130 = vsel %vm127, %v129, %v125
  %v131 = vmul.f32 1.0, %v130
  %v132 = vtanh.pop %v92
  %v133 = vtanh.pop %v93
  %v134 = vmul.f32 %v116, 0.0
  %v135 = vmul.f32 %v131, 0.0
  %138 = vrot.lane.b32.xlu0 %v132, 64
  %v139 = vpop.permute.xlu0 %138
  %140 = vrot.lane.b32.xlu0 %v133, 64
  %v141 = vpop.permute.xlu0 %140
  %v144 = vmul.f32 %v116, %v139
  %v145 = vmul.f32 %v131, %v141
  %148 = vrot.lane.b32.xlu0 %v144, 32
  %v149 = vpop.permute.xlu0 %148
  %150 = vrot.lane.b32.xlu0 %v145, 32
  %v151 = vpop.permute.xlu0 %150
  %v154 = vadd.f32 %v134, %v149
  %v155 = vadd.f32 %v135, %v151
  %v156 = vtanh.pop %v154
  %v157 = vtanh.pop %v155
  %160 = vrot.lane.b32.xlu0 %v156, 64
  %v161 = vpop.permute.xlu0 %160
  %162 = vrot.lane.b32.xlu0 %v157, 64
  %v163 = vpop.permute.xlu0 %162
  %v166 = vmul.f32 %v116, %v161
  %v167 = vmul.f32 %v131, %v163
  %v170 = vrot.slane %v167, 7
  %vm171 = vcmask 1041409
  %v172 = vsel %vm171, %v170, %v166
  %173 = vrot.lane.b32.xlu0 %v172, 32
  %v174 = vpop.permute.xlu0 %173
  %v175 = vsel %vm64, %v174, 0
  %177 = vmatpush.msra.mxu0 0.0
  %178 = vmatpush.msra.mxu0 0.0
  %179 = vmatpush.msra.mxu0 0.0
  %180 = vmatpush.msra.mxu0 0.0
  %181 = vmatpush.msra.mxu0 0.0
  %182 = vmatpush.msra.mxu0 0.0
  %183 = vmatpush.msra.mxu0 0.0
  %184 = vmatpush.msra.mxu0 0.0
  %185 = vmatpush.msra.mxu0 0.0
  %186 = vmatpush.msra.mxu0 0.0
  %187 = vmatpush.msra.mxu0 0.0
  %188 = vmatpush.msra.mxu0 0.0
  %189 = vmatpush.msra.mxu0 %v25
  %190 = vmatpush.msra.mxu0 %v24
  %191 = vmatpush.msra.mxu0 %v23
  %192 = vmatpush.msra.mxu0 %v22
  %193 = vmatmul.f32.gmra.mxu0 %v175
  %v194 = vpop.f32.mrf.mxu0
  %v195 = vadd.f32 0.0, %v194
  %196 = vdwg.mxu0
  %v198 = vrot.slane %v195, 7
  %v201 = vadd.f32 %v59, %v198
  %v202 = vadd.f32 %v62, %v195
  %v203 = vxor.u32 %v201, 2147483648
  %v204 = vxor.u32 %v202, 2147483648
  %v205 = vmul.f32 %v203, 1.442695
  %v206 = vpow.pop %v205
  %v207 = vmul.f32 %v204, 1.442695
  %v208 = vpow.pop %v207
  %v209 = vadd.f32 %v206, 1.0
  %v210 = vadd.f32 %v208, 1.0
  %v211 = vrcp.pop %v209
  %v212 = vmul.f32 %v209, %v211
  %v213 = vsub.f32 1.0, %v212
  %v214 = vmul.f32 %v211, %v213
  %v215 = vadd.f32 %v211, %v214
  %vm216 = vweird.f32 %v209
  %vm217 = vweird.f32 %v211
  %vm218 = vmor %vm216, %vm217
  %v219 = vsel %vm218, %v211, %v215
  %v220 = vand.u32 2147483647, %v209
  %vm221 = vcmp.eq.f32.partialorder %v220, 8.507059e+37
  %v222 = vand.u32 %v209, 2147483648
  %v223 = vor.u32 1.1754944e-38, %v222
  %v224 = vsel %vm221, %v223, %v219
  %v225 = vmul.f32 1.0, %v224
  %v226 = vrcp.pop %v210
  %v227 = vmul.f32 %v210, %v226
  %v228 = vsub.f32 1.0, %v227
  %v229 = vmul.f32 %v226, %v228
  %v230 = vadd.f32 %v226, %v229
  %vm231 = vweird.f32 %v210
  %vm232 = vweird.f32 %v226
  %vm233 = vmor %vm231, %vm232
  %v234 = vsel %vm233, %v226, %v230
  %v235 = vand.u32 2147483647, %v210
  %vm236 = vcmp.eq.f32.partialorder %v235, 8.507059e+37
  %v237 = vand.u32 %v210, 2147483648
  %v238 = vor.u32 1.1754944e-38, %v237
  %v239 = vsel %vm236, %v238, %v234
  %v240 = vmul.f32 1.0, %v239
  %v241 = vtanh.pop %v201
  %v242 = vtanh.pop %v202
  %v245 = vrot.slane %v154, 7
  %v246 = vrot.slane %v155, 7
  %v249 = vmul.f32 %v225, %v245
  %v250 = vmul.f32 %v240, %v246
  %253 = vrot.lane.b32.xlu0 %v241, 64
  %v254 = vpop.permute.xlu0 %253
  %255 = vrot.lane.b32.xlu0 %v242, 64
  %v256 = vpop.permute.xlu0 %255
  %v259 = vmul.f32 %v225, %v254
  %v260 = vmul.f32 %v240, %v256
  %263 = vrot.lane.b32.xlu0 %v259, 32
  %v264 = vpop.permute.xlu0 %263
  %265 = vrot.lane.b32.xlu0 %v260, 32
  %v266 = vpop.permute.xlu0 %265
  %v269 = vadd.f32 %v249, %v264
  %v270 = vadd.f32 %v250, %v266
  %v271 = vtanh.pop %v269
  %v272 = vtanh.pop %v270
  %275 = vrot.lane.b32.xlu0 %v271, 64
  %v276 = vpop.permute.xlu0 %275
  %277 = vrot.lane.b32.xlu0 %v272, 64
  %v278 = vpop.permute.xlu0 %277
  %v281 = vmul.f32 %v225, %v276
  %v282 = vmul.f32 %v240, %v278
  %v285 = vrot.slane %v281, 1
  %v286 = vsel %vm171, %v282, %v285
  %287 = vrot.lane.b32.xlu0 %v286, 32
  %v288 = vpop.permute.xlu0 %287
  %v289 = vsel %vm64, %v288, 0
  %291 = vmatpush.msra.mxu0 0.0
  %292 = vmatpush.msra.mxu0 0.0
  %293 = vmatpush.msra.mxu0 0.0
  %294 = vmatpush.msra.mxu0 0.0
  %295 = vmatpush.msra.mxu0 0.0
  %296 = vmatpush.msra.mxu0 0.0
  %297 = vmatpush.msra.mxu0 0.0
  %298 = vmatpush.msra.mxu0 0.0
  %299 = vmatpush.msra.mxu0 0.0
  %300 = vmatpush.msra.mxu0 0.0
  %301 = vmatpush.msra.mxu0 0.0
  %302 = vmatpush.msra.mxu0 0.0
  %303 = vmatpush.msra.mxu0 %v25
  %304 = vmatpush.msra.mxu0 %v24
  %305 = vmatpush.msra.mxu0 %v23
  %306 = vmatpush.msra.mxu0 %v22
  %307 = vmatmul.f32.gmra.mxu0 %v289
  %v308 = vpop.f32.mrf.mxu0
  %v309 = vadd.f32 0.0, %v308
  %310 = vdwg.mxu0
  %v312 = vrot.slane %v309, 6
  %v313 = vrot.slane %v309, 7
  %v316 = vadd.f32 %v59, %v312
  %v317 = vadd.f32 %v62, %v313
  %v318 = vxor.u32 %v316, 2147483648
  %v319 = vxor.u32 %v317, 2147483648
  %v320 = vmul.f32 %v318, 1.442695
  %v321 = vpow.pop %v320
  %v322 = vmul.f32 %v319, 1.442695
  %v323 = vpow.pop %v322
  %v324 = vadd.f32 %v321, 1.0
  %v325 = vadd.f32 %v323, 1.0
  %v326 = vrcp.pop %v324
  %v327 = vmul.f32 %v324, %v326
  %v328 = vsub.f32 1.0, %v327
  %v329 = vmul.f32 %v326, %v328
  %v330 = vadd.f32 %v326, %v329
  %vm331 = vweird.f32 %v324
  %vm332 = vweird.f32 %v326
  %vm333 = vmor %vm331, %vm332
  %v334 = vsel %vm333, %v326, %v330
  %v335 = vand.u32 2147483647, %v324
  %vm336 = vcmp.eq.f32.partialorder %v335, 8.507059e+37
  %v337 = vand.u32 %v324, 2147483648
  %v338 = vor.u32 1.1754944e-38, %v337
  %v339 = vsel %vm336, %v338, %v334
  %v340 = vmul.f32 1.0, %v339
  %v341 = vrcp.pop %v325
  %v342 = vmul.f32 %v325, %v341
  %v343 = vsub.f32 1.0, %v342
  %v344 = vmul.f32 %v341, %v343
  %v345 = vadd.f32 %v341, %v344
  %vm346 = vweird.f32 %v325
  %vm347 = vweird.f32 %v341
  %vm348 = vmor %vm346, %vm347
  %v349 = vsel %vm348, %v341, %v345
  %v350 = vand.u32 2147483647, %v325
  %vm351 = vcmp.eq.f32.partialorder %v350, 8.507059e+37
  %v352 = vand.u32 %v325, 2147483648
  %v353 = vor.u32 1.1754944e-38, %v352
  %v354 = vsel %vm351, %v353, %v349
  %v355 = vmul.f32 1.0, %v354
  %v356 = vtanh.pop %v316
  %v357 = vtanh.pop %v317
  %v360 = vrot.slane %v269, 7
  %v361 = vrot.slane %v270, 7
  %v364 = vmul.f32 %v340, %v360
  %v365 = vmul.f32 %v355, %v361
  %368 = vrot.lane.b32.xlu0 %v356, 64
  %v369 = vpop.permute.xlu0 %368
  %370 = vrot.lane.b32.xlu0 %v357, 64
  %v371 = vpop.permute.xlu0 %370
  %v374 = vmul.f32 %v340, %v369
  %v375 = vmul.f32 %v355, %v371
  %378 = vrot.lane.b32.xlu0 %v374, 32
  %v379 = vpop.permute.xlu0 %378
  %380 = vrot.lane.b32.xlu0 %v375, 32
  %v381 = vpop.permute.xlu0 %380
  %v384 = vadd.f32 %v364, %v379
  %v385 = vadd.f32 %v365, %v381
  %v386 = vtanh.pop %v384
  %v387 = vtanh.pop %v385
  %390 = vrot.lane.b32.xlu0 %v386, 64
  %v391 = vpop.permute.xlu0 %390
  %392 = vrot.lane.b32.xlu0 %v387, 64
  %v393 = vpop.permute.xlu0 %392
  %v396 = vmul.f32 %v340, %v391
  %v397 = vmul.f32 %v355, %v393
  %v400 = vrot.slane %v396, 2
  %v401 = vrot.slane %v397, 1
  %v402 = vsel %vm171, %v401, %v400
  %403 = vrot.lane.b32.xlu0 %v402, 32
  %v404 = vpop.permute.xlu0 %403
  %v405 = vsel %vm64, %v404, 0
  %407 = vmatpush.msra.mxu0 0.0
  %408 = vmatpush.msra.mxu0 0.0
  %409 = vmatpush.msra.mxu0 0.0
  %410 = vmatpush.msra.mxu0 0.0
  %411 = vmatpush.msra.mxu0 0.0
  %412 = vmatpush.msra.mxu0 0.0
  %413 = vmatpush.msra.mxu0 0.0
  %414 = vmatpush.msra.mxu0 0.0
  %415 = vmatpush.msra.mxu0 0.0
  %416 = vmatpush.msra.mxu0 0.0
  %417 = vmatpush.msra.mxu0 0.0
  %418 = vmatpush.msra.mxu0 0.0
  %419 = vmatpush.msra.mxu0 %v25
  %420 = vmatpush.msra.mxu0 %v24
  %421 = vmatpush.msra.mxu0 %v23
  %422 = vmatpush.msra.mxu0 %v22
  %423 = vmatmul.f32.gmra.mxu0 %v405
  %v424 = vpop.f32.mrf.mxu0
  %v425 = vadd.f32 0.0, %v424
  %426 = vdwg.mxu0
  %v428 = vrot.slane %v425, 5
  %v429 = vrot.slane %v425, 6
  %v432 = vadd.f32 %v59, %v428
  %v433 = vadd.f32 %v62, %v429
  %v434 = vxor.u32 %v432, 2147483648
  %v435 = vxor.u32 %v433, 2147483648
  %v436 = vmul.f32 %v434, 1.442695
  %v437 = vpow.pop %v436
  %v438 = vmul.f32 %v435, 1.442695
  %v439 = vpow.pop %v438
  %v440 = vadd.f32 %v437, 1.0
  %v441 = vadd.f32 %v439, 1.0
  %v442 = vrcp.pop %v440
  %v443 = vmul.f32 %v440, %v442
  %v444 = vsub.f32 1.0, %v443
  %v445 = vmul.f32 %v442, %v444
  %v446 = vadd.f32 %v442, %v445
  %vm447 = vweird.f32 %v440
  %vm448 = vweird.f32 %v442
  %vm449 = vmor %vm447, %vm448
  %v450 = vsel %vm449, %v442, %v446
  %v451 = vand.u32 2147483647, %v440
  %vm452 = vcmp.eq.f32.partialorder %v451, 8.507059e+37
  %v453 = vand.u32 %v440, 2147483648
  %v454 = vor.u32 1.1754944e-38, %v453
  %v455 = vsel %vm452, %v454, %v450
  %v456 = vmul.f32 1.0, %v455
  %v457 = vrcp.pop %v441
  %v458 = vmul.f32 %v441, %v457
  %v459 = vsub.f32 1.0, %v458
  %v460 = vmul.f32 %v457, %v459
  %v461 = vadd.f32 %v457, %v460
  %vm462 = vweird.f32 %v441
  %vm463 = vweird.f32 %v457
  %vm464 = vmor %vm462, %vm463
  %v465 = vsel %vm464, %v457, %v461
  %v466 = vand.u32 2147483647, %v441
  %vm467 = vcmp.eq.f32.partialorder %v466, 8.507059e+37
  %v468 = vand.u32 %v441, 2147483648
  %v469 = vor.u32 1.1754944e-38, %v468
  %v470 = vsel %vm467, %v469, %v465
  %v471 = vmul.f32 1.0, %v470
  %v472 = vtanh.pop %v432
  %v473 = vtanh.pop %v433
  %v476 = vrot.slane %v384, 7
  %v477 = vrot.slane %v385, 7
  %v480 = vmul.f32 %v456, %v476
  %v481 = vmul.f32 %v471, %v477
  %484 = vrot.lane.b32.xlu0 %v472, 64
  %v485 = vpop.permute.xlu0 %484
  %486 = vrot.lane.b32.xlu0 %v473, 64
  %v487 = vpop.permute.xlu0 %486
  %v490 = vmul.f32 %v456, %v485
  %v491 = vmul.f32 %v471, %v487
  %494 = vrot.lane.b32.xlu0 %v490, 32
  %v495 = vpop.permute.xlu0 %494
  %496 = vrot.lane.b32.xlu0 %v491, 32
  %v497 = vpop.permute.xlu0 %496
  %v500 = vadd.f32 %v480, %v495
  %v501 = vadd.f32 %v481, %v497
  %v502 = vtanh.pop %v500
  %v503 = vtanh.pop %v501
  %506 = vrot.lane.b32.xlu0 %v502, 64
  %v507 = vpop.permute.xlu0 %506
  %508 = vrot.lane.b32.xlu0 %v503, 64
  %v509 = vpop.permute.xlu0 %508
  %v512 = vmul.f32 %v456, %v507
  %v513 = vmul.f32 %v471, %v509
  %v516 = vrot.slane %v512, 3
  %v517 = vrot.slane %v513, 2
  %v518 = vsel %vm171, %v517, %v516
  %519 = vrot.lane.b32.xlu0 %v518, 32
  %v520 = vpop.permute.xlu0 %519
  %v521 = vsel %vm64, %v520, 0
  %523 = vmatpush.msra.mxu0 0.0
  %524 = vmatpush.msra.mxu0 0.0
  %525 = vmatpush.msra.mxu0 0.0
  %526 = vmatpush.msra.mxu0 0.0
  %527 = vmatpush.msra.mxu0 0.0
  %528 = vmatpush.msra.mxu0 0.0
  %529 = vmatpush.msra.mxu0 0.0
  %530 = vmatpush.msra.mxu0 0.0
  %531 = vmatpush.msra.mxu0 0.0
  %532 = vmatpush.msra.mxu0 0.0
  %533 = vmatpush.msra.mxu0 0.0
  %534 = vmatpush.msra.mxu0 0.0
  %535 = vmatpush.msra.mxu0 %v25
  %536 = vmatpush.msra.mxu0 %v24
  %537 = vmatpush.msra.mxu0 %v23
  %538 = vmatpush.msra.mxu0 %v22
  %539 = vmatmul.f32.gmra.mxu0 %v521
  %v540 = vpop.f32.mrf.mxu0
  %v541 = vadd.f32 0.0, %v540
  %542 = vdwg.mxu0
  %v544 = vrot.slane %v541, 4
  %v545 = vrot.slane %v541, 5
  %v548 = vadd.f32 %v59, %v544
  %v549 = vadd.f32 %v62, %v545
  %v550 = vxor.u32 %v548, 2147483648
  %v551 = vxor.u32 %v549, 2147483648
  %v552 = vmul.f32 %v550, 1.442695
  %v553 = vpow.pop %v552
  %v554 = vmul.f32 %v551, 1.442695
  %v555 = vpow.pop %v554
  %v556 = vadd.f32 %v553, 1.0
  %v557 = vadd.f32 %v555, 1.0
  %v558 = vrcp.pop %v556
  %v559 = vmul.f32 %v556, %v558
  %v560 = vsub.f32 1.0, %v559
  %v561 = vmul.f32 %v558, %v560
  %v562 = vadd.f32 %v558, %v561
  %vm563 = vweird.f32 %v556
  %vm564 = vweird.f32 %v558
  %vm565 = vmor %vm563, %vm564
  %v566 = vsel %vm565, %v558, %v562
  %v567 = vand.u32 2147483647, %v556
  %vm568 = vcmp.eq.f32.partialorder %v567, 8.507059e+37
  %v569 = vand.u32 %v556, 2147483648
  %v570 = vor.u32 1.1754944e-38, %v569
  %v571 = vsel %vm568, %v570, %v566
  %v572 = vmul.f32 1.0, %v571
  %v573 = vrcp.pop %v557
  %v574 = vmul.f32 %v557, %v573
  %v575 = vsub.f32 1.0, %v574
  %v576 = vmul.f32 %v573, %v575
  %v577 = vadd.f32 %v573, %v576
  %vm578 = vweird.f32 %v557
  %vm579 = vweird.f32 %v573
  %vm580 = vmor %vm578, %vm579
  %v581 = vsel %vm580, %v573, %v577
  %v582 = vand.u32 2147483647, %v557
  %vm583 = vcmp.eq.f32.partialorder %v582, 8.507059e+37
  %v584 = vand.u32 %v557, 2147483648
  %v585 = vor.u32 1.1754944e-38, %v584
  %v586 = vsel %vm583, %v585, %v581
  %v587 = vmul.f32 1.0, %v586
  %v588 = vtanh.pop %v548
  %v589 = vtanh.pop %v549
  %v592 = vrot.slane %v500, 7
  %v593 = vrot.slane %v501, 7
  %v596 = vmul.f32 %v572, %v592
  %v597 = vmul.f32 %v587, %v593
  %600 = vrot.lane.b32.xlu0 %v588, 64
  %v601 = vpop.permute.xlu0 %600
  %602 = vrot.lane.b32.xlu0 %v589, 64
  %v603 = vpop.permute.xlu0 %602
  %v606 = vmul.f32 %v572, %v601
  %v607 = vmul.f32 %v587, %v603
  %610 = vrot.lane.b32.xlu0 %v606, 32
  %v611 = vpop.permute.xlu0 %610
  %612 = vrot.lane.b32.xlu0 %v607, 32
  %v613 = vpop.permute.xlu0 %612
  %v616 = vadd.f32 %v596, %v611
  %v617 = vadd.f32 %v597, %v613
  %v618 = vtanh.pop %v616
  %v619 = vtanh.pop %v617
  %622 = vrot.lane.b32.xlu0 %v618, 64
  %v623 = vpop.permute.xlu0 %622
  %624 = vrot.lane.b32.xlu0 %v619, 64
  %v625 = vpop.permute.xlu0 %624
  %v628 = vmul.f32 %v572, %v623
  %v629 = vmul.f32 %v587, %v625
  %v632 = vrot.slane %v628, 4
  %v633 = vrot.slane %v629, 3
  %v634 = vsel %vm171, %v633, %v632
  %635 = vrot.lane.b32.xlu0 %v634, 32
  %v636 = vpop.permute.xlu0 %635
  %v637 = vsel %vm64, %v636, 0
  %639 = vmatpush.msra.mxu0 0.0
  %640 = vmatpush.msra.mxu0 0.0
  %641 = vmatpush.msra.mxu0 0.0
  %642 = vmatpush.msra.mxu0 0.0
  %643 = vmatpush.msra.mxu0 0.0
  %644 = vmatpush.msra.mxu0 0.0
  %645 = vmatpush.msra.mxu0 0.0
  %646 = vmatpush.msra.mxu0 0.0
  %647 = vmatpush.msra.mxu0 0.0
  %648 = vmatpush.msra.mxu0 0.0
  %649 = vmatpush.msra.mxu0 0.0
  %650 = vmatpush.msra.mxu0 0.0
  %651 = vmatpush.msra.mxu0 %v25
  %652 = vmatpush.msra.mxu0 %v24
  %653 = vmatpush.msra.mxu0 %v23
  %654 = vmatpush.msra.mxu0 %v22
  %655 = vmatmul.f32.gmra.mxu0 %v637
  %v656 = vpop.f32.mrf.mxu0
  %v657 = vadd.f32 0.0, %v656
  %658 = vdwg.mxu0
  %v660 = vrot.slane %v657, 3
  %v661 = vrot.slane %v657, 4
  %v664 = vadd.f32 %v59, %v660
  %v665 = vadd.f32 %v62, %v661
  %v666 = vxor.u32 %v664, 2147483648
  %v667 = vxor.u32 %v665, 2147483648
  %v668 = vmul.f32 %v666, 1.442695
  %v669 = vpow.pop %v668
  %v670 = vmul.f32 %v667, 1.442695
  %v671 = vpow.pop %v670
  %v672 = vadd.f32 %v669, 1.0
  %v673 = vadd.f32 %v671, 1.0
  %v674 = vrcp.pop %v672
  %v675 = vmul.f32 %v672, %v674
  %v676 = vsub.f32 1.0, %v675
  %v677 = vmul.f32 %v674, %v676
  %v678 = vadd.f32 %v674, %v677
  %vm679 = vweird.f32 %v672
  %vm680 = vweird.f32 %v674
  %vm681 = vmor %vm679, %vm680
  %v682 = vsel %vm681, %v674, %v678
  %v683 = vand.u32 2147483647, %v672
  %vm684 = vcmp.eq.f32.partialorder %v683, 8.507059e+37
  %v685 = vand.u32 %v672, 2147483648
  %v686 = vor.u32 1.1754944e-38, %v685
  %v687 = vsel %vm684, %v686, %v682
  %v688 = vmul.f32 1.0, %v687
  %v689 = vrcp.pop %v673
  %v690 = vmul.f32 %v673, %v689
  %v691 = vsub.f32 1.0, %v690
  %v692 = vmul.f32 %v689, %v691
  %v693 = vadd.f32 %v689, %v692
  %vm694 = vweird.f32 %v673
  %vm695 = vweird.f32 %v689
  %vm696 = vmor %vm694, %vm695
  %v697 = vsel %vm696, %v689, %v693
  %v698 = vand.u32 2147483647, %v673
  %vm699 = vcmp.eq.f32.partialorder %v698, 8.507059e+37
  %v700 = vand.u32 %v673, 2147483648
  %v701 = vor.u32 1.1754944e-38, %v700
  %v702 = vsel %vm699, %v701, %v697
  %v703 = vmul.f32 1.0, %v702
  %v704 = vtanh.pop %v664
  %v705 = vtanh.pop %v665
  %v708 = vrot.slane %v616, 7
  %v709 = vrot.slane %v617, 7
  %v712 = vmul.f32 %v688, %v708
  %v713 = vmul.f32 %v703, %v709
  %716 = vrot.lane.b32.xlu0 %v704, 64
  %v717 = vpop.permute.xlu0 %716
  %718 = vrot.lane.b32.xlu0 %v705, 64
  %v719 = vpop.permute.xlu0 %718
  %v722 = vmul.f32 %v688, %v717
  %v723 = vmul.f32 %v703, %v719
  %726 = vrot.lane.b32.xlu0 %v722, 32
  %v727 = vpop.permute.xlu0 %726
  %728 = vrot.lane.b32.xlu0 %v723, 32
  %v729 = vpop.permute.xlu0 %728
  %v732 = vadd.f32 %v712, %v727
  %v733 = vadd.f32 %v713, %v729
  %v734 = vtanh.pop %v732
  %v735 = vtanh.pop %v733
  %738 = vrot.lane.b32.xlu0 %v734, 64
  %v739 = vpop.permute.xlu0 %738
  %740 = vrot.lane.b32.xlu0 %v735, 64
  %v741 = vpop.permute.xlu0 %740
  %v744 = vmul.f32 %v688, %v739
  %v745 = vmul.f32 %v703, %v741
  %v748 = vrot.slane %v744, 5
  %v749 = vrot.slane %v745, 4
  %v750 = vsel %vm171, %v749, %v748
  %751 = vrot.lane.b32.xlu0 %v750, 32
  %v752 = vpop.permute.xlu0 %751
  %v753 = vsel %vm64, %v752, 0
  %755 = vmatpush.msra.mxu0 0.0
  %756 = vmatpush.msra.mxu0 0.0
  %757 = vmatpush.msra.mxu0 0.0
  %758 = vmatpush.msra.mxu0 0.0
  %759 = vmatpush.msra.mxu0 0.0
  %760 = vmatpush.msra.mxu0 0.0
  %761 = vmatpush.msra.mxu0 0.0
  %762 = vmatpush.msra.mxu0 0.0
  %763 = vmatpush.msra.mxu0 0.0
  %764 = vmatpush.msra.mxu0 0.0
  %765 = vmatpush.msra.mxu0 0.0
  %766 = vmatpush.msra.mxu0 0.0
  %767 = vmatpush.msra.mxu0 %v25
  %768 = vmatpush.msra.mxu0 %v24
  %769 = vmatpush.msra.mxu0 %v23
  %770 = vmatpush.msra.mxu0 %v22
  %771 = vmatmul.f32.gmra.mxu0 %v753
  %v772 = vpop.f32.mrf.mxu0
  %v773 = vadd.f32 0.0, %v772
  %774 = vdwg.mxu0
  %v776 = vrot.slane %v773, 2
  %v777 = vrot.slane %v773, 3
  %v780 = vadd.f32 %v59, %v776
  %v781 = vadd.f32 %v62, %v777
  %v782 = vxor.u32 %v780, 2147483648
  %v783 = vxor.u32 %v781, 2147483648
  %v784 = vmul.f32 %v782, 1.442695
  %v785 = vpow.pop %v784
  %v786 = vmul.f32 %v783, 1.442695
  %v787 = vpow.pop %v786
  %v788 = vadd.f32 %v785, 1.0
  %v789 = vadd.f32 %v787, 1.0
  %v790 = vrcp.pop %v788
  %v791 = vmul.f32 %v788, %v790
  %v792 = vsub.f32 1.0, %v791
  %v793 = vmul.f32 %v790, %v792
  %v794 = vadd.f32 %v790, %v793
  %vm795 = vweird.f32 %v788
  %vm796 = vweird.f32 %v790
  %vm797 = vmor %vm795, %vm796
  %v798 = vsel %vm797, %v790, %v794
  %v799 = vand.u32 2147483647, %v788
  %vm800 = vcmp.eq.f32.partialorder %v799, 8.507059e+37
  %v801 = vand.u32 %v788, 2147483648
  %v802 = vor.u32 1.1754944e-38, %v801
  %v803 = vsel %vm800, %v802, %v798
  %v804 = vmul.f32 1.0, %v803
  %v805 = vrcp.pop %v789
  %v806 = vmul.f32 %v789, %v805
  %v807 = vsub.f32 1.0, %v806
  %v808 = vmul.f32 %v805, %v807
  %v809 = vadd.f32 %v805, %v808
  %vm810 = vweird.f32 %v789
  %vm811 = vweird.f32 %v805
  %vm812 = vmor %vm810, %vm811
  %v813 = vsel %vm812, %v805, %v809
  %v814 = vand.u32 2147483647, %v789
  %vm815 = vcmp.eq.f32.partialorder %v814, 8.507059e+37
  %v816 = vand.u32 %v789, 2147483648
  %v817 = vor.u32 1.1754944e-38, %v816
  %v818 = vsel %vm815, %v817, %v813
  %v819 = vmul.f32 1.0, %v818
  %v820 = vtanh.pop %v780
  %v821 = vtanh.pop %v781
  %v824 = vrot.slane %v732, 7
  %v825 = vrot.slane %v733, 7
  %v828 = vmul.f32 %v804, %v824
  %v829 = vmul.f32 %v819, %v825
  %832 = vrot.lane.b32.xlu0 %v820, 64
  %v833 = vpop.permute.xlu0 %832
  %834 = vrot.lane.b32.xlu0 %v821, 64
  %v835 = vpop.permute.xlu0 %834
  %v838 = vmul.f32 %v804, %v833
  %v839 = vmul.f32 %v819, %v835
  %842 = vrot.lane.b32.xlu0 %v838, 32
  %v843 = vpop.permute.xlu0 %842
  %844 = vrot.lane.b32.xlu0 %v839, 32
  %v845 = vpop.permute.xlu0 %844
  %v848 = vadd.f32 %v828, %v843
  %v849 = vadd.f32 %v829, %v845
  %v850 = vtanh.pop %v848
  %v851 = vtanh.pop %v849
  %854 = vrot.lane.b32.xlu0 %v850, 64
  %v855 = vpop.permute.xlu0 %854
  %856 = vrot.lane.b32.xlu0 %v851, 64
  %v857 = vpop.permute.xlu0 %856
  %v860 = vmul.f32 %v804, %v855
  %v861 = vmul.f32 %v819, %v857
  %v864 = vrot.slane %v860, 6
  %v865 = vrot.slane %v861, 5
  %v866 = vsel %vm171, %v865, %v864
  %867 = vrot.lane.b32.xlu0 %v866, 32
  %v868 = vpop.permute.xlu0 %867
  %v869 = vsel %vm64, %v868, 0
  %871 = vmatpush.msra.mxu0 0.0
  %872 = vmatpush.msra.mxu0 0.0
  %873 = vmatpush.msra.mxu0 0.0
  %874 = vmatpush.msra.mxu0 0.0
  %875 = vmatpush.msra.mxu0 0.0
  %876 = vmatpush.msra.mxu0 0.0
  %877 = vmatpush.msra.mxu0 0.0
  %878 = vmatpush.msra.mxu0 0.0
  %879 = vmatpush.msra.mxu0 0.0
  %880 = vmatpush.msra.mxu0 0.0
  %881 = vmatpush.msra.mxu0 0.0
  %882 = vmatpush.msra.mxu0 0.0
  %883 = vmatpush.msra.mxu0 %v25
  %884 = vmatpush.msra.mxu0 %v24
  %885 = vmatpush.msra.mxu0 %v23
  %886 = vmatpush.msra.mxu0 %v22
  %887 = vmatmul.f32.gmra.mxu0 %v869
  %v888 = vpop.f32.mrf.mxu0
  %v889 = vadd.f32 0.0, %v888
  %890 = vdwg.mxu0
  %v892 = vrot.slane %v889, 1
  %v893 = vrot.slane %v889, 2
  %v896 = vadd.f32 %v59, %v892
  %v897 = vadd.f32 %v62, %v893
  %v898 = vxor.u32 %v896, 2147483648
  %v899 = vxor.u32 %v897, 2147483648
  %v900 = vmul.f32 %v898, 1.442695
  %v901 = vpow.pop %v900
  %v902 = vmul.f32 %v899, 1.442695
  %v903 = vpow.pop %v902
  %v904 = vadd.f32 %v901, 1.0
  %v905 = vadd.f32 %v903, 1.0
  %v906 = vrcp.pop %v904
  %v907 = vmul.f32 %v904, %v906
  %v908 = vsub.f32 1.0, %v907
  %v909 = vmul.f32 %v906, %v908
  %v910 = vadd.f32 %v906, %v909
  %vm911 = vweird.f32 %v904
  %vm912 = vweird.f32 %v906
  %vm913 = vmor %vm911, %vm912
  %v914 = vsel %vm913, %v906, %v910
  %v915 = vand.u32 2147483647, %v904
  %vm916 = vcmp.eq.f32.partialorder %v915, 8.507059e+37
  %v917 = vand.u32 %v904, 2147483648
  %v918 = vor.u32 1.1754944e-38, %v917
  %v919 = vsel %vm916, %v918, %v914
  %v920 = vmul.f32 1.0, %v919
  %v921 = vrcp.pop %v905
  %v922 = vmul.f32 %v905, %v921
  %v923 = vsub.f32 1.0, %v922
  %v924 = vmul.f32 %v921, %v923
  %v925 = vadd.f32 %v921, %v924
  %vm926 = vweird.f32 %v905
  %vm927 = vweird.f32 %v921
  %vm928 = vmor %vm926, %vm927
  %v929 = vsel %vm928, %v921, %v925
  %v930 = vand.u32 2147483647, %v905
  %vm931 = vcmp.eq.f32.partialorder %v930, 8.507059e+37
  %v932 = vand.u32 %v905, 2147483648
  %v933 = vor.u32 1.1754944e-38, %v932
  %v934 = vsel %vm931, %v933, %v929
  %v935 = vmul.f32 1.0, %v934
  %v936 = vtanh.pop %v896
  %v937 = vtanh.pop %v897
  %v940 = vrot.slane %v848, 7
  %v941 = vrot.slane %v849, 7
  %v944 = vmul.f32 %v920, %v940
  %v945 = vmul.f32 %v935, %v941
  %948 = vrot.lane.b32.xlu0 %v936, 64
  %v949 = vpop.permute.xlu0 %948
  %950 = vrot.lane.b32.xlu0 %v937, 64
  %v951 = vpop.permute.xlu0 %950
  %v954 = vmul.f32 %v920, %v949
  %v955 = vmul.f32 %v935, %v951
  %958 = vrot.lane.b32.xlu0 %v954, 32
  %v959 = vpop.permute.xlu0 %958
  %960 = vrot.lane.b32.xlu0 %v955, 32
  %v961 = vpop.permute.xlu0 %960
  %v964 = vadd.f32 %v944, %v959
  %v965 = vadd.f32 %v945, %v961
  %v966 = vtanh.pop %v964
  %v967 = vtanh.pop %v965
  %970 = vrot.lane.b32.xlu0 %v966, 64
  %v971 = vpop.permute.xlu0 %970
  %972 = vrot.lane.b32.xlu0 %v967, 64
  %v973 = vpop.permute.xlu0 %972
  %v976 = vmul.f32 %v920, %v971
  %v977 = vmul.f32 %v935, %v973
  %979 = vrot.lane.b32.xlu0 %v286, 64
  %v980 = vpop.permute.xlu0 %979
  %982 = vrot.lane.b32.xlu0 %v402, 96
  %v983 = vpop.permute.xlu0 %982
  %987 = vrot.lane.b32.xlu0 %v750, 64
  %v988 = vpop.permute.xlu0 %987
  %990 = vrot.lane.b32.xlu0 %v866, 96
  %v991 = vpop.permute.xlu0 %990
  %v995 = vrot.slane %v976, 7
  %v996 = vrot.slane %v977, 6
  %v997 = vsel %vm171, %v996, %v995
  %v999 = vsel %vm64, %v174, %v980
  %vm1000 = vcmask 523264
  %v1001 = vsel %vm1000, %v999, %v983
  %vm1002 = vcmask 785408
  %v1003 = vsel %vm1002, %v1001, %v518
  %v1004 = vsel %vm64, %v636, %v988
  %v1005 = vsel %vm1000, %v1004, %v991
  %v1006 = vsel %vm1002, %v1005, %v997
  %v1009 = vrot.slane %v1006, 6
  %vm1010 = vcmask 1041408
  %v1011 = vsel %vm1010, %v1003, %v1009
  %1013 = vst [vmem:[%s5] sm:$0xf] %v1011
  %v1014 = vld [vmem:[%s0] sm:$0x1]
  %v1015 = vld [vmem:[%s0 + $0x1] sm:$0x1]
  %v1016 = vand.u32 2147483647, %v1014
  %v1017 = vand.u32 2147483647, %v1015
  %vm1018 = vcmp.eq.f32.partialorder %v1016, 0.0
  %vm1019 = vcmp.eq.f32.partialorder %v1017, 0.0
  %v1020 = vsel %vm1018, 1, 0
  %v1021 = vsel %vm1019, 1, 0
  %v1022 = vcvt.s32.f32 %v1020
  %v1023 = vcvt.s32.f32 %v1021
  %vm1024 = vcmask 57344
  %1025 = vst.msk [vmem:[%s6] sm:$0x1] %vm1024, %v1022
  %1026 = vst.msk [vmem:[%s6 + $0x1] sm:$0x1] %vm1024, %v1023
  // Predicated region
  $region22: #{net_forward.7} parent=0 // pred_check
    _
  $region23: #{net_forward.7} parent=0 // pred_check_branch
    %1028 = sbr.rel (0) target = $region25
  $region24: #{net_forward.7} parent=0 // pred_region
    _
  $region25: #{net_forward.7} parent=0 // pred_fallthru
    _
  // Predicated region
  $region26: #{net_forward.7} parent=0 // pred_check
    _
  $region27: #{net_forward.7} parent=0 // pred_check_branch
    %1030 = sbr.rel (0) target = $region29
  $region28: #{net_forward.7} parent=0 // pred_region
    _
  $region29: #{net_forward.7} parent=0 // pred_fallthru
    _
  // Predicated region
  $region30: #{net_forward.7} parent=0 // pred_check
    _
  $region31: #{net_forward.7} parent=0 // pred_check_branch
    %1032 = sbr.rel (0) target = $region33
  $region32: #{net_forward.7} parent=0 // pred_region
    _
  $region33: #{net_forward.7} parent=0 // pred_fallthru
    _
  // Predicated region
  $region34: #{net_forward.7} parent=0 // pred_check
    _
  $region35: #{net_forward.7} parent=0 // pred_check_branch
    %1034 = sbr.rel (0) target = $region37
  $region36: #{net_forward.7} parent=0 // pred_region
    _
  $region37: #{net_forward.7} parent=0 // pred_fallthru
    _

// kernel: net_forward.11
$region0: #{net_forward.11}
  #allocation0 [shape = 'u32[]', space=smem, size = 0x4, offset = 0x4, fixed_abs, tag = 'smem constant byte address 0x4 - core index']
  #allocation1 [shape = 'u32[72,128]{1,0:T(1,128)}', space=vmem, size = 0x9000, scoped, tag = 'internal scratch']
  %s0 = inlined_call_operand.vmem [shape: f32[2,16,32], index: 0, kind: input, shape index: {}]
  %s1 = inlined_call_operand.vmem [shape: f32[2,8,32], index: 1, kind: input, shape index: {}]
  %s2 = inlined_call_operand.vmem [shape: f32[2,1,16], index: 2, kind: input, shape index: {}]
  %s3 = inlined_call_operand.vmem [shape: f32[2,1,8], index: 3, kind: input, shape index: {}]
  %s4 = inlined_call_operand.vmem [shape: f32[32,96], index: 4, kind: input, shape index: {}]
  %s5 = inlined_call_operand.vmem [shape: f32[1,96], index: 5, kind: input, shape index: {}]
  %s6 = inlined_call_operand.vmem [shape: f32[32,32], index: 6, kind: input, shape index: {}]
  %s7 = inlined_call_operand.vmem [shape: f32[1,32], index: 7, kind: input, shape index: {}]
  %s8 = inlined_call_operand.vmem [shape: f32[1,32], index: 8, kind: input, shape index: {}]
  %s9 = inlined_call_operand.vmem [shape: f32[1,32], index: 9, kind: input, shape index: {}]
  %s10 = inlined_call_operand.vmem [shape: f32[32,32], index: 10, kind: input, shape index: {}]
  %s11 = inlined_call_operand.vmem [shape: f32[1,32], index: 11, kind: input, shape index: {}]
  %s12 = inlined_call_operand.vmem [shape: f32[32,64], index: 12, kind: input, shape index: {}]
  %s13 = inlined_call_operand.vmem [shape: f32[1,64], index: 13, kind: input, shape index: {}]
  %s14 = inlined_call_operand.vmem [shape: f32[32,32], index: 14, kind: input, shape index: {}]
  %s15 = inlined_call_operand.vmem [shape: f32[1,32], index: 15, kind: input, shape index: {}]
  %s16 = inlined_call_operand.vmem [shape: f32[1,32], index: 16, kind: input, shape index: {}]
  %s17 = inlined_call_operand.vmem [shape: f32[1,32], index: 17, kind: input, shape index: {}]
  %s18 = inlined_call_operand.hbm [shape: f32[32,64], index: 18, kind: input, shape index: {}]
  %s19 = inlined_call_operand.vmem [shape: f32[1,64], index: 19, kind: input, shape index: {}]
  %s20 = inlined_call_operand.vmem [shape: f32[64,32], index: 20, kind: input, shape index: {}]
  %s21 = inlined_call_operand.vmem [shape: f32[1,32], index: 21, kind: input, shape index: {}]
  %s22 = inlined_call_operand.vmem [shape: f32[1,32], index: 22, kind: input, shape index: {}]
  %s23 = inlined_call_operand.vmem [shape: f32[1,32], index: 23, kind: input, shape index: {}]
  %s24 = inlined_call_operand.vmem [shape: f32[2,16,32], index: 24, kind: output, shape index: {}]
  %s25 = sld [smem:[#allocation0]]
  $region133: #{net_forward.11} parent=0
    _
  %s27 = ssub.s32 1, %s25
  %s28 = scalar_select 0, %s27, %s25
  $region1: #{net_forward.11} parent=0
    #allocation2 [shape = 'u8[16384]{0}', space=vmem, size = 0x4000, scoped, tag = 'input window, operand 18, single buffered']
    #allocation3 [shape = 's32[2]{0}', space=sflag, size = 0x8, scoped, tag = 'scoped memory for net_forward.11']
    %29 = vsyncpa [#allocation3], 0
    loop: start=0, step=1, limit=4
    $region2: #{net_forward.11} parent=1 // loop_pre_header
      _
    $region3: #{net_forward.11} parent=1 // loop_header
      %s31 = sphi 0, %s35
      %p32 = scmp.ge.s32.totalorder %s31, 4
      %s41 = sphi 0, %s43
      %s44 = sphi 0, %s41
      %s45 = sphi 0, %s44
      %s61 = sphi 0, %s45
      %s67 = sphi 0, %s69
      %s70 = sphi 0, %s67
      %s71 = sphi 0, %s70
      %s87 = sphi 0, %s71
      %s93 = sphi 0, %s95
      %s96 = sphi 0, %s93
      %s97 = sphi 0, %s96
      %s113 = sphi 0, %s97
      %s119 = sphi 0, %s121
      %s122 = sphi 0, %s119
      %s123 = sphi 0, %s122
      %s139 = sphi 0, %s123
      %s143 = sphi 0, %s143
      %s145 = sphi 0, %s143
      %s146 = sphi 0, %s145
      %s160 = sphi 0, %s146
      %s164 = sphi 0, %s164
      %s166 = sphi 0, %s164
      %s167 = sphi 0, %s166
      %s181 = sphi 0, %s167
      %s185 = sphi 0, %s185
      %s187 = sphi 0, %s185
      %s188 = sphi 0, %s187
      %s202 = sphi 0, %s188
      %s206 = sphi 0, %s206
      %s208 = sphi 0, %s206
      %s209 = sphi 0, %s208
      %s223 = sphi 0, %s209
      %s227 = sphi 0, %s227
      %s229 = sphi 0, %s227
      %s230 = sphi 0, %s229
      %s244 = sphi 0, %s230
      %s248 = sphi 0, %s248
      %s250 = sphi 0, %s248
      %s251 = sphi 0, %s250
      %s265 = sphi 0, %s251
      %s269 = sphi 0, %s269
      %s271 = sphi 0, %s269
      %s272 = sphi 0, %s271
      %s286 = sphi 0, %s272
      %s290 = sphi 0, %s290
      %s292 = sphi 0, %s290
      %s293 = sphi 0, %s292
      %s307 = sphi 0, %s293
      %s311 = sphi 0, %s311
      %s313 = sphi 0, %s311
      %s314 = sphi 0, %s313
      %s328 = sphi 0, %s314
      %s332 = sphi 0, %s332
      %s334 = sphi 0, %s332
      %s335 = sphi 0, %s334
      %s349 = sphi 0, %s335
      %s353 = sphi 0, %s353
      %s355 = sphi 0, %s353
      %s356 = sphi 0, %s355
      %s370 = sphi 0, %s356
      %s374 = sphi 0, %s374
      %s376 = sphi 0, %s374
      %s377 = sphi 0, %s376
      %s391 = sphi 0, %s377
      %s395 = sphi 0, %s395
      %s397 = sphi 0, %s395
      %s398 = sphi 0, %s397
      %s412 = sphi 0, %s398
      %s416 = sphi 0, %s416
      %s418 = sphi 0, %s416
      %s419 = sphi 0, %s418
      %s433 = sphi 0, %s419
      %s437 = sphi 0, %s437
      %s439 = sphi 0, %s437
      %s440 = sphi 0, %s439
      %s454 = sphi 0, %s440
      %s458 = sphi 0, %s458
      %s460 = sphi 0, %s458
      %s461 = sphi 0, %s460
      %s475 = sphi 0, %s461
      %s479 = sphi 0, %s479
      %s481 = sphi 0, %s479
      %s482 = sphi 0, %s481
      %s496 = sphi 0, %s482
      %s500 = sphi 0, %s500
      %s502 = sphi 0, %s500
      %s503 = sphi 0, %s502
      %s517 = sphi 0, %s503
      %s521 = sphi 0, %s521
      %s523 = sphi 0, %s521
      %s524 = sphi 0, %s523
      %s538 = sphi 0, %s524
      %s542 = sphi 0, %s542
      %s544 = sphi 0, %s542
      %s545 = sphi 0, %s544
      %s559 = sphi 0, %s545
      %s565 = sphi 0, %s567
      %s568 = sphi 0, %s565
      %s569 = sphi 0, %s568
      %s585 = sphi 0, %s569
    $region4: #{net_forward.11} parent=1 // loop_header_branch
      %34 = sbr.rel (%p32) target = $region8
    $region5: #{net_forward.11} parent=1 // loop_body
      %s36 = ssub.s32 %s31, 1
      %s37 = ssub.s32 %s31, 2
      %s38 = sadd.s32 %s31, 1
      %s39 = ssub.s32 %s31, %s38
      %p40 = scmp.eq.s32.totalorder %s39, 0
      %s42 = sadd.s32 %s41, 1
      %s43 = scalar_select %p40, %s41, %s42
      %p46 = pneg %p40
      %p47 = scmp.eq.s32.totalorder %s31, 1
      %p48 = por %p46, %p47
      %p49 = scmp.ne.s32.totalorder %s41, %s44
      %p50 = scmp.eq.s32.totalorder %s31, 0
      %p51 = por %p49, %p50
      %p52 = scmp.ne.s32.totalorder %s41, %s44
      %p53 = scmp.eq.s32.totalorder %s36, 1
      %p54 = por %p52, %p53
      %p55 = scmp.ne.s32.totalorder %s44, %s45
      %p56 = scmp.eq.s32.totalorder %s36, 0
      %p57 = por %p55, %p56
      %p58 = scmp.ne.s32.totalorder %s44, %s45
      %p59 = scmp.eq.s32.totalorder %s37, 1
      %p60 = por %p58, %p59
      %p62 = scmp.ne.s32.totalorder %s45, %s61
      %p63 = scmp.eq.s32.totalorder %s37, 0
      %p64 = por %p62, %p63
      %s65 = ssub.s32 %s31, %s38
      %p66 = scmp.eq.s32.totalorder %s65, 0
      %s68 = sadd.s32 %s67, 1
      %s69 = scalar_select %p66, %s67, %s68
      %p72 = pneg %p66
      %p73 = scmp.eq.s32.totalorder %s31, 1
      %p74 = por %p72, %p73
      %p75 = scmp.ne.s32.totalorder %s67, %s70
      %p76 = scmp.eq.s32.totalorder %s31, 0
      %p77 = por %p75, %p76
      %p78 = scmp.ne.s32.totalorder %s67, %s70
      %p79 = scmp.eq.s32.totalorder %s36, 1
      %p80 = por %p78, %p79
      %p81 = scmp.ne.s32.totalorder %s70, %s71
      %p82 = scmp.eq.s32.totalorder %s36, 0
      %p83 = por %p81, %p82
      %p84 = scmp.ne.s32.totalorder %s70, %s71
      %p85 = scmp.eq.s32.totalorder %s37, 1
      %p86 = por %p84, %p85
      %p88 = scmp.ne.s32.totalorder %s71, %s87
      %p89 = scmp.eq.s32.totalorder %s37, 0
      %p90 = por %p88, %p89
      %s91 = ssub.s32 %s31, %s38
      %p92 = scmp.eq.s32.totalorder %s91, 0
      %s94 = sadd.s32 %s93, 1
      %s95 = scalar_select %p92, %s93, %s94
      %p98 = pneg %p92
      %p99 = scmp.eq.s32.totalorder %s31, 1
      %p100 = por %p98, %p99
      %p101 = scmp.ne.s32.totalorder %s93, %s96
      %p102 = scmp.eq.s32.totalorder %s31, 0
      %p103 = por %p101, %p102
      %p104 = scmp.ne.s32.totalorder %s93, %s96
      %p105 = scmp.eq.s32.totalorder %s36, 1
      %p106 = por %p104, %p105
      %p107 = scmp.ne.s32.totalorder %s96, %s97
      %p108 = scmp.eq.s32.totalorder %s36, 0
      %p109 = por %p107, %p108
      %p110 = scmp.ne.s32.totalorder %s96, %s97
      %p111 = scmp.eq.s32.totalorder %s37, 1
      %p112 = por %p110, %p111
      %p114 = scmp.ne.s32.totalorder %s97, %s113
      %p115 = scmp.eq.s32.totalorder %s37, 0
      %p116 = por %p114, %p115
      %s117 = ssub.s32 %s31, %s38
      %p118 = scmp.eq.s32.totalorder %s117, 0
      %s120 = sadd.s32 %s119, 1
      %s121 = scalar_select %p118, %s119, %s120
      %p124 = pneg %p118
      %p125 = scmp.eq.s32.totalorder %s31, 1
      %p126 = por %p124, %p125
      %p127 = scmp.ne.s32.totalorder %s119, %s122
      %p128 = scmp.eq.s32.totalorder %s31, 0
      %p129 = por %p127, %p128
      %p130 = scmp.ne.s32.totalorder %s119, %s122
      %p131 = scmp.eq.s32.totalorder %s36, 1
      %p132 = por %p130, %p131
      %p133 = scmp.ne.s32.totalorder %s122, %s123
      %p134 = scmp.eq.s32.totalorder %s36, 0
      %p135 = por %p133, %p134
      %p136 = scmp.ne.s32.totalorder %s122, %s123
      %p137 = scmp.eq.s32.totalorder %s37, 1
      %p138 = por %p136, %p137
      %p140 = scmp.ne.s32.totalorder %s123, %s139
      %p141 = scmp.eq.s32.totalorder %s37, 0
      %p142 = por %p140, %p141
      %s144 = sadd.s32 %s143, 1
      %p147 = scmp.eq.s32.totalorder %s31, 1
      %p148 = scmp.ne.s32.totalorder %s143, %s145
      %p149 = scmp.eq.s32.totalorder %s31, 0
      %p150 = por %p148, %p149
      %p151 = scmp.ne.s32.totalorder %s143, %s145
      %p152 = scmp.eq.s32.totalorder %s36, 1
      %p153 = por %p151, %p152
      %p154 = scmp.ne.s32.totalorder %s145, %s146
      %p155 = scmp.eq.s32.totalorder %s36, 0
      %p156 = por %p154, %p155
      %p157 = scmp.ne.s32.totalorder %s145, %s146
      %p158 = scmp.eq.s32.totalorder %s37, 1
      %p159 = por %p157, %p158
      %p161 = scmp.ne.s32.totalorder %s146, %s160
      %p162 = scmp.eq.s32.totalorder %s37, 0
      %p163 = por %p161, %p162
      %s165 = sadd.s32 %s164, 1
      %p168 = scmp.eq.s32.totalorder %s31, 1
      %p169 = scmp.ne.s32.totalorder %s164, %s166
      %p170 = scmp.eq.s32.totalorder %s31, 0
      %p171 = por %p169, %p170
      %p172 = scmp.ne.s32.totalorder %s164, %s166
      %p173 = scmp.eq.s32.totalorder %s36, 1
      %p174 = por %p172, %p173
      %p175 = scmp.ne.s32.totalorder %s166, %s167
      %p176 = scmp.eq.s32.totalorder %s36, 0
      %p177 = por %p175, %p176
      %p178 = scmp.ne.s32.totalorder %s166, %s167
      %p179 = scmp.eq.s32.totalorder %s37, 1
      %p180 = por %p178, %p179
      %p182 = scmp.ne.s32.totalorder %s167, %s181
      %p183 = scmp.eq.s32.totalorder %s37, 0
      %p184 = por %p182, %p183
      %s186 = sadd.s32 %s185, 1
      %p189 = scmp.eq.s32.totalorder %s31, 1
      %p190 = scmp.ne.s32.totalorder %s185, %s187
      %p191 = scmp.eq.s32.totalorder %s31, 0
      %p192 = por %p190, %p191
      %p193 = scmp.ne.s32.totalorder %s185, %s187
      %p194 = scmp.eq.s32.totalorder %s36, 1
      %p195 = por %p193, %p194
      %p196 = scmp.ne.s32.totalorder %s187, %s188
      %p197 = scmp.eq.s32.totalorder %s36, 0
      %p198 = por %p196, %p197
      %p199 = scmp.ne.s32.totalorder %s187, %s188
      %p200 = scmp.eq.s32.totalorder %s37, 1
      %p201 = por %p199, %p200
      %p203 = scmp.ne.s32.totalorder %s188, %s202
      %p204 = scmp.eq.s32.totalorder %s37, 0
      %p205 = por %p203, %p204
      %s207 = sadd.s32 %s206, 1
      %p210 = scmp.eq.s32.totalorder %s31, 1
      %p211 = scmp.ne.s32.totalorder %s206, %s208
      %p212 = scmp.eq.s32.totalorder %s31, 0
      %p213 = por %p211, %p212
      %p214 = scmp.ne.s32.totalorder %s206, %s208
      %p215 = scmp.eq.s32.totalorder %s36, 1
      %p216 = por %p214, %p215
      %p217 = scmp.ne.s32.totalorder %s208, %s209
      %p218 = scmp.eq.s32.totalorder %s36, 0
      %p219 = por %p217, %p218
      %p220 = scmp.ne.s32.totalorder %s208, %s209
      %p221 = scmp.eq.s32.totalorder %s37, 1
      %p222 = por %p220, %p221
      %p224 = scmp.ne.s32.totalorder %s209, %s223
      %p225 = scmp.eq.s32.totalorder %s37, 0
      %p226 = por %p224, %p225
      %s228 = sadd.s32 %s227, 1
      %p231 = scmp.eq.s32.totalorder %s31, 1
      %p232 = scmp.ne.s32.totalorder %s227, %s229
      %p233 = scmp.eq.s32.totalorder %s31, 0
      %p234 = por %p232, %p233
      %p235 = scmp.ne.s32.totalorder %s227, %s229
      %p236 = scmp.eq.s32.totalorder %s36, 1
      %p237 = por %p235, %p236
      %p238 = scmp.ne.s32.totalorder %s229, %s230
      %p239 = scmp.eq.s32.totalorder %s36, 0
      %p240 = por %p238, %p239
      %p241 = scmp.ne.s32.totalorder %s229, %s230
      %p242 = scmp.eq.s32.totalorder %s37, 1
      %p243 = por %p241, %p242
      %p245 = scmp.ne.s32.totalorder %s230, %s244
      %p246 = scmp.eq.s32.totalorder %s37, 0
      %p247 = por %p245, %p246
      %s249 = sadd.s32 %s248, 1
      %p252 = scmp.eq.s32.totalorder %s31, 1
      %p253 = scmp.ne.s32.totalorder %s248, %s250
      %p254 = scmp.eq.s32.totalorder %s31, 0
      %p255 = por %p253, %p254
      %p256 = scmp.ne.s32.totalorder %s248, %s250
      %p257 = scmp.eq.s32.totalorder %s36, 1
      %p258 = por %p256, %p257
      %p259 = scmp.ne.s32.totalorder %s250, %s251
      %p260 = scmp.eq.s32.totalorder %s36, 0
      %p261 = por %p259, %p260
      %p262 = scmp.ne.s32.totalorder %s250, %s251
      %p263 = scmp.eq.s32.totalorder %s37, 1
      %p264 = por %p262, %p263
      %p266 = scmp.ne.s32.totalorder %s251, %s265
      %p267 = scmp.eq.s32.totalorder %s37, 0
      %p268 = por %p266, %p267
      %s270 = sadd.s32 %s269, 1
      %p273 = scmp.eq.s32.totalorder %s31, 1
      %p274 = scmp.ne.s32.totalorder %s269, %s271
      %p275 = scmp.eq.s32.totalorder %s31, 0
      %p276 = por %p274, %p275
      %p277 = scmp.ne.s32.totalorder %s269, %s271
      %p278 = scmp.eq.s32.totalorder %s36, 1
      %p279 = por %p277, %p278
      %p280 = scmp.ne.s32.totalorder %s271, %s272
      %p281 = scmp.eq.s32.totalorder %s36, 0
      %p282 = por %p280, %p281
      %p283 = scmp.ne.s32.totalorder %s271, %s272
      %p284 = scmp.eq.s32.totalorder %s37, 1
      %p285 = por %p283, %p284
      %p287 = scmp.ne.s32.totalorder %s272, %s286
      %p288 = scmp.eq.s32.totalorder %s37, 0
      %p289 = por %p287, %p288
      %s291 = sadd.s32 %s290, 1
      %p294 = scmp.eq.s32.totalorder %s31, 1
      %p295 = scmp.ne.s32.totalorder %s290, %s292
      %p296 = scmp.eq.s32.totalorder %s31, 0
      %p297 = por %p295, %p296
      %p298 = scmp.ne.s32.totalorder %s290, %s292
      %p299 = scmp.eq.s32.totalorder %s36, 1
      %p300 = por %p298, %p299
      %p301 = scmp.ne.s32.totalorder %s292, %s293
      %p302 = scmp.eq.s32.totalorder %s36, 0
      %p303 = por %p301, %p302
      %p304 = scmp.ne.s32.totalorder %s292, %s293
      %p305 = scmp.eq.s32.totalorder %s37, 1
      %p306 = por %p304, %p305
      %p308 = scmp.ne.s32.totalorder %s293, %s307
      %p309 = scmp.eq.s32.totalorder %s37, 0
      %p310 = por %p308, %p309
      %s312 = sadd.s32 %s311, 1
      %p315 = scmp.eq.s32.totalorder %s31, 1
      %p316 = scmp.ne.s32.totalorder %s311, %s313
      %p317 = scmp.eq.s32.totalorder %s31, 0
      %p318 = por %p316, %p317
      %p319 = scmp.ne.s32.totalorder %s311, %s313
      %p320 = scmp.eq.s32.totalorder %s36, 1
      %p321 = por %p319, %p320
      %p322 = scmp.ne.s32.totalorder %s313, %s314
      %p323 = scmp.eq.s32.totalorder %s36, 0
      %p324 = por %p322, %p323
      %p325 = scmp.ne.s32.totalorder %s313, %s314
      %p326 = scmp.eq.s32.totalorder %s37, 1
      %p327 = por %p325, %p326
      %p329 = scmp.ne.s32.totalorder %s314, %s328
      %p330 = scmp.eq.s32.totalorder %s37, 0
      %p331 = por %p329, %p330
      %s333 = sadd.s32 %s332, 1
      %p336 = scmp.eq.s32.totalorder %s31, 1
      %p337 = scmp.ne.s32.totalorder %s332, %s334
      %p338 = scmp.eq.s32.totalorder %s31, 0
      %p339 = por %p337, %p338
      %p340 = scmp.ne.s32.totalorder %s332, %s334
      %p341 = scmp.eq.s32.totalorder %s36, 1
      %p342 = por %p340, %p341
      %p343 = scmp.ne.s32.totalorder %s334, %s335
      %p344 = scmp.eq.s32.totalorder %s36, 0
      %p345 = por %p343, %p344
      %p346 = scmp.ne.s32.totalorder %s334, %s335
      %p347 = scmp.eq.s32.totalorder %s37, 1
      %p348 = por %p346, %p347
      %p350 = scmp.ne.s32.totalorder %s335, %s349
      %p351 = scmp.eq.s32.totalorder %s37, 0
      %p352 = por %p350, %p351
      %s354 = sadd.s32 %s353, 1
      %p357 = scmp.eq.s32.totalorder %s31, 1
      %p358 = scmp.ne.s32.totalorder %s353, %s355
      %p359 = scmp.eq.s32.totalorder %s31, 0
      %p360 = por %p358, %p359
      %p361 = scmp.ne.s32.totalorder %s353, %s355
      %p362 = scmp.eq.s32.totalorder %s36, 1
      %p363 = por %p361, %p362
      %p364 = scmp.ne.s32.totalorder %s355, %s356
      %p365 = scmp.eq.s32.totalorder %s36, 0
      %p366 = por %p364, %p365
      %p367 = scmp.ne.s32.totalorder %s355, %s356
      %p368 = scmp.eq.s32.totalorder %s37, 1
      %p369 = por %p367, %p368
      %p371 = scmp.ne.s32.totalorder %s356, %s370
      %p372 = scmp.eq.s32.totalorder %s37, 0
      %p373 = por %p371, %p372
      %s375 = sadd.s32 %s374, 1
      %p378 = scmp.eq.s32.totalorder %s31, 1
      %p379 = scmp.ne.s32.totalorder %s374, %s376
      %p380 = scmp.eq.s32.totalorder %s31, 0
      %p381 = por %p379, %p380
      %p382 = scmp.ne.s32.totalorder %s374, %s376
      %p383 = scmp.eq.s32.totalorder %s36, 1
      %p384 = por %p382, %p383
      %p385 = scmp.ne.s32.totalorder %s376, %s377
      %p386 = scmp.eq.s32.totalorder %s36, 0
      %p387 = por %p385, %p386
      %p388 = scmp.ne.s32.totalorder %s376, %s377
      %p389 = scmp.eq.s32.totalorder %s37, 1
      %p390 = por %p388, %p389
      %p392 = scmp.ne.s32.totalorder %s377, %s391
      %p393 = scmp.eq.s32.totalorder %s37, 0
      %p394 = por %p392, %p393
      %s396 = sadd.s32 %s395, 1
      %p399 = scmp.eq.s32.totalorder %s31, 1
      %p400 = scmp.ne.s32.totalorder %s395, %s397
      %p401 = scmp.eq.s32.totalorder %s31, 0
      %p402 = por %p400, %p401
      %p403 = scmp.ne.s32.totalorder %s395, %s397
      %p404 = scmp.eq.s32.totalorder %s36, 1
      %p405 = por %p403, %p404
      %p406 = scmp.ne.s32.totalorder %s397, %s398
      %p407 = scmp.eq.s32.totalorder %s36, 0
      %p408 = por %p406, %p407
      %p409 = scmp.ne.s32.totalorder %s397, %s398
      %p410 = scmp.eq.s32.totalorder %s37, 1
      %p411 = por %p409, %p410
      %p413 = scmp.ne.s32.totalorder %s398, %s412
      %p414 = scmp.eq.s32.totalorder %s37, 0
      %p415 = por %p413, %p414
      %s417 = sadd.s32 %s416, 1
      %p420 = scmp.eq.s32.totalorder %s31, 1
      %p421 = scmp.ne.s32.totalorder %s416, %s418
      %p422 = scmp.eq.s32.totalorder %s31, 0
      %p423 = por %p421, %p422
      %p424 = scmp.ne.s32.totalorder %s416, %s418
      %p425 = scmp.eq.s32.totalorder %s36, 1
      %p426 = por %p424, %p425
      %p427 = scmp.ne.s32.totalorder %s418, %s419
      %p428 = scmp.eq.s32.totalorder %s36, 0
      %p429 = por %p427, %p428
      %p430 = scmp.ne.s32.totalorder %s418, %s419
      %p431 = scmp.eq.s32.totalorder %s37, 1
      %p432 = por %p430, %p431
      %p434 = scmp.ne.s32.totalorder %s419, %s433
      %p435 = scmp.eq.s32.totalorder %s37, 0
      %p436 = por %p434, %p435
      %s438 = sadd.s32 %s437, 1
      %p441 = scmp.eq.s32.totalorder %s31, 1
      %p442 = scmp.ne.s32.totalorder %s437, %s439
      %p443 = scmp.eq.s32.totalorder %s31, 0
      %p444 = por %p442, %p443
      %p445 = scmp.ne.s32.totalorder %s437, %s439
      %p446 = scmp.eq.s32.totalorder %s36, 1
      %p447 = por %p445, %p446
      %p448 = scmp.ne.s32.totalorder %s439, %s440
      %p449 = scmp.eq.s32.totalorder %s36, 0
      %p450 = por %p448, %p449
      %p451 = scmp.ne.s32.totalorder %s439, %s440
      %p452 = scmp.eq.s32.totalorder %s37, 1
      %p453 = por %p451, %p452
      %p455 = scmp.ne.s32.totalorder %s440, %s454
      %p456 = scmp.eq.s32.totalorder %s37, 0
      %p457 = por %p455, %p456
      %s459 = sadd.s32 %s458, 1
      %p462 = scmp.eq.s32.totalorder %s31, 1
      %p463 = scmp.ne.s32.totalorder %s458, %s460
      %p464 = scmp.eq.s32.totalorder %s31, 0
      %p465 = por %p463, %p464
      %p466 = scmp.ne.s32.totalorder %s458, %s460
      %p467 = scmp.eq.s32.totalorder %s36, 1
      %p468 = por %p466, %p467
      %p469 = scmp.ne.s32.totalorder %s460, %s461
      %p470 = scmp.eq.s32.totalorder %s36, 0
      %p471 = por %p469, %p470
      %p472 = scmp.ne.s32.totalorder %s460, %s461
      %p473 = scmp.eq.s32.totalorder %s37, 1
      %p474 = por %p472, %p473
      %p476 = scmp.ne.s32.totalorder %s461, %s475
      %p477 = scmp.eq.s32.totalorder %s37, 0
      %p478 = por %p476, %p477
      %s480 = sadd.s32 %s479, 1
      %p483 = scmp.eq.s32.totalorder %s31, 1
      %p484 = scmp.ne.s32.totalorder %s479, %s481
      %p485 = scmp.eq.s32.totalorder %s31, 0
      %p486 = por %p484, %p485
      %p487 = scmp.ne.s32.totalorder %s479, %s481
      %p488 = scmp.eq.s32.totalorder %s36, 1
      %p489 = por %p487, %p488
      %p490 = scmp.ne.s32.totalorder %s481, %s482
      %p491 = scmp.eq.s32.totalorder %s36, 0
      %p492 = por %p490, %p491
      %p493 = scmp.ne.s32.totalorder %s481, %s482
      %p494 = scmp.eq.s32.totalorder %s37, 1
      %p495 = por %p493, %p494
      %p497 = scmp.ne.s32.totalorder %s482, %s496
      %p498 = scmp.eq.s32.totalorder %s37, 0
      %p499 = por %p497, %p498
      %s501 = sadd.s32 %s500, 1
      %p504 = scmp.eq.s32.totalorder %s31, 1
      %p505 = scmp.ne.s32.totalorder %s500, %s502
      %p506 = scmp.eq.s32.totalorder %s31, 0
      %p507 = por %p505, %p506
      %p508 = scmp.ne.s32.totalorder %s500, %s502
      %p509 = scmp.eq.s32.totalorder %s36, 1
      %p510 = por %p508, %p509
      %p511 = scmp.ne.s32.totalorder %s502, %s503
      %p512 = scmp.eq.s32.totalorder %s36, 0
      %p513 = por %p511, %p512
      %p514 = scmp.ne.s32.totalorder %s502, %s503
      %p515 = scmp.eq.s32.totalorder %s37, 1
      %p516 = por %p514, %p515
      %p518 = scmp.ne.s32.totalorder %s503, %s517
      %p519 = scmp.eq.s32.totalorder %s37, 0
      %p520 = por %p518, %p519
      %s522 = sadd.s32 %s521, 1
      %p525 = scmp.eq.s32.totalorder %s31, 1
      %p526 = scmp.ne.s32.totalorder %s521, %s523
      %p527 = scmp.eq.s32.totalorder %s31, 0
      %p528 = por %p526, %p527
      %p529 = scmp.ne.s32.totalorder %s521, %s523
      %p530 = scmp.eq.s32.totalorder %s36, 1
      %p531 = por %p529, %p530
      %p532 = scmp.ne.s32.totalorder %s523, %s524
      %p533 = scmp.eq.s32.totalorder %s36, 0
      %p534 = por %p532, %p533
      %p535 = scmp.ne.s32.totalorder %s523, %s524
      %p536 = scmp.eq.s32.totalorder %s37, 1
      %p537 = por %p535, %p536
      %p539 = scmp.ne.s32.totalorder %s524, %s538
      %p540 = scmp.eq.s32.totalorder %s37, 0
      %p541 = por %p539, %p540
      %s543 = sadd.s32 %s542, 1
      %p546 = scmp.eq.s32.totalorder %s31, 1
      %p547 = scmp.ne.s32.totalorder %s542, %s544
      %p548 = scmp.eq.s32.totalorder %s31, 0
      %p549 = por %p547, %p548
      %p550 = scmp.ne.s32.totalorder %s542, %s544
      %p551 = scmp.eq.s32.totalorder %s36, 1
      %p552 = por %p550, %p551
      %p553 = scmp.ne.s32.totalorder %s544, %s545
      %p554 = scmp.eq.s32.totalorder %s36, 0
      %p555 = por %p553, %p554
      %p556 = scmp.ne.s32.totalorder %s544, %s545
      %p557 = scmp.eq.s32.totalorder %s37, 1
      %p558 = por %p556, %p557
      %p560 = scmp.ne.s32.totalorder %s545, %s559
      %p561 = scmp.eq.s32.totalorder %s37, 0
      %p562 = por %p560, %p561
      %s563 = ssub.s32 %s31, %s38
      %p564 = scmp.eq.s32.totalorder %s563, 0
      %s566 = sadd.s32 %s565, 1
      %s567 = scalar_select %p564, %s565, %s566
      %p570 = pneg %p564
      %p571 = scmp.eq.s32.totalorder %s31, 1
      %p572 = por %p570, %p571
      %p573 = scmp.ne.s32.totalorder %s565, %s568
      %p574 = scmp.eq.s32.totalorder %s31, 0
      %p575 = por %p573, %p574
      %p576 = scmp.ne.s32.totalorder %s565, %s568
      %p577 = scmp.eq.s32.totalorder %s36, 1
      %p578 = por %p576, %p577
      %p579 = scmp.ne.s32.totalorder %s568, %s569
      %p580 = scmp.eq.s32.totalorder %s36, 0
      %p581 = por %p579, %p580
      %p582 = scmp.ne.s32.totalorder %s568, %s569
      %p583 = scmp.eq.s32.totalorder %s37, 1
      %p584 = por %p582, %p583
      %p586 = scmp.ne.s32.totalorder %s569, %s585
      %p587 = scmp.eq.s32.totalorder %s37, 0
      %p588 = por %p586, %p587
      %p589 = scmp.le.s32.totalorder 1, %s31
      %p590 = scmp.lt.s32.totalorder %s31, 3
      %p591 = pnand %p589, %p590
      %p592 = pneg %p591
      // Predicated region
      $region9: #{net_forward.11} parent=5 // pred_check
        _
      $region10: #{net_forward.11} parent=5 // pred_check_branch
        %594 = sbr.rel (%p591) target = $region12
      $region11: #{net_forward.11} parent=5 // pred_region
        %s595 = ssub.s32 %s31, 1
        // Predicated region
        $region13: #{net_forward.11} parent=11 // pred_check
          %p596 = pneg %p156
        $region14: #{net_forward.11} parent=11 // pred_check_branch
          %598 = sbr.rel (%p596) target = $region16
        $region15: #{net_forward.11} parent=11 // pred_region
          _
        $region16: #{net_forward.11} parent=11 // pred_fallthru
          _
        // Predicated region
        $region17: #{net_forward.11} parent=11 // pred_check
          %p599 = pneg %p177
        $region18: #{net_forward.11} parent=11 // pred_check_branch
          %601 = sbr.rel (%p599) target = $region20
        $region19: #{net_forward.11} parent=11 // pred_region
          _
        $region20: #{net_forward.11} parent=11 // pred_fallthru
          _
        // Predicated region
        $region21: #{net_forward.11} parent=11 // pred_check
          %p602 = pneg %p198
        $region22: #{net_forward.11} parent=11 // pred_check_branch
          %604 = sbr.rel (%p602) target = $region24
        $region23: #{net_forward.11} parent=11 // pred_region
          _
        $region24: #{net_forward.11} parent=11 // pred_fallthru
          _
        // Predicated region
        $region25: #{net_forward.11} parent=11 // pred_check
          %p605 = pneg %p219
        $region26: #{net_forward.11} parent=11 // pred_check_branch
          %607 = sbr.rel (%p605) target = $region28
        $region27: #{net_forward.11} parent=11 // pred_region
          _
        $region28: #{net_forward.11} parent=11 // pred_fallthru
          _
        // Predicated region
        $region29: #{net_forward.11} parent=11 // pred_check
          %p608 = pneg %p240
        $region30: #{net_forward.11} parent=11 // pred_check_branch
          %610 = sbr.rel (%p608) target = $region32
        $region31: #{net_forward.11} parent=11 // pred_region
          _
        $region32: #{net_forward.11} parent=11 // pred_fallthru
          _
        // Predicated region
        $region33: #{net_forward.11} parent=11 // pred_check
          %p611 = pneg %p261
        $region34: #{net_forward.11} parent=11 // pred_check_branch
          %613 = sbr.rel (%p611) target = $region36
        $region35: #{net_forward.11} parent=11 // pred_region
          _
        $region36: #{net_forward.11} parent=11 // pred_fallthru
          _
        // Predicated region
        $region37: #{net_forward.11} parent=11 // pred_check
          %p614 = pneg %p282
        $region38: #{net_forward.11} parent=11 // pred_check_branch
          %616 = sbr.rel (%p614) target = $region40
        $region39: #{net_forward.11} parent=11 // pred_region
          _
        $region40: #{net_forward.11} parent=11 // pred_fallthru
          _
        // Predicated region
        $region41: #{net_forward.11} parent=11 // pred_check
          %p617 = pneg %p303
        $region42: #{net_forward.11} parent=11 // pred_check_branch
          %619 = sbr.rel (%p617) target = $region44
        $region43: #{net_forward.11} parent=11 // pred_region
          _
        $region44: #{net_forward.11} parent=11 // pred_fallthru
          _
        // Predicated region
        $region45: #{net_forward.11} parent=11 // pred_check
          %p620 = pneg %p324
        $region46: #{net_forward.11} parent=11 // pred_check_branch
          %622 = sbr.rel (%p620) target = $region48
        $region47: #{net_forward.11} parent=11 // pred_region
          _
        $region48: #{net_forward.11} parent=11 // pred_fallthru
          _
        // Predicated region
        $region49: #{net_forward.11} parent=11 // pred_check
          %p623 = pneg %p345
        $region50: #{net_forward.11} parent=11 // pred_check_branch
          %625 = sbr.rel (%p623) target = $region52
        $region51: #{net_forward.11} parent=11 // pred_region
          _
        $region52: #{net_forward.11} parent=11 // pred_fallthru
          _
        // Predicated region
        $region53: #{net_forward.11} parent=11 // pred_check
          %p626 = pneg %p366
        $region54: #{net_forward.11} parent=11 // pred_check_branch
          %628 = sbr.rel (%p626) target = $region56
        $region55: #{net_forward.11} parent=11 // pred_region
          _
        $region56: #{net_forward.11} parent=11 // pred_fallthru
          _
        // Predicated region
        $region57: #{net_forward.11} parent=11 // pred_check
          %p629 = pneg %p387
        $region58: #{net_forward.11} parent=11 // pred_check_branch
          %631 = sbr.rel (%p629) target = $region60
        $region59: #{net_forward.11} parent=11 // pred_region
          _
        $region60: #{net_forward.11} parent=11 // pred_fallthru
          _
        // Predicated region
        $region61: #{net_forward.11} parent=11 // pred_check
          %p632 = pneg %p408
        $region62: #{net_forward.11} parent=11 // pred_check_branch
          %634 = sbr.rel (%p632) target = $region64
        $region63: #{net_forward.11} parent=11 // pred_region
          _
        $region64: #{net_forward.11} parent=11 // pred_fallthru
          _
        // Predicated region
        $region65: #{net_forward.11} parent=11 // pred_check
          %p635 = pneg %p429
        $region66: #{net_forward.11} parent=11 // pred_check_branch
          %637 = sbr.rel (%p635) target = $region68
        $region67: #{net_forward.11} parent=11 // pred_region
          _
        $region68: #{net_forward.11} parent=11 // pred_fallthru
          _
        // Predicated region
        $region69: #{net_forward.11} parent=11 // pred_check
          %p638 = pneg %p450
        $region70: #{net_forward.11} parent=11 // pred_check_branch
          %640 = sbr.rel (%p638) target = $region72
        $region71: #{net_forward.11} parent=11 // pred_region
          %642 = vsyncadd [#allocation3], 0
          %s643 = sshll.u32 %s18, 4
          %s644 = int_to_ptr.hbm [resolvable:$true] %s643
          %s645 = sshll.u32 [#allocation2], 4
          %s646 = int_to_ptr.vmem [resolvable:$true] %s645
          %651 = dma.hbm_to_vmem [thread:$0]  %s644, 512, %s646, [#allocation3], 128, 128, 8
        $region72: #{net_forward.11} parent=11 // pred_fallthru
          _
        // Predicated region
        $region73: #{net_forward.11} parent=11 // pred_check
          %p652 = pneg %p471
        $region74: #{net_forward.11} parent=11 // pred_check_branch
          %654 = sbr.rel (%p652) target = $region76
        $region75: #{net_forward.11} parent=11 // pred_region
          _
        $region76: #{net_forward.11} parent=11 // pred_fallthru
          _
        // Predicated region
        $region77: #{net_forward.11} parent=11 // pred_check
          %p655 = pneg %p492
        $region78: #{net_forward.11} parent=11 // pred_check_branch
          %657 = sbr.rel (%p655) target = $region80
        $region79: #{net_forward.11} parent=11 // pred_region
          _
        $region80: #{net_forward.11} parent=11 // pred_fallthru
          _
        // Predicated region
        $region81: #{net_forward.11} parent=11 // pred_check
          %p658 = pneg %p513
        $region82: #{net_forward.11} parent=11 // pred_check_branch
          %660 = sbr.rel (%p658) target = $region84
        $region83: #{net_forward.11} parent=11 // pred_region
          _
        $region84: #{net_forward.11} parent=11 // pred_fallthru
          _
        // Predicated region
        $region85: #{net_forward.11} parent=11 // pred_check
          %p661 = pneg %p534
        $region86: #{net_forward.11} parent=11 // pred_check_branch
          %663 = sbr.rel (%p661) target = $region88
        $region87: #{net_forward.11} parent=11 // pred_region
          _
        $region88: #{net_forward.11} parent=11 // pred_fallthru
          _
        // Predicated region
        $region89: #{net_forward.11} parent=11 // pred_check
          %p664 = pneg %p555
        $region90: #{net_forward.11} parent=11 // pred_check_branch
          %666 = sbr.rel (%p664) target = $region92
        $region91: #{net_forward.11} parent=11 // pred_region
          _
        $region92: #{net_forward.11} parent=11 // pred_fallthru
          _
      $region12: #{net_forward.11} parent=5 // pred_fallthru
        _
      %p667 = scmp.lt.s32.totalorder %s31, 2
      // Predicated region
      $region93: #{net_forward.11} parent=5 // pred_check
        %p668 = pneg %p667
      $region94: #{net_forward.11} parent=5 // pred_check_branch
        %670 = sbr.rel (%p668) target = $region96
      $region95: #{net_forward.11} parent=5 // pred_region
        // Predicated region
        $region97: #{net_forward.11} parent=95 // pred_check
          %p671 = pneg %p51
        $region98: #{net_forward.11} parent=95 // pred_check_branch
          %673 = sbr.rel (%p671) target = $region100
        $region99: #{net_forward.11} parent=95 // pred_region
          %p674 = scmp.lt.s32.totalorder %s31, 1
          %s675 = scalar_select %p674, %s31, 1
          %s676 = smul.addr %s675, 2
          %s677 = smul.addr %s676, 8
          %s678 = scalar_lea.vmem %s0, %s677
        $region100: #{net_forward.11} parent=95 // pred_fallthru
          _
        // Predicated region
        $region101: #{net_forward.11} parent=95 // pred_check
          %p679 = pneg %p77
        $region102: #{net_forward.11} parent=95 // pred_check_branch
          %681 = sbr.rel (%p679) target = $region104
        $region103: #{net_forward.11} parent=95 // pred_region
          %p682 = scmp.lt.s32.totalorder %s31, 1
          %s683 = scalar_select %p682, %s31, 1
          %s684 = smul.addr %s683, 8
          %s685 = scalar_lea.vmem %s1, %s684
        $region104: #{net_forward.11} parent=95 // pred_fallthru
          _
        // Predicated region
        $region105: #{net_forward.11} parent=95 // pred_check
          %p686 = pneg %p103
        $region106: #{net_forward.11} parent=95 // pred_check_branch
          %688 = sbr.rel (%p686) target = $region108
        $region107: #{net_forward.11} parent=95 // pred_region
          %p689 = scmp.lt.s32.totalorder %s31, 1
          %s690 = scalar_select %p689, %s31, 1
          %s691 = scalar_lea.vmem %s2, %s690
        $region108: #{net_forward.11} parent=95 // pred_fallthru
          _
        // Predicated region
        $region109: #{net_forward.11} parent=95 // pred_check
          %p692 = pneg %p129
        $region110: #{net_forward.11} parent=95 // pred_check_branch
          %694 = sbr.rel (%p692) target = $region112
        $region111: #{net_forward.11} parent=95 // pred_region
          %p695 = scmp.lt.s32.totalorder %s31, 1
          %s696 = scalar_select %p695, %s31, 1
          %s697 = scalar_lea.vmem %s3, %s696
        $region112: #{net_forward.11} parent=95 // pred_fallthru
          _
      $region96: #{net_forward.11} parent=5 // pred_fallthru
        _
      %p698 = scmp.le.s32.totalorder 1, %s31
      %p699 = scmp.lt.s32.totalorder %s31, 3
      %p700 = pnand %p698, %p699
      %p701 = pneg %p700
      // Predicated region
      $region113: #{net_forward.11} parent=5 // pred_check
        _
      $region114: #{net_forward.11} parent=5 // pred_check_branch
        %703 = sbr.rel (%p700) target = $region116
      $region115: #{net_forward.11} parent=5 // pred_region
        %s704 = ssub.s32 %s31, 1
        // Predicated region
        $region117: #{net_forward.11} parent=115 // pred_check
          %p705 = pneg %p450
        $region118: #{net_forward.11} parent=115 // pred_check_branch
          %707 = sbr.rel (%p705) target = $region120
        $region119: #{net_forward.11} parent=115 // pred_region
          %709 = dma.done [#allocation3], 512
        $region120: #{net_forward.11} parent=115 // pred_fallthru
          _
        %p710 = scmp.lt.s32.totalorder %s36, 1
        %s711 = scalar_select %p710, %s36, 1
        %s712 = smul.addr %s711, 2
        %s713 = smul.addr %s712, 8
        %s714 = scalar_lea.vmem %s0, %s713
        %p715 = pneg %p57
        %p716 = pneg %p54
        %p717 = scmp.lt.s32.totalorder %s36, 1
        %s718 = scalar_select %p717, %s36, 1
        %s719 = smul.addr %s718, 8
        %s720 = scalar_lea.vmem %s1, %s719
        %p721 = pneg %p83
        %p722 = pneg %p80
        %p723 = scmp.lt.s32.totalorder %s36, 1
        %s724 = scalar_select %p723, %s36, 1
        %s725 = scalar_lea.vmem %s2, %s724
        %p726 = pneg %p109
        %p727 = pneg %p106
        %p728 = scmp.lt.s32.totalorder %s36, 1
        %s729 = scalar_select %p728, %s36, 1
        %s730 = scalar_lea.vmem %s3, %s729
        %p731 = pneg %p135
        %p732 = pneg %p132
        %p733 = pneg %p156
        %p734 = pneg %p153
        %p735 = pneg %p177
        %p736 = pneg %p174
        %p737 = pneg %p198
        %p738 = pneg %p195
        %p739 = pneg %p219
        %p740 = pneg %p216
        %p741 = pneg %p240
        %p742 = pneg %p237
        %p743 = pneg %p261
        %p744 = pneg %p258
        %p745 = pneg %p282
        %p746 = pneg %p279
        %p747 = pneg %p303
        %p748 = pneg %p300
        %p749 = pneg %p324
        %p750 = pneg %p321
        %p751 = pneg %p345
        %p752 = pneg %p342
        %p753 = pneg %p366
        %p754 = pneg %p363
        %p755 = pneg %p387
        %p756 = pneg %p384
        %p757 = pneg %p408
        %p758 = pneg %p405
        %p759 = pneg %p429
        %p760 = pneg %p426
        %p761 = pneg %p450
        %p762 = pneg %p447
        %p763 = pneg %p471
        %p764 = pneg %p468
        %p765 = pneg %p492
        %p766 = pneg %p489
        %p767 = pneg %p513
        %p768 = pneg %p510
        %p769 = pneg %p534
        %p770 = pneg %p531
        %p771 = pneg %p555
        %p772 = pneg %p552
        %p773 = pneg %p581
        %p774 = pneg %p578
        %p775 = scmp.lt.s32.totalorder %s36, 1
        %s776 = scalar_select %p775, %s36, 1
        %s777 = smul.addr %s776, 2
        %s778 = smul.addr %s777, 8
        %s779 = scalar_lea.vmem %s24, %s778
        %p780 = scmp.lt.s32.totalorder %s36, 1
        %s781 = scalar_select %p780, %s36, 1
        %s782 = smul.addr %s781, 2
        %s783 = smul.addr %s782, 8
        %s784 = scalar_lea.vmem %s0, %s783
        %p785 = scmp.lt.s32.totalorder %s36, 1
        %s786 = scalar_select %p785, %s36, 1
        %s787 = smul.addr %s786, 8
        %s788 = scalar_lea.vmem %s1, %s787
        %p789 = scmp.lt.s32.totalorder %s36, 1
        %s790 = scalar_select %p789, %s36, 1
        %s791 = scalar_lea.vmem %s2, %s790
        %p792 = scmp.lt.s32.totalorder %s36, 1
        %s793 = scalar_select %p792, %s36, 1
        %s794 = scalar_lea.vmem %s3, %s793
        %p795 = scmp.lt.s32.totalorder %s36, 1
        %s796 = scalar_select %p795, %s36, 1
        %s797 = smul.addr %s796, 2
        %s798 = smul.addr %s797, 8
        %s799 = scalar_lea.vmem %s24, %s798
        %v800 = vld [vmem:[%s784] sm:$0xff]
        %v801 = vld [vmem:[%s784 + $0x8] sm:$0xff]
        %v802 = vld [vmem:[%s788] sm:$0xff]
        %v803 = vld [vmem:[%s791] sm:$0x1]
        %v804 = vld [vmem:[%s794] sm:$0x1]
        %v805 = vld [vmem:[%s4] sm:$0xff]
        %v806 = vld [vmem:[%s4 + $0x8] sm:$0xff]
        %v807 = vld [vmem:[%s4 + $0x10] sm:$0xff]
        %v808 = vld [vmem:[%s4 + $0x18] sm:$0xff]
        %v809 = vld [vmem:[%s5] sm:$0x1]
        %v810 = vld [vmem:[%s6] sm:$0xff]
        %v811 = vld [vmem:[%s6 + $0x8] sm:$0xff]
        %v812 = vld [vmem:[%s6 + $0x10] sm:$0xff]
        %v813 = vld [vmem:[%s6 + $0x18] sm:$0xff]
        %v814 = vld [vmem:[%s7] sm:$0x1]
        %v816 = vperm.slane %v809, 0
        %vm818 = vcmask 261120
        %v820 = vsel %vm818, %v800, 0
        %v823 = vsel %vm818, %v801, 0
        %825 = vmatpush.msra.mxu0 0.0
        %826 = vmatpush.msra.mxu0 0.0
        %827 = vmatpush.msra.mxu0 0.0
        %828 = vmatpush.msra.mxu0 0.0
        %829 = vmatpush.msra.mxu0 0.0
        %830 = vmatpush.msra.mxu0 0.0
        %831 = vmatpush.msra.mxu0 0.0
        %832 = vmatpush.msra.mxu0 0.0
        %833 = vmatpush.msra.mxu0 0.0
        %834 = vmatpush.msra.mxu0 0.0
        %835 = vmatpush.msra.mxu0 0.0
        %836 = vmatpush.msra.mxu0 0.0
        %837 = vmatpush.msra.mxu0 %v808
        %838 = vmatpush.msra.mxu0 %v807
        %839 = vmatpush.msra.mxu0 %v806
        %840 = vmatpush.msra.mxu0 %v805
        %841 = vmatmul.f32.gmra.mxu0 %v820
        %v842 = vpop.f32.mrf.mxu0
        %v843 = vadd.f32 %v816, %v842
        %844 = vmatmul.f32.gmra.mxu0 %v823
        %v845 = vpop.f32.mrf.mxu0
        %v846 = vadd.f32 %v816, %v845
        %847 = vdwg.mxu0
        %850 = vrot.lane.b32.xlu0 %v843, 96
        %v851 = vpop.permute.xlu0 %850
        %852 = vrot.lane.b32.xlu0 %v846, 96
        %v853 = vpop.permute.xlu0 %852
        %vm854 = vcmask 64512
        %v855 = vsel %vm854, %v843, 0
        %v857 = vsel %vm854, %v846, 0
        %v859 = vsel %vm854, %v851, 0
        %v861 = vsel %vm854, %v853, 0
        %863 = vmatpush.xpose.msra.mxu0 0.0
        %864 = vmatpush.xpose.msra.mxu0 0.0
        %865 = vmatpush.xpose.msra.mxu0 0.0
        %866 = vmatpush.xpose.msra.mxu0 0.0
        %867 = vmatpush.xpose.msra.mxu0 0.0
        %868 = vmatpush.xpose.msra.mxu0 0.0
        %869 = vmatpush.xpose.msra.mxu0 0.0
        %870 = vmatpush.xpose.msra.mxu0 0.0
        %871 = vmatpush.xpose.msra.mxu0 0.0
        %872 = vmatpush.xpose.msra.mxu0 0.0
        %873 = vmatpush.xpose.msra.mxu0 0.0
        %874 = vmatpush.xpose.msra.mxu0 0.0
        %875 = vmatpush.xpose.msra.mxu0 0.0
        %876 = vmatpush.xpose.msra.mxu0 0.0
        %877 = vmatpush.xpose.msra.mxu0 %v861
        %878 = vmatpush.xpose.msra.mxu0 %v859
        %879 = vmatmul.f32.gmra.mxu0 %v855
        %v880 = vpop.f32.mrf.mxu0
        %v881 = vadd.f32 0.0, %v880
        %882 = vmatmul.f32.gmra.mxu0 %v857
        %v883 = vpop.f32.mrf.mxu0
        %v884 = vadd.f32 0.0, %v883
        %885 = vdwg.mxu0
        %v886 = vmul.f32 %v881, 0.35355338
        %v887 = vmul.f32 %v884, 0.35355338
        %vm888 = vcmp.gt.f32.partialorder %v803, 0.5
        %v889 = vsel %vm888, 1, 0
        %v890 = vperm.slane %v889, 0
        %vm891 = vcmp.eq.s32.totalorder %v890, 1
        %v892 = vsel %vm891, -1e+09, %v886
        %v893 = vsel %vm891, -1e+09, %v887
        %vm894 = vcmask 130048
        %v895 = vsel %vm894, %v892, -inf
        %896 = vmax.xlane.f32.xlu0 %v895
        %v897 = vpop.xlane.xlu0 %896
        %v898 = vsel %vm894, %v893, -inf
        %899 = vmax.xlane.f32.xlu0 %v898
        %v900 = vpop.xlane.xlu0 %899
        %v901 = vsub.f32 %v892, %v897
        %v902 = vsub.f32 %v893, %v900
        %v903 = vmul.f32 %v901, 1.442695
        %v904 = vpow.pop %v903
        %v905 = vmul.f32 %v902, 1.442695
        %v906 = vpow.pop %v905
        %v907 = vsel %vm894, %v904, 0.0
        %908 = vadd.xlane.f32.xlu0 %v907
        %v909 = vpop.xlane.xlu0 %908
        %v910 = vsel %vm894, %v906, 0.0
        %911 = vadd.xlane.f32.xlu0 %v910
        %v912 = vpop.xlane.xlu0 %911
        %v913 = vrcp.pop %v909
        %v914 = vmul.f32 %v909, %v913
        %v915 = vsub.f32 1.0, %v914
        %v916 = vmul.f32 %v913, %v915
        %v917 = vadd.f32 %v913, %v916
        %vm918 = vweird.f32 %v909
        %vm919 = vweird.f32 %v913
        %vm920 = vmor %vm918, %vm919
        %v921 = vsel %vm920, %v913, %v917
        %v922 = vand.u32 2147483647, %v909
        %vm923 = vcmp.eq.f32.partialorder %v922, 8.507059e+37
        %v924 = vand.u32 %v909, 2147483648
        %v925 = vor.u32 1.1754944e-38, %v924
        %v926 = vsel %vm923, %v925, %v921
        %v927 = vmul.f32 %v904, %v926
        %v928 = vrcp.pop %v912
        %v929 = vmul.f32 %v912, %v928
        %v930 = vsub.f32 1.0, %v929
        %v931 = vmul.f32 %v928, %v930
        %v932 = vadd.f32 %v928, %v931
        %vm933 = vweird.f32 %v912
        %vm934 = vweird.f32 %v928
        %vm935 = vmor %vm933, %vm934
        %v936 = vsel %vm935, %v928, %v932
        %v937 = vand.u32 2147483647, %v912
        %vm938 = vcmp.eq.f32.partialorder %v937, 8.507059e+37
        %v939 = vand.u32 %v912, 2147483648
        %v940 = vor.u32 1.1754944e-38, %v939
        %v941 = vsel %vm938, %v940, %v936
        %v942 = vmul.f32 %v906, %v941
        %943 = vrot.lane.b32.xlu0 %v843, 64
        %v944 = vpop.permute.xlu0 %943
        %945 = vrot.lane.b32.xlu0 %v846, 64
        %v946 = vpop.permute.xlu0 %945
        %v950 = vsel %vm894, %v927, 0
        %v953 = vsel %vm894, %v942, 0
        %955 = vmatpush.msra.mxu0 0.0
        %956 = vmatpush.msra.mxu0 0.0
        %957 = vmatpush.msra.mxu0 0.0
        %958 = vmatpush.msra.mxu0 0.0
        %959 = vmatpush.msra.mxu0 0.0
        %960 = vmatpush.msra.mxu0 0.0
        %961 = vmatpush.msra.mxu0 0.0
        %962 = vmatpush.msra.mxu0 0.0
        %963 = vmatpush.msra.mxu0 0.0
        %964 = vmatpush.msra.mxu0 0.0
        %965 = vmatpush.msra.mxu0 0.0
        %966 = vmatpush.msra.mxu0 0.0
        %967 = vmatpush.msra.mxu0 0.0
        %968 = vmatpush.msra.mxu0 0.0
        %969 = vmatpush.msra.mxu0 %v946
        %970 = vmatpush.msra.mxu0 %v944
        %971 = vmatmul.f32.gmra.mxu0 %v950
        %v972 = vpop.f32.mrf.mxu0
        %v973 = vadd.f32 0.0, %v972
        %974 = vmatmul.f32.gmra.mxu0 %v953
        %v975 = vpop.f32.mrf.mxu0
        %v976 = vadd.f32 0.0, %v975
        %977 = vdwg.mxu0
        %978 = vrot.lane.b32.xlu0 %v843, 120
        %v979 = vpop.permute.xlu0 %978
        %980 = vrot.lane.b32.xlu0 %v846, 120
        %v981 = vpop.permute.xlu0 %980
        %982 = vrot.lane.b32.xlu0 %v843, 88
        %v983 = vpop.permute.xlu0 %982
        %984 = vrot.lane.b32.xlu0 %v846, 88
        %v985 = vpop.permute.xlu0 %984
        %v986 = vsel %vm854, %v979, 0
        %v988 = vsel %vm854, %v981, 0
        %v990 = vsel %vm854, %v983, 0
        %v992 = vsel %vm854, %v985, 0
        %994 = vmatpush.xpose.msra.mxu0 0.0
        %995 = vmatpush.xpose.msra.mxu0 0.0
        %996 = vmatpush.xpose.msra.mxu0 0.0
        %997 = vmatpush.xpose.msra.mxu0 0.0
        %998 = vmatpush.xpose.msra.mxu0 0.0
        %999 = vmatpush.xpose.msra.mxu0 0.0
        %1000 = vmatpush.xpose.msra.mxu0 0.0
        %1001 = vmatpush.xpose.msra.mxu0 0.0
        %1002 = vmatpush.xpose.msra.mxu0 0.0
        %1003 = vmatpush.xpose.msra.mxu0 0.0
        %1004 = vmatpush.xpose.msra.mxu0 0.0
        %1005 = vmatpush.xpose.msra.mxu0 0.0
        %1006 = vmatpush.xpose.msra.mxu0 0.0
        %1007 = vmatpush.xpose.msra.mxu0 0.0
        %1008 = vmatpush.xpose.msra.mxu0 %v992
        %1009 = vmatpush.xpose.msra.mxu0 %v990
        %1010 = vmatmul.f32.gmra.mxu0 %v986
        %v1011 = vpop.f32.mrf.mxu0
        %v1012 = vadd.f32 0.0, %v1011
        %1013 = vmatmul.f32.gmra.mxu0 %v988
        %v1014 = vpop.f32.mrf.mxu0
        %v1015 = vadd.f32 0.0, %v1014
        %1016 = vdwg.mxu0
        %v1017 = vmul.f32 %v1012, 0.35355338
        %v1018 = vmul.f32 %v1015, 0.35355338
        %v1019 = vsel %vm891, -1e+09, %v1017
        %v1020 = vsel %vm891, -1e+09, %v1018
        %v1021 = vsel %vm894, %v1019, -inf
        %1022 = vmax.xlane.f32.xlu0 %v1021
        %v1023 = vpop.xlane.xlu0 %1022
        %v1024 = vsel %vm894, %v1020, -inf
        %1025 = vmax.xlane.f32.xlu0 %v1024
        %v1026 = vpop.xlane.xlu0 %1025
        %v1027 = vsub.f32 %v1019, %v1023
        %v1028 = vsub.f32 %v1020, %v1026
        %v1029 = vmul.f32 %v1027, 1.442695
        %v1030 = vpow.pop %v1029
        %v1031 = vmul.f32 %v1028, 1.442695
        %v1032 = vpow.pop %v1031
        %v1033 = vsel %vm894, %v1030, 0.0
        %1034 = vadd.xlane.f32.xlu0 %v1033
        %v1035 = vpop.xlane.xlu0 %1034
        %v1036 = vsel %vm894, %v1032, 0.0
        %1037 = vadd.xlane.f32.xlu0 %v1036
        %v1038 = vpop.xlane.xlu0 %1037
        %v1039 = vrcp.pop %v1035
        %v1040 = vmul.f32 %v1035, %v1039
        %v1041 = vsub.f32 1.0, %v1040
        %v1042 = vmul.f32 %v1039, %v1041
        %v1043 = vadd.f32 %v1039, %v1042
        %vm1044 = vweird.f32 %v1035
        %vm1045 = vweird.f32 %v1039
        %vm1046 = vmor %vm1044, %vm1045
        %v1047 = vsel %vm1046, %v1039, %v1043
        %v1048 = vand.u32 2147483647, %v1035
        %vm1049 = vcmp.eq.f32.partialorder %v1048, 8.507059e+37
        %v1050 = vand.u32 %v1035, 2147483648
        %v1051 = vor.u32 1.1754944e-38, %v1050
        %v1052 = vsel %vm1049, %v1051, %v1047
        %v1053 = vmul.f32 %v1030, %v1052
        %v1054 = vrcp.pop %v1038
        %v1055 = vmul.f32 %v1038, %v1054
        %v1056 = vsub.f32 1.0, %v1055
        %v1057 = vmul.f32 %v1054, %v1056
        %v1058 = vadd.f32 %v1054, %v1057
        %vm1059 = vweird.f32 %v1038
        %vm1060 = vweird.f32 %v1054
        %vm1061 = vmor %vm1059, %vm1060
        %v1062 = vsel %vm1061, %v1054, %v1058
        %v1063 = vand.u32 2147483647, %v1038
        %vm1064 = vcmp.eq.f32.partialorder %v1063, 8.507059e+37
        %v1065 = vand.u32 %v1038, 2147483648
        %v1066 = vor.u32 1.1754944e-38, %v1065
        %v1067 = vsel %vm1064, %v1066, %v1062
        %v1068 = vmul.f32 %v1032, %v1067
        %1069 = vrot.lane.b32.xlu0 %v843, 56
        %v1070 = vpop.permute.xlu0 %1069
        %1071 = vrot.lane.b32.xlu0 %v846, 56
        %v1072 = vpop.permute.xlu0 %1071
        %v1076 = vsel %vm894, %v1053, 0
        %v1079 = vsel %vm894, %v1068, 0
        %1081 = vmatpush.msra.mxu0 0.0
        %1082 = vmatpush.msra.mxu0 0.0
        %1083 = vmatpush.msra.mxu0 0.0
        %1084 = vmatpush.msra.mxu0 0.0
        %1085 = vmatpush.msra.mxu0 0.0
        %1086 = vmatpush.msra.mxu0 0.0
        %1087 = vmatpush.msra.mxu0 0.0
        %1088 = vmatpush.msra.mxu0 0.0
        %1089 = vmatpush.msra.mxu0 0.0
        %1090 = vmatpush.msra.mxu0 0.0
        %1091 = vmatpush.msra.mxu0 0.0
        %1092 = vmatpush.msra.mxu0 0.0
        %1093 = vmatpush.msra.mxu0 0.0
        %1094 = vmatpush.msra.mxu0 0.0
        %1095 = vmatpush.msra.mxu0 %v1072
        %1096 = vmatpush.msra.mxu0 %v1070
        %1097 = vmatmul.f32.gmra.mxu0 %v1076
        %v1098 = vpop.f32.mrf.mxu0
        %v1099 = vadd.f32 0.0, %v1098
        %1100 = vmatmul.f32.gmra.mxu0 %v1079
        %v1101 = vpop.f32.mrf.mxu0
        %v1102 = vadd.f32 0.0, %v1101
        %1103 = vdwg.mxu0
        %1104 = vrot.lane.b32.xlu0 %v843, 112
        %v1105 = vpop.permute.xlu0 %1104
        %1106 = vrot.lane.b32.xlu0 %v846, 112
        %v1107 = vpop.permute.xlu0 %1106
        %1108 = vrot.lane.b32.xlu0 %v843, 80
        %v1109 = vpop.permute.xlu0 %1108
        %1110 = vrot.lane.b32.xlu0 %v846, 80
        %v1111 = vpop.permute.xlu0 %1110
        %v1112 = vsel %vm854, %v1105, 0
        %v1114 = vsel %vm854, %v1107, 0
        %v1116 = vsel %vm854, %v1109, 0
        %v1118 = vsel %vm854, %v1111, 0
        %1120 = vmatpush.xpose.msra.mxu0 0.0
        %1121 = vmatpush.xpose.msra.mxu0 0.0
        %1122 = vmatpush.xpose.msra.mxu0 0.0
        %1123 = vmatpush.xpose.msra.mxu0 0.0
        %1124 = vmatpush.xpose.msra.mxu0 0.0
        %1125 = vmatpush.xpose.msra.mxu0 0.0
        %1126 = vmatpush.xpose.msra.mxu0 0.0
        %1127 = vmatpush.xpose.msra.mxu0 0.0
        %1128 = vmatpush.xpose.msra.mxu0 0.0
        %1129 = vmatpush.xpose.msra.mxu0 0.0
        %1130 = vmatpush.xpose.msra.mxu0 0.0
        %1131 = vmatpush.xpose.msra.mxu0 0.0
        %1132 = vmatpush.xpose.msra.mxu0 0.0
        %1133 = vmatpush.xpose.msra.mxu0 0.0
        %1134 = vmatpush.xpose.msra.mxu0 %v1118
        %1135 = vmatpush.xpose.msra.mxu0 %v1116
        %1136 = vmatmul.f32.gmra.mxu0 %v1112
        %v1137 = vpop.f32.mrf.mxu0
        %v1138 = vadd.f32 0.0, %v1137
        %1139 = vmatmul.f32.gmra.mxu0 %v1114
        %v1140 = vpop.f32.mrf.mxu0
        %v1141 = vadd.f32 0.0, %v1140
        %1142 = vdwg.mxu0
        %v1143 = vmul.f32 %v1138, 0.35355338
        %v1144 = vmul.f32 %v1141, 0.35355338
        %v1145 = vsel %vm891, -1e+09, %v1143
        %v1146 = vsel %vm891, -1e+09, %v1144
        %v1147 = vsel %vm894, %v1145, -inf
        %1148 = vmax.xlane.f32.xlu0 %v1147
        %v1149 = vpop.xlane.xlu0 %1148
        %v1150 = vsel %vm894, %v1146, -inf
        %1151 = vmax.xlane.f32.xlu0 %v1150
        %v1152 = vpop.xlane.xlu0 %1151
        %v1153 = vsub.f32 %v1145, %v1149
        %v1154 = vsub.f32 %v1146, %v1152
        %v1155 = vmul.f32 %v1153, 1.442695
        %v1156 = vpow.pop %v1155
        %v1157 = vmul.f32 %v1154, 1.442695
        %v1158 = vpow.pop %v1157
        %v1159 = vsel %vm894, %v1156, 0.0
        %1160 = vadd.xlane.f32.xlu0 %v1159
        %v1161 = vpop.xlane.xlu0 %1160
        %v1162 = vsel %vm894, %v1158, 0.0
        %1163 = vadd.xlane.f32.xlu0 %v1162
        %v1164 = vpop.xlane.xlu0 %1163
        %v1165 = vrcp.pop %v1161
        %v1166 = vmul.f32 %v1161, %v1165
        %v1167 = vsub.f32 1.0, %v1166
        %v1168 = vmul.f32 %v1165, %v1167
        %v1169 = vadd.f32 %v1165, %v1168
        %vm1170 = vweird.f32 %v1161
        %vm1171 = vweird.f32 %v1165
        %vm1172 = vmor %vm1170, %vm1171
        %v1173 = vsel %vm1172, %v1165, %v1169
        %v1174 = vand.u32 2147483647, %v1161
        %vm1175 = vcmp.eq.f32.partialorder %v1174, 8.507059e+37
        %v1176 = vand.u32 %v1161, 2147483648
        %v1177 = vor.u32 1.1754944e-38, %v1176
        %v1178 = vsel %vm1175, %v1177, %v1173
        %v1179 = vmul.f32 %v1156, %v1178
        %v1180 = vrcp.pop %v1164
        %v1181 = vmul.f32 %v1164, %v1180
        %v1182 = vsub.f32 1.0, %v1181
        %v1183 = vmul.f32 %v1180, %v1182
        %v1184 = vadd.f32 %v1180, %v1183
        %vm1185 = vweird.f32 %v1164
        %vm1186 = vweird.f32 %v1180
        %vm1187 = vmor %vm1185, %vm1186
        %v1188 = vsel %vm1187, %v1180, %v1184
        %v1189 = vand.u32 2147483647, %v1164
        %vm1190 = vcmp.eq.f32.partialorder %v1189, 8.507059e+37
        %v1191 = vand.u32 %v1164, 2147483648
        %v1192 = vor.u32 1.1754944e-38, %v1191
        %v1193 = vsel %vm1190, %v1192, %v1188
        %v1194 = vmul.f32 %v1158, %v1193
        %1195 = vrot.lane.b32.xlu0 %v843, 48
        %v1196 = vpop.permute.xlu0 %1195
        %1197 = vrot.lane.b32.xlu0 %v846, 48
        %v1198 = vpop.permute.xlu0 %1197
        %v1202 = vsel %vm894, %v1179, 0
        %v1205 = vsel %vm894, %v1194, 0
        %1207 = vmatpush.msra.mxu0 0.0
        %1208 = vmatpush.msra.mxu0 0.0
        %1209 = vmatpush.msra.mxu0 0.0
        %1210 = vmatpush.msra.mxu0 0.0
        %1211 = vmatpush.msra.mxu0 0.0
        %1212 = vmatpush.msra.mxu0 0.0
        %1213 = vmatpush.msra.mxu0 0.0
        %1214 = vmatpush.msra.mxu0 0.0
        %1215 = vmatpush.msra.mxu0 0.0
        %1216 = vmatpush.msra.mxu0 0.0
        %1217 = vmatpush.msra.mxu0 0.0
        %1218 = vmatpush.msra.mxu0 0.0
        %1219 = vmatpush.msra.mxu0 0.0
        %1220 = vmatpush.msra.mxu0 0.0
        %1221 = vmatpush.msra.mxu0 %v1198
        %1222 = vmatpush.msra.mxu0 %v1196
        %1223 = vmatmul.f32.gmra.mxu0 %v1202
        %v1224 = vpop.f32.mrf.mxu0
        %v1225 = vadd.f32 0.0, %v1224
        %1226 = vmatmul.f32.gmra.mxu0 %v1205
        %v1227 = vpop.f32.mrf.mxu0
        %v1228 = vadd.f32 0.0, %v1227
        %1229 = vdwg.mxu0
        %1230 = vrot.lane.b32.xlu0 %v843, 104
        %v1231 = vpop.permute.xlu0 %1230
        %1232 = vrot.lane.b32.xlu0 %v846, 104
        %v1233 = vpop.permute.xlu0 %1232
        %1234 = vrot.lane.b32.xlu0 %v843, 72
        %v1235 = vpop.permute.xlu0 %1234
        %1236 = vrot.lane.b32.xlu0 %v846, 72
        %v1237 = vpop.permute.xlu0 %1236
        %v1238 = vsel %vm854, %v1231, 0
        %v1240 = vsel %vm854, %v1233, 0
        %v1242 = vsel %vm854, %v1235, 0
        %v1244 = vsel %vm854, %v1237, 0
        %1246 = vmatpush.xpose.msra.mxu0 0.0
        %1247 = vmatpush.xpose.msra.mxu0 0.0
        %1248 = vmatpush.xpose.msra.mxu0 0.0
        %1249 = vmatpush.xpose.msra.mxu0 0.0
        %1250 = vmatpush.xpose.msra.mxu0 0.0
        %1251 = vmatpush.xpose.msra.mxu0 0.0
        %1252 = vmatpush.xpose.msra.mxu0 0.0
        %1253 = vmatpush.xpose.msra.mxu0 0.0
        %1254 = vmatpush.xpose.msra.mxu0 0.0
        %1255 = vmatpush.xpose.msra.mxu0 0.0
        %1256 = vmatpush.xpose.msra.mxu0 0.0
        %1257 = vmatpush.xpose.msra.mxu0 0.0
        %1258 = vmatpush.xpose.msra.mxu0 0.0
        %1259 = vmatpush.xpose.msra.mxu0 0.0
        %1260 = vmatpush.xpose.msra.mxu0 %v1244
        %1261 = vmatpush.xpose.msra.mxu0 %v1242
        %1262 = vmatmul.f32.gmra.mxu0 %v1238
        %v1263 = vpop.f32.mrf.mxu0
        %v1264 = vadd.f32 0.0, %v1263
        %1265 = vmatmul.f32.gmra.mxu0 %v1240
        %v1266 = vpop.f32.mrf.mxu0
        %v1267 = vadd.f32 0.0, %v1266
        %1268 = vdwg.mxu0
        %v1269 = vmul.f32 %v1264, 0.35355338
        %v1270 = vmul.f32 %v1267, 0.35355338
        %v1271 = vsel %vm891, -1e+09, %v1269
        %v1272 = vsel %vm891, -1e+09, %v1270
        %v1273 = vsel %vm894, %v1271, -inf
        %1274 = vmax.xlane.f32.xlu0 %v1273
        %v1275 = vpop.xlane.xlu0 %1274
        %v1276 = vsel %vm894, %v1272, -inf
        %1277 = vmax.xlane.f32.xlu0 %v1276
        %v1278 = vpop.xlane.xlu0 %1277
        %v1279 = vsub.f32 %v1271, %v1275
        %v1280 = vsub.f32 %v1272, %v1278
        %v1281 = vmul.f32 %v1279, 1.442695
        %v1282 = vpow.pop %v1281
        %v1283 = vmul.f32 %v1280, 1.442695
        %v1284 = vpow.pop %v1283
        %v1285 = vsel %vm894, %v1282, 0.0
        %1286 = vadd.xlane.f32.xlu0 %v1285
        %v1287 = vpop.xlane.xlu0 %1286
        %v1288 = vsel %vm894, %v1284, 0.0
        %1289 = vadd.xlane.f32.xlu0 %v1288
        %v1290 = vpop.xlane.xlu0 %1289
        %v1291 = vrcp.pop %v1287
        %v1292 = vmul.f32 %v1287, %v1291
        %v1293 = vsub.f32 1.0, %v1292
        %v1294 = vmul.f32 %v1291, %v1293
        %v1295 = vadd.f32 %v1291, %v1294
        %vm1296 = vweird.f32 %v1287
        %vm1297 = vweird.f32 %v1291
        %vm1298 = vmor %vm1296, %vm1297
        %v1299 = vsel %vm1298, %v1291, %v1295
        %v1300 = vand.u32 2147483647, %v1287
        %vm1301 = vcmp.eq.f32.partialorder %v1300, 8.507059e+37
        %v1302 = vand.u32 %v1287, 2147483648
        %v1303 = vor.u32 1.1754944e-38, %v1302
        %v1304 = vsel %vm1301, %v1303, %v1299
        %v1305 = vmul.f32 %v1282, %v1304
        %v1306 = vrcp.pop %v1290
        %v1307 = vmul.f32 %v1290, %v1306
        %v1308 = vsub.f32 1.0, %v1307
        %v1309 = vmul.f32 %v1306, %v1308
        %v1310 = vadd.f32 %v1306, %v1309
        %vm1311 = vweird.f32 %v1290
        %vm1312 = vweird.f32 %v1306
        %vm1313 = vmor %vm1311, %vm1312
        %v1314 = vsel %vm1313, %v1306, %v1310
        %v1315 = vand.u32 2147483647, %v1290
        %vm1316 = vcmp.eq.f32.partialorder %v1315, 8.507059e+37
        %v1317 = vand.u32 %v1290, 2147483648
        %v1318 = vor.u32 1.1754944e-38, %v1317
        %v1319 = vsel %vm1316, %v1318, %v1314
        %v1320 = vmul.f32 %v1284, %v1319
        %1321 = vrot.lane.b32.xlu0 %v843, 40
        %v1322 = vpop.permute.xlu0 %1321
        %1323 = vrot.lane.b32.xlu0 %v846, 40
        %v1324 = vpop.permute.xlu0 %1323
        %v1328 = vsel %vm894, %v1305, 0
        %v1331 = vsel %vm894, %v1320, 0
        %1333 = vmatpush.msra.mxu0 0.0
        %1334 = vmatpush.msra.mxu0 0.0
        %1335 = vmatpush.msra.mxu0 0.0
        %1336 = vmatpush.msra.mxu0 0.0
        %1337 = vmatpush.msra.mxu0 0.0
        %1338 = vmatpush.msra.mxu0 0.0
        %1339 = vmatpush.msra.mxu0 0.0
        %1340 = vmatpush.msra.mxu0 0.0
        %1341 = vmatpush.msra.mxu0 0.0
        %1342 = vmatpush.msra.mxu0 0.0
        %1343 = vmatpush.msra.mxu0 0.0
        %1344 = vmatpush.msra.mxu0 0.0
        %1345 = vmatpush.msra.mxu0 0.0
        %1346 = vmatpush.msra.mxu0 0.0
        %1347 = vmatpush.msra.mxu0 %v1324
        %1348 = vmatpush.msra.mxu0 %v1322
        %1349 = vmatmul.f32.gmra.mxu0 %v1328
        %v1350 = vpop.f32.mrf.mxu0
        %v1351 = vadd.f32 0.0, %v1350
        %1352 = vmatmul.f32.gmra.mxu0 %v1331
        %v1353 = vpop.f32.mrf.mxu0
        %v1354 = vadd.f32 0.0, %v1353
        %1355 = vdwg.mxu0
        %1358 = vrot.lane.b32.xlu0 %v1099, 8
        %v1359 = vpop.permute.xlu0 %1358
        %1360 = vrot.lane.b32.xlu0 %v1102, 8
        %v1361 = vpop.permute.xlu0 %1360
        %1366 = vrot.lane.b32.xlu0 %v1225, 16
        %v1367 = vpop.permute.xlu0 %1366
        %1368 = vrot.lane.b32.xlu0 %v1228, 16
        %v1369 = vpop.permute.xlu0 %1368
        %1374 = vrot.lane.b32.xlu0 %v1351, 24
        %v1375 = vpop.permute.xlu0 %1374
        %1376 = vrot.lane.b32.xlu0 %v1354, 24
        %v1377 = vpop.permute.xlu0 %1376
        %v1380 = vsel %vm854, %v973, %v1359
        %v1381 = vsel %vm854, %v976, %v1361
        %v1382 = vsel %vm894, %v1380, %v1367
        %v1383 = vsel %vm894, %v1381, %v1369
        %vm1384 = vcmask 195584
        %v1385 = vsel %vm1384, %v1382, %v1375
        %v1386 = vsel %vm1384, %v1383, %v1377
        %v1388 = vperm.slane %v814, 0
        %v1391 = vsel %vm818, %v1385, 0
        %v1394 = vsel %vm818, %v1386, 0
        %1396 = vmatpush.msra.mxu0 0.0
        %1397 = vmatpush.msra.mxu0 0.0
        %1398 = vmatpush.msra.mxu0 0.0
        %1399 = vmatpush.msra.mxu0 0.0
        %1400 = vmatpush.msra.mxu0 0.0
        %1401 = vmatpush.msra.mxu0 0.0
        %1402 = vmatpush.msra.mxu0 0.0
        %1403 = vmatpush.msra.mxu0 0.0
        %1404 = vmatpush.msra.mxu0 0.0
        %1405 = vmatpush.msra.mxu0 0.0
        %1406 = vmatpush.msra.mxu0 0.0
        %1407 = vmatpush.msra.mxu0 0.0
        %1408 = vmatpush.msra.mxu0 %v813
        %1409 = vmatpush.msra.mxu0 %v812
        %1410 = vmatpush.msra.mxu0 %v811
        %1411 = vmatpush.msra.mxu0 %v810
        %1412 = vmatmul.f32.gmra.mxu0 %v1391
        %v1413 = vpop.f32.mrf.mxu0
        %v1414 = vadd.f32 %v1388, %v1413
        %1415 = vmatmul.f32.gmra.mxu0 %v1394
        %v1416 = vpop.f32.mrf.mxu0
        %v1417 = vadd.f32 %v1388, %v1416
        %1418 = vdwg.mxu0
        %v1419 = vadd.f32 %v800, %v1414
        %v1420 = vadd.f32 %v801, %v1417
        %v1421 = vld [vmem:[%s8] sm:$0x1]
        %v1422 = vld [vmem:[%s9] sm:$0x1]
        %v1423 = vsel %vm818, %v1419, 0.0
        %1424 = vadd.xlane.f32.xlu0 %v1423
        %v1425 = vpop.xlane.xlu0 %1424
        %v1426 = vsel %vm818, %v1420, 0.0
        %1427 = vadd.xlane.f32.xlu0 %v1426
        %v1428 = vpop.xlane.xlu0 %1427
        %v1429 = vrcp.pop 32.0
        %v1430 = vmul.f32 32.0, %v1429
        %v1431 = vsub.f32 1.0, %v1430
        %v1432 = vmul.f32 %v1429, %v1431
        %v1433 = vadd.f32 %v1429, %v1432
        %vm1434 = vweird.f32 %v1429
        %v1435 = vsel %vm1434, %v1429, %v1433
        %v1436 = vmul.f32 %v1425, %v1435
        %v1437 = vmul.f32 %v1428, %v1435
        %v1438 = vsub.f32 %v1419, %v1436
        %v1439 = vsub.f32 %v1420, %v1437
        %v1440 = vmul.f32 %v1438, %v1438
        %v1441 = vmul.f32 %v1439, %v1439
        %v1442 = vsel %vm818, %v1440, 0.0
        %1443 = vadd.xlane.f32.xlu0 %v1442
        %v1444 = vpop.xlane.xlu0 %1443
        %v1445 = vsel %vm818, %v1441, 0.0
        %1446 = vadd.xlane.f32.xlu0 %v1445
        %v1447 = vpop.xlane.xlu0 %1446
        %v1448 = vmul.f32 %v1444, 0.032258064
        %v1449 = vmul.f32 %v1447, 0.032258064
        %v1451 = vperm.slane %v1421, 0
        %v1453 = vmul.f32 %v1451, %v1438
        %v1454 = vmul.f32 %v1451, %v1439
        %v1455 = vrsqrt.pop %v1448
        %v1456 = vmul.f32 %v1455, %v1448
        %v1457 = vmul.f32 %v1456, %v1455
        %v1458 = vmul.f32 0.5, %v1457
        %v1459 = vsub.f32 1.5, %v1458
        %v1460 = vmul.f32 %v1455, %v1459
        %v1461 = vmul.f32 %v1448, %v1460
        %vm1462 = vcmp.eq.f32.partialorder %v1448, inf
        %v1463 = vsel %vm1462, %v1448, %v1461
        %vm1464 = vcmp.eq.f32.partialorder %v1448, 0.0
        %v1465 = vand.u32 %v1448, 2147483648
        %v1466 = vsel %vm1464, %v1465, %v1463
        %v1467 = vrsqrt.pop %v1449
        %v1468 = vmul.f32 %v1467, %v1449
        %v1469 = vmul.f32 %v1468, %v1467
        %v1470 = vmul.f32 0.5, %v1469
        %v1471 = vsub.f32 1.5, %v1470
        %v1472 = vmul.f32 %v1467, %v1471
        %v1473 = vmul.f32 %v1449, %v1472
        %vm1474 = vcmp.eq.f32.partialorder %v1449, inf
        %v1475 = vsel %vm1474, %v1449, %v1473
        %vm1476 = vcmp.eq.f32.partialorder %v1449, 0.0
        %v1477 = vand.u32 %v1449, 2147483648
        %v1478 = vsel %vm1476, %v1477, %v1475
        %v1479 = vadd.f32 %v1466, 1e-06
        %v1480 = vadd.f32 %v1478, 1e-06
        %v1481 = vrcp.pop %v1479
        %v1482 = vmul.f32 %v1479, %v1481
        %v1483 = vsub.f32 1.0, %v1482
        %v1484 = vmul.f32 %v1481, %v1483
        %v1485 = vadd.f32 %v1481, %v1484
        %vm1486 = vweird.f32 %v1479
        %vm1487 = vweird.f32 %v1481
        %vm1488 = vmor %vm1486, %vm1487
        %v1489 = vsel %vm1488, %v1481, %v1485
        %v1490 = vand.u32 2147483647, %v1479
        %vm1491 = vcmp.eq.f32.partialorder %v1490, 8.507059e+37
        %v1492 = vand.u32 %v1479, 2147483648
        %v1493 = vor.u32 1.1754944e-38, %v1492
        %v1494 = vsel %vm1491, %v1493, %v1489
        %v1495 = vmul.f32 %v1453, %v1494
        %v1496 = vrcp.pop %v1480
        %v1497 = vmul.f32 %v1480, %v1496
        %v1498 = vsub.f32 1.0, %v1497
        %v1499 = vmul.f32 %v1496, %v1498
        %v1500 = vadd.f32 %v1496, %v1499
        %vm1501 = vweird.f32 %v1480
        %vm1502 = vweird.f32 %v1496
        %vm1503 = vmor %vm1501, %vm1502
        %v1504 = vsel %vm1503, %v1496, %v1500
        %v1505 = vand.u32 2147483647, %v1480
        %vm1506 = vcmp.eq.f32.partialorder %v1505, 8.507059e+37
        %v1507 = vand.u32 %v1480, 2147483648
        %v1508 = vor.u32 1.1754944e-38, %v1507
        %v1509 = vsel %vm1506, %v1508, %v1504
        %v1510 = vmul.f32 %v1454, %v1509
        %v1512 = vperm.slane %v1422, 0
        %v1514 = vadd.f32 %v1495, %v1512
        %v1515 = vadd.f32 %v1510, %v1512
        %v1516 = vld [vmem:[%s10] sm:$0xff]
        %v1517 = vld [vmem:[%s10 + $0x8] sm:$0xff]
        %v1518 = vld [vmem:[%s10 + $0x10] sm:$0xff]
        %v1519 = vld [vmem:[%s10 + $0x18] sm:$0xff]
        %v1520 = vld [vmem:[%s11] sm:$0x1]
        %v1521 = vld [vmem:[%s12] sm:$0xff]
        %v1522 = vld [vmem:[%s12 + $0x8] sm:$0xff]
        %v1523 = vld [vmem:[%s12 + $0x10] sm:$0xff]
        %v1524 = vld [vmem:[%s12 + $0x18] sm:$0xff]
        %v1525 = vld [vmem:[%s13] sm:$0x1]
        %v1526 = vld [vmem:[%s14] sm:$0xff]
        %v1527 = vld [vmem:[%s14 + $0x8] sm:$0xff]
        %v1528 = vld [vmem:[%s14 + $0x10] sm:$0xff]
        %v1529 = vld [vmem:[%s14 + $0x18] sm:$0xff]
        %v1530 = vld [vmem:[%s15] sm:$0x1]
        %v1532 = vperm.slane %v1520, 0
        %v1535 = vsel %vm818, %v1514, 0
        %v1538 = vsel %vm818, %v1515, 0
        %1540 = vmatpush.msra.mxu0 0.0
        %1541 = vmatpush.msra.mxu0 0.0
        %1542 = vmatpush.msra.mxu0 0.0
        %1543 = vmatpush.msra.mxu0 0.0
        %1544 = vmatpush.msra.mxu0 0.0
        %1545 = vmatpush.msra.mxu0 0.0
        %1546 = vmatpush.msra.mxu0 0.0
        %1547 = vmatpush.msra.mxu0 0.0
        %1548 = vmatpush.msra.mxu0 0.0
        %1549 = vmatpush.msra.mxu0 0.0
        %1550 = vmatpush.msra.mxu0 0.0
        %1551 = vmatpush.msra.mxu0 0.0
        %1552 = vmatpush.msra.mxu0 %v1519
        %1553 = vmatpush.msra.mxu0 %v1518
        %1554 = vmatpush.msra.mxu0 %v1517
        %1555 = vmatpush.msra.mxu0 %v1516
        %1556 = vmatmul.f32.gmra.mxu0 %v1535
        %v1557 = vpop.f32.mrf.mxu0
        %v1558 = vadd.f32 %v1532, %v1557
        %1559 = vmatmul.f32.gmra.mxu0 %v1538
        %v1560 = vpop.f32.mrf.mxu0
        %v1561 = vadd.f32 %v1532, %v1560
        %1562 = vdwg.mxu0
        %v1564 = vperm.slane %v1525, 0
        %v1567 = vsel %vm818, %v802, 0
        %1569 = vmatpush.msra.mxu0 0.0
        %1570 = vmatpush.msra.mxu0 0.0
        %1571 = vmatpush.msra.mxu0 0.0
        %1572 = vmatpush.msra.mxu0 0.0
        %1573 = vmatpush.msra.mxu0 0.0
        %1574 = vmatpush.msra.mxu0 0.0
        %1575 = vmatpush.msra.mxu0 0.0
        %1576 = vmatpush.msra.mxu0 0.0
        %1577 = vmatpush.msra.mxu0 0.0
        %1578 = vmatpush.msra.mxu0 0.0
        %1579 = vmatpush.msra.mxu0 0.0
        %1580 = vmatpush.msra.mxu0 0.0
        %1581 = vmatpush.msra.mxu0 %v1524
        %1582 = vmatpush.msra.mxu0 %v1523
        %1583 = vmatpush.msra.mxu0 %v1522
        %1584 = vmatpush.msra.mxu0 %v1521
        %1585 = vmatmul.f32.gmra.mxu0 %v1567
        %v1586 = vpop.f32.mrf.mxu0
        %v1587 = vadd.f32 %v1564, %v1586
        %1588 = vdwg.mxu0
        %v1590 = vsel %vm854, %v1558, 0
        %v1593 = vsel %vm854, %v1561, 0
        %v1596 = vsel %vm854, %v1587, 0
        %1598 = vmatpush.xpose.msra.mxu0 0.0
        %1599 = vmatpush.xpose.msra.mxu0 0.0
        %1600 = vmatpush.xpose.msra.mxu0 0.0
        %1601 = vmatpush.xpose.msra.mxu0 0.0
        %1602 = vmatpush.xpose.msra.mxu0 0.0
        %1603 = vmatpush.xpose.msra.mxu0 0.0
        %1604 = vmatpush.xpose.msra.mxu0 0.0
        %1605 = vmatpush.xpose.msra.mxu0 0.0
        %1606 = vmatpush.xpose.msra.mxu0 0.0
        %1607 = vmatpush.xpose.msra.mxu0 0.0
        %1608 = vmatpush.xpose.msra.mxu0 0.0
        %1609 = vmatpush.xpose.msra.mxu0 0.0
        %1610 = vmatpush.xpose.msra.mxu0 0.0
        %1611 = vmatpush.xpose.msra.mxu0 0.0
        %1612 = vmatpush.xpose.msra.mxu0 0.0
        %1613 = vmatpush.xpose.msra.mxu0 %v1596
        %1614 = vmatmul.f32.gmra.mxu0 %v1590
        %v1615 = vpop.f32.mrf.mxu0
        %v1616 = vadd.f32 0.0, %v1615
        %1617 = vmatmul.f32.gmra.mxu0 %v1593
        %v1618 = vpop.f32.mrf.mxu0
        %v1619 = vadd.f32 0.0, %v1618
        %1620 = vdwg.mxu0
        %v1621 = vmul.f32 %v1616, 0.35355338
        %v1622 = vmul.f32 %v1619, 0.35355338
        %vm1623 = vcmp.gt.f32.partialorder %v804, 0.5
        %v1624 = vsel %vm1623, 1, 0
        %v1625 = vperm.slane %v1624, 0
        %vm1626 = vcmp.eq.s32.totalorder %v1625, 1
        %v1627 = vsel %vm1626, -1e+09, %v1621
        %v1628 = vsel %vm1626, -1e+09, %v1622
        %v1629 = vsel %vm854, %v1627, -inf
        %1630 = vmax.xlane.f32.xlu0 %v1629
        %v1631 = vpop.xlane.xlu0 %1630
        %v1632 = vsel %vm854, %v1628, -inf
        %1633 = vmax.xlane.f32.xlu0 %v1632
        %v1634 = vpop.xlane.xlu0 %1633
        %v1635 = vsub.f32 %v1627, %v1631
        %v1636 = vsub.f32 %v1628, %v1634
        %v1637 = vmul.f32 %v1635, 1.442695
        %v1638 = vpow.pop %v1637
        %v1639 = vmul.f32 %v1636, 1.442695
        %v1640 = vpow.pop %v1639
        %v1641 = vsel %vm854, %v1638, 0.0
        %1642 = vadd.xlane.f32.xlu0 %v1641
        %v1643 = vpop.xlane.xlu0 %1642
        %v1644 = vsel %vm854, %v1640, 0.0
        %1645 = vadd.xlane.f32.xlu0 %v1644
        %v1646 = vpop.xlane.xlu0 %1645
        %v1647 = vrcp.pop %v1643
        %v1648 = vmul.f32 %v1643, %v1647
        %v1649 = vsub.f32 1.0, %v1648
        %v1650 = vmul.f32 %v1647, %v1649
        %v1651 = vadd.f32 %v1647, %v1650
        %vm1652 = vweird.f32 %v1643
        %vm1653 = vweird.f32 %v1647
        %vm1654 = vmor %vm1652, %vm1653
        %v1655 = vsel %vm1654, %v1647, %v1651
        %v1656 = vand.u32 2147483647, %v1643
        %vm1657 = vcmp.eq.f32.partialorder %v1656, 8.507059e+37
        %v1658 = vand.u32 %v1643, 2147483648
        %v1659 = vor.u32 1.1754944e-38, %v1658
        %v1660 = vsel %vm1657, %v1659, %v1655
        %v1661 = vmul.f32 %v1638, %v1660
        %v1662 = vrcp.pop %v1646
        %v1663 = vmul.f32 %v1646, %v1662
        %v1664 = vsub.f32 1.0, %v1663
        %v1665 = vmul.f32 %v1662, %v1664
        %v1666 = vadd.f32 %v1662, %v1665
        %vm1667 = vweird.f32 %v1646
        %vm1668 = vweird.f32 %v1662
        %vm1669 = vmor %vm1667, %vm1668
        %v1670 = vsel %vm1669, %v1662, %v1666
        %v1671 = vand.u32 2147483647, %v1646
        %vm1672 = vcmp.eq.f32.partialorder %v1671, 8.507059e+37
        %v1673 = vand.u32 %v1646, 2147483648
        %v1674 = vor.u32 1.1754944e-38, %v1673
        %v1675 = vsel %vm1672, %v1674, %v1670
        %v1676 = vmul.f32 %v1640, %v1675
        %1677 = vrot.lane.b32.xlu0 %v1587, 96
        %v1678 = vpop.permute.xlu0 %1677
        %v1681 = vsel %vm854, %v1661, 0
        %v1684 = vsel %vm854, %v1676, 0
        %1686 = vmatpush.msra.mxu0 0.0
        %1687 = vmatpush.msra.mxu0 0.0
        %1688 = vmatpush.msra.mxu0 0.0
        %1689 = vmatpush.msra.mxu0 0.0
        %1690 = vmatpush.msra.mxu0 0.0
        %1691 = vmatpush.msra.mxu0 0.0
        %1692 = vmatpush.msra.mxu0 0.0
        %1693 = vmatpush.msra.mxu0 0.0
        %1694 = vmatpush.msra.mxu0 0.0
        %1695 = vmatpush.msra.mxu0 0.0
        %1696 = vmatpush.msra.mxu0 0.0
        %1697 = vmatpush.msra.mxu0 0.0
        %1698 = vmatpush.msra.mxu0 0.0
        %1699 = vmatpush.msra.mxu0 0.0
        %1700 = vmatpush.msra.mxu0 0.0
        %1701 = vmatpush.msra.mxu0 %v1678
        %1702 = vmatmul.f32.gmra.mxu0 %v1681
        %v1703 = vpop.f32.mrf.mxu0
        %v1704 = vadd.f32 0.0, %v1703
        %1705 = vmatmul.f32.gmra.mxu0 %v1684
        %v1706 = vpop.f32.mrf.mxu0
        %v1707 = vadd.f32 0.0, %v1706
        %1708 = vdwg.mxu0
        %1709 = vrot.lane.b32.xlu0 %v1558, 120
        %v1710 = vpop.permute.xlu0 %1709
        %1711 = vrot.lane.b32.xlu0 %v1561, 120
        %v1712 = vpop.permute.xlu0 %1711
        %1713 = vrot.lane.b32.xlu0 %v1587, 120
        %v1714 = vpop.permute.xlu0 %1713
        %v1715 = vsel %vm854, %v1710, 0
        %v1717 = vsel %vm854, %v1712, 0
        %v1719 = vsel %vm854, %v1714, 0
        %1721 = vmatpush.xpose.msra.mxu0 0.0
        %1722 = vmatpush.xpose.msra.mxu0 0.0
        %1723 = vmatpush.xpose.msra.mxu0 0.0
        %1724 = vmatpush.xpose.msra.mxu0 0.0
        %1725 = vmatpush.xpose.msra.mxu0 0.0
        %1726 = vmatpush.xpose.msra.mxu0 0.0
        %1727 = vmatpush.xpose.msra.mxu0 0.0
        %1728 = vmatpush.xpose.msra.mxu0 0.0
        %1729 = vmatpush.xpose.msra.mxu0 0.0
        %1730 = vmatpush.xpose.msra.mxu0 0.0
        %1731 = vmatpush.xpose.msra.mxu0 0.0
        %1732 = vmatpush.xpose.msra.mxu0 0.0
        %1733 = vmatpush.xpose.msra.mxu0 0.0
        %1734 = vmatpush.xpose.msra.mxu0 0.0
        %1735 = vmatpush.xpose.msra.mxu0 0.0
        %1736 = vmatpush.xpose.msra.mxu0 %v1719
        %1737 = vmatmul.f32.gmra.mxu0 %v1715
        %v1738 = vpop.f32.mrf.mxu0
        %v1739 = vadd.f32 0.0, %v1738
        %1740 = vmatmul.f32.gmra.mxu0 %v1717
        %v1741 = vpop.f32.mrf.mxu0
        %v1742 = vadd.f32 0.0, %v1741
        %1743 = vdwg.mxu0
        %v1744 = vmul.f32 %v1739, 0.35355338
        %v1745 = vmul.f32 %v1742, 0.35355338
        %v1746 = vsel %vm1626, -1e+09, %v1744
        %v1747 = vsel %vm1626, -1e+09, %v1745
        %v1748 = vsel %vm854, %v1746, -inf
        %1749 = vmax.xlane.f32.xlu0 %v1748
        %v1750 = vpop.xlane.xlu0 %1749
        %v1751 = vsel %vm854, %v1747, -inf
        %1752 = vmax.xlane.f32.xlu0 %v1751
        %v1753 = vpop.xlane.xlu0 %1752
        %v1754 = vsub.f32 %v1746, %v1750
        %v1755 = vsub.f32 %v1747, %v1753
        %v1756 = vmul.f32 %v1754, 1.442695
        %v1757 = vpow.pop %v1756
        %v1758 = vmul.f32 %v1755, 1.442695
        %v1759 = vpow.pop %v1758
        %v1760 = vsel %vm854, %v1757, 0.0
        %1761 = vadd.xlane.f32.xlu0 %v1760
        %v1762 = vpop.xlane.xlu0 %1761
        %v1763 = vsel %vm854, %v1759, 0.0
        %1764 = vadd.xlane.f32.xlu0 %v1763
        %v1765 = vpop.xlane.xlu0 %1764
        %v1766 = vrcp.pop %v1762
        %v1767 = vmul.f32 %v1762, %v1766
        %v1768 = vsub.f32 1.0, %v1767
        %v1769 = vmul.f32 %v1766, %v1768
        %v1770 = vadd.f32 %v1766, %v1769
        %vm1771 = vweird.f32 %v1762
        %vm1772 = vweird.f32 %v1766
        %vm1773 = vmor %vm1771, %vm1772
        %v1774 = vsel %vm1773, %v1766, %v1770
        %v1775 = vand.u32 2147483647, %v1762
        %vm1776 = vcmp.eq.f32.partialorder %v1775, 8.507059e+37
        %v1777 = vand.u32 %v1762, 2147483648
        %v1778 = vor.u32 1.1754944e-38, %v1777
        %v1779 = vsel %vm1776, %v1778, %v1774
        %v1780 = vmul.f32 %v1757, %v1779
        %v1781 = vrcp.pop %v1765
        %v1782 = vmul.f32 %v1765, %v1781
        %v1783 = vsub.f32 1.0, %v1782
        %v1784 = vmul.f32 %v1781, %v1783
        %v1785 = vadd.f32 %v1781, %v1784
        %vm1786 = vweird.f32 %v1765
        %vm1787 = vweird.f32 %v1781
        %vm1788 = vmor %vm1786, %vm1787
        %v1789 = vsel %vm1788, %v1781, %v1785
        %v1790 = vand.u32 2147483647, %v1765
        %vm1791 = vcmp.eq.f32.partialorder %v1790, 8.507059e+37
        %v1792 = vand.u32 %v1765, 2147483648
        %v1793 = vor.u32 1.1754944e-38, %v1792
        %v1794 = vsel %vm1791, %v1793, %v1789
        %v1795 = vmul.f32 %v1759, %v1794
        %1796 = vrot.lane.b32.xlu0 %v1587, 88
        %v1797 = vpop.permute.xlu0 %1796
        %v1800 = vsel %vm854, %v1780, 0
        %v1803 = vsel %vm854, %v1795, 0
        %1805 = vmatpush.msra.mxu0 0.0
        %1806 = vmatpush.msra.mxu0 0.0
        %1807 = vmatpush.msra.mxu0 0.0
        %1808 = vmatpush.msra.mxu0 0.0
        %1809 = vmatpush.msra.mxu0 0.0
        %1810 = vmatpush.msra.mxu0 0.0
        %1811 = vmatpush.msra.mxu0 0.0
        %1812 = vmatpush.msra.mxu0 0.0
        %1813 = vmatpush.msra.mxu0 0.0
        %1814 = vmatpush.msra.mxu0 0.0
        %1815 = vmatpush.msra.mxu0 0.0
        %1816 = vmatpush.msra.mxu0 0.0
        %1817 = vmatpush.msra.mxu0 0.0
        %1818 = vmatpush.msra.mxu0 0.0
        %1819 = vmatpush.msra.mxu0 0.0
        %1820 = vmatpush.msra.mxu0 %v1797
        %1821 = vmatmul.f32.gmra.mxu0 %v1800
        %v1822 = vpop.f32.mrf.mxu0
        %v1823 = vadd.f32 0.0, %v1822
        %1824 = vmatmul.f32.gmra.mxu0 %v1803
        %v1825 = vpop.f32.mrf.mxu0
        %v1826 = vadd.f32 0.0, %v1825
        %1827 = vdwg.mxu0
        %1828 = vrot.lane.b32.xlu0 %v1558, 112
        %v1829 = vpop.permute.xlu0 %1828
        %1830 = vrot.lane.b32.xlu0 %v1561, 112
        %v1831 = vpop.permute.xlu0 %1830
        %1832 = vrot.lane.b32.xlu0 %v1587, 112
        %v1833 = vpop.permute.xlu0 %1832
        %v1834 = vsel %vm854, %v1829, 0
        %v1836 = vsel %vm854, %v1831, 0
        %v1838 = vsel %vm854, %v1833, 0
        %1840 = vmatpush.xpose.msra.mxu0 0.0
        %1841 = vmatpush.xpose.msra.mxu0 0.0
        %1842 = vmatpush.xpose.msra.mxu0 0.0
        %1843 = vmatpush.xpose.msra.mxu0 0.0
        %1844 = vmatpush.xpose.msra.mxu0 0.0
        %1845 = vmatpush.xpose.msra.mxu0 0.0
        %1846 = vmatpush.xpose.msra.mxu0 0.0
        %1847 = vmatpush.xpose.msra.mxu0 0.0
        %1848 = vmatpush.xpose.msra.mxu0 0.0
        %1849 = vmatpush.xpose.msra.mxu0 0.0
        %1850 = vmatpush.xpose.msra.mxu0 0.0
        %1851 = vmatpush.xpose.msra.mxu0 0.0
        %1852 = vmatpush.xpose.msra.mxu0 0.0
        %1853 = vmatpush.xpose.msra.mxu0 0.0
        %1854 = vmatpush.xpose.msra.mxu0 0.0
        %1855 = vmatpush.xpose.msra.mxu0 %v1838
        %1856 = vmatmul.f32.gmra.mxu0 %v1834
        %v1857 = vpop.f32.mrf.mxu0
        %v1858 = vadd.f32 0.0, %v1857
        %1859 = vmatmul.f32.gmra.mxu0 %v1836
        %v1860 = vpop.f32.mrf.mxu0
        %v1861 = vadd.f32 0.0, %v1860
        %1862 = vdwg.mxu0
        %v1863 = vmul.f32 %v1858, 0.35355338
        %v1864 = vmul.f32 %v1861, 0.35355338
        %v1865 = vsel %vm1626, -1e+09, %v1863
        %v1866 = vsel %vm1626, -1e+09, %v1864
        %v1867 = vsel %vm854, %v1865, -inf
        %1868 = vmax.xlane.f32.xlu0 %v1867
        %v1869 = vpop.xlane.xlu0 %1868
        %v1870 = vsel %vm854, %v1866, -inf
        %1871 = vmax.xlane.f32.xlu0 %v1870
        %v1872 = vpop.xlane.xlu0 %1871
        %v1873 = vsub.f32 %v1865, %v1869
        %v1874 = vsub.f32 %v1866, %v1872
        %v1875 = vmul.f32 %v1873, 1.442695
        %v1876 = vpow.pop %v1875
        %v1877 = vmul.f32 %v1874, 1.442695
        %v1878 = vpow.pop %v1877
        %v1879 = vsel %vm854, %v1876, 0.0
        %1880 = vadd.xlane.f32.xlu0 %v1879
        %v1881 = vpop.xlane.xlu0 %1880
        %v1882 = vsel %vm854, %v1878, 0.0
        %1883 = vadd.xlane.f32.xlu0 %v1882
        %v1884 = vpop.xlane.xlu0 %1883
        %v1885 = vrcp.pop %v1881
        %v1886 = vmul.f32 %v1881, %v1885
        %v1887 = vsub.f32 1.0, %v1886
        %v1888 = vmul.f32 %v1885, %v1887
        %v1889 = vadd.f32 %v1885, %v1888
        %vm1890 = vweird.f32 %v1881
        %vm1891 = vweird.f32 %v1885
        %vm1892 = vmor %vm1890, %vm1891
        %v1893 = vsel %vm1892, %v1885, %v1889
        %v1894 = vand.u32 2147483647, %v1881
        %vm1895 = vcmp.eq.f32.partialorder %v1894, 8.507059e+37
        %v1896 = vand.u32 %v1881, 2147483648
        %v1897 = vor.u32 1.1754944e-38, %v1896
        %v1898 = vsel %vm1895, %v1897, %v1893
        %v1899 = vmul.f32 %v1876, %v1898
        %v1900 = vrcp.pop %v1884
        %v1901 = vmul.f32 %v1884, %v1900
        %v1902 = vsub.f32 1.0, %v1901
        %v1903 = vmul.f32 %v1900, %v1902
        %v1904 = vadd.f32 %v1900, %v1903
        %vm1905 = vweird.f32 %v1884
        %vm1906 = vweird.f32 %v1900
        %vm1907 = vmor %vm1905, %vm1906
        %v1908 = vsel %vm1907, %v1900, %v1904
        %v1909 = vand.u32 2147483647, %v1884
        %vm1910 = vcmp.eq.f32.partialorder %v1909, 8.507059e+37
        %v1911 = vand.u32 %v1884, 2147483648
        %v1912 = vor.u32 1.1754944e-38, %v1911
        %v1913 = vsel %vm1910, %v1912, %v1908
        %v1914 = vmul.f32 %v1878, %v1913
        %1915 = vrot.lane.b32.xlu0 %v1587, 80
        %v1916 = vpop.permute.xlu0 %1915
        %v1919 = vsel %vm854, %v1899, 0
        %v1922 = vsel %vm854, %v1914, 0
        %1924 = vmatpush.msra.mxu0 0.0
        %1925 = vmatpush.msra.mxu0 0.0
        %1926 = vmatpush.msra.mxu0 0.0
        %1927 = vmatpush.msra.mxu0 0.0
        %1928 = vmatpush.msra.mxu0 0.0
        %1929 = vmatpush.msra.mxu0 0.0
        %1930 = vmatpush.msra.mxu0 0.0
        %1931 = vmatpush.msra.mxu0 0.0
        %1932 = vmatpush.msra.mxu0 0.0
        %1933 = vmatpush.msra.mxu0 0.0
        %1934 = vmatpush.msra.mxu0 0.0
        %1935 = vmatpush.msra.mxu0 0.0
        %1936 = vmatpush.msra.mxu0 0.0
        %1937 = vmatpush.msra.mxu0 0.0
        %1938 = vmatpush.msra.mxu0 0.0
        %1939 = vmatpush.msra.mxu0 %v1916
        %1940 = vmatmul.f32.gmra.mxu0 %v1919
        %v1941 = vpop.f32.mrf.mxu0
        %v1942 = vadd.f32 0.0, %v1941
        %1943 = vmatmul.f32.gmra.mxu0 %v1922
        %v1944 = vpop.f32.mrf.mxu0
        %v1945 = vadd.f32 0.0, %v1944
        %1946 = vdwg.mxu0
        %1947 = vrot.lane.b32.xlu0 %v1558, 104
        %v1948 = vpop.permute.xlu0 %1947
        %1949 = vrot.lane.b32.xlu0 %v1561, 104
        %v1950 = vpop.permute.xlu0 %1949
        %1951 = vrot.lane.b32.xlu0 %v1587, 104
        %v1952 = vpop.permute.xlu0 %1951
        %v1953 = vsel %vm854, %v1948, 0
        %v1955 = vsel %vm854, %v1950, 0
        %v1957 = vsel %vm854, %v1952, 0
        %1959 = vmatpush.xpose.msra.mxu0 0.0
        %1960 = vmatpush.xpose.msra.mxu0 0.0
        %1961 = vmatpush.xpose.msra.mxu0 0.0
        %1962 = vmatpush.xpose.msra.mxu0 0.0
        %1963 = vmatpush.xpose.msra.mxu0 0.0
        %1964 = vmatpush.xpose.msra.mxu0 0.0
        %1965 = vmatpush.xpose.msra.mxu0 0.0
        %1966 = vmatpush.xpose.msra.mxu0 0.0
        %1967 = vmatpush.xpose.msra.mxu0 0.0
        %1968 = vmatpush.xpose.msra.mxu0 0.0
        %1969 = vmatpush.xpose.msra.mxu0 0.0
        %1970 = vmatpush.xpose.msra.mxu0 0.0
        %1971 = vmatpush.xpose.msra.mxu0 0.0
        %1972 = vmatpush.xpose.msra.mxu0 0.0
        %1973 = vmatpush.xpose.msra.mxu0 0.0
        %1974 = vmatpush.xpose.msra.mxu0 %v1957
        %1975 = vmatmul.f32.gmra.mxu0 %v1953
        %v1976 = vpop.f32.mrf.mxu0
        %v1977 = vadd.f32 0.0, %v1976
        %1978 = vmatmul.f32.gmra.mxu0 %v1955
        %v1979 = vpop.f32.mrf.mxu0
        %v1980 = vadd.f32 0.0, %v1979
        %1981 = vdwg.mxu0
        %v1982 = vmul.f32 %v1977, 0.35355338
        %v1983 = vmul.f32 %v1980, 0.35355338
        %v1984 = vsel %vm1626, -1e+09, %v1982
        %v1985 = vsel %vm1626, -1e+09, %v1983
        %v1986 = vsel %vm854, %v1984, -inf
        %1987 = vmax.xlane.f32.xlu0 %v1986
        %v1988 = vpop.xlane.xlu0 %1987
        %v1989 = vsel %vm854, %v1985, -inf
        %1990 = vmax.xlane.f32.xlu0 %v1989
        %v1991 = vpop.xlane.xlu0 %1990
        %v1992 = vsub.f32 %v1984, %v1988
        %v1993 = vsub.f32 %v1985, %v1991
        %v1994 = vmul.f32 %v1992, 1.442695
        %v1995 = vpow.pop %v1994
        %v1996 = vmul.f32 %v1993, 1.442695
        %v1997 = vpow.pop %v1996
        %v1998 = vsel %vm854, %v1995, 0.0
        %1999 = vadd.xlane.f32.xlu0 %v1998
        %v2000 = vpop.xlane.xlu0 %1999
        %v2001 = vsel %vm854, %v1997, 0.0
        %2002 = vadd.xlane.f32.xlu0 %v2001
        %v2003 = vpop.xlane.xlu0 %2002
        %v2004 = vrcp.pop %v2000
        %v2005 = vmul.f32 %v2000, %v2004
        %v2006 = vsub.f32 1.0, %v2005
        %v2007 = vmul.f32 %v2004, %v2006
        %v2008 = vadd.f32 %v2004, %v2007
        %vm2009 = vweird.f32 %v2000
        %vm2010 = vweird.f32 %v2004
        %vm2011 = vmor %vm2009, %vm2010
        %v2012 = vsel %vm2011, %v2004, %v2008
        %v2013 = vand.u32 2147483647, %v2000
        %vm2014 = vcmp.eq.f32.partialorder %v2013, 8.507059e+37
        %v2015 = vand.u32 %v2000, 2147483648
        %v2016 = vor.u32 1.1754944e-38, %v2015
        %v2017 = vsel %vm2014, %v2016, %v2012
        %v2018 = vmul.f32 %v1995, %v2017
        %v2019 = vrcp.pop %v2003
        %v2020 = vmul.f32 %v2003, %v2019
        %v2021 = vsub.f32 1.0, %v2020
        %v2022 = vmul.f32 %v2019, %v2021
        %v2023 = vadd.f32 %v2019, %v2022
        %vm2024 = vweird.f32 %v2003
        %vm2025 = vweird.f32 %v2019
        %vm2026 = vmor %vm2024, %vm2025
        %v2027 = vsel %vm2026, %v2019, %v2023
        %v2028 = vand.u32 2147483647, %v2003
        %vm2029 = vcmp.eq.f32.partialorder %v2028, 8.507059e+37
        %v2030 = vand.u32 %v2003, 2147483648
        %v2031 = vor.u32 1.1754944e-38, %v2030
        %v2032 = vsel %vm2029, %v2031, %v2027
        %v2033 = vmul.f32 %v1997, %v2032
        %2034 = vrot.lane.b32.xlu0 %v1587, 72
        %v2035 = vpop.permute.xlu0 %2034
        %v2038 = vsel %vm854, %v2018, 0
        %v2041 = vsel %vm854, %v2033, 0
        %2043 = vmatpush.msra.mxu0 0.0
        %2044 = vmatpush.msra.mxu0 0.0
        %2045 = vmatpush.msra.mxu0 0.0
        %2046 = vmatpush.msra.mxu0 0.0
        %2047 = vmatpush.msra.mxu0 0.0
        %2048 = vmatpush.msra.mxu0 0.0
        %2049 = vmatpush.msra.mxu0 0.0
        %2050 = vmatpush.msra.mxu0 0.0
        %2051 = vmatpush.msra.mxu0 0.0
        %2052 = vmatpush.msra.mxu0 0.0
        %2053 = vmatpush.msra.mxu0 0.0
        %2054 = vmatpush.msra.mxu0 0.0
        %2055 = vmatpush.msra.mxu0 0.0
        %2056 = vmatpush.msra.mxu0 0.0
        %2057 = vmatpush.msra.mxu0 0.0
        %2058 = vmatpush.msra.mxu0 %v2035
        %2059 = vmatmul.f32.gmra.mxu0 %v2038
        %v2060 = vpop.f32.mrf.mxu0
        %v2061 = vadd.f32 0.0, %v2060
        %2062 = vmatmul.f32.gmra.mxu0 %v2041
        %v2063 = vpop.f32.mrf.mxu0
        %v2064 = vadd.f32 0.0, %v2063
        %2065 = vdwg.mxu0
        %2068 = vrot.lane.b32.xlu0 %v1823, 8
        %v2069 = vpop.permute.xlu0 %2068
        %2070 = vrot.lane.b32.xlu0 %v1826, 8
        %v2071 = vpop.permute.xlu0 %2070
        %2076 = vrot.lane.b32.xlu0 %v1942, 16
        %v2077 = vpop.permute.xlu0 %2076
        %2078 = vrot.lane.b32.xlu0 %v1945, 16
        %v2079 = vpop.permute.xlu0 %2078
        %2084 = vrot.lane.b32.xlu0 %v2061, 24
        %v2085 = vpop.permute.xlu0 %2084
        %2086 = vrot.lane.b32.xlu0 %v2064, 24
        %v2087 = vpop.permute.xlu0 %2086
        %v2090 = vsel %vm854, %v1704, %v2069
        %v2091 = vsel %vm854, %v1707, %v2071
        %v2092 = vsel %vm894, %v2090, %v2077
        %v2093 = vsel %vm894, %v2091, %v2079
        %v2094 = vsel %vm1384, %v2092, %v2085
        %v2095 = vsel %vm1384, %v2093, %v2087
        %v2097 = vperm.slane %v1530, 0
        %v2100 = vsel %vm818, %v2094, 0
        %v2103 = vsel %vm818, %v2095, 0
        %2105 = vmatpush.msra.mxu0 0.0
        %2106 = vmatpush.msra.mxu0 0.0
        %2107 = vmatpush.msra.mxu0 0.0
        %2108 = vmatpush.msra.mxu0 0.0
        %2109 = vmatpush.msra.mxu0 0.0
        %2110 = vmatpush.msra.mxu0 0.0
        %2111 = vmatpush.msra.mxu0 0.0
        %2112 = vmatpush.msra.mxu0 0.0
        %2113 = vmatpush.msra.mxu0 0.0
        %2114 = vmatpush.msra.mxu0 0.0
        %2115 = vmatpush.msra.mxu0 0.0
        %2116 = vmatpush.msra.mxu0 0.0
        %2117 = vmatpush.msra.mxu0 %v1529
        %2118 = vmatpush.msra.mxu0 %v1528
        %2119 = vmatpush.msra.mxu0 %v1527
        %2120 = vmatpush.msra.mxu0 %v1526
        %2121 = vmatmul.f32.gmra.mxu0 %v2100
        %v2122 = vpop.f32.mrf.mxu0
        %v2123 = vadd.f32 %v2097, %v2122
        %2124 = vmatmul.f32.gmra.mxu0 %v2103
        %v2125 = vpop.f32.mrf.mxu0
        %v2126 = vadd.f32 %v2097, %v2125
        %2127 = vdwg.mxu0
        %v2128 = vadd.f32 %v1514, %v2123
        %v2129 = vadd.f32 %v1515, %v2126
        %v2130 = vld [vmem:[%s16] sm:$0x1]
        %v2131 = vld [vmem:[%s17] sm:$0x1]
        %v2132 = vsel %vm818, %v2128, 0.0
        %2133 = vadd.xlane.f32.xlu0 %v2132
        %v2134 = vpop.xlane.xlu0 %2133
        %v2135 = vsel %vm818, %v2129, 0.0
        %2136 = vadd.xlane.f32.xlu0 %v2135
        %v2137 = vpop.xlane.xlu0 %2136
        %v2138 = vmul.f32 %v2134, %v1435
        %v2139 = vmul.f32 %v2137, %v1435
        %v2140 = vsub.f32 %v2128, %v2138
        %v2141 = vsub.f32 %v2129, %v2139
        %v2142 = vmul.f32 %v2140, %v2140
        %v2143 = vmul.f32 %v2141, %v2141
        %v2144 = vsel %vm818, %v2142, 0.0
        %2145 = vadd.xlane.f32.xlu0 %v2144
        %v2146 = vpop.xlane.xlu0 %2145
        %v2147 = vsel %vm818, %v2143, 0.0
        %2148 = vadd.xlane.f32.xlu0 %v2147
        %v2149 = vpop.xlane.xlu0 %2148
        %v2150 = vmul.f32 %v2146, 0.032258064
        %v2151 = vmul.f32 %v2149, 0.032258064
        %v2153 = vperm.slane %v2130, 0
        %v2155 = vmul.f32 %v2153, %v2140
        %v2156 = vmul.f32 %v2153, %v2141
        %v2157 = vrsqrt.pop %v2150
        %v2158 = vmul.f32 %v2157, %v2150
        %v2159 = vmul.f32 %v2158, %v2157
        %v2160 = vmul.f32 0.5, %v2159
        %v2161 = vsub.f32 1.5, %v2160
        %v2162 = vmul.f32 %v2157, %v2161
        %v2163 = vmul.f32 %v2150, %v2162
        %vm2164 = vcmp.eq.f32.partialorder %v2150, inf
        %v2165 = vsel %vm2164, %v2150, %v2163
        %vm2166 = vcmp.eq.f32.partialorder %v2150, 0.0
        %v2167 = vand.u32 %v2150, 2147483648
        %v2168 = vsel %vm2166, %v2167, %v2165
        %v2169 = vrsqrt.pop %v2151
        %v2170 = vmul.f32 %v2169, %v2151
        %v2171 = vmul.f32 %v2170, %v2169
        %v2172 = vmul.f32 0.5, %v2171
        %v2173 = vsub.f32 1.5, %v2172
        %v2174 = vmul.f32 %v2169, %v2173
        %v2175 = vmul.f32 %v2151, %v2174
        %vm2176 = vcmp.eq.f32.partialorder %v2151, inf
        %v2177 = vsel %vm2176, %v2151, %v2175
        %vm2178 = vcmp.eq.f32.partialorder %v2151, 0.0
        %v2179 = vand.u32 %v2151, 2147483648
        %v2180 = vsel %vm2178, %v2179, %v2177
        %v2181 = vadd.f32 %v2168, 1e-06
        %v2182 = vadd.f32 %v2180, 1e-06
        %v2183 = vrcp.pop %v2181
        %v2184 = vmul.f32 %v2181, %v2183
        %v2185 = vsub.f32 1.0, %v2184
        %v2186 = vmul.f32 %v2183, %v2185
        %v2187 = vadd.f32 %v2183, %v2186
        %vm2188 = vweird.f32 %v2181
        %vm2189 = vweird.f32 %v2183
        %vm2190 = vmor %vm2188, %vm2189
        %v2191 = vsel %vm2190, %v2183, %v2187
        %v2192 = vand.u32 2147483647, %v2181
        %vm2193 = vcmp.eq.f32.partialorder %v2192, 8.507059e+37
        %v2194 = vand.u32 %v2181, 2147483648
        %v2195 = vor.u32 1.1754944e-38, %v2194
        %v2196 = vsel %vm2193, %v2195, %v2191
        %v2197 = vmul.f32 %v2155, %v2196
        %v2198 = vrcp.pop %v2182
        %v2199 = vmul.f32 %v2182, %v2198
        %v2200 = vsub.f32 1.0, %v2199
        %v2201 = vmul.f32 %v2198, %v2200
        %v2202 = vadd.f32 %v2198, %v2201
        %vm2203 = vweird.f32 %v2182
        %vm2204 = vweird.f32 %v2198
        %vm2205 = vmor %vm2203, %vm2204
        %v2206 = vsel %vm2205, %v2198, %v2202
        %v2207 = vand.u32 2147483647, %v2182
        %vm2208 = vcmp.eq.f32.partialorder %v2207, 8.507059e+37
        %v2209 = vand.u32 %v2182, 2147483648
        %v2210 = vor.u32 1.1754944e-38, %v2209
        %v2211 = vsel %vm2208, %v2210, %v2206
        %v2212 = vmul.f32 %v2156, %v2211
        %v2214 = vperm.slane %v2131, 0
        %v2216 = vadd.f32 %v2197, %v2214
        %v2217 = vadd.f32 %v2212, %v2214
        %v2218 = vld [vmem:[#allocation2] sm:$0xff]
        %v2219 = vld [vmem:[#allocation2 + $0x8] sm:$0xff]
        %v2220 = vld [vmem:[#allocation2 + $0x10] sm:$0xff]
        %v2221 = vld [vmem:[#allocation2 + $0x18] sm:$0xff]
        %v2222 = vld [vmem:[%s19] sm:$0x1]
        %v2223 = vld [vmem:[%s20] sm:$0xff]
        %v2224 = vld [vmem:[%s20 + $0x8] sm:$0xff]
        %v2225 = vld [vmem:[%s20 + $0x10] sm:$0xff]
        %v2226 = vld [vmem:[%s20 + $0x18] sm:$0xff]
        %v2227 = vld [vmem:[%s20 + $0x20] sm:$0xff]
        %v2228 = vld [vmem:[%s20 + $0x28] sm:$0xff]
        %v2229 = vld [vmem:[%s20 + $0x30] sm:$0xff]
        %v2230 = vld [vmem:[%s20 + $0x38] sm:$0xff]
        %v2231 = vld [vmem:[%s21] sm:$0x1]
        %v2233 = vperm.slane %v2222, 0
        %v2236 = vsel %vm818, %v2216, 0
        %v2239 = vsel %vm818, %v2217, 0
        %2241 = vmatpush.msra.mxu0 0.0
        %2242 = vmatpush.msra.mxu0 0.0
        %2243 = vmatpush.msra.mxu0 0.0
        %2244 = vmatpush.msra.mxu0 0.0
        %2245 = vmatpush.msra.mxu0 0.0
        %2246 = vmatpush.msra.mxu0 0.0
        %2247 = vmatpush.msra.mxu0 0.0
        %2248 = vmatpush.msra.mxu0 0.0
        %2249 = vmatpush.msra.mxu0 0.0
        %2250 = vmatpush.msra.mxu0 0.0
        %2251 = vmatpush.msra.mxu0 0.0
        %2252 = vmatpush.msra.mxu0 0.0
        %2253 = vmatpush.msra.mxu0 %v2221
        %2254 = vmatpush.msra.mxu0 %v2220
        %2255 = vmatpush.msra.mxu0 %v2219
        %2256 = vmatpush.msra.mxu0 %v2218
        %2257 = vmatmul.f32.gmra.mxu0 %v2236
        %v2258 = vpop.f32.mrf.mxu0
        %v2259 = vadd.f32 %v2233, %v2258
        %2260 = vmatmul.f32.gmra.mxu0 %v2239
        %v2261 = vpop.f32.mrf.mxu0
        %v2262 = vadd.f32 %v2233, %v2261
        %2263 = vdwg.mxu0
        %v2264 = vmax.f32 %v2259, 0.0
        %v2265 = vmax.f32 %v2262, 0.0
        %v2267 = vperm.slane %v2231, 0
        %vm2269 = vcmask 523264
        %v2271 = vsel %vm2269, %v2264, 0
        %v2274 = vsel %vm2269, %v2265, 0
        %2276 = vmatpush.msra.mxu0 0.0
        %2277 = vmatpush.msra.mxu0 0.0
        %2278 = vmatpush.msra.mxu0 0.0
        %2279 = vmatpush.msra.mxu0 0.0
        %2280 = vmatpush.msra.mxu0 0.0
        %2281 = vmatpush.msra.mxu0 0.0
        %2282 = vmatpush.msra.mxu0 0.0
        %2283 = vmatpush.msra.mxu0 0.0
        %2284 = vmatpush.msra.mxu0 %v2230
        %2285 = vmatpush.msra.mxu0 %v2229
        %2286 = vmatpush.msra.mxu0 %v2228
        %2287 = vmatpush.msra.mxu0 %v2227
        %2288 = vmatpush.msra.mxu0 %v2226
        %2289 = vmatpush.msra.mxu0 %v2225
        %2290 = vmatpush.msra.mxu0 %v2224
        %2291 = vmatpush.msra.mxu0 %v2223
        %2292 = vmatmul.f32.gmra.mxu0 %v2271
        %v2293 = vpop.f32.mrf.mxu0
        %v2294 = vadd.f32 %v2267, %v2293
        %2295 = vmatmul.f32.gmra.mxu0 %v2274
        %v2296 = vpop.f32.mrf.mxu0
        %v2297 = vadd.f32 %v2267, %v2296
        %2298 = vdwg.mxu0
        %v2299 = vadd.f32 %v2216, %v2294
        %v2300 = vadd.f32 %v2217, %v2297
        %v2301 = vld [vmem:[%s22] sm:$0x1]
        %v2302 = vld [vmem:[%s23] sm:$0x1]
        %v2303 = vsel %vm818, %v2299, 0.0
        %2304 = vadd.xlane.f32.xlu0 %v2303
        %v2305 = vpop.xlane.xlu0 %2304
        %v2306 = vsel %vm818, %v2300, 0.0
        %2307 = vadd.xlane.f32.xlu0 %v2306
        %v2308 = vpop.xlane.xlu0 %2307
        %v2309 = vmul.f32 %v2305, %v1435
        %v2310 = vmul.f32 %v2308, %v1435
        %v2311 = vsub.f32 %v2299, %v2309
        %v2312 = vsub.f32 %v2300, %v2310
        %v2313 = vmul.f32 %v2311, %v2311
        %v2314 = vmul.f32 %v2312, %v2312
        %v2315 = vsel %vm818, %v2313, 0.0
        %2316 = vadd.xlane.f32.xlu0 %v2315
        %v2317 = vpop.xlane.xlu0 %2316
        %v2318 = vsel %vm818, %v2314, 0.0
        %2319 = vadd.xlane.f32.xlu0 %v2318
        %v2320 = vpop.xlane.xlu0 %2319
        %v2321 = vmul.f32 %v2317, 0.032258064
        %v2322 = vmul.f32 %v2320, 0.032258064
        %v2324 = vperm.slane %v2301, 0
        %v2326 = vmul.f32 %v2324, %v2311
        %v2327 = vmul.f32 %v2324, %v2312
        %v2328 = vrsqrt.pop %v2321
        %v2329 = vmul.f32 %v2328, %v2321
        %v2330 = vmul.f32 %v2329, %v2328
        %v2331 = vmul.f32 0.5, %v2330
        %v2332 = vsub.f32 1.5, %v2331
        %v2333 = vmul.f32 %v2328, %v2332
        %v2334 = vmul.f32 %v2321, %v2333
        %vm2335 = vcmp.eq.f32.partialorder %v2321, inf
        %v2336 = vsel %vm2335, %v2321, %v2334
        %vm2337 = vcmp.eq.f32.partialorder %v2321, 0.0
        %v2338 = vand.u32 %v2321, 2147483648
        %v2339 = vsel %vm2337, %v2338, %v2336
        %v2340 = vrsqrt.pop %v2322
        %v2341 = vmul.f32 %v2340, %v2322
        %v2342 = vmul.f32 %v2341, %v2340
        %v2343 = vmul.f32 0.5, %v2342
        %v2344 = vsub.f32 1.5, %v2343
        %v2345 = vmul.f32 %v2340, %v2344
        %v2346 = vmul.f32 %v2322, %v2345
        %vm2347 = vcmp.eq.f32.partialorder %v2322, inf
        %v2348 = vsel %vm2347, %v2322, %v2346
        %vm2349 = vcmp.eq.f32.partialorder %v2322, 0.0
        %v2350 = vand.u32 %v2322, 2147483648
        %v2351 = vsel %vm2349, %v2350, %v2348
        %v2352 = vadd.f32 %v2339, 1e-06
        %v2353 = vadd.f32 %v2351, 1e-06
        %v2354 = vrcp.pop %v2352
        %v2355 = vmul.f32 %v2352, %v2354
        %v2356 = vsub.f32 1.0, %v2355
        %v2357 = vmul.f32 %v2354, %v2356
        %v2358 = vadd.f32 %v2354, %v2357
        %vm2359 = vweird.f32 %v2352
        %vm2360 = vweird.f32 %v2354
        %vm2361 = vmor %vm2359, %vm2360
        %v2362 = vsel %vm2361, %v2354, %v2358
        %v2363 = vand.u32 2147483647, %v2352
        %vm2364 = vcmp.eq.f32.partialorder %v2363, 8.507059e+37
        %v2365 = vand.u32 %v2352, 2147483648
        %v2366 = vor.u32 1.1754944e-38, %v2365
        %v2367 = vsel %vm2364, %v2366, %v2362
        %v2368 = vmul.f32 %v2326, %v2367
        %v2369 = vrcp.pop %v2353
        %v2370 = vmul.f32 %v2353, %v2369
        %v2371 = vsub.f32 1.0, %v2370
        %v2372 = vmul.f32 %v2369, %v2371
        %v2373 = vadd.f32 %v2369, %v2372
        %vm2374 = vweird.f32 %v2353
        %vm2375 = vweird.f32 %v2369
        %vm2376 = vmor %vm2374, %vm2375
        %v2377 = vsel %vm2376, %v2369, %v2373
        %v2378 = vand.u32 2147483647, %v2353
        %vm2379 = vcmp.eq.f32.partialorder %v2378, 8.507059e+37
        %v2380 = vand.u32 %v2353, 2147483648
        %v2381 = vor.u32 1.1754944e-38, %v2380
        %v2382 = vsel %vm2379, %v2381, %v2377
        %v2383 = vmul.f32 %v2327, %v2382
        %v2385 = vperm.slane %v2302, 0
        %v2387 = vadd.f32 %v2368, %v2385
        %v2388 = vadd.f32 %v2383, %v2385
        %2389 = vst.msk [vmem:[%s799] sm:$0xff] %vm818, %v2387
        %2390 = vst.msk [vmem:[%s799 + $0x8] sm:$0xff] %vm818, %v2388
        %p2391 = scmp.lt.s32.totalorder %s36, 1
        %s2392 = scalar_select %p2391, %s36, 1
        %s2393 = smul.addr %s2392, 2
        %s2394 = smul.addr %s2393, 8
        %s2395 = scalar_lea.vmem %s24, %s2394
        // Predicated region
        $region121: #{net_forward.11} parent=115 // pred_check
          %p2396 = pneg %p578
        $region122: #{net_forward.11} parent=115 // pred_check_branch
          %2398 = sbr.rel (%p2396) target = $region124
        $region123: #{net_forward.11} parent=115 // pred_region
          _
        $region124: #{net_forward.11} parent=115 // pred_fallthru
          _
      $region116: #{net_forward.11} parent=5 // pred_fallthru
        _
      %p2399 = scmp.le.s32.totalorder 2, %s31
      // Predicated region
      $region125: #{net_forward.11} parent=5 // pred_check
        %p2400 = pneg %p2399
      $region126: #{net_forward.11} parent=5 // pred_check_branch
        %2402 = sbr.rel (%p2400) target = $region128
      $region127: #{net_forward.11} parent=5 // pred_region
        %s2403 = ssub.s32 %s31, 2
        // Predicated region
        $region129: #{net_forward.11} parent=127 // pred_check
          %p2404 = pneg %p584
        $region130: #{net_forward.11} parent=127 // pred_check_branch
          %2406 = sbr.rel (%p2404) target = $region132
        $region131: #{net_forward.11} parent=127 // pred_region
          %p2407 = scmp.lt.s32.totalorder %s37, 1
          %s2408 = scalar_select %p2407, %s37, 1
          %s2409 = smul.addr %s2408, 2
          %s2410 = smul.addr %s2409, 8
          %s2411 = scalar_lea.vmem %s24, %s2410
        $region132: #{net_forward.11} parent=127 // pred_fallthru
          _
      $region128: #{net_forward.11} parent=5 // pred_fallthru
        _
    $region6: #{net_forward.11} parent=1 // loop_footer
      %s35 = sadd.s32 1, %s31
    $region7: #{net_forward.11} parent=1 // loop_footer_branch
      %30 = sbr.rel target = $region3
    $region8: #{net_forward.11} parent=1 // loop_exit
      _
    %2412 = vsyncpa [#allocation3], 1
    %s2413 = scalar_lea.sflag [#allocation3], 1
    %2414 = vsyncpa %s2413, 1

// kernel: net_forward.13
$region0: #{net_forward.13}
  #allocation0 [shape = 'u32[]', space=smem, size = 0x4, offset = 0x4, fixed_abs, tag = 'smem constant byte address 0x4 - core index']
  #allocation1 [shape = 'u32[72,128]{1,0:T(1,128)}', space=vmem, size = 0x9000, scoped, tag = 'internal scratch']
  #allocation2 [shape = 'f32[1,1]{1,0:T(1,128)S(1)}', space=vmem, size = 0x200, scoped, tag = 'scoped memory for net_forward.13']
  #allocation3 [shape = 'f32[1,1]{1,0:T(1,128)S(1)}', space=vmem, size = 0x200, scoped, tag = 'scoped memory for net_forward.13']
  %s0 = inlined_call_operand.vmem [shape: f32[2,8,32], index: 0, kind: input, shape index: {}]
  %s1 = inlined_call_operand.vmem [shape: f32[2,1,8], index: 1, kind: input, shape index: {}]
  %s2 = inlined_call_operand.vmem [shape: f32[2,16,32], index: 2, kind: input, shape index: {}]
  %s3 = inlined_call_operand.vmem [shape: f32[2,1,16], index: 3, kind: input, shape index: {}]
  %s4 = inlined_call_operand.vmem [shape: f32[32,16], index: 4, kind: input, shape index: {}]
  %s5 = inlined_call_operand.vmem [shape: f32[1,16], index: 5, kind: input, shape index: {}]
  %s6 = inlined_call_operand.vmem [shape: f32[16,1], index: 6, kind: input, shape index: {}]
  %s7 = inlined_call_operand.<no memory space> [shape: f32[1,1], index: 7, kind: input, shape index: {}]
  %s8 = inlined_call_operand.vmem [shape: f32[32,64], index: 8, kind: input, shape index: {}]
  %s9 = inlined_call_operand.vmem [shape: f32[1,64], index: 9, kind: input, shape index: {}]
  %s10 = inlined_call_operand.vmem [shape: f32[32,16], index: 10, kind: input, shape index: {}]
  %s11 = inlined_call_operand.vmem [shape: f32[1,16], index: 11, kind: input, shape index: {}]
  %s12 = inlined_call_operand.vmem [shape: f32[16,1], index: 12, kind: input, shape index: {}]
  %s13 = inlined_call_operand.<no memory space> [shape: f32[1,1], index: 13, kind: input, shape index: {}]
  %s14 = inlined_call_operand.vmem [shape: f32[32,64], index: 14, kind: input, shape index: {}]
  %s15 = inlined_call_operand.vmem [shape: f32[1,64], index: 15, kind: input, shape index: {}]
  %s16 = inlined_call_operand.vmem [shape: f32[1,64], index: 16, kind: input, shape index: {}]
  %s17 = inlined_call_operand.vmem [shape: f32[1,64], index: 17, kind: input, shape index: {}]
  %s18 = inlined_call_operand.vmem [shape: f32[64,10], index: 18, kind: input, shape index: {}]
  %s19 = inlined_call_operand.vmem [shape: f32[1,10], index: 19, kind: input, shape index: {}]
  %s20 = inlined_call_operand.hbm [shape: f32[2,10], index: 20, kind: output, shape index: {}]
  %s21 = sld [smem:[#allocation0]]
  $region90: #{net_forward.13} parent=0
    _
  %s23 = ssub.s32 1, %s21
  %s24 = scalar_select 0, %s23, %s21
  %v25 = vstv %s7
  %26 = vst [vmem:[#allocation2] sm:$0x1] %v25
  %v27 = vstv %s13
  %28 = vst [vmem:[#allocation3] sm:$0x1] %v27
  $region1: #{net_forward.13} parent=0
    #allocation4 [shape = 'u8[1024]{0}', space=vmem, size = 0x400, scoped, tag = 'output window, operand 0, single buffered']
    #allocation5 [shape = 's32[1]{0}', space=sflag, size = 0x4, scoped, tag = 'scoped memory for net_forward.13']
    %29 = vsyncpa [#allocation5], 0
    // Predicated region
    $region2: #{net_forward.13} parent=1 // pred_check
      _
    $region3: #{net_forward.13} parent=1 // pred_check_branch
      %31 = sbr.rel (0) target = $region5
    $region4: #{net_forward.13} parent=1 // pred_region
      _
    $region5: #{net_forward.13} parent=1 // pred_fallthru
      _
    // Predicated region
    $region6: #{net_forward.13} parent=1 // pred_check
      _
    $region7: #{net_forward.13} parent=1 // pred_check_branch
      %33 = sbr.rel (0) target = $region9
    $region8: #{net_forward.13} parent=1 // pred_region
      _
    $region9: #{net_forward.13} parent=1 // pred_fallthru
      _
    // Predicated region
    $region10: #{net_forward.13} parent=1 // pred_check
      _
    $region11: #{net_forward.13} parent=1 // pred_check_branch
      %35 = sbr.rel (0) target = $region13
    $region12: #{net_forward.13} parent=1 // pred_region
      _
    $region13: #{net_forward.13} parent=1 // pred_fallthru
      _
    // Predicated region
    $region14: #{net_forward.13} parent=1 // pred_check
      _
    $region15: #{net_forward.13} parent=1 // pred_check_branch
      %37 = sbr.rel (0) target = $region17
    $region16: #{net_forward.13} parent=1 // pred_region
      _
    $region17: #{net_forward.13} parent=1 // pred_fallthru
      _
    // Predicated region
    $region18: #{net_forward.13} parent=1 // pred_check
      _
    $region19: #{net_forward.13} parent=1 // pred_check_branch
      %39 = sbr.rel (0) target = $region21
    $region20: #{net_forward.13} parent=1 // pred_region
      _
    $region21: #{net_forward.13} parent=1 // pred_fallthru
      _
    // Predicated region
    $region22: #{net_forward.13} parent=1 // pred_check
      _
    $region23: #{net_forward.13} parent=1 // pred_check_branch
      %41 = sbr.rel (0) target = $region25
    $region24: #{net_forward.13} parent=1 // pred_region
      _
    $region25: #{net_forward.13} parent=1 // pred_fallthru
      _
    // Predicated region
    $region26: #{net_forward.13} parent=1 // pred_check
      _
    $region27: #{net_forward.13} parent=1 // pred_check_branch
      %43 = sbr.rel (0) target = $region29
    $region28: #{net_forward.13} parent=1 // pred_region
      _
    $region29: #{net_forward.13} parent=1 // pred_fallthru
      _
    // Predicated region
    $region30: #{net_forward.13} parent=1 // pred_check
      _
    $region31: #{net_forward.13} parent=1 // pred_check_branch
      %45 = sbr.rel (0) target = $region33
    $region32: #{net_forward.13} parent=1 // pred_region
      _
    $region33: #{net_forward.13} parent=1 // pred_fallthru
      _
    // Predicated region
    $region34: #{net_forward.13} parent=1 // pred_check
      _
    $region35: #{net_forward.13} parent=1 // pred_check_branch
      %47 = sbr.rel (0) target = $region37
    $region36: #{net_forward.13} parent=1 // pred_region
      _
    $region37: #{net_forward.13} parent=1 // pred_fallthru
      _
    // Predicated region
    $region38: #{net_forward.13} parent=1 // pred_check
      _
    $region39: #{net_forward.13} parent=1 // pred_check_branch
      %49 = sbr.rel (0) target = $region41
    $region40: #{net_forward.13} parent=1 // pred_region
      _
    $region41: #{net_forward.13} parent=1 // pred_fallthru
      _
    // Predicated region
    $region42: #{net_forward.13} parent=1 // pred_check
      _
    $region43: #{net_forward.13} parent=1 // pred_check_branch
      %51 = sbr.rel (0) target = $region45
    $region44: #{net_forward.13} parent=1 // pred_region
      _
    $region45: #{net_forward.13} parent=1 // pred_fallthru
      _
    // Predicated region
    $region46: #{net_forward.13} parent=1 // pred_check
      _
    $region47: #{net_forward.13} parent=1 // pred_check_branch
      %53 = sbr.rel (0) target = $region49
    $region48: #{net_forward.13} parent=1 // pred_region
      _
    $region49: #{net_forward.13} parent=1 // pred_fallthru
      _
    // Predicated region
    $region50: #{net_forward.13} parent=1 // pred_check
      _
    $region51: #{net_forward.13} parent=1 // pred_check_branch
      %55 = sbr.rel (0) target = $region53
    $region52: #{net_forward.13} parent=1 // pred_region
      _
    $region53: #{net_forward.13} parent=1 // pred_fallthru
      _
    // Predicated region
    $region54: #{net_forward.13} parent=1 // pred_check
      _
    $region55: #{net_forward.13} parent=1 // pred_check_branch
      %57 = sbr.rel (0) target = $region57
    $region56: #{net_forward.13} parent=1 // pred_region
      _
    $region57: #{net_forward.13} parent=1 // pred_fallthru
      _
    // Predicated region
    $region58: #{net_forward.13} parent=1 // pred_check
      _
    $region59: #{net_forward.13} parent=1 // pred_check_branch
      %59 = sbr.rel (0) target = $region61
    $region60: #{net_forward.13} parent=1 // pred_region
      _
    $region61: #{net_forward.13} parent=1 // pred_fallthru
      _
    // Predicated region
    $region62: #{net_forward.13} parent=1 // pred_check
      _
    $region63: #{net_forward.13} parent=1 // pred_check_branch
      %61 = sbr.rel (0) target = $region65
    $region64: #{net_forward.13} parent=1 // pred_region
      _
    $region65: #{net_forward.13} parent=1 // pred_fallthru
      _
    // Predicated region
    $region66: #{net_forward.13} parent=1 // pred_check
      _
    $region67: #{net_forward.13} parent=1 // pred_check_branch
      %63 = sbr.rel (0) target = $region69
    $region68: #{net_forward.13} parent=1 // pred_region
      _
    $region69: #{net_forward.13} parent=1 // pred_fallthru
      _
    // Predicated region
    $region70: #{net_forward.13} parent=1 // pred_check
      _
    $region71: #{net_forward.13} parent=1 // pred_check_branch
      %65 = sbr.rel (0) target = $region73
    $region72: #{net_forward.13} parent=1 // pred_region
      _
    $region73: #{net_forward.13} parent=1 // pred_fallthru
      _
    // Predicated region
    $region74: #{net_forward.13} parent=1 // pred_check
      _
    $region75: #{net_forward.13} parent=1 // pred_check_branch
      %67 = sbr.rel (0) target = $region77
    $region76: #{net_forward.13} parent=1 // pred_region
      _
    $region77: #{net_forward.13} parent=1 // pred_fallthru
      _
    // Predicated region
    $region78: #{net_forward.13} parent=1 // pred_check
      _
    $region79: #{net_forward.13} parent=1 // pred_check_branch
      %69 = sbr.rel (0) target = $region81
    $region80: #{net_forward.13} parent=1 // pred_region
      _
    $region81: #{net_forward.13} parent=1 // pred_fallthru
      _
    %v70 = vld [vmem:[%s0] sm:$0xff]
    %v71 = vld [vmem:[%s0 + $0x8] sm:$0xff]
    %v72 = vld [vmem:[%s1] sm:$0x1]
    %v73 = vld [vmem:[%s1 + $0x1] sm:$0x1]
    %v74 = vld [vmem:[%s4] sm:$0xff]
    %v75 = vld [vmem:[%s4 + $0x8] sm:$0xff]
    %v76 = vld [vmem:[%s4 + $0x10] sm:$0xff]
    %v77 = vld [vmem:[%s4 + $0x18] sm:$0xff]
    %v78 = vld [vmem:[%s5] sm:$0x1]
    %v79 = vld [vmem:[%s6] sm:$0xff]
    %v80 = vld [vmem:[%s6 + $0x8] sm:$0xff]
    %v81 = vld [vmem:[#allocation2] sm:$0x1]
    %v82 = vld [vmem:[%s8] sm:$0xff]
    %v83 = vld [vmem:[%s8 + $0x8] sm:$0xff]
    %v84 = vld [vmem:[%s8 + $0x10] sm:$0xff]
    %v85 = vld [vmem:[%s8 + $0x18] sm:$0xff]
    %v86 = vld [vmem:[%s9] sm:$0x1]
    %v88 = vperm.slane %v78, 0
    %vm90 = vcmask 261120
    %v92 = vsel %vm90, %v70, 0
    %v95 = vsel %vm90, %v71, 0
    %97 = vmatpush.msra.mxu0 0.0
    %98 = vmatpush.msra.mxu0 0.0
    %99 = vmatpush.msra.mxu0 0.0
    %100 = vmatpush.msra.mxu0 0.0
    %101 = vmatpush.msra.mxu0 0.0
    %102 = vmatpush.msra.mxu0 0.0
    %103 = vmatpush.msra.mxu0 0.0
    %104 = vmatpush.msra.mxu0 0.0
    %105 = vmatpush.msra.mxu0 0.0
    %106 = vmatpush.msra.mxu0 0.0
    %107 = vmatpush.msra.mxu0 0.0
    %108 = vmatpush.msra.mxu0 0.0
    %109 = vmatpush.msra.mxu0 %v77
    %110 = vmatpush.msra.mxu0 %v76
    %111 = vmatpush.msra.mxu0 %v75
    %112 = vmatpush.msra.mxu0 %v74
    %113 = vmatmul.f32.gmra.mxu0 %v92
    %v114 = vpop.f32.mrf.mxu0
    %v115 = vadd.f32 %v88, %v114
    %116 = vmatmul.f32.gmra.mxu0 %v95
    %v117 = vpop.f32.mrf.mxu0
    %v118 = vadd.f32 %v88, %v117
    %119 = vdwg.mxu0
    %v120 = vmax.f32 %v115, 0.0
    %v121 = vmax.f32 %v118, 0.0
    %v123 = vperm.slane %v81, 0
    %vm125 = vcmask 130048
    %v127 = vsel %vm125, %v120, 0
    %v130 = vsel %vm125, %v121, 0
    %132 = vmatpush.msra.mxu0 0.0
    %133 = vmatpush.msra.mxu0 0.0
    %134 = vmatpush.msra.mxu0 0.0
    %135 = vmatpush.msra.mxu0 0.0
    %136 = vmatpush.msra.mxu0 0.0
    %137 = vmatpush.msra.mxu0 0.0
    %138 = vmatpush.msra.mxu0 0.0
    %139 = vmatpush.msra.mxu0 0.0
    %140 = vmatpush.msra.mxu0 0.0
    %141 = vmatpush.msra.mxu0 0.0
    %142 = vmatpush.msra.mxu0 0.0
    %143 = vmatpush.msra.mxu0 0.0
    %144 = vmatpush.msra.mxu0 0.0
    %145 = vmatpush.msra.mxu0 0.0
    %146 = vmatpush.msra.mxu0 %v80
    %147 = vmatpush.msra.mxu0 %v79
    %148 = vmatmul.f32.gmra.mxu0 %v127
    %v149 = vpop.f32.mrf.mxu0
    %v150 = vadd.f32 %v123, %v149
    %151 = vmatmul.f32.gmra.mxu0 %v130
    %v152 = vpop.f32.mrf.mxu0
    %v153 = vadd.f32 %v123, %v152
    %154 = vdwg.mxu0
    %v155 = vperm.slane %v72, 0
    %v156 = vlaneseq
    %v157 = vshrl.u32 %v156, 7
    %159 = vset.pattern.permute.xlu0 %v157
    %160 = vperm.xlu0 %159, %v155
    %v161 = vpop.permute.xlu0 %160
    %v162 = vperm.slane %v73, 0
    %v163 = vlaneseq
    %v164 = vshrl.u32 %v163, 7
    %166 = vset.pattern.permute.xlu0 %v164
    %167 = vperm.xlu0 %166, %v162
    %v168 = vpop.permute.xlu0 %167
    %vm169 = vcmp.gt.f32.partialorder %v161, 0.5
    %vm170 = vcmp.gt.f32.partialorder %v168, 0.5
    %v171 = vsel %vm169, -1e+09, %v150
    %v172 = vsel %vm170, -1e+09, %v153
    %vm173 = vcmask 7168
    %v174 = vsel %vm173, %v171, -inf
    %v175 = vrot.slane %v174, 4
    %v176 = vmax.f32 %v174, %v175
    %v177 = vrot.slane %v176, 2
    %v178 = vmax.f32 %v176, %v177
    %v179 = vrot.slane %v178, 1
    %v180 = vmax.f32 %v178, %v179
    %v181 = vsel %vm173, %v172, -inf
    %v182 = vrot.slane %v181, 4
    %v183 = vmax.f32 %v181, %v182
    %v184 = vrot.slane %v183, 2
    %v185 = vmax.f32 %v183, %v184
    %v186 = vrot.slane %v185, 1
    %v187 = vmax.f32 %v185, %v186
    %v188 = vsub.f32 %v171, %v180
    %v189 = vsub.f32 %v172, %v187
    %v190 = vmul.f32 %v188, 1.442695
    %v191 = vpow.pop %v190
    %v192 = vmul.f32 %v189, 1.442695
    %v193 = vpow.pop %v192
    %v194 = vsel %vm173, %v191, 0.0
    %v195 = vrot.slane %v194, 4
    %v196 = vadd.f32 %v194, %v195
    %v197 = vrot.slane %v196, 2
    %v198 = vadd.f32 %v196, %v197
    %v199 = vrot.slane %v198, 1
    %v200 = vadd.f32 %v198, %v199
    %v201 = vsel %vm173, %v193, 0.0
    %v202 = vrot.slane %v201, 4
    %v203 = vadd.f32 %v201, %v202
    %v204 = vrot.slane %v203, 2
    %v205 = vadd.f32 %v203, %v204
    %v206 = vrot.slane %v205, 1
    %v207 = vadd.f32 %v205, %v206
    %v208 = vrcp.pop %v200
    %v209 = vmul.f32 %v200, %v208
    %v210 = vsub.f32 1.0, %v209
    %v211 = vmul.f32 %v208, %v210
    %v212 = vadd.f32 %v208, %v211
    %vm213 = vweird.f32 %v200
    %vm214 = vweird.f32 %v208
    %vm215 = vmor %vm213, %vm214
    %v216 = vsel %vm215, %v208, %v212
    %v217 = vand.u32 2147483647, %v200
    %vm218 = vcmp.eq.f32.partialorder %v217, 8.507059e+37
    %v219 = vand.u32 %v200, 2147483648
    %v220 = vor.u32 1.1754944e-38, %v219
    %v221 = vsel %vm218, %v220, %v216
    %v222 = vmul.f32 %v191, %v221
    %v223 = vrcp.pop %v207
    %v224 = vmul.f32 %v207, %v223
    %v225 = vsub.f32 1.0, %v224
    %v226 = vmul.f32 %v223, %v225
    %v227 = vadd.f32 %v223, %v226
    %vm228 = vweird.f32 %v207
    %vm229 = vweird.f32 %v223
    %vm230 = vmor %vm228, %vm229
    %v231 = vsel %vm230, %v223, %v227
    %v232 = vand.u32 2147483647, %v207
    %vm233 = vcmp.eq.f32.partialorder %v232, 8.507059e+37
    %v234 = vand.u32 %v207, 2147483648
    %v235 = vor.u32 1.1754944e-38, %v234
    %v236 = vsel %vm233, %v235, %v231
    %v237 = vmul.f32 %v193, %v236
    %239 = vset.pattern.permute.xlu0 0
    %240 = vperm.xlu0 %239, %v222
    %v241 = vpop.permute.xlu0 %240
    %244 = vset.pattern.permute.xlu0 0
    %245 = vperm.xlu0 %244, %v237
    %v246 = vpop.permute.xlu0 %245
    %v248 = vmul.f32 %v241, %v70
    %v249 = vmul.f32 %v246, %v71
    %v250 = vsel %vm90, %v248, 0.0
    %v251 = vrot.slane %v250, 4
    %v252 = vadd.f32 %v250, %v251
    %v253 = vrot.slane %v252, 2
    %v254 = vadd.f32 %v252, %v253
    %v255 = vrot.slane %v254, 1
    %v256 = vadd.f32 %v254, %v255
    %v257 = vsel %vm90, %v249, 0.0
    %v258 = vrot.slane %v257, 4
    %v259 = vadd.f32 %v257, %v258
    %v260 = vrot.slane %v259, 2
    %v261 = vadd.f32 %v259, %v260
    %v262 = vrot.slane %v261, 1
    %v263 = vadd.f32 %v261, %v262
    %v265 = vperm.slane %v86, 0
    %vm269 = vcmask 1041409
    %v270 = vsel %vm269, %v263, %v256
    %v271 = vsel %vm90, %v270, 0
    %273 = vmatpush.msra.mxu0 0.0
    %274 = vmatpush.msra.mxu0 0.0
    %275 = vmatpush.msra.mxu0 0.0
    %276 = vmatpush.msra.mxu0 0.0
    %277 = vmatpush.msra.mxu0 0.0
    %278 = vmatpush.msra.mxu0 0.0
    %279 = vmatpush.msra.mxu0 0.0
    %280 = vmatpush.msra.mxu0 0.0
    %281 = vmatpush.msra.mxu0 0.0
    %282 = vmatpush.msra.mxu0 0.0
    %283 = vmatpush.msra.mxu0 0.0
    %284 = vmatpush.msra.mxu0 0.0
    %285 = vmatpush.msra.mxu0 %v85
    %286 = vmatpush.msra.mxu0 %v84
    %287 = vmatpush.msra.mxu0 %v83
    %288 = vmatpush.msra.mxu0 %v82
    %289 = vmatmul.f32.gmra.mxu0 %v271
    %v290 = vpop.f32.mrf.mxu0
    %v291 = vadd.f32 %v265, %v290
    %292 = vdwg.mxu0
    %v293 = vld [vmem:[%s2] sm:$0xff]
    %v294 = vld [vmem:[%s2 + $0x8] sm:$0xff]
    %v295 = vld [vmem:[%s2 + $0x10] sm:$0xff]
    %v296 = vld [vmem:[%s2 + $0x18] sm:$0xff]
    %v297 = vld [vmem:[%s3] sm:$0x1]
    %v298 = vld [vmem:[%s3 + $0x1] sm:$0x1]
    %v299 = vld [vmem:[%s10] sm:$0xff]
    %v300 = vld [vmem:[%s10 + $0x8] sm:$0xff]
    %v301 = vld [vmem:[%s10 + $0x10] sm:$0xff]
    %v302 = vld [vmem:[%s10 + $0x18] sm:$0xff]
    %v303 = vld [vmem:[%s11] sm:$0x1]
    %v304 = vld [vmem:[%s12] sm:$0xff]
    %v305 = vld [vmem:[%s12 + $0x8] sm:$0xff]
    %v306 = vld [vmem:[#allocation3] sm:$0x1]
    %v307 = vld [vmem:[%s14] sm:$0xff]
    %v308 = vld [vmem:[%s14 + $0x8] sm:$0xff]
    %v309 = vld [vmem:[%s14 + $0x10] sm:$0xff]
    %v310 = vld [vmem:[%s14 + $0x18] sm:$0xff]
    %v311 = vld [vmem:[%s15] sm:$0x1]
    %v313 = vperm.slane %v303, 0
    %v316 = vsel %vm90, %v293, 0
    %v319 = vsel %vm90, %v294, 0
    %v322 = vsel %vm90, %v295, 0
    %v325 = vsel %vm90, %v296, 0
    %327 = vmatpush.msra.mxu0 0.0
    %328 = vmatpush.msra.mxu0 0.0
    %329 = vmatpush.msra.mxu0 0.0
    %330 = vmatpush.msra.mxu0 0.0
    %331 = vmatpush.msra.mxu0 0.0
    %332 = vmatpush.msra.mxu0 0.0
    %333 = vmatpush.msra.mxu0 0.0
    %334 = vmatpush.msra.mxu0 0.0
    %335 = vmatpush.msra.mxu0 0.0
    %336 = vmatpush.msra.mxu0 0.0
    %337 = vmatpush.msra.mxu0 0.0
    %338 = vmatpush.msra.mxu0 0.0
    %339 = vmatpush.msra.mxu0 %v302
    %340 = vmatpush.msra.mxu0 %v301
    %341 = vmatpush.msra.mxu0 %v300
    %342 = vmatpush.msra.mxu0 %v299
    %343 = vmatmul.f32.gmra.mxu0 %v316
    %v344 = vpop.f32.mrf.mxu0
    %v345 = vadd.f32 %v313, %v344
    %346 = vmatmul.f32.gmra.mxu0 %v319
    %v347 = vpop.f32.mrf.mxu0
    %v348 = vadd.f32 %v313, %v347
    %349 = vmatmul.f32.gmra.mxu0 %v322
    %v350 = vpop.f32.mrf.mxu0
    %v351 = vadd.f32 %v313, %v350
    %352 = vmatmul.f32.gmra.mxu0 %v325
    %v353 = vpop.f32.mrf.mxu0
    %v354 = vadd.f32 %v313, %v353
    %355 = vdwg.mxu0
    %v356 = vmax.f32 %v345, 0.0
    %v357 = vmax.f32 %v348, 0.0
    %v358 = vmax.f32 %v351, 0.0
    %v359 = vmax.f32 %v354, 0.0
    %v361 = vperm.slane %v306, 0
    %v364 = vsel %vm125, %v356, 0
    %v367 = vsel %vm125, %v357, 0
    %v370 = vsel %vm125, %v358, 0
    %v373 = vsel %vm125, %v359, 0
    %375 = vmatpush.msra.mxu0 0.0
    %376 = vmatpush.msra.mxu0 0.0
    %377 = vmatpush.msra.mxu0 0.0
    %378 = vmatpush.msra.mxu0 0.0
    %379 = vmatpush.msra.mxu0 0.0
    %380 = vmatpush.msra.mxu0 0.0
    %381 = vmatpush.msra.mxu0 0.0
    %382 = vmatpush.msra.mxu0 0.0
    %383 = vmatpush.msra.mxu0 0.0
    %384 = vmatpush.msra.mxu0 0.0
    %385 = vmatpush.msra.mxu0 0.0
    %386 = vmatpush.msra.mxu0 0.0
    %387 = vmatpush.msra.mxu0 0.0
    %388 = vmatpush.msra.mxu0 0.0
    %389 = vmatpush.msra.mxu0 %v305
    %390 = vmatpush.msra.mxu0 %v304
    %391 = vmatmul.f32.gmra.mxu0 %v364
    %v392 = vpop.f32.mrf.mxu0
    %v393 = vadd.f32 %v361, %v392
    %394 = vmatmul.f32.gmra.mxu0 %v367
    %v395 = vpop.f32.mrf.mxu0
    %v396 = vadd.f32 %v361, %v395
    %397 = vmatmul.f32.gmra.mxu0 %v370
    %v398 = vpop.f32.mrf.mxu0
    %v399 = vadd.f32 %v361, %v398
    %400 = vmatmul.f32.gmra.mxu0 %v373
    %v401 = vpop.f32.mrf.mxu0
    %v402 = vadd.f32 %v361, %v401
    %403 = vdwg.mxu0
    %v404 = vperm.slane %v297, 0
    %v405 = vlaneseq
    %v406 = vshrl.u32 %v405, 7
    %408 = vset.pattern.permute.xlu0 %v406
    %409 = vperm.xlu0 %408, %v404
    %v410 = vpop.permute.xlu0 %409
    %v411 = vlaneseq
    %v412 = vshrl.u32 %v411, 7
    %v413 = vadd.s32 %v412, 8
    %414 = vset.pattern.permute.xlu0 %v413
    %415 = vperm.xlu0 %414, %v404
    %v416 = vpop.permute.xlu0 %415
    %v417 = vperm.slane %v298, 0
    %v418 = vlaneseq
    %v419 = vshrl.u32 %v418, 7
    %421 = vset.pattern.permute.xlu0 %v419
    %422 = vperm.xlu0 %421, %v417
    %v423 = vpop.permute.xlu0 %422
    %v424 = vlaneseq
    %v425 = vshrl.u32 %v424, 7
    %v426 = vadd.s32 %v425, 8
    %427 = vset.pattern.permute.xlu0 %v426
    %428 = vperm.xlu0 %427, %v417
    %v429 = vpop.permute.xlu0 %428
    %vm430 = vcmp.gt.f32.partialorder %v410, 0.5
    %vm431 = vcmp.gt.f32.partialorder %v416, 0.5
    %vm432 = vcmp.gt.f32.partialorder %v423, 0.5
    %vm433 = vcmp.gt.f32.partialorder %v429, 0.5
    %v434 = vsel %vm430, -1e+09, %v393
    %v435 = vsel %vm431, -1e+09, %v396
    %v436 = vsel %vm432, -1e+09, %v399
    %v437 = vsel %vm433, -1e+09, %v402
    %v438 = vsel %vm173, %v434, -inf
    %v439 = vsel %vm173, %v435, -inf
    %v440 = vmax.f32 %v438, %v439
    %v441 = vrot.slane %v440, 4
    %v442 = vmax.f32 %v440, %v441
    %v443 = vrot.slane %v442, 2
    %v444 = vmax.f32 %v442, %v443
    %v445 = vrot.slane %v444, 1
    %v446 = vmax.f32 %v444, %v445
    %v447 = vsel %vm173, %v436, -inf
    %v448 = vsel %vm173, %v437, -inf
    %v449 = vmax.f32 %v447, %v448
    %v450 = vrot.slane %v449, 4
    %v451 = vmax.f32 %v449, %v450
    %v452 = vrot.slane %v451, 2
    %v453 = vmax.f32 %v451, %v452
    %v454 = vrot.slane %v453, 1
    %v455 = vmax.f32 %v453, %v454
    %v456 = vsub.f32 %v434, %v446
    %v457 = vsub.f32 %v435, %v446
    %v458 = vsub.f32 %v436, %v455
    %v459 = vsub.f32 %v437, %v455
    %v460 = vmul.f32 %v456, 1.442695
    %v461 = vpow.pop %v460
    %v462 = vmul.f32 %v457, 1.442695
    %v463 = vpow.pop %v462
    %v464 = vmul.f32 %v458, 1.442695
    %v465 = vpow.pop %v464
    %v466 = vmul.f32 %v459, 1.442695
    %v467 = vpow.pop %v466
    %v468 = vsel %vm173, %v461, 0.0
    %v469 = vsel %vm173, %v463, 0.0
    %v470 = vadd.f32 %v468, %v469
    %v471 = vrot.slane %v470, 4
    %v472 = vadd.f32 %v470, %v471
    %v473 = vrot.slane %v472, 2
    %v474 = vadd.f32 %v472, %v473
    %v475 = vrot.slane %v474, 1
    %v476 = vadd.f32 %v474, %v475
    %v477 = vsel %vm173, %v465, 0.0
    %v478 = vsel %vm173, %v467, 0.0
    %v479 = vadd.f32 %v477, %v478
    %v480 = vrot.slane %v479, 4
    %v481 = vadd.f32 %v479, %v480
    %v482 = vrot.slane %v481, 2
    %v483 = vadd.f32 %v481, %v482
    %v484 = vrot.slane %v483, 1
    %v485 = vadd.f32 %v483, %v484
    %v486 = vrcp.pop %v476
    %v487 = vmul.f32 %v476, %v486
    %v488 = vsub.f32 1.0, %v487
    %v489 = vmul.f32 %v486, %v488
    %v490 = vadd.f32 %v486, %v489
    %vm491 = vweird.f32 %v476
    %vm492 = vweird.f32 %v486
    %vm493 = vmor %vm491, %vm492
    %v494 = vsel %vm493, %v486, %v490
    %v495 = vand.u32 2147483647, %v476
    %vm496 = vcmp.eq.f32.partialorder %v495, 8.507059e+37
    %v497 = vand.u32 %v476, 2147483648
    %v498 = vor.u32 1.1754944e-38, %v497
    %v499 = vsel %vm496, %v498, %v494
    %v500 = vmul.f32 %v461, %v499
    %v501 = vmul.f32 %v463, %v499
    %v502 = vrcp.pop %v485
    %v503 = vmul.f32 %v485, %v502
    %v504 = vsub.f32 1.0, %v503
    %v505 = vmul.f32 %v502, %v504
    %v506 = vadd.f32 %v502, %v505
    %vm507 = vweird.f32 %v485
    %vm508 = vweird.f32 %v502
    %vm509 = vmor %vm507, %vm508
    %v510 = vsel %vm509, %v502, %v506
    %v511 = vand.u32 2147483647, %v485
    %vm512 = vcmp.eq.f32.partialorder %v511, 8.507059e+37
    %v513 = vand.u32 %v485, 2147483648
    %v514 = vor.u32 1.1754944e-38, %v513
    %v515 = vsel %vm512, %v514, %v510
    %v516 = vmul.f32 %v465, %v515
    %v517 = vmul.f32 %v467, %v515
    %519 = vset.pattern.permute.xlu0 0
    %520 = vperm.xlu0 %519, %v500
    %v521 = vpop.permute.xlu0 %520
    %524 = vset.pattern.permute.xlu0 0
    %525 = vperm.xlu0 %524, %v501
    %v526 = vpop.permute.xlu0 %525
    %529 = vset.pattern.permute.xlu0 0
    %530 = vperm.xlu0 %529, %v516
    %v531 = vpop.permute.xlu0 %530
    %534 = vset.pattern.permute.xlu0 0
    %535 = vperm.xlu0 %534, %v517
    %v536 = vpop.permute.xlu0 %535
    %v538 = vmul.f32 %v521, %v293
    %v539 = vmul.f32 %v526, %v294
    %v540 = vmul.f32 %v531, %v295
    %v541 = vmul.f32 %v536, %v296
    %v542 = vsel %vm90, %v538, 0.0
    %v543 = vsel %vm90, %v539, 0.0
    %v544 = vadd.f32 %v542, %v543
    %v545 = vrot.slane %v544, 4
    %v546 = vadd.f32 %v544, %v545
    %v547 = vrot.slane %v546, 2
    %v548 = vadd.f32 %v546, %v547
    %v549 = vrot.slane %v548, 1
    %v550 = vadd.f32 %v548, %v549
    %v551 = vsel %vm90, %v540, 0.0
    %v552 = vsel %vm90, %v541, 0.0
    %v553 = vadd.f32 %v551, %v552
    %v554 = vrot.slane %v553, 4
    %v555 = vadd.f32 %v553, %v554
    %v556 = vrot.slane %v555, 2
    %v557 = vadd.f32 %v555, %v556
    %v558 = vrot.slane %v557, 1
    %v559 = vadd.f32 %v557, %v558
    %v561 = vperm.slane %v311, 0
    %v565 = vsel %vm269, %v559, %v550
    %v566 = vsel %vm90, %v565, 0
    %568 = vmatpush.msra.mxu0 0.0
    %569 = vmatpush.msra.mxu0 0.0
    %570 = vmatpush.msra.mxu0 0.0
    %571 = vmatpush.msra.mxu0 0.0
    %572 = vmatpush.msra.mxu0 0.0
    %573 = vmatpush.msra.mxu0 0.0
    %574 = vmatpush.msra.mxu0 0.0
    %575 = vmatpush.msra.mxu0 0.0
    %576 = vmatpush.msra.mxu0 0.0
    %577 = vmatpush.msra.mxu0 0.0
    %578 = vmatpush.msra.mxu0 0.0
    %579 = vmatpush.msra.mxu0 0.0
    %580 = vmatpush.msra.mxu0 %v310
    %581 = vmatpush.msra.mxu0 %v309
    %582 = vmatpush.msra.mxu0 %v308
    %583 = vmatpush.msra.mxu0 %v307
    %584 = vmatmul.f32.gmra.mxu0 %v566
    %v585 = vpop.f32.mrf.mxu0
    %v586 = vadd.f32 %v561, %v585
    %587 = vdwg.mxu0
    %v588 = vadd.f32 %v291, %v586
    %v589 = vld [vmem:[%s16] sm:$0x1]
    %v590 = vld [vmem:[%s17] sm:$0x1]
    %vm591 = vcmask 517120
    %v592 = vsel %vm591, %v588, 0.0
    %593 = vadd.xlane.f32.xlu0 %v592
    %v594 = vpop.xlane.xlu0 %593
    %v595 = vrcp.pop 64.0
    %v596 = vmul.f32 64.0, %v595
    %v597 = vsub.f32 1.0, %v596
    %v598 = vmul.f32 %v595, %v597
    %v599 = vadd.f32 %v595, %v598
    %vm600 = vweird.f32 %v595
    %v601 = vsel %vm600, %v595, %v599
    %v602 = vmul.f32 %v594, %v601
    %v603 = vsub.f32 %v588, %v602
    %v604 = vmul.f32 %v603, %v603
    %v605 = vsel %vm591, %v604, 0.0
    %606 = vadd.xlane.f32.xlu0 %v605
    %v607 = vpop.xlane.xlu0 %606
    %v608 = vmul.f32 %v607, 0.015873017
    %v610 = vperm.slane %v589, 0
    %v612 = vmul.f32 %v610, %v603
    %v613 = vrsqrt.pop %v608
    %v614 = vmul.f32 %v613, %v608
    %v615 = vmul.f32 %v614, %v613
    %v616 = vmul.f32 0.5, %v615
    %v617 = vsub.f32 1.5, %v616
    %v618 = vmul.f32 %v613, %v617
    %v619 = vmul.f32 %v608, %v618
    %vm620 = vcmp.eq.f32.partialorder %v608, inf
    %v621 = vsel %vm620, %v608, %v619
    %vm622 = vcmp.eq.f32.partialorder %v608, 0.0
    %v623 = vand.u32 %v608, 2147483648
    %v624 = vsel %vm622, %v623, %v621
    %v625 = vadd.f32 %v624, 1e-06
    %v626 = vrcp.pop %v625
    %v627 = vmul.f32 %v625, %v626
    %v628 = vsub.f32 1.0, %v627
    %v629 = vmul.f32 %v626, %v628
    %v630 = vadd.f32 %v626, %v629
    %vm631 = vweird.f32 %v625
    %vm632 = vweird.f32 %v626
    %vm633 = vmor %vm631, %vm632
    %v634 = vsel %vm633, %v626, %v630
    %v635 = vand.u32 2147483647, %v625
    %vm636 = vcmp.eq.f32.partialorder %v635, 8.507059e+37
    %v637 = vand.u32 %v625, 2147483648
    %v638 = vor.u32 1.1754944e-38, %v637
    %v639 = vsel %vm636, %v638, %v634
    %v640 = vmul.f32 %v612, %v639
    %v642 = vperm.slane %v590, 0
    %v644 = vadd.f32 %v640, %v642
    %v645 = vld [vmem:[%s18] sm:$0xff]
    %v646 = vld [vmem:[%s18 + $0x8] sm:$0xff]
    %v647 = vld [vmem:[%s18 + $0x10] sm:$0xff]
    %v648 = vld [vmem:[%s18 + $0x18] sm:$0xff]
    %v649 = vld [vmem:[%s18 + $0x20] sm:$0xff]
    %v650 = vld [vmem:[%s18 + $0x28] sm:$0xff]
    %v651 = vld [vmem:[%s18 + $0x30] sm:$0xff]
    %v652 = vld [vmem:[%s18 + $0x38] sm:$0xff]
    %v653 = vld [vmem:[%s19] sm:$0x1]
    %v655 = vperm.slane %v653, 0
    %vm657 = vcmask 523264
    %v659 = vsel %vm657, %v644, 0
    %661 = vmatpush.msra.mxu0 0.0
    %662 = vmatpush.msra.mxu0 0.0
    %663 = vmatpush.msra.mxu0 0.0
    %664 = vmatpush.msra.mxu0 0.0
    %665 = vmatpush.msra.mxu0 0.0
    %666 = vmatpush.msra.mxu0 0.0
    %667 = vmatpush.msra.mxu0 0.0
    %668 = vmatpush.msra.mxu0 0.0
    %669 = vmatpush.msra.mxu0 %v652
    %670 = vmatpush.msra.mxu0 %v651
    %671 = vmatpush.msra.mxu0 %v650
    %672 = vmatpush.msra.mxu0 %v649
    %673 = vmatpush.msra.mxu0 %v648
    %674 = vmatpush.msra.mxu0 %v647
    %675 = vmatpush.msra.mxu0 %v646
    %676 = vmatpush.msra.mxu0 %v645
    %677 = vmatmul.f32.gmra.mxu0 %v659
    %v678 = vpop.f32.mrf.mxu0
    %v679 = vadd.f32 %v655, %v678
    %680 = vdwg.mxu0
    %v681 = vxor.u32 %v679, 2147483648
    %v682 = vmul.f32 %v681, 1.442695
    %v683 = vpow.pop %v682
    %v684 = vadd.f32 %v683, 1.0
    %v685 = vrcp.pop %v684
    %v686 = vmul.f32 %v684, %v685
    %v687 = vsub.f32 1.0, %v686
    %v688 = vmul.f32 %v685, %v687
    %v689 = vadd.f32 %v685, %v688
    %vm690 = vweird.f32 %v684
    %vm691 = vweird.f32 %v685
    %vm692 = vmor %vm690, %vm691
    %v693 = vsel %vm692, %v685, %v689
    %v694 = vand.u32 2147483647, %v684
    %vm695 = vcmp.eq.f32.partialorder %v694, 8.507059e+37
    %v696 = vand.u32 %v684, 2147483648
    %v697 = vor.u32 1.1754944e-38, %v696
    %v698 = vsel %vm695, %v697, %v693
    %v699 = vmul.f32 1.0, %v698
    %vm700 = vcmask 74752
    %701 = vst.msk [vmem:[#allocation4] sm:$0x3] %vm700, %v699
    // Predicated region
    $region82: #{net_forward.13} parent=1 // pred_check
      _
    $region83: #{net_forward.13} parent=1 // pred_check_branch
      %703 = sbr.rel (0) target = $region85
    $region84: #{net_forward.13} parent=1 // pred_region
      %705 = vsyncadd [#allocation5], 0
      %s707 = sshll.u32 [#allocation4], 4
      %s708 = int_to_ptr.vmem [resolvable:$true] %s707
      %s709 = sshll.u32 %s20, 4
      %s710 = int_to_ptr.hbm [resolvable:$true] %s709
      %712 = dma.vmem_to_hbm [thread:$0]  %s708, 32, %s710, [#allocation5]
    $region85: #{net_forward.13} parent=1 // pred_fallthru
      _
    // Predicated region
    $region86: #{net_forward.13} parent=1 // pred_check
      _
    $region87: #{net_forward.13} parent=1 // pred_check_branch
      %714 = sbr.rel (0) target = $region89
    $region88: #{net_forward.13} parent=1 // pred_region
      %716 = dma.done [#allocation5], 32
    $region89: #{net_forward.13} parent=1 // pred_fallthru
      _
    %717 = vsyncpa [#allocation5], 1

// kernel: net_forward.12
$region0: #{net_forward.12}
  #allocation0 [shape = 'u32[]', space=smem, size = 0x4, offset = 0x4, fixed_abs, tag = 'smem constant byte address 0x4 - core index']
  #allocation1 [shape = 'u32[72,128]{1,0:T(1,128)}', space=vmem, size = 0x9000, scoped, tag = 'internal scratch']
  %s0 = inlined_call_operand.vmem [shape: f32[2,16,32], index: 0, kind: input, shape index: {}]
  %s1 = inlined_call_operand.vmem [shape: f32[2,8,32], index: 1, kind: input, shape index: {}]
  %s2 = inlined_call_operand.vmem [shape: f32[2,1,16], index: 2, kind: input, shape index: {}]
  %s3 = inlined_call_operand.vmem [shape: f32[2,1,8], index: 3, kind: input, shape index: {}]
  %s4 = inlined_call_operand.vmem [shape: f32[32,96], index: 4, kind: input, shape index: {}]
  %s5 = inlined_call_operand.vmem [shape: f32[1,96], index: 5, kind: input, shape index: {}]
  %s6 = inlined_call_operand.vmem [shape: f32[32,32], index: 6, kind: input, shape index: {}]
  %s7 = inlined_call_operand.vmem [shape: f32[1,32], index: 7, kind: input, shape index: {}]
  %s8 = inlined_call_operand.vmem [shape: f32[1,32], index: 8, kind: input, shape index: {}]
  %s9 = inlined_call_operand.vmem [shape: f32[1,32], index: 9, kind: input, shape index: {}]
  %s10 = inlined_call_operand.hbm [shape: f32[32,32], index: 10, kind: input, shape index: {}]
  %s11 = inlined_call_operand.vmem [shape: f32[1,32], index: 11, kind: input, shape index: {}]
  %s12 = inlined_call_operand.hbm [shape: f32[32,64], index: 12, kind: input, shape index: {}]
  %s13 = inlined_call_operand.vmem [shape: f32[1,64], index: 13, kind: input, shape index: {}]
  %s14 = inlined_call_operand.hbm [shape: f32[32,32], index: 14, kind: input, shape index: {}]
  %s15 = inlined_call_operand.vmem [shape: f32[1,32], index: 15, kind: input, shape index: {}]
  %s16 = inlined_call_operand.vmem [shape: f32[1,32], index: 16, kind: input, shape index: {}]
  %s17 = inlined_call_operand.vmem [shape: f32[1,32], index: 17, kind: input, shape index: {}]
  %s18 = inlined_call_operand.hbm [shape: f32[32,64], index: 18, kind: input, shape index: {}]
  %s19 = inlined_call_operand.vmem [shape: f32[1,64], index: 19, kind: input, shape index: {}]
  %s20 = inlined_call_operand.vmem [shape: f32[64,32], index: 20, kind: input, shape index: {}]
  %s21 = inlined_call_operand.vmem [shape: f32[1,32], index: 21, kind: input, shape index: {}]
  %s22 = inlined_call_operand.vmem [shape: f32[1,32], index: 22, kind: input, shape index: {}]
  %s23 = inlined_call_operand.vmem [shape: f32[1,32], index: 23, kind: input, shape index: {}]
  %s24 = inlined_call_operand.vmem [shape: f32[2,16,32], index: 24, kind: output, shape index: {}]
  %s25 = sld [smem:[#allocation0]]
  $region145: #{net_forward.12} parent=0
    _
  %s27 = ssub.s32 1, %s25
  %s28 = scalar_select 0, %s27, %s25
  $region1: #{net_forward.12} parent=0
    #allocation2 [shape = 'u8[16384]{0}', space=vmem, size = 0x4000, scoped, tag = 'input window, operand 10, single buffered']
    #allocation3 [shape = 's32[2]{0}', space=sflag, size = 0x8, scoped, tag = 'scoped memory for net_forward.12']
    #allocation4 [shape = 'u8[16384]{0}', space=vmem, size = 0x4000, scoped, tag = 'input window, operand 12, single buffered']
    #allocation5 [shape = 's32[1]{0}', space=sflag, size = 0x4, scoped, tag = 'scoped memory for net_forward.12']
    #allocation6 [shape = 'u8[16384]{0}', space=vmem, size = 0x4000, scoped, tag = 'input window, operand 14, single buffered']
    #allocation7 [shape = 'u8[16384]{0}', space=vmem, size = 0x4000, scoped, tag = 'input window, operand 18, single buffered']
    #allocation8 [shape = 's32[1]{0}', space=sflag, size = 0x4, scoped, tag = 'scoped memory for net_forward.12']
    %29 = vsyncpa [#allocation3], 0
    %30 = vsyncpa [#allocation5], 0
    %31 = vsyncpa [#allocation8], 0
    loop: start=0, step=1, limit=4
    $region2: #{net_forward.12} parent=1 // loop_pre_header
      _
    $region3: #{net_forward.12} parent=1 // loop_header
      %s33 = sphi 0, %s37
      %p34 = scmp.ge.s32.totalorder %s33, 4
      %s43 = sphi 0, %s45
      %s46 = sphi 0, %s43
      %s47 = sphi 0, %s46
      %s63 = sphi 0, %s47
      %s69 = sphi 0, %s71
      %s72 = sphi 0, %s69
      %s73 = sphi 0, %s72
      %s89 = sphi 0, %s73
      %s95 = sphi 0, %s97
      %s98 = sphi 0, %s95
      %s99 = sphi 0, %s98
      %s115 = sphi 0, %s99
      %s121 = sphi 0, %s123
      %s124 = sphi 0, %s121
      %s125 = sphi 0, %s124
      %s141 = sphi 0, %s125
      %s145 = sphi 0, %s145
      %s147 = sphi 0, %s145
      %s148 = sphi 0, %s147
      %s162 = sphi 0, %s148
      %s166 = sphi 0, %s166
      %s168 = sphi 0, %s166
      %s169 = sphi 0, %s168
      %s183 = sphi 0, %s169
      %s187 = sphi 0, %s187
      %s189 = sphi 0, %s187
      %s190 = sphi 0, %s189
      %s204 = sphi 0, %s190
      %s208 = sphi 0, %s208
      %s210 = sphi 0, %s208
      %s211 = sphi 0, %s210
      %s225 = sphi 0, %s211
      %s229 = sphi 0, %s229
      %s231 = sphi 0, %s229
      %s232 = sphi 0, %s231
      %s246 = sphi 0, %s232
      %s250 = sphi 0, %s250
      %s252 = sphi 0, %s250
      %s253 = sphi 0, %s252
      %s267 = sphi 0, %s253
      %s271 = sphi 0, %s271
      %s273 = sphi 0, %s271
      %s274 = sphi 0, %s273
      %s288 = sphi 0, %s274
      %s292 = sphi 0, %s292
      %s294 = sphi 0, %s292
      %s295 = sphi 0, %s294
      %s309 = sphi 0, %s295
      %s313 = sphi 0, %s313
      %s315 = sphi 0, %s313
      %s316 = sphi 0, %s315
      %s330 = sphi 0, %s316
      %s334 = sphi 0, %s334
      %s336 = sphi 0, %s334
      %s337 = sphi 0, %s336
      %s351 = sphi 0, %s337
      %s355 = sphi 0, %s355
      %s357 = sphi 0, %s355
      %s358 = sphi 0, %s357
      %s372 = sphi 0, %s358
      %s376 = sphi 0, %s376
      %s378 = sphi 0, %s376
      %s379 = sphi 0, %s378
      %s393 = sphi 0, %s379
      %s397 = sphi 0, %s397
      %s399 = sphi 0, %s397
      %s400 = sphi 0, %s399
      %s414 = sphi 0, %s400
      %s418 = sphi 0, %s418
      %s420 = sphi 0, %s418
      %s421 = sphi 0, %s420
      %s435 = sphi 0, %s421
      %s439 = sphi 0, %s439
      %s441 = sphi 0, %s439
      %s442 = sphi 0, %s441
      %s456 = sphi 0, %s442
      %s460 = sphi 0, %s460
      %s462 = sphi 0, %s460
      %s463 = sphi 0, %s462
      %s477 = sphi 0, %s463
      %s481 = sphi 0, %s481
      %s483 = sphi 0, %s481
      %s484 = sphi 0, %s483
      %s498 = sphi 0, %s484
      %s502 = sphi 0, %s502
      %s504 = sphi 0, %s502
      %s505 = sphi 0, %s504
      %s519 = sphi 0, %s505
      %s523 = sphi 0, %s523
      %s525 = sphi 0, %s523
      %s526 = sphi 0, %s525
      %s540 = sphi 0, %s526
      %s544 = sphi 0, %s544
      %s546 = sphi 0, %s544
      %s547 = sphi 0, %s546
      %s561 = sphi 0, %s547
      %s567 = sphi 0, %s569
      %s570 = sphi 0, %s567
      %s571 = sphi 0, %s570
      %s587 = sphi 0, %s571
    $region4: #{net_forward.12} parent=1 // loop_header_branch
      %36 = sbr.rel (%p34) target = $region8
    $region5: #{net_forward.12} parent=1 // loop_body
      %s38 = ssub.s32 %s33, 1
      %s39 = ssub.s32 %s33, 2
      %s40 = sadd.s32 %s33, 1
      %s41 = ssub.s32 %s33, %s40
      %p42 = scmp.eq.s32.totalorder %s41, 0
      %s44 = sadd.s32 %s43, 1
      %s45 = scalar_select %p42, %s43, %s44
      %p48 = pneg %p42
      %p49 = scmp.eq.s32.totalorder %s33, 1
      %p50 = por %p48, %p49
      %p51 = scmp.ne.s32.totalorder %s43, %s46
      %p52 = scmp.eq.s32.totalorder %s33, 0
      %p53 = por %p51, %p52
      %p54 = scmp.ne.s32.totalorder %s43, %s46
      %p55 = scmp.eq.s32.totalorder %s38, 1
      %p56 = por %p54, %p55
      %p57 = scmp.ne.s32.totalorder %s46, %s47
      %p58 = scmp.eq.s32.totalorder %s38, 0
      %p59 = por %p57, %p58
      %p60 = scmp.ne.s32.totalorder %s46, %s47
      %p61 = scmp.eq.s32.totalorder %s39, 1
      %p62 = por %p60, %p61
      %p64 = scmp.ne.s32.totalorder %s47, %s63
      %p65 = scmp.eq.s32.totalorder %s39, 0
      %p66 = por %p64, %p65
      %s67 = ssub.s32 %s33, %s40
      %p68 = scmp.eq.s32.totalorder %s67, 0
      %s70 = sadd.s32 %s69, 1
      %s71 = scalar_select %p68, %s69, %s70
      %p74 = pneg %p68
      %p75 = scmp.eq.s32.totalorder %s33, 1
      %p76 = por %p74, %p75
      %p77 = scmp.ne.s32.totalorder %s69, %s72
      %p78 = scmp.eq.s32.totalorder %s33, 0
      %p79 = por %p77, %p78
      %p80 = scmp.ne.s32.totalorder %s69, %s72
      %p81 = scmp.eq.s32.totalorder %s38, 1
      %p82 = por %p80, %p81
      %p83 = scmp.ne.s32.totalorder %s72, %s73
      %p84 = scmp.eq.s32.totalorder %s38, 0
      %p85 = por %p83, %p84
      %p86 = scmp.ne.s32.totalorder %s72, %s73
      %p87 = scmp.eq.s32.totalorder %s39, 1
      %p88 = por %p86, %p87
      %p90 = scmp.ne.s32.totalorder %s73, %s89
      %p91 = scmp.eq.s32.totalorder %s39, 0
      %p92 = por %p90, %p91
      %s93 = ssub.s32 %s33, %s40
      %p94 = scmp.eq.s32.totalorder %s93, 0
      %s96 = sadd.s32 %s95, 1
      %s97 = scalar_select %p94, %s95, %s96
      %p100 = pneg %p94
      %p101 = scmp.eq.s32.totalorder %s33, 1
      %p102 = por %p100, %p101
      %p103 = scmp.ne.s32.totalorder %s95, %s98
      %p104 = scmp.eq.s32.totalorder %s33, 0
      %p105 = por %p103, %p104
      %p106 = scmp.ne.s32.totalorder %s95, %s98
      %p107 = scmp.eq.s32.totalorder %s38, 1
      %p108 = por %p106, %p107
      %p109 = scmp.ne.s32.totalorder %s98, %s99
      %p110 = scmp.eq.s32.totalorder %s38, 0
      %p111 = por %p109, %p110
      %p112 = scmp.ne.s32.totalorder %s98, %s99
      %p113 = scmp.eq.s32.totalorder %s39, 1
      %p114 = por %p112, %p113
      %p116 = scmp.ne.s32.totalorder %s99, %s115
      %p117 = scmp.eq.s32.totalorder %s39, 0
      %p118 = por %p116, %p117
      %s119 = ssub.s32 %s33, %s40
      %p120 = scmp.eq.s32.totalorder %s119, 0
      %s122 = sadd.s32 %s121, 1
      %s123 = scalar_select %p120, %s121, %s122
      %p126 = pneg %p120
      %p127 = scmp.eq.s32.totalorder %s33, 1
      %p128 = por %p126, %p127
      %p129 = scmp.ne.s32.totalorder %s121, %s124
      %p130 = scmp.eq.s32.totalorder %s33, 0
      %p131 = por %p129, %p130
      %p132 = scmp.ne.s32.totalorder %s121, %s124
      %p133 = scmp.eq.s32.totalorder %s38, 1
      %p134 = por %p132, %p133
      %p135 = scmp.ne.s32.totalorder %s124, %s125
      %p136 = scmp.eq.s32.totalorder %s38, 0
      %p137 = por %p135, %p136
      %p138 = scmp.ne.s32.totalorder %s124, %s125
      %p139 = scmp.eq.s32.totalorder %s39, 1
      %p140 = por %p138, %p139
      %p142 = scmp.ne.s32.totalorder %s125, %s141
      %p143 = scmp.eq.s32.totalorder %s39, 0
      %p144 = por %p142, %p143
      %s146 = sadd.s32 %s145, 1
      %p149 = scmp.eq.s32.totalorder %s33, 1
      %p150 = scmp.ne.s32.totalorder %s145, %s147
      %p151 = scmp.eq.s32.totalorder %s33, 0
      %p152 = por %p150, %p151
      %p153 = scmp.ne.s32.totalorder %s145, %s147
      %p154 = scmp.eq.s32.totalorder %s38, 1
      %p155 = por %p153, %p154
      %p156 = scmp.ne.s32.totalorder %s147, %s148
      %p157 = scmp.eq.s32.totalorder %s38, 0
      %p158 = por %p156, %p157
      %p159 = scmp.ne.s32.totalorder %s147, %s148
      %p160 = scmp.eq.s32.totalorder %s39, 1
      %p161 = por %p159, %p160
      %p163 = scmp.ne.s32.totalorder %s148, %s162
      %p164 = scmp.eq.s32.totalorder %s39, 0
      %p165 = por %p163, %p164
      %s167 = sadd.s32 %s166, 1
      %p170 = scmp.eq.s32.totalorder %s33, 1
      %p171 = scmp.ne.s32.totalorder %s166, %s168
      %p172 = scmp.eq.s32.totalorder %s33, 0
      %p173 = por %p171, %p172
      %p174 = scmp.ne.s32.totalorder %s166, %s168
      %p175 = scmp.eq.s32.totalorder %s38, 1
      %p176 = por %p174, %p175
      %p177 = scmp.ne.s32.totalorder %s168, %s169
      %p178 = scmp.eq.s32.totalorder %s38, 0
      %p179 = por %p177, %p178
      %p180 = scmp.ne.s32.totalorder %s168, %s169
      %p181 = scmp.eq.s32.totalorder %s39, 1
      %p182 = por %p180, %p181
      %p184 = scmp.ne.s32.totalorder %s169, %s183
      %p185 = scmp.eq.s32.totalorder %s39, 0
      %p186 = por %p184, %p185
      %s188 = sadd.s32 %s187, 1
      %p191 = scmp.eq.s32.totalorder %s33, 1
      %p192 = scmp.ne.s32.totalorder %s187, %s189
      %p193 = scmp.eq.s32.totalorder %s33, 0
      %p194 = por %p192, %p193
      %p195 = scmp.ne.s32.totalorder %s187, %s189
      %p196 = scmp.eq.s32.totalorder %s38, 1
      %p197 = por %p195, %p196
      %p198 = scmp.ne.s32.totalorder %s189, %s190
      %p199 = scmp.eq.s32.totalorder %s38, 0
      %p200 = por %p198, %p199
      %p201 = scmp.ne.s32.totalorder %s189, %s190
      %p202 = scmp.eq.s32.totalorder %s39, 1
      %p203 = por %p201, %p202
      %p205 = scmp.ne.s32.totalorder %s190, %s204
      %p206 = scmp.eq.s32.totalorder %s39, 0
      %p207 = por %p205, %p206
      %s209 = sadd.s32 %s208, 1
      %p212 = scmp.eq.s32.totalorder %s33, 1
      %p213 = scmp.ne.s32.totalorder %s208, %s210
      %p214 = scmp.eq.s32.totalorder %s33, 0
      %p215 = por %p213, %p214
      %p216 = scmp.ne.s32.totalorder %s208, %s210
      %p217 = scmp.eq.s32.totalorder %s38, 1
      %p218 = por %p216, %p217
      %p219 = scmp.ne.s32.totalorder %s210, %s211
      %p220 = scmp.eq.s32.totalorder %s38, 0
      %p221 = por %p219, %p220
      %p222 = scmp.ne.s32.totalorder %s210, %s211
      %p223 = scmp.eq.s32.totalorder %s39, 1
      %p224 = por %p222, %p223
      %p226 = scmp.ne.s32.totalorder %s211, %s225
      %p227 = scmp.eq.s32.totalorder %s39, 0
      %p228 = por %p226, %p227
      %s230 = sadd.s32 %s229, 1
      %p233 = scmp.eq.s32.totalorder %s33, 1
      %p234 = scmp.ne.s32.totalorder %s229, %s231
      %p235 = scmp.eq.s32.totalorder %s33, 0
      %p236 = por %p234, %p235
      %p237 = scmp.ne.s32.totalorder %s229, %s231
      %p238 = scmp.eq.s32.totalorder %s38, 1
      %p239 = por %p237, %p238
      %p240 = scmp.ne.s32.totalorder %s231, %s232
      %p241 = scmp.eq.s32.totalorder %s38, 0
      %p242 = por %p240, %p241
      %p243 = scmp.ne.s32.totalorder %s231, %s232
      %p244 = scmp.eq.s32.totalorder %s39, 1
      %p245 = por %p243, %p244
      %p247 = scmp.ne.s32.totalorder %s232, %s246
      %p248 = scmp.eq.s32.totalorder %s39, 0
      %p249 = por %p247, %p248
      %s251 = sadd.s32 %s250, 1
      %p254 = scmp.eq.s32.totalorder %s33, 1
      %p255 = scmp.ne.s32.totalorder %s250, %s252
      %p256 = scmp.eq.s32.totalorder %s33, 0
      %p257 = por %p255, %p256
      %p258 = scmp.ne.s32.totalorder %s250, %s252
      %p259 = scmp.eq.s32.totalorder %s38, 1
      %p260 = por %p258, %p259
      %p261 = scmp.ne.s32.totalorder %s252, %s253
      %p262 = scmp.eq.s32.totalorder %s38, 0
      %p263 = por %p261, %p262
      %p264 = scmp.ne.s32.totalorder %s252, %s253
      %p265 = scmp.eq.s32.totalorder %s39, 1
      %p266 = por %p264, %p265
      %p268 = scmp.ne.s32.totalorder %s253, %s267
      %p269 = scmp.eq.s32.totalorder %s39, 0
      %p270 = por %p268, %p269
      %s272 = sadd.s32 %s271, 1
      %p275 = scmp.eq.s32.totalorder %s33, 1
      %p276 = scmp.ne.s32.totalorder %s271, %s273
      %p277 = scmp.eq.s32.totalorder %s33, 0
      %p278 = por %p276, %p277
      %p279 = scmp.ne.s32.totalorder %s271, %s273
      %p280 = scmp.eq.s32.totalorder %s38, 1
      %p281 = por %p279, %p280
      %p282 = scmp.ne.s32.totalorder %s273, %s274
      %p283 = scmp.eq.s32.totalorder %s38, 0
      %p284 = por %p282, %p283
      %p285 = scmp.ne.s32.totalorder %s273, %s274
      %p286 = scmp.eq.s32.totalorder %s39, 1
      %p287 = por %p285, %p286
      %p289 = scmp.ne.s32.totalorder %s274, %s288
      %p290 = scmp.eq.s32.totalorder %s39, 0
      %p291 = por %p289, %p290
      %s293 = sadd.s32 %s292, 1
      %p296 = scmp.eq.s32.totalorder %s33, 1
      %p297 = scmp.ne.s32.totalorder %s292, %s294
      %p298 = scmp.eq.s32.totalorder %s33, 0
      %p299 = por %p297, %p298
      %p300 = scmp.ne.s32.totalorder %s292, %s294
      %p301 = scmp.eq.s32.totalorder %s38, 1
      %p302 = por %p300, %p301
      %p303 = scmp.ne.s32.totalorder %s294, %s295
      %p304 = scmp.eq.s32.totalorder %s38, 0
      %p305 = por %p303, %p304
      %p306 = scmp.ne.s32.totalorder %s294, %s295
      %p307 = scmp.eq.s32.totalorder %s39, 1
      %p308 = por %p306, %p307
      %p310 = scmp.ne.s32.totalorder %s295, %s309
      %p311 = scmp.eq.s32.totalorder %s39, 0
      %p312 = por %p310, %p311
      %s314 = sadd.s32 %s313, 1
      %p317 = scmp.eq.s32.totalorder %s33, 1
      %p318 = scmp.ne.s32.totalorder %s313, %s315
      %p319 = scmp.eq.s32.totalorder %s33, 0
      %p320 = por %p318, %p319
      %p321 = scmp.ne.s32.totalorder %s313, %s315
      %p322 = scmp.eq.s32.totalorder %s38, 1
      %p323 = por %p321, %p322
      %p324 = scmp.ne.s32.totalorder %s315, %s316
      %p325 = scmp.eq.s32.totalorder %s38, 0
      %p326 = por %p324, %p325
      %p327 = scmp.ne.s32.totalorder %s315, %s316
      %p328 = scmp.eq.s32.totalorder %s39, 1
      %p329 = por %p327, %p328
      %p331 = scmp.ne.s32.totalorder %s316, %s330
      %p332 = scmp.eq.s32.totalorder %s39, 0
      %p333 = por %p331, %p332
      %s335 = sadd.s32 %s334, 1
      %p338 = scmp.eq.s32.totalorder %s33, 1
      %p339 = scmp.ne.s32.totalorder %s334, %s336
      %p340 = scmp.eq.s32.totalorder %s33, 0
      %p341 = por %p339, %p340
      %p342 = scmp.ne.s32.totalorder %s334, %s336
      %p343 = scmp.eq.s32.totalorder %s38, 1
      %p344 = por %p342, %p343
      %p345 = scmp.ne.s32.totalorder %s336, %s337
      %p346 = scmp.eq.s32.totalorder %s38, 0
      %p347 = por %p345, %p346
      %p348 = scmp.ne.s32.totalorder %s336, %s337
      %p349 = scmp.eq.s32.totalorder %s39, 1
      %p350 = por %p348, %p349
      %p352 = scmp.ne.s32.totalorder %s337, %s351
      %p353 = scmp.eq.s32.totalorder %s39, 0
      %p354 = por %p352, %p353
      %s356 = sadd.s32 %s355, 1
      %p359 = scmp.eq.s32.totalorder %s33, 1
      %p360 = scmp.ne.s32.totalorder %s355, %s357
      %p361 = scmp.eq.s32.totalorder %s33, 0
      %p362 = por %p360, %p361
      %p363 = scmp.ne.s32.totalorder %s355, %s357
      %p364 = scmp.eq.s32.totalorder %s38, 1
      %p365 = por %p363, %p364
      %p366 = scmp.ne.s32.totalorder %s357, %s358
      %p367 = scmp.eq.s32.totalorder %s38, 0
      %p368 = por %p366, %p367
      %p369 = scmp.ne.s32.totalorder %s357, %s358
      %p370 = scmp.eq.s32.totalorder %s39, 1
      %p371 = por %p369, %p370
      %p373 = scmp.ne.s32.totalorder %s358, %s372
      %p374 = scmp.eq.s32.totalorder %s39, 0
      %p375 = por %p373, %p374
      %s377 = sadd.s32 %s376, 1
      %p380 = scmp.eq.s32.totalorder %s33, 1
      %p381 = scmp.ne.s32.totalorder %s376, %s378
      %p382 = scmp.eq.s32.totalorder %s33, 0
      %p383 = por %p381, %p382
      %p384 = scmp.ne.s32.totalorder %s376, %s378
      %p385 = scmp.eq.s32.totalorder %s38, 1
      %p386 = por %p384, %p385
      %p387 = scmp.ne.s32.totalorder %s378, %s379
      %p388 = scmp.eq.s32.totalorder %s38, 0
      %p389 = por %p387, %p388
      %p390 = scmp.ne.s32.totalorder %s378, %s379
      %p391 = scmp.eq.s32.totalorder %s39, 1
      %p392 = por %p390, %p391
      %p394 = scmp.ne.s32.totalorder %s379, %s393
      %p395 = scmp.eq.s32.totalorder %s39, 0
      %p396 = por %p394, %p395
      %s398 = sadd.s32 %s397, 1
      %p401 = scmp.eq.s32.totalorder %s33, 1
      %p402 = scmp.ne.s32.totalorder %s397, %s399
      %p403 = scmp.eq.s32.totalorder %s33, 0
      %p404 = por %p402, %p403
      %p405 = scmp.ne.s32.totalorder %s397, %s399
      %p406 = scmp.eq.s32.totalorder %s38, 1
      %p407 = por %p405, %p406
      %p408 = scmp.ne.s32.totalorder %s399, %s400
      %p409 = scmp.eq.s32.totalorder %s38, 0
      %p410 = por %p408, %p409
      %p411 = scmp.ne.s32.totalorder %s399, %s400
      %p412 = scmp.eq.s32.totalorder %s39, 1
      %p413 = por %p411, %p412
      %p415 = scmp.ne.s32.totalorder %s400, %s414
      %p416 = scmp.eq.s32.totalorder %s39, 0
      %p417 = por %p415, %p416
      %s419 = sadd.s32 %s418, 1
      %p422 = scmp.eq.s32.totalorder %s33, 1
      %p423 = scmp.ne.s32.totalorder %s418, %s420
      %p424 = scmp.eq.s32.totalorder %s33, 0
      %p425 = por %p423, %p424
      %p426 = scmp.ne.s32.totalorder %s418, %s420
      %p427 = scmp.eq.s32.totalorder %s38, 1
      %p428 = por %p426, %p427
      %p429 = scmp.ne.s32.totalorder %s420, %s421
      %p430 = scmp.eq.s32.totalorder %s38, 0
      %p431 = por %p429, %p430
      %p432 = scmp.ne.s32.totalorder %s420, %s421
      %p433 = scmp.eq.s32.totalorder %s39, 1
      %p434 = por %p432, %p433
      %p436 = scmp.ne.s32.totalorder %s421, %s435
      %p437 = scmp.eq.s32.totalorder %s39, 0
      %p438 = por %p436, %p437
      %s440 = sadd.s32 %s439, 1
      %p443 = scmp.eq.s32.totalorder %s33, 1
      %p444 = scmp.ne.s32.totalorder %s439, %s441
      %p445 = scmp.eq.s32.totalorder %s33, 0
      %p446 = por %p444, %p445
      %p447 = scmp.ne.s32.totalorder %s439, %s441
      %p448 = scmp.eq.s32.totalorder %s38, 1
      %p449 = por %p447, %p448
      %p450 = scmp.ne.s32.totalorder %s441, %s442
      %p451 = scmp.eq.s32.totalorder %s38, 0
      %p452 = por %p450, %p451
      %p453 = scmp.ne.s32.totalorder %s441, %s442
      %p454 = scmp.eq.s32.totalorder %s39, 1
      %p455 = por %p453, %p454
      %p457 = scmp.ne.s32.totalorder %s442, %s456
      %p458 = scmp.eq.s32.totalorder %s39, 0
      %p459 = por %p457, %p458
      %s461 = sadd.s32 %s460, 1
      %p464 = scmp.eq.s32.totalorder %s33, 1
      %p465 = scmp.ne.s32.totalorder %s460, %s462
      %p466 = scmp.eq.s32.totalorder %s33, 0
      %p467 = por %p465, %p466
      %p468 = scmp.ne.s32.totalorder %s460, %s462
      %p469 = scmp.eq.s32.totalorder %s38, 1
      %p470 = por %p468, %p469
      %p471 = scmp.ne.s32.totalorder %s462, %s463
      %p472 = scmp.eq.s32.totalorder %s38, 0
      %p473 = por %p471, %p472
      %p474 = scmp.ne.s32.totalorder %s462, %s463
      %p475 = scmp.eq.s32.totalorder %s39, 1
      %p476 = por %p474, %p475
      %p478 = scmp.ne.s32.totalorder %s463, %s477
      %p479 = scmp.eq.s32.totalorder %s39, 0
      %p480 = por %p478, %p479
      %s482 = sadd.s32 %s481, 1
      %p485 = scmp.eq.s32.totalorder %s33, 1
      %p486 = scmp.ne.s32.totalorder %s481, %s483
      %p487 = scmp.eq.s32.totalorder %s33, 0
      %p488 = por %p486, %p487
      %p489 = scmp.ne.s32.totalorder %s481, %s483
      %p490 = scmp.eq.s32.totalorder %s38, 1
      %p491 = por %p489, %p490
      %p492 = scmp.ne.s32.totalorder %s483, %s484
      %p493 = scmp.eq.s32.totalorder %s38, 0
      %p494 = por %p492, %p493
      %p495 = scmp.ne.s32.totalorder %s483, %s484
      %p496 = scmp.eq.s32.totalorder %s39, 1
      %p497 = por %p495, %p496
      %p499 = scmp.ne.s32.totalorder %s484, %s498
      %p500 = scmp.eq.s32.totalorder %s39, 0
      %p501 = por %p499, %p500
      %s503 = sadd.s32 %s502, 1
      %p506 = scmp.eq.s32.totalorder %s33, 1
      %p507 = scmp.ne.s32.totalorder %s502, %s504
      %p508 = scmp.eq.s32.totalorder %s33, 0
      %p509 = por %p507, %p508
      %p510 = scmp.ne.s32.totalorder %s502, %s504
      %p511 = scmp.eq.s32.totalorder %s38, 1
      %p512 = por %p510, %p511
      %p513 = scmp.ne.s32.totalorder %s504, %s505
      %p514 = scmp.eq.s32.totalorder %s38, 0
      %p515 = por %p513, %p514
      %p516 = scmp.ne.s32.totalorder %s504, %s505
      %p517 = scmp.eq.s32.totalorder %s39, 1
      %p518 = por %p516, %p517
      %p520 = scmp.ne.s32.totalorder %s505, %s519
      %p521 = scmp.eq.s32.totalorder %s39, 0
      %p522 = por %p520, %p521
      %s524 = sadd.s32 %s523, 1
      %p527 = scmp.eq.s32.totalorder %s33, 1
      %p528 = scmp.ne.s32.totalorder %s523, %s525
      %p529 = scmp.eq.s32.totalorder %s33, 0
      %p530 = por %p528, %p529
      %p531 = scmp.ne.s32.totalorder %s523, %s525
      %p532 = scmp.eq.s32.totalorder %s38, 1
      %p533 = por %p531, %p532
      %p534 = scmp.ne.s32.totalorder %s525, %s526
      %p535 = scmp.eq.s32.totalorder %s38, 0
      %p536 = por %p534, %p535
      %p537 = scmp.ne.s32.totalorder %s525, %s526
      %p538 = scmp.eq.s32.totalorder %s39, 1
      %p539 = por %p537, %p538
      %p541 = scmp.ne.s32.totalorder %s526, %s540
      %p542 = scmp.eq.s32.totalorder %s39, 0
      %p543 = por %p541, %p542
      %s545 = sadd.s32 %s544, 1
      %p548 = scmp.eq.s32.totalorder %s33, 1
      %p549 = scmp.ne.s32.totalorder %s544, %s546
      %p550 = scmp.eq.s32.totalorder %s33, 0
      %p551 = por %p549, %p550
      %p552 = scmp.ne.s32.totalorder %s544, %s546
      %p553 = scmp.eq.s32.totalorder %s38, 1
      %p554 = por %p552, %p553
      %p555 = scmp.ne.s32.totalorder %s546, %s547
      %p556 = scmp.eq.s32.totalorder %s38, 0
      %p557 = por %p555, %p556
      %p558 = scmp.ne.s32.totalorder %s546, %s547
      %p559 = scmp.eq.s32.totalorder %s39, 1
      %p560 = por %p558, %p559
      %p562 = scmp.ne.s32.totalorder %s547, %s561
      %p563 = scmp.eq.s32.totalorder %s39, 0
      %p564 = por %p562, %p563
      %s565 = ssub.s32 %s33, %s40
      %p566 = scmp.eq.s32.totalorder %s565, 0
      %s568 = sadd.s32 %s567, 1
      %s569 = scalar_select %p566, %s567, %s568
      %p572 = pneg %p566
      %p573 = scmp.eq.s32.totalorder %s33, 1
      %p574 = por %p572, %p573
      %p575 = scmp.ne.s32.totalorder %s567, %s570
      %p576 = scmp.eq.s32.totalorder %s33, 0
      %p577 = por %p575, %p576
      %p578 = scmp.ne.s32.totalorder %s567, %s570
      %p579 = scmp.eq.s32.totalorder %s38, 1
      %p580 = por %p578, %p579
      %p581 = scmp.ne.s32.totalorder %s570, %s571
      %p582 = scmp.eq.s32.totalorder %s38, 0
      %p583 = por %p581, %p582
      %p584 = scmp.ne.s32.totalorder %s570, %s571
      %p585 = scmp.eq.s32.totalorder %s39, 1
      %p586 = por %p584, %p585
      %p588 = scmp.ne.s32.totalorder %s571, %s587
      %p589 = scmp.eq.s32.totalorder %s39, 0
      %p590 = por %p588, %p589
      %p591 = scmp.le.s32.totalorder 1, %s33
      %p592 = scmp.lt.s32.totalorder %s33, 3
      %p593 = pnand %p591, %p592
      %p594 = pneg %p593
      // Predicated region
      $region9: #{net_forward.12} parent=5 // pred_check
        _
      $region10: #{net_forward.12} parent=5 // pred_check_branch
        %596 = sbr.rel (%p593) target = $region12
      $region11: #{net_forward.12} parent=5 // pred_region
        %s597 = ssub.s32 %s33, 1
        // Predicated region
        $region13: #{net_forward.12} parent=11 // pred_check
          %p598 = pneg %p158
        $region14: #{net_forward.12} parent=11 // pred_check_branch
          %600 = sbr.rel (%p598) target = $region16
        $region15: #{net_forward.12} parent=11 // pred_region
          _
        $region16: #{net_forward.12} parent=11 // pred_fallthru
          _
        // Predicated region
        $region17: #{net_forward.12} parent=11 // pred_check
          %p601 = pneg %p179
        $region18: #{net_forward.12} parent=11 // pred_check_branch
          %603 = sbr.rel (%p601) target = $region20
        $region19: #{net_forward.12} parent=11 // pred_region
          _
        $region20: #{net_forward.12} parent=11 // pred_fallthru
          _
        // Predicated region
        $region21: #{net_forward.12} parent=11 // pred_check
          %p604 = pneg %p200
        $region22: #{net_forward.12} parent=11 // pred_check_branch
          %606 = sbr.rel (%p604) target = $region24
        $region23: #{net_forward.12} parent=11 // pred_region
          _
        $region24: #{net_forward.12} parent=11 // pred_fallthru
          _
        // Predicated region
        $region25: #{net_forward.12} parent=11 // pred_check
          %p607 = pneg %p221
        $region26: #{net_forward.12} parent=11 // pred_check_branch
          %609 = sbr.rel (%p607) target = $region28
        $region27: #{net_forward.12} parent=11 // pred_region
          _
        $region28: #{net_forward.12} parent=11 // pred_fallthru
          _
        // Predicated region
        $region29: #{net_forward.12} parent=11 // pred_check
          %p610 = pneg %p242
        $region30: #{net_forward.12} parent=11 // pred_check_branch
          %612 = sbr.rel (%p610) target = $region32
        $region31: #{net_forward.12} parent=11 // pred_region
          _
        $region32: #{net_forward.12} parent=11 // pred_fallthru
          _
        // Predicated region
        $region33: #{net_forward.12} parent=11 // pred_check
          %p613 = pneg %p263
        $region34: #{net_forward.12} parent=11 // pred_check_branch
          %615 = sbr.rel (%p613) target = $region36
        $region35: #{net_forward.12} parent=11 // pred_region
          _
        $region36: #{net_forward.12} parent=11 // pred_fallthru
          _
        // Predicated region
        $region37: #{net_forward.12} parent=11 // pred_check
          %p616 = pneg %p284
        $region38: #{net_forward.12} parent=11 // pred_check_branch
          %618 = sbr.rel (%p616) target = $region40
        $region39: #{net_forward.12} parent=11 // pred_region
          %620 = vsyncadd [#allocation3], 0
          %s621 = sshll.u32 %s10, 4
          %s622 = int_to_ptr.hbm [resolvable:$true] %s621
          %s623 = sshll.u32 [#allocation2], 4
          %s624 = int_to_ptr.vmem [resolvable:$true] %s623
          %629 = dma.hbm_to_vmem [thread:$0]  %s622, 512, %s624, [#allocation3], 128, 128, 8
        $region40: #{net_forward.12} parent=11 // pred_fallthru
          _
        // Predicated region
        $region41: #{net_forward.12} parent=11 // pred_check
          %p630 = pneg %p305
        $region42: #{net_forward.12} parent=11 // pred_check_branch
          %632 = sbr.rel (%p630) target = $region44
        $region43: #{net_forward.12} parent=11 // pred_region
          _
        $region44: #{net_forward.12} parent=11 // pred_fallthru
          _
        // Predicated region
        $region45: #{net_forward.12} parent=11 // pred_check
          %p633 = pneg %p326
        $region46: #{net_forward.12} parent=11 // pred_check_branch
          %635 = sbr.rel (%p633) target = $region48
        $region47: #{net_forward.12} parent=11 // pred_region
          %637 = vsyncadd [#allocation5], 0
          %s638 = sshll.u32 %s12, 4
          %s639 = int_to_ptr.hbm [resolvable:$true] %s638
          %s640 = sshll.u32 [#allocation4], 4
          %s641 = int_to_ptr.vmem [resolvable:$true] %s640
          %646 = dma.hbm_to_vmem [thread:$0]  %s639, 512, %s641, [#allocation5], 128, 128, 8
        $region48: #{net_forward.12} parent=11 // pred_fallthru
          _
        // Predicated region
        $region49: #{net_forward.12} parent=11 // pred_check
          %p647 = pneg %p347
        $region50: #{net_forward.12} parent=11 // pred_check_branch
          %649 = sbr.rel (%p647) target = $region52
        $region51: #{net_forward.12} parent=11 // pred_region
          _
        $region52: #{net_forward.12} parent=11 // pred_fallthru
          _
        // Predicated region
        $region53: #{net_forward.12} parent=11 // pred_check
          %p650 = pneg %p368
        $region54: #{net_forward.12} parent=11 // pred_check_branch
          %652 = sbr.rel (%p650) target = $region56
        $region55: #{net_forward.12} parent=11 // pred_region
          %654 = vsyncadd [#allocation5], 0
          %s655 = sshll.u32 %s14, 4
          %s656 = int_to_ptr.hbm [resolvable:$true] %s655
          %s657 = sshll.u32 [#allocation6], 4
          %s658 = int_to_ptr.vmem [resolvable:$true] %s657
          %663 = dma.hbm_to_vmem [thread:$0]  %s656, 512, %s658, [#allocation5], 128, 128, 8
        $region56: #{net_forward.12} parent=11 // pred_fallthru
          _
        // Predicated region
        $region57: #{net_forward.12} parent=11 // pred_check
          %p664 = pneg %p389
        $region58: #{net_forward.12} parent=11 // pred_check_branch
          %666 = sbr.rel (%p664) target = $region60
        $region59: #{net_forward.12} parent=11 // pred_region
          _
        $region60: #{net_forward.12} parent=11 // pred_fallthru
          _
        // Predicated region
        $region61: #{net_forward.12} parent=11 // pred_check
          %p667 = pneg %p410
        $region62: #{net_forward.12} parent=11 // pred_check_branch
          %669 = sbr.rel (%p667) target = $region64
        $region63: #{net_forward.12} parent=11 // pred_region
          _
        $region64: #{net_forward.12} parent=11 // pred_fallthru
          _
        // Predicated region
        $region65: #{net_forward.12} parent=11 // pred_check
          %p670 = pneg %p431
        $region66: #{net_forward.12} parent=11 // pred_check_branch
          %672 = sbr.rel (%p670) target = $region68
        $region67: #{net_forward.12} parent=11 // pred_region
          _
        $region68: #{net_forward.12} parent=11 // pred_fallthru
          _
        // Predicated region
        $region69: #{net_forward.12} parent=11 // pred_check
          %p673 = pneg %p452
        $region70: #{net_forward.12} parent=11 // pred_check_branch
          %675 = sbr.rel (%p673) target = $region72
        $region71: #{net_forward.12} parent=11 // pred_region
          %677 = vsyncadd [#allocation8], 0
          %s678 = sshll.u32 %s18, 4
          %s679 = int_to_ptr.hbm [resolvable:$true] %s678
          %s680 = sshll.u32 [#allocation7], 4
          %s681 = int_to_ptr.vmem [resolvable:$true] %s680
          %686 = dma.hbm_to_vmem [thread:$0]  %s679, 512, %s681, [#allocation8], 128, 128, 8
        $region72: #{net_forward.12} parent=11 // pred_fallthru
          _
        // Predicated region
        $region73: #{net_forward.12} parent=11 // pred_check
          %p687 = pneg %p473
        $region74: #{net_forward.12} parent=11 // pred_check_branch
          %689 = sbr.rel (%p687) target = $region76
        $region75: #{net_forward.12} parent=11 // pred_region
          _
        $region76: #{net_forward.12} parent=11 // pred_fallthru
          _
        // Predicated region
        $region77: #{net_forward.12} parent=11 // pred_check
          %p690 = pneg %p494
        $region78: #{net_forward.12} parent=11 // pred_check_branch
          %692 = sbr.rel (%p690) target = $region80
        $region79: #{net_forward.12} parent=11 // pred_region
          _
        $region80: #{net_forward.12} parent=11 // pred_fallthru
          _
        // Predicated region
        $region81: #{net_forward.12} parent=11 // pred_check
          %p693 = pneg %p515
        $region82: #{net_forward.12} parent=11 // pred_check_branch
          %695 = sbr.rel (%p693) target = $region84
        $region83: #{net_forward.12} parent=11 // pred_region
          _
        $region84: #{net_forward.12} parent=11 // pred_fallthru
          _
        // Predicated region
        $region85: #{net_forward.12} parent=11 // pred_check
          %p696 = pneg %p536
        $region86: #{net_forward.12} parent=11 // pred_check_branch
          %698 = sbr.rel (%p696) target = $region88
        $region87: #{net_forward.12} parent=11 // pred_region
          _
        $region88: #{net_forward.12} parent=11 // pred_fallthru
          _
        // Predicated region
        $region89: #{net_forward.12} parent=11 // pred_check
          %p699 = pneg %p557
        $region90: #{net_forward.12} parent=11 // pred_check_branch
          %701 = sbr.rel (%p699) target = $region92
        $region91: #{net_forward.12} parent=11 // pred_region
          _
        $region92: #{net_forward.12} parent=11 // pred_fallthru
          _
      $region12: #{net_forward.12} parent=5 // pred_fallthru
        _
      %p702 = scmp.lt.s32.totalorder %s33, 2
      // Predicated region
      $region93: #{net_forward.12} parent=5 // pred_check
        %p703 = pneg %p702
      $region94: #{net_forward.12} parent=5 // pred_check_branch
        %705 = sbr.rel (%p703) target = $region96
      $region95: #{net_forward.12} parent=5 // pred_region
        // Predicated region
        $region97: #{net_forward.12} parent=95 // pred_check
          %p706 = pneg %p53
        $region98: #{net_forward.12} parent=95 // pred_check_branch
          %708 = sbr.rel (%p706) target = $region100
        $region99: #{net_forward.12} parent=95 // pred_region
          %p709 = scmp.lt.s32.totalorder %s33, 1
          %s710 = scalar_select %p709, %s33, 1
          %s711 = smul.addr %s710, 2
          %s712 = smul.addr %s711, 8
          %s713 = scalar_lea.vmem %s0, %s712
        $region100: #{net_forward.12} parent=95 // pred_fallthru
          _
        // Predicated region
        $region101: #{net_forward.12} parent=95 // pred_check
          %p714 = pneg %p79
        $region102: #{net_forward.12} parent=95 // pred_check_branch
          %716 = sbr.rel (%p714) target = $region104
        $region103: #{net_forward.12} parent=95 // pred_region
          %p717 = scmp.lt.s32.totalorder %s33, 1
          %s718 = scalar_select %p717, %s33, 1
          %s719 = smul.addr %s718, 8
          %s720 = scalar_lea.vmem %s1, %s719
        $region104: #{net_forward.12} parent=95 // pred_fallthru
          _
        // Predicated region
        $region105: #{net_forward.12} parent=95 // pred_check
          %p721 = pneg %p105
        $region106: #{net_forward.12} parent=95 // pred_check_branch
          %723 = sbr.rel (%p721) target = $region108
        $region107: #{net_forward.12} parent=95 // pred_region
          %p724 = scmp.lt.s32.totalorder %s33, 1
          %s725 = scalar_select %p724, %s33, 1
          %s726 = scalar_lea.vmem %s2, %s725
        $region108: #{net_forward.12} parent=95 // pred_fallthru
          _
        // Predicated region
        $region109: #{net_forward.12} parent=95 // pred_check
          %p727 = pneg %p131
        $region110: #{net_forward.12} parent=95 // pred_check_branch
          %729 = sbr.rel (%p727) target = $region112
        $region111: #{net_forward.12} parent=95 // pred_region
          %p730 = scmp.lt.s32.totalorder %s33, 1
          %s731 = scalar_select %p730, %s33, 1
          %s732 = scalar_lea.vmem %s3, %s731
        $region112: #{net_forward.12} parent=95 // pred_fallthru
          _
      $region96: #{net_forward.12} parent=5 // pred_fallthru
        _
      %p733 = scmp.le.s32.totalorder 1, %s33
      %p734 = scmp.lt.s32.totalorder %s33, 3
      %p735 = pnand %p733, %p734
      %p736 = pneg %p735
      // Predicated region
      $region113: #{net_forward.12} parent=5 // pred_check
        _
      $region114: #{net_forward.12} parent=5 // pred_check_branch
        %738 = sbr.rel (%p735) target = $region116
      $region115: #{net_forward.12} parent=5 // pred_region
        %s739 = ssub.s32 %s33, 1
        // Predicated region
        $region117: #{net_forward.12} parent=115 // pred_check
          %p740 = pneg %p284
        $region118: #{net_forward.12} parent=115 // pred_check_branch
          %742 = sbr.rel (%p740) target = $region120
        $region119: #{net_forward.12} parent=115 // pred_region
          %744 = dma.done [#allocation3], 512
        $region120: #{net_forward.12} parent=115 // pred_fallthru
          _
        // Predicated region
        $region121: #{net_forward.12} parent=115 // pred_check
          %p745 = pneg %p326
        $region122: #{net_forward.12} parent=115 // pred_check_branch
          %747 = sbr.rel (%p745) target = $region124
        $region123: #{net_forward.12} parent=115 // pred_region
          %749 = dma.done [#allocation5], 512
        $region124: #{net_forward.12} parent=115 // pred_fallthru
          _
        // Predicated region
        $region125: #{net_forward.12} parent=115 // pred_check
          %p750 = pneg %p368
        $region126: #{net_forward.12} parent=115 // pred_check_branch
          %752 = sbr.rel (%p750) target = $region128
        $region127: #{net_forward.12} parent=115 // pred_region
          %754 = dma.done [#allocation5], 512
        $region128: #{net_forward.12} parent=115 // pred_fallthru
          _
        // Predicated region
        $region129: #{net_forward.12} parent=115 // pred_check
          %p755 = pneg %p452
        $region130: #{net_forward.12} parent=115 // pred_check_branch
          %757 = sbr.rel (%p755) target = $region132
        $region131: #{net_forward.12} parent=115 // pred_region
          %759 = dma.done [#allocation8], 512
        $region132: #{net_forward.12} parent=115 // pred_fallthru
          _
        %p760 = scmp.lt.s32.totalorder %s38, 1
        %s761 = scalar_select %p760, %s38, 1
        %s762 = smul.addr %s761, 2
        %s763 = smul.addr %s762, 8
        %s764 = scalar_lea.vmem %s0, %s763
        %p765 = pneg %p59
        %p766 = pneg %p56
        %p767 = scmp.lt.s32.totalorder %s38, 1
        %s768 = scalar_select %p767, %s38, 1
        %s769 = smul.addr %s768, 8
        %s770 = scalar_lea.vmem %s1, %s769
        %p771 = pneg %p85
        %p772 = pneg %p82
        %p773 = scmp.lt.s32.totalorder %s38, 1
        %s774 = scalar_select %p773, %s38, 1
        %s775 = scalar_lea.vmem %s2, %s774
        %p776 = pneg %p111
        %p777 = pneg %p108
        %p778 = scmp.lt.s32.totalorder %s38, 1
        %s779 = scalar_select %p778, %s38, 1
        %s780 = scalar_lea.vmem %s3, %s779
        %p781 = pneg %p137
        %p782 = pneg %p134
        %p783 = pneg %p158
        %p784 = pneg %p155
        %p785 = pneg %p179
        %p786 = pneg %p176
        %p787 = pneg %p200
        %p788 = pneg %p197
        %p789 = pneg %p221
        %p790 = pneg %p218
        %p791 = pneg %p242
        %p792 = pneg %p239
        %p793 = pneg %p263
        %p794 = pneg %p260
        %p795 = pneg %p284
        %p796 = pneg %p281
        %p797 = pneg %p305
        %p798 = pneg %p302
        %p799 = pneg %p326
        %p800 = pneg %p323
        %p801 = pneg %p347
        %p802 = pneg %p344
        %p803 = pneg %p368
        %p804 = pneg %p365
        %p805 = pneg %p389
        %p806 = pneg %p386
        %p807 = pneg %p410
        %p808 = pneg %p407
        %p809 = pneg %p431
        %p810 = pneg %p428
        %p811 = pneg %p452
        %p812 = pneg %p449
        %p813 = pneg %p473
        %p814 = pneg %p470
        %p815 = pneg %p494
        %p816 = pneg %p491
        %p817 = pneg %p515
        %p818 = pneg %p512
        %p819 = pneg %p536
        %p820 = pneg %p533
        %p821 = pneg %p557
        %p822 = pneg %p554
        %p823 = pneg %p583
        %p824 = pneg %p580
        %p825 = scmp.lt.s32.totalorder %s38, 1
        %s826 = scalar_select %p825, %s38, 1
        %s827 = smul.addr %s826, 2
        %s828 = smul.addr %s827, 8
        %s829 = scalar_lea.vmem %s24, %s828
        %p830 = scmp.lt.s32.totalorder %s38, 1
        %s831 = scalar_select %p830, %s38, 1
        %s832 = smul.addr %s831, 2
        %s833 = smul.addr %s832, 8
        %s834 = scalar_lea.vmem %s0, %s833
        %p835 = scmp.lt.s32.totalorder %s38, 1
        %s836 = scalar_select %p835, %s38, 1
        %s837 = smul.addr %s836, 8
        %s838 = scalar_lea.vmem %s1, %s837
        %p839 = scmp.lt.s32.totalorder %s38, 1
        %s840 = scalar_select %p839, %s38, 1
        %s841 = scalar_lea.vmem %s2, %s840
        %p842 = scmp.lt.s32.totalorder %s38, 1
        %s843 = scalar_select %p842, %s38, 1
        %s844 = scalar_lea.vmem %s3, %s843
        %p845 = scmp.lt.s32.totalorder %s38, 1
        %s846 = scalar_select %p845, %s38, 1
        %s847 = smul.addr %s846, 2
        %s848 = smul.addr %s847, 8
        %s849 = scalar_lea.vmem %s24, %s848
        %v850 = vld [vmem:[%s834] sm:$0xff]
        %v851 = vld [vmem:[%s834 + $0x8] sm:$0xff]
        %v852 = vld [vmem:[%s838] sm:$0xff]
        %v853 = vld [vmem:[%s841] sm:$0x1]
        %v854 = vld [vmem:[%s844] sm:$0x1]
        %v855 = vld [vmem:[%s4] sm:$0xff]
        %v856 = vld [vmem:[%s4 + $0x8] sm:$0xff]
        %v857 = vld [vmem:[%s4 + $0x10] sm:$0xff]
        %v858 = vld [vmem:[%s4 + $0x18] sm:$0xff]
        %v859 = vld [vmem:[%s5] sm:$0x1]
        %v860 = vld [vmem:[%s6] sm:$0xff]
        %v861 = vld [vmem:[%s6 + $0x8] sm:$0xff]
        %v862 = vld [vmem:[%s6 + $0x10] sm:$0xff]
        %v863 = vld [vmem:[%s6 + $0x18] sm:$0xff]
        %v864 = vld [vmem:[%s7] sm:$0x1]
        %v866 = vperm.slane %v859, 0
        %vm868 = vcmask 261120
        %v870 = vsel %vm868, %v850, 0
        %v873 = vsel %vm868, %v851, 0
        %875 = vmatpush.msra.mxu0 0.0
        %876 = vmatpush.msra.mxu0 0.0
        %877 = vmatpush.msra.mxu0 0.0
        %878 = vmatpush.msra.mxu0 0.0
        %879 = vmatpush.msra.mxu0 0.0
        %880 = vmatpush.msra.mxu0 0.0
        %881 = vmatpush.msra.mxu0 0.0
        %882 = vmatpush.msra.mxu0 0.0
        %883 = vmatpush.msra.mxu0 0.0
        %884 = vmatpush.msra.mxu0 0.0
        %885 = vmatpush.msra.mxu0 0.0
        %886 = vmatpush.msra.mxu0 0.0
        %887 = vmatpush.msra.mxu0 %v858
        %888 = vmatpush.msra.mxu0 %v857
        %889 = vmatpush.msra.mxu0 %v856
        %890 = vmatpush.msra.mxu0 %v855
        %891 = vmatmul.f32.gmra.mxu0 %v870
        %v892 = vpop.f32.mrf.mxu0
        %v893 = vadd.f32 %v866, %v892
        %894 = vmatmul.f32.gmra.mxu0 %v873
        %v895 = vpop.f32.mrf.mxu0
        %v896 = vadd.f32 %v866, %v895
        %897 = vdwg.mxu0
        %900 = vrot.lane.b32.xlu0 %v893, 96
        %v901 = vpop.permute.xlu0 %900
        %902 = vrot.lane.b32.xlu0 %v896, 96
        %v903 = vpop.permute.xlu0 %902
        %vm904 = vcmask 64512
        %v905 = vsel %vm904, %v893, 0
        %v907 = vsel %vm904, %v896, 0
        %v909 = vsel %vm904, %v901, 0
        %v911 = vsel %vm904, %v903, 0
        %913 = vmatpush.xpose.msra.mxu0 0.0
        %914 = vmatpush.xpose.msra.mxu0 0.0
        %915 = vmatpush.xpose.msra.mxu0 0.0
        %916 = vmatpush.xpose.msra.mxu0 0.0
        %917 = vmatpush.xpose.msra.mxu0 0.0
        %918 = vmatpush.xpose.msra.mxu0 0.0
        %919 = vmatpush.xpose.msra.mxu0 0.0
        %920 = vmatpush.xpose.msra.mxu0 0.0
        %921 = vmatpush.xpose.msra.mxu0 0.0
        %922 = vmatpush.xpose.msra.mxu0 0.0
        %923 = vmatpush.xpose.msra.mxu0 0.0
        %924 = vmatpush.xpose.msra.mxu0 0.0
        %925 = vmatpush.xpose.msra.mxu0 0.0
        %926 = vmatpush.xpose.msra.mxu0 0.0
        %927 = vmatpush.xpose.msra.mxu0 %v911
        %928 = vmatpush.xpose.msra.mxu0 %v909
        %929 = vmatmul.f32.gmra.mxu0 %v905
        %v930 = vpop.f32.mrf.mxu0
        %v931 = vadd.f32 0.0, %v930
        %932 = vmatmul.f32.gmra.mxu0 %v907
        %v933 = vpop.f32.mrf.mxu0
        %v934 = vadd.f32 0.0, %v933
        %935 = vdwg.mxu0
        %v936 = vmul.f32 %v931, 0.35355338
        %v937 = vmul.f32 %v934, 0.35355338
        %vm938 = vcmp.gt.f32.partialorder %v853, 0.5
        %v939 = vsel %vm938, 1, 0
        %v940 = vperm.slane %v939, 0
        %vm941 = vcmp.eq.s32.totalorder %v940, 1
        %v942 = vsel %vm941, -1e+09, %v936
        %v943 = vsel %vm941, -1e+09, %v937
        %vm944 = vcmask 130048
        %v945 = vsel %vm944, %v942, -inf
        %946 = vmax.xlane.f32.xlu0 %v945
        %v947 = vpop.xlane.xlu0 %946
        %v948 = vsel %vm944, %v943, -inf
        %949 = vmax.xlane.f32.xlu0 %v948
        %v950 = vpop.xlane.xlu0 %949
        %v951 = vsub.f32 %v942, %v947
        %v952 = vsub.f32 %v943, %v950
        %v953 = vmul.f32 %v951, 1.442695
        %v954 = vpow.pop %v953
        %v955 = vmul.f32 %v952, 1.442695
        %v956 = vpow.pop %v955
        %v957 = vsel %vm944, %v954, 0.0
        %958 = vadd.xlane.f32.xlu0 %v957
        %v959 = vpop.xlane.xlu0 %958
        %v960 = vsel %vm944, %v956, 0.0
        %961 = vadd.xlane.f32.xlu0 %v960
        %v962 = vpop.xlane.xlu0 %961
        %v963 = vrcp.pop %v959
        %v964 = vmul.f32 %v959, %v963
        %v965 = vsub.f32 1.0, %v964
        %v966 = vmul.f32 %v963, %v965
        %v967 = vadd.f32 %v963, %v966
        %vm968 = vweird.f32 %v959
        %vm969 = vweird.f32 %v963
        %vm970 = vmor %vm968, %vm969
        %v971 = vsel %vm970, %v963, %v967
        %v972 = vand.u32 2147483647, %v959
        %vm973 = vcmp.eq.f32.partialorder %v972, 8.507059e+37
        %v974 = vand.u32 %v959, 2147483648
        %v975 = vor.u32 1.1754944e-38, %v974
        %v976 = vsel %vm973, %v975, %v971
        %v977 = vmul.f32 %v954, %v976
        %v978 = vrcp.pop %v962
        %v979 = vmul.f32 %v962, %v978
        %v980 = vsub.f32 1.0, %v979
        %v981 = vmul.f32 %v978, %v980
        %v982 = vadd.f32 %v978, %v981
        %vm983 = vweird.f32 %v962
        %vm984 = vweird.f32 %v978
        %vm985 = vmor %vm983, %vm984
        %v986 = vsel %vm985, %v978, %v982
        %v987 = vand.u32 2147483647, %v962
        %vm988 = vcmp.eq.f32.partialorder %v987, 8.507059e+37
        %v989 = vand.u32 %v962, 2147483648
        %v990 = vor.u32 1.1754944e-38, %v989
        %v991 = vsel %vm988, %v990, %v986
        %v992 = vmul.f32 %v956, %v991
        %993 = vrot.lane.b32.xlu0 %v893, 64
        %v994 = vpop.permute.xlu0 %993
        %995 = vrot.lane.b32.xlu0 %v896, 64
        %v996 = vpop.permute.xlu0 %995
        %v1000 = vsel %vm944, %v977, 0
        %v1003 = vsel %vm944, %v992, 0
        %1005 = vmatpush.msra.mxu0 0.0
        %1006 = vmatpush.msra.mxu0 0.0
        %1007 = vmatpush.msra.mxu0 0.0
        %1008 = vmatpush.msra.mxu0 0.0
        %1009 = vmatpush.msra.mxu0 0.0
        %1010 = vmatpush.msra.mxu0 0.0
        %1011 = vmatpush.msra.mxu0 0.0
        %1012 = vmatpush.msra.mxu0 0.0
        %1013 = vmatpush.msra.mxu0 0.0
        %1014 = vmatpush.msra.mxu0 0.0
        %1015 = vmatpush.msra.mxu0 0.0
        %1016 = vmatpush.msra.mxu0 0.0
        %1017 = vmatpush.msra.mxu0 0.0
        %1018 = vmatpush.msra.mxu0 0.0
        %1019 = vmatpush.msra.mxu0 %v996
        %1020 = vmatpush.msra.mxu0 %v994
        %1021 = vmatmul.f32.gmra.mxu0 %v1000
        %v1022 = vpop.f32.mrf.mxu0
        %v1023 = vadd.f32 0.0, %v1022
        %1024 = vmatmul.f32.gmra.mxu0 %v1003
        %v1025 = vpop.f32.mrf.mxu0
        %v1026 = vadd.f32 0.0, %v1025
        %1027 = vdwg.mxu0
        %1028 = vrot.lane.b32.xlu0 %v893, 120
        %v1029 = vpop.permute.xlu0 %1028
        %1030 = vrot.lane.b32.xlu0 %v896, 120
        %v1031 = vpop.permute.xlu0 %1030
        %1032 = vrot.lane.b32.xlu0 %v893, 88
        %v1033 = vpop.permute.xlu0 %1032
        %1034 = vrot.lane.b32.xlu0 %v896, 88
        %v1035 = vpop.permute.xlu0 %1034
        %v1036 = vsel %vm904, %v1029, 0
        %v1038 = vsel %vm904, %v1031, 0
        %v1040 = vsel %vm904, %v1033, 0
        %v1042 = vsel %vm904, %v1035, 0
        %1044 = vmatpush.xpose.msra.mxu0 0.0
        %1045 = vmatpush.xpose.msra.mxu0 0.0
        %1046 = vmatpush.xpose.msra.mxu0 0.0
        %1047 = vmatpush.xpose.msra.mxu0 0.0
        %1048 = vmatpush.xpose.msra.mxu0 0.0
        %1049 = vmatpush.xpose.msra.mxu0 0.0
        %1050 = vmatpush.xpose.msra.mxu0 0.0
        %1051 = vmatpush.xpose.msra.mxu0 0.0
        %1052 = vmatpush.xpose.msra.mxu0 0.0
        %1053 = vmatpush.xpose.msra.mxu0 0.0
        %1054 = vmatpush.xpose.msra.mxu0 0.0
        %1055 = vmatpush.xpose.msra.mxu0 0.0
        %1056 = vmatpush.xpose.msra.mxu0 0.0
        %1057 = vmatpush.xpose.msra.mxu0 0.0
        %1058 = vmatpush.xpose.msra.mxu0 %v1042
        %1059 = vmatpush.xpose.msra.mxu0 %v1040
        %1060 = vmatmul.f32.gmra.mxu0 %v1036
        %v1061 = vpop.f32.mrf.mxu0
        %v1062 = vadd.f32 0.0, %v1061
        %1063 = vmatmul.f32.gmra.mxu0 %v1038
        %v1064 = vpop.f32.mrf.mxu0
        %v1065 = vadd.f32 0.0, %v1064
        %1066 = vdwg.mxu0
        %v1067 = vmul.f32 %v1062, 0.35355338
        %v1068 = vmul.f32 %v1065, 0.35355338
        %v1069 = vsel %vm941, -1e+09, %v1067
        %v1070 = vsel %vm941, -1e+09, %v1068
        %v1071 = vsel %vm944, %v1069, -inf
        %1072 = vmax.xlane.f32.xlu0 %v1071
        %v1073 = vpop.xlane.xlu0 %1072
        %v1074 = vsel %vm944, %v1070, -inf
        %1075 = vmax.xlane.f32.xlu0 %v1074
        %v1076 = vpop.xlane.xlu0 %1075
        %v1077 = vsub.f32 %v1069, %v1073
        %v1078 = vsub.f32 %v1070, %v1076
        %v1079 = vmul.f32 %v1077, 1.442695
        %v1080 = vpow.pop %v1079
        %v1081 = vmul.f32 %v1078, 1.442695
        %v1082 = vpow.pop %v1081
        %v1083 = vsel %vm944, %v1080, 0.0
        %1084 = vadd.xlane.f32.xlu0 %v1083
        %v1085 = vpop.xlane.xlu0 %1084
        %v1086 = vsel %vm944, %v1082, 0.0
        %1087 = vadd.xlane.f32.xlu0 %v1086
        %v1088 = vpop.xlane.xlu0 %1087
        %v1089 = vrcp.pop %v1085
        %v1090 = vmul.f32 %v1085, %v1089
        %v1091 = vsub.f32 1.0, %v1090
        %v1092 = vmul.f32 %v1089, %v1091
        %v1093 = vadd.f32 %v1089, %v1092
        %vm1094 = vweird.f32 %v1085
        %vm1095 = vweird.f32 %v1089
        %vm1096 = vmor %vm1094, %vm1095
        %v1097 = vsel %vm1096, %v1089, %v1093
        %v1098 = vand.u32 2147483647, %v1085
        %vm1099 = vcmp.eq.f32.partialorder %v1098, 8.507059e+37
        %v1100 = vand.u32 %v1085, 2147483648
        %v1101 = vor.u32 1.1754944e-38, %v1100
        %v1102 = vsel %vm1099, %v1101, %v1097
        %v1103 = vmul.f32 %v1080, %v1102
        %v1104 = vrcp.pop %v1088
        %v1105 = vmul.f32 %v1088, %v1104
        %v1106 = vsub.f32 1.0, %v1105
        %v1107 = vmul.f32 %v1104, %v1106
        %v1108 = vadd.f32 %v1104, %v1107
        %vm1109 = vweird.f32 %v1088
        %vm1110 = vweird.f32 %v1104
        %vm1111 = vmor %vm1109, %vm1110
        %v1112 = vsel %vm1111, %v1104, %v1108
        %v1113 = vand.u32 2147483647, %v1088
        %vm1114 = vcmp.eq.f32.partialorder %v1113, 8.507059e+37
        %v1115 = vand.u32 %v1088, 2147483648
        %v1116 = vor.u32 1.1754944e-38, %v1115
        %v1117 = vsel %vm1114, %v1116, %v1112
        %v1118 = vmul.f32 %v1082, %v1117
        %1119 = vrot.lane.b32.xlu0 %v893, 56
        %v1120 = vpop.permute.xlu0 %1119
        %1121 = vrot.lane.b32.xlu0 %v896, 56
        %v1122 = vpop.permute.xlu0 %1121
        %v1126 = vsel %vm944, %v1103, 0
        %v1129 = vsel %vm944, %v1118, 0
        %1131 = vmatpush.msra.mxu0 0.0
        %1132 = vmatpush.msra.mxu0 0.0
        %1133 = vmatpush.msra.mxu0 0.0
        %1134 = vmatpush.msra.mxu0 0.0
        %1135 = vmatpush.msra.mxu0 0.0
        %1136 = vmatpush.msra.mxu0 0.0
        %1137 = vmatpush.msra.mxu0 0.0
        %1138 = vmatpush.msra.mxu0 0.0
        %1139 = vmatpush.msra.mxu0 0.0
        %1140 = vmatpush.msra.mxu0 0.0
        %1141 = vmatpush.msra.mxu0 0.0
        %1142 = vmatpush.msra.mxu0 0.0
        %1143 = vmatpush.msra.mxu0 0.0
        %1144 = vmatpush.msra.mxu0 0.0
        %1145 = vmatpush.msra.mxu0 %v1122
        %1146 = vmatpush.msra.mxu0 %v1120
        %1147 = vmatmul.f32.gmra.mxu0 %v1126
        %v1148 = vpop.f32.mrf.mxu0
        %v1149 = vadd.f32 0.0, %v1148
        %1150 = vmatmul.f32.gmra.mxu0 %v1129
        %v1151 = vpop.f32.mrf.mxu0
        %v1152 = vadd.f32 0.0, %v1151
        %1153 = vdwg.mxu0
        %1154 = vrot.lane.b32.xlu0 %v893, 112
        %v1155 = vpop.permute.xlu0 %1154
        %1156 = vrot.lane.b32.xlu0 %v896, 112
        %v1157 = vpop.permute.xlu0 %1156
        %1158 = vrot.lane.b32.xlu0 %v893, 80
        %v1159 = vpop.permute.xlu0 %1158
        %1160 = vrot.lane.b32.xlu0 %v896, 80
        %v1161 = vpop.permute.xlu0 %1160
        %v1162 = vsel %vm904, %v1155, 0
        %v1164 = vsel %vm904, %v1157, 0
        %v1166 = vsel %vm904, %v1159, 0
        %v1168 = vsel %vm904, %v1161, 0
        %1170 = vmatpush.xpose.msra.mxu0 0.0
        %1171 = vmatpush.xpose.msra.mxu0 0.0
        %1172 = vmatpush.xpose.msra.mxu0 0.0
        %1173 = vmatpush.xpose.msra.mxu0 0.0
        %1174 = vmatpush.xpose.msra.mxu0 0.0
        %1175 = vmatpush.xpose.msra.mxu0 0.0
        %1176 = vmatpush.xpose.msra.mxu0 0.0
        %1177 = vmatpush.xpose.msra.mxu0 0.0
        %1178 = vmatpush.xpose.msra.mxu0 0.0
        %1179 = vmatpush.xpose.msra.mxu0 0.0
        %1180 = vmatpush.xpose.msra.mxu0 0.0
        %1181 = vmatpush.xpose.msra.mxu0 0.0
        %1182 = vmatpush.xpose.msra.mxu0 0.0
        %1183 = vmatpush.xpose.msra.mxu0 0.0
        %1184 = vmatpush.xpose.msra.mxu0 %v1168
        %1185 = vmatpush.xpose.msra.mxu0 %v1166
        %1186 = vmatmul.f32.gmra.mxu0 %v1162
        %v1187 = vpop.f32.mrf.mxu0
        %v1188 = vadd.f32 0.0, %v1187
        %1189 = vmatmul.f32.gmra.mxu0 %v1164
        %v1190 = vpop.f32.mrf.mxu0
        %v1191 = vadd.f32 0.0, %v1190
        %1192 = vdwg.mxu0
        %v1193 = vmul.f32 %v1188, 0.35355338
        %v1194 = vmul.f32 %v1191, 0.35355338
        %v1195 = vsel %vm941, -1e+09, %v1193
        %v1196 = vsel %vm941, -1e+09, %v1194
        %v1197 = vsel %vm944, %v1195, -inf
        %1198 = vmax.xlane.f32.xlu0 %v1197
        %v1199 = vpop.xlane.xlu0 %1198
        %v1200 = vsel %vm944, %v1196, -inf
        %1201 = vmax.xlane.f32.xlu0 %v1200
        %v1202 = vpop.xlane.xlu0 %1201
        %v1203 = vsub.f32 %v1195, %v1199
        %v1204 = vsub.f32 %v1196, %v1202
        %v1205 = vmul.f32 %v1203, 1.442695
        %v1206 = vpow.pop %v1205
        %v1207 = vmul.f32 %v1204, 1.442695
        %v1208 = vpow.pop %v1207
        %v1209 = vsel %vm944, %v1206, 0.0
        %1210 = vadd.xlane.f32.xlu0 %v1209
        %v1211 = vpop.xlane.xlu0 %1210
        %v1212 = vsel %vm944, %v1208, 0.0
        %1213 = vadd.xlane.f32.xlu0 %v1212
        %v1214 = vpop.xlane.xlu0 %1213
        %v1215 = vrcp.pop %v1211
        %v1216 = vmul.f32 %v1211, %v1215
        %v1217 = vsub.f32 1.0, %v1216
        %v1218 = vmul.f32 %v1215, %v1217
        %v1219 = vadd.f32 %v1215, %v1218
        %vm1220 = vweird.f32 %v1211
        %vm1221 = vweird.f32 %v1215
        %vm1222 = vmor %vm1220, %vm1221
        %v1223 = vsel %vm1222, %v1215, %v1219
        %v1224 = vand.u32 2147483647, %v1211
        %vm1225 = vcmp.eq.f32.partialorder %v1224, 8.507059e+37
        %v1226 = vand.u32 %v1211, 2147483648
        %v1227 = vor.u32 1.1754944e-38, %v1226
        %v1228 = vsel %vm1225, %v1227, %v1223
        %v1229 = vmul.f32 %v1206, %v1228
        %v1230 = vrcp.pop %v1214
        %v1231 = vmul.f32 %v1214, %v1230
        %v1232 = vsub.f32 1.0, %v1231
        %v1233 = vmul.f32 %v1230, %v1232
        %v1234 = vadd.f32 %v1230, %v1233
        %vm1235 = vweird.f32 %v1214
        %vm1236 = vweird.f32 %v1230
        %vm1237 = vmor %vm1235, %vm1236
        %v1238 = vsel %vm1237, %v1230, %v1234
        %v1239 = vand.u32 2147483647, %v1214
        %vm1240 = vcmp.eq.f32.partialorder %v1239, 8.507059e+37
        %v1241 = vand.u32 %v1214, 2147483648
        %v1242 = vor.u32 1.1754944e-38, %v1241
        %v1243 = vsel %vm1240, %v1242, %v1238
        %v1244 = vmul.f32 %v1208, %v1243
        %1245 = vrot.lane.b32.xlu0 %v893, 48
        %v1246 = vpop.permute.xlu0 %1245
        %1247 = vrot.lane.b32.xlu0 %v896, 48
        %v1248 = vpop.permute.xlu0 %1247
        %v1252 = vsel %vm944, %v1229, 0
        %v1255 = vsel %vm944, %v1244, 0
        %1257 = vmatpush.msra.mxu0 0.0
        %1258 = vmatpush.msra.mxu0 0.0
        %1259 = vmatpush.msra.mxu0 0.0
        %1260 = vmatpush.msra.mxu0 0.0
        %1261 = vmatpush.msra.mxu0 0.0
        %1262 = vmatpush.msra.mxu0 0.0
        %1263 = vmatpush.msra.mxu0 0.0
        %1264 = vmatpush.msra.mxu0 0.0
        %1265 = vmatpush.msra.mxu0 0.0
        %1266 = vmatpush.msra.mxu0 0.0
        %1267 = vmatpush.msra.mxu0 0.0
        %1268 = vmatpush.msra.mxu0 0.0
        %1269 = vmatpush.msra.mxu0 0.0
        %1270 = vmatpush.msra.mxu0 0.0
        %1271 = vmatpush.msra.mxu0 %v1248
        %1272 = vmatpush.msra.mxu0 %v1246
        %1273 = vmatmul.f32.gmra.mxu0 %v1252
        %v1274 = vpop.f32.mrf.mxu0
        %v1275 = vadd.f32 0.0, %v1274
        %1276 = vmatmul.f32.gmra.mxu0 %v1255
        %v1277 = vpop.f32.mrf.mxu0
        %v1278 = vadd.f32 0.0, %v1277
        %1279 = vdwg.mxu0
        %1280 = vrot.lane.b32.xlu0 %v893, 104
        %v1281 = vpop.permute.xlu0 %1280
        %1282 = vrot.lane.b32.xlu0 %v896, 104
        %v1283 = vpop.permute.xlu0 %1282
        %1284 = vrot.lane.b32.xlu0 %v893, 72
        %v1285 = vpop.permute.xlu0 %1284
        %1286 = vrot.lane.b32.xlu0 %v896, 72
        %v1287 = vpop.permute.xlu0 %1286
        %v1288 = vsel %vm904, %v1281, 0
        %v1290 = vsel %vm904, %v1283, 0
        %v1292 = vsel %vm904, %v1285, 0
        %v1294 = vsel %vm904, %v1287, 0
        %1296 = vmatpush.xpose.msra.mxu0 0.0
        %1297 = vmatpush.xpose.msra.mxu0 0.0
        %1298 = vmatpush.xpose.msra.mxu0 0.0
        %1299 = vmatpush.xpose.msra.mxu0 0.0
        %1300 = vmatpush.xpose.msra.mxu0 0.0
        %1301 = vmatpush.xpose.msra.mxu0 0.0
        %1302 = vmatpush.xpose.msra.mxu0 0.0
        %1303 = vmatpush.xpose.msra.mxu0 0.0
        %1304 = vmatpush.xpose.msra.mxu0 0.0
        %1305 = vmatpush.xpose.msra.mxu0 0.0
        %1306 = vmatpush.xpose.msra.mxu0 0.0
        %1307 = vmatpush.xpose.msra.mxu0 0.0
        %1308 = vmatpush.xpose.msra.mxu0 0.0
        %1309 = vmatpush.xpose.msra.mxu0 0.0
        %1310 = vmatpush.xpose.msra.mxu0 %v1294
        %1311 = vmatpush.xpose.msra.mxu0 %v1292
        %1312 = vmatmul.f32.gmra.mxu0 %v1288
        %v1313 = vpop.f32.mrf.mxu0
        %v1314 = vadd.f32 0.0, %v1313
        %1315 = vmatmul.f32.gmra.mxu0 %v1290
        %v1316 = vpop.f32.mrf.mxu0
        %v1317 = vadd.f32 0.0, %v1316
        %1318 = vdwg.mxu0
        %v1319 = vmul.f32 %v1314, 0.35355338
        %v1320 = vmul.f32 %v1317, 0.35355338
        %v1321 = vsel %vm941, -1e+09, %v1319
        %v1322 = vsel %vm941, -1e+09, %v1320
        %v1323 = vsel %vm944, %v1321, -inf
        %1324 = vmax.xlane.f32.xlu0 %v1323
        %v1325 = vpop.xlane.xlu0 %1324
        %v1326 = vsel %vm944, %v1322, -inf
        %1327 = vmax.xlane.f32.xlu0 %v1326
        %v1328 = vpop.xlane.xlu0 %1327
        %v1329 = vsub.f32 %v1321, %v1325
        %v1330 = vsub.f32 %v1322, %v1328
        %v1331 = vmul.f32 %v1329, 1.442695
        %v1332 = vpow.pop %v1331
        %v1333 = vmul.f32 %v1330, 1.442695
        %v1334 = vpow.pop %v1333
        %v1335 = vsel %vm944, %v1332, 0.0
        %1336 = vadd.xlane.f32.xlu0 %v1335
        %v1337 = vpop.xlane.xlu0 %1336
        %v1338 = vsel %vm944, %v1334, 0.0
        %1339 = vadd.xlane.f32.xlu0 %v1338
        %v1340 = vpop.xlane.xlu0 %1339
        %v1341 = vrcp.pop %v1337
        %v1342 = vmul.f32 %v1337, %v1341
        %v1343 = vsub.f32 1.0, %v1342
        %v1344 = vmul.f32 %v1341, %v1343
        %v1345 = vadd.f32 %v1341, %v1344
        %vm1346 = vweird.f32 %v1337
        %vm1347 = vweird.f32 %v1341
        %vm1348 = vmor %vm1346, %vm1347
        %v1349 = vsel %vm1348, %v1341, %v1345
        %v1350 = vand.u32 2147483647, %v1337
        %vm1351 = vcmp.eq.f32.partialorder %v1350, 8.507059e+37
        %v1352 = vand.u32 %v1337, 2147483648
        %v1353 = vor.u32 1.1754944e-38, %v1352
        %v1354 = vsel %vm1351, %v1353, %v1349
        %v1355 = vmul.f32 %v1332, %v1354
        %v1356 = vrcp.pop %v1340
        %v1357 = vmul.f32 %v1340, %v1356
        %v1358 = vsub.f32 1.0, %v1357
        %v1359 = vmul.f32 %v1356, %v1358
        %v1360 = vadd.f32 %v1356, %v1359
        %vm1361 = vweird.f32 %v1340
        %vm1362 = vweird.f32 %v1356
        %vm1363 = vmor %vm1361, %vm1362
        %v1364 = vsel %vm1363, %v1356, %v1360
        %v1365 = vand.u32 2147483647, %v1340
        %vm1366 = vcmp.eq.f32.partialorder %v1365, 8.507059e+37
        %v1367 = vand.u32 %v1340, 2147483648
        %v1368 = vor.u32 1.1754944e-38, %v1367
        %v1369 = vsel %vm1366, %v1368, %v1364
        %v1370 = vmul.f32 %v1334, %v1369
        %1371 = vrot.lane.b32.xlu0 %v893, 40
        %v1372 = vpop.permute.xlu0 %1371
        %1373 = vrot.lane.b32.xlu0 %v896, 40
        %v1374 = vpop.permute.xlu0 %1373
        %v1378 = vsel %vm944, %v1355, 0
        %v1381 = vsel %vm944, %v1370, 0
        %1383 = vmatpush.msra.mxu0 0.0
        %1384 = vmatpush.msra.mxu0 0.0
        %1385 = vmatpush.msra.mxu0 0.0
        %1386 = vmatpush.msra.mxu0 0.0
        %1387 = vmatpush.msra.mxu0 0.0
        %1388 = vmatpush.msra.mxu0 0.0
        %1389 = vmatpush.msra.mxu0 0.0
        %1390 = vmatpush.msra.mxu0 0.0
        %1391 = vmatpush.msra.mxu0 0.0
        %1392 = vmatpush.msra.mxu0 0.0
        %1393 = vmatpush.msra.mxu0 0.0
        %1394 = vmatpush.msra.mxu0 0.0
        %1395 = vmatpush.msra.mxu0 0.0
        %1396 = vmatpush.msra.mxu0 0.0
        %1397 = vmatpush.msra.mxu0 %v1374
        %1398 = vmatpush.msra.mxu0 %v1372
        %1399 = vmatmul.f32.gmra.mxu0 %v1378
        %v1400 = vpop.f32.mrf.mxu0
        %v1401 = vadd.f32 0.0, %v1400
        %1402 = vmatmul.f32.gmra.mxu0 %v1381
        %v1403 = vpop.f32.mrf.mxu0
        %v1404 = vadd.f32 0.0, %v1403
        %1405 = vdwg.mxu0
        %1408 = vrot.lane.b32.xlu0 %v1149, 8
        %v1409 = vpop.permute.xlu0 %1408
        %1410 = vrot.lane.b32.xlu0 %v1152, 8
        %v1411 = vpop.permute.xlu0 %1410
        %1416 = vrot.lane.b32.xlu0 %v1275, 16
        %v1417 = vpop.permute.xlu0 %1416
        %1418 = vrot.lane.b32.xlu0 %v1278, 16
        %v1419 = vpop.permute.xlu0 %1418
        %1424 = vrot.lane.b32.xlu0 %v1401, 24
        %v1425 = vpop.permute.xlu0 %1424
        %1426 = vrot.lane.b32.xlu0 %v1404, 24
        %v1427 = vpop.permute.xlu0 %1426
        %v1430 = vsel %vm904, %v1023, %v1409
        %v1431 = vsel %vm904, %v1026, %v1411
        %v1432 = vsel %vm944, %v1430, %v1417
        %v1433 = vsel %vm944, %v1431, %v1419
        %vm1434 = vcmask 195584
        %v1435 = vsel %vm1434, %v1432, %v1425
        %v1436 = vsel %vm1434, %v1433, %v1427
        %v1438 = vperm.slane %v864, 0
        %v1441 = vsel %vm868, %v1435, 0
        %v1444 = vsel %vm868, %v1436, 0
        %1446 = vmatpush.msra.mxu0 0.0
        %1447 = vmatpush.msra.mxu0 0.0
        %1448 = vmatpush.msra.mxu0 0.0
        %1449 = vmatpush.msra.mxu0 0.0
        %1450 = vmatpush.msra.mxu0 0.0
        %1451 = vmatpush.msra.mxu0 0.0
        %1452 = vmatpush.msra.mxu0 0.0
        %1453 = vmatpush.msra.mxu0 0.0
        %1454 = vmatpush.msra.mxu0 0.0
        %1455 = vmatpush.msra.mxu0 0.0
        %1456 = vmatpush.msra.mxu0 0.0
        %1457 = vmatpush.msra.mxu0 0.0
        %1458 = vmatpush.msra.mxu0 %v863
        %1459 = vmatpush.msra.mxu0 %v862
        %1460 = vmatpush.msra.mxu0 %v861
        %1461 = vmatpush.msra.mxu0 %v860
        %1462 = vmatmul.f32.gmra.mxu0 %v1441
        %v1463 = vpop.f32.mrf.mxu0
        %v1464 = vadd.f32 %v1438, %v1463
        %1465 = vmatmul.f32.gmra.mxu0 %v1444
        %v1466 = vpop.f32.mrf.mxu0
        %v1467 = vadd.f32 %v1438, %v1466
        %1468 = vdwg.mxu0
        %v1469 = vadd.f32 %v850, %v1464
        %v1470 = vadd.f32 %v851, %v1467
        %v1471 = vld [vmem:[%s8] sm:$0x1]
        %v1472 = vld [vmem:[%s9] sm:$0x1]
        %v1473 = vsel %vm868, %v1469, 0.0
        %1474 = vadd.xlane.f32.xlu0 %v1473
        %v1475 = vpop.xlane.xlu0 %1474
        %v1476 = vsel %vm868, %v1470, 0.0
        %1477 = vadd.xlane.f32.xlu0 %v1476
        %v1478 = vpop.xlane.xlu0 %1477
        %v1479 = vrcp.pop 32.0
        %v1480 = vmul.f32 32.0, %v1479
        %v1481 = vsub.f32 1.0, %v1480
        %v1482 = vmul.f32 %v1479, %v1481
        %v1483 = vadd.f32 %v1479, %v1482
        %vm1484 = vweird.f32 %v1479
        %v1485 = vsel %vm1484, %v1479, %v1483
        %v1486 = vmul.f32 %v1475, %v1485
        %v1487 = vmul.f32 %v1478, %v1485
        %v1488 = vsub.f32 %v1469, %v1486
        %v1489 = vsub.f32 %v1470, %v1487
        %v1490 = vmul.f32 %v1488, %v1488
        %v1491 = vmul.f32 %v1489, %v1489
        %v1492 = vsel %vm868, %v1490, 0.0
        %1493 = vadd.xlane.f32.xlu0 %v1492
        %v1494 = vpop.xlane.xlu0 %1493
        %v1495 = vsel %vm868, %v1491, 0.0
        %1496 = vadd.xlane.f32.xlu0 %v1495
        %v1497 = vpop.xlane.xlu0 %1496
        %v1498 = vmul.f32 %v1494, 0.032258064
        %v1499 = vmul.f32 %v1497, 0.032258064
        %v1501 = vperm.slane %v1471, 0
        %v1503 = vmul.f32 %v1501, %v1488
        %v1504 = vmul.f32 %v1501, %v1489
        %v1505 = vrsqrt.pop %v1498
        %v1506 = vmul.f32 %v1505, %v1498
        %v1507 = vmul.f32 %v1506, %v1505
        %v1508 = vmul.f32 0.5, %v1507
        %v1509 = vsub.f32 1.5, %v1508
        %v1510 = vmul.f32 %v1505, %v1509
        %v1511 = vmul.f32 %v1498, %v1510
        %vm1512 = vcmp.eq.f32.partialorder %v1498, inf
        %v1513 = vsel %vm1512, %v1498, %v1511
        %vm1514 = vcmp.eq.f32.partialorder %v1498, 0.0
        %v1515 = vand.u32 %v1498, 2147483648
        %v1516 = vsel %vm1514, %v1515, %v1513
        %v1517 = vrsqrt.pop %v1499
        %v1518 = vmul.f32 %v1517, %v1499
        %v1519 = vmul.f32 %v1518, %v1517
        %v1520 = vmul.f32 0.5, %v1519
        %v1521 = vsub.f32 1.5, %v1520
        %v1522 = vmul.f32 %v1517, %v1521
        %v1523 = vmul.f32 %v1499, %v1522
        %vm1524 = vcmp.eq.f32.partialorder %v1499, inf
        %v1525 = vsel %vm1524, %v1499, %v1523
        %vm1526 = vcmp.eq.f32.partialorder %v1499, 0.0
        %v1527 = vand.u32 %v1499, 2147483648
        %v1528 = vsel %vm1526, %v1527, %v1525
        %v1529 = vadd.f32 %v1516, 1e-06
        %v1530 = vadd.f32 %v1528, 1e-06
        %v1531 = vrcp.pop %v1529
        %v1532 = vmul.f32 %v1529, %v1531
        %v1533 = vsub.f32 1.0, %v1532
        %v1534 = vmul.f32 %v1531, %v1533
        %v1535 = vadd.f32 %v1531, %v1534
        %vm1536 = vweird.f32 %v1529
        %vm1537 = vweird.f32 %v1531
        %vm1538 = vmor %vm1536, %vm1537
        %v1539 = vsel %vm1538, %v1531, %v1535
        %v1540 = vand.u32 2147483647, %v1529
        %vm1541 = vcmp.eq.f32.partialorder %v1540, 8.507059e+37
        %v1542 = vand.u32 %v1529, 2147483648
        %v1543 = vor.u32 1.1754944e-38, %v1542
        %v1544 = vsel %vm1541, %v1543, %v1539
        %v1545 = vmul.f32 %v1503, %v1544
        %v1546 = vrcp.pop %v1530
        %v1547 = vmul.f32 %v1530, %v1546
        %v1548 = vsub.f32 1.0, %v1547
        %v1549 = vmul.f32 %v1546, %v1548
        %v1550 = vadd.f32 %v1546, %v1549
        %vm1551 = vweird.f32 %v1530
        %vm1552 = vweird.f32 %v1546
        %vm1553 = vmor %vm1551, %vm1552
        %v1554 = vsel %vm1553, %v1546, %v1550
        %v1555 = vand.u32 2147483647, %v1530
        %vm1556 = vcmp.eq.f32.partialorder %v1555, 8.507059e+37
        %v1557 = vand.u32 %v1530, 2147483648
        %v1558 = vor.u32 1.1754944e-38, %v1557
        %v1559 = vsel %vm1556, %v1558, %v1554
        %v1560 = vmul.f32 %v1504, %v1559
        %v1562 = vperm.slane %v1472, 0
        %v1564 = vadd.f32 %v1545, %v1562
        %v1565 = vadd.f32 %v1560, %v1562
        %v1566 = vld [vmem:[#allocation2] sm:$0xff]
        %v1567 = vld [vmem:[#allocation2 + $0x8] sm:$0xff]
        %v1568 = vld [vmem:[#allocation2 + $0x10] sm:$0xff]
        %v1569 = vld [vmem:[#allocation2 + $0x18] sm:$0xff]
        %v1570 = vld [vmem:[%s11] sm:$0x1]
        %v1571 = vld [vmem:[#allocation4] sm:$0xff]
        %v1572 = vld [vmem:[#allocation4 + $0x8] sm:$0xff]
        %v1573 = vld [vmem:[#allocation4 + $0x10] sm:$0xff]
        %v1574 = vld [vmem:[#allocation4 + $0x18] sm:$0xff]
        %v1575 = vld [vmem:[%s13] sm:$0x1]
        %v1576 = vld [vmem:[#allocation6] sm:$0xff]
        %v1577 = vld [vmem:[#allocation6 + $0x8] sm:$0xff]
        %v1578 = vld [vmem:[#allocation6 + $0x10] sm:$0xff]
        %v1579 = vld [vmem:[#allocation6 + $0x18] sm:$0xff]
        %v1580 = vld [vmem:[%s15] sm:$0x1]
        %v1582 = vperm.slane %v1570, 0
        %v1585 = vsel %vm868, %v1564, 0
        %v1588 = vsel %vm868, %v1565, 0
        %1590 = vmatpush.msra.mxu0 0.0
        %1591 = vmatpush.msra.mxu0 0.0
        %1592 = vmatpush.msra.mxu0 0.0
        %1593 = vmatpush.msra.mxu0 0.0
        %1594 = vmatpush.msra.mxu0 0.0
        %1595 = vmatpush.msra.mxu0 0.0
        %1596 = vmatpush.msra.mxu0 0.0
        %1597 = vmatpush.msra.mxu0 0.0
        %1598 = vmatpush.msra.mxu0 0.0
        %1599 = vmatpush.msra.mxu0 0.0
        %1600 = vmatpush.msra.mxu0 0.0
        %1601 = vmatpush.msra.mxu0 0.0
        %1602 = vmatpush.msra.mxu0 %v1569
        %1603 = vmatpush.msra.mxu0 %v1568
        %1604 = vmatpush.msra.mxu0 %v1567
        %1605 = vmatpush.msra.mxu0 %v1566
        %1606 = vmatmul.f32.gmra.mxu0 %v1585
        %v1607 = vpop.f32.mrf.mxu0
        %v1608 = vadd.f32 %v1582, %v1607
        %1609 = vmatmul.f32.gmra.mxu0 %v1588
        %v1610 = vpop.f32.mrf.mxu0
        %v1611 = vadd.f32 %v1582, %v1610
        %1612 = vdwg.mxu0
        %v1614 = vperm.slane %v1575, 0
        %v1617 = vsel %vm868, %v852, 0
        %1619 = vmatpush.msra.mxu0 0.0
        %1620 = vmatpush.msra.mxu0 0.0
        %1621 = vmatpush.msra.mxu0 0.0
        %1622 = vmatpush.msra.mxu0 0.0
        %1623 = vmatpush.msra.mxu0 0.0
        %1624 = vmatpush.msra.mxu0 0.0
        %1625 = vmatpush.msra.mxu0 0.0
        %1626 = vmatpush.msra.mxu0 0.0
        %1627 = vmatpush.msra.mxu0 0.0
        %1628 = vmatpush.msra.mxu0 0.0
        %1629 = vmatpush.msra.mxu0 0.0
        %1630 = vmatpush.msra.mxu0 0.0
        %1631 = vmatpush.msra.mxu0 %v1574
        %1632 = vmatpush.msra.mxu0 %v1573
        %1633 = vmatpush.msra.mxu0 %v1572
        %1634 = vmatpush.msra.mxu0 %v1571
        %1635 = vmatmul.f32.gmra.mxu0 %v1617
        %v1636 = vpop.f32.mrf.mxu0
        %v1637 = vadd.f32 %v1614, %v1636
        %1638 = vdwg.mxu0
        %v1640 = vsel %vm904, %v1608, 0
        %v1643 = vsel %vm904, %v1611, 0
        %v1646 = vsel %vm904, %v1637, 0
        %1648 = vmatpush.xpose.msra.mxu0 0.0
        %1649 = vmatpush.xpose.msra.mxu0 0.0
        %1650 = vmatpush.xpose.msra.mxu0 0.0
        %1651 = vmatpush.xpose.msra.mxu0 0.0
        %1652 = vmatpush.xpose.msra.mxu0 0.0
        %1653 = vmatpush.xpose.msra.mxu0 0.0
        %1654 = vmatpush.xpose.msra.mxu0 0.0
        %1655 = vmatpush.xpose.msra.mxu0 0.0
        %1656 = vmatpush.xpose.msra.mxu0 0.0
        %1657 = vmatpush.xpose.msra.mxu0 0.0
        %1658 = vmatpush.xpose.msra.mxu0 0.0
        %1659 = vmatpush.xpose.msra.mxu0 0.0
        %1660 = vmatpush.xpose.msra.mxu0 0.0
        %1661 = vmatpush.xpose.msra.mxu0 0.0
        %1662 = vmatpush.xpose.msra.mxu0 0.0
        %1663 = vmatpush.xpose.msra.mxu0 %v1646
        %1664 = vmatmul.f32.gmra.mxu0 %v1640
        %v1665 = vpop.f32.mrf.mxu0
        %v1666 = vadd.f32 0.0, %v1665
        %1667 = vmatmul.f32.gmra.mxu0 %v1643
        %v1668 = vpop.f32.mrf.mxu0
        %v1669 = vadd.f32 0.0, %v1668
        %1670 = vdwg.mxu0
        %v1671 = vmul.f32 %v1666, 0.35355338
        %v1672 = vmul.f32 %v1669, 0.35355338
        %vm1673 = vcmp.gt.f32.partialorder %v854, 0.5
        %v1674 = vsel %vm1673, 1, 0
        %v1675 = vperm.slane %v1674, 0
        %vm1676 = vcmp.eq.s32.totalorder %v1675, 1
        %v1677 = vsel %vm1676, -1e+09, %v1671
        %v1678 = vsel %vm1676, -1e+09, %v1672
        %v1679 = vsel %vm904, %v1677, -inf
        %1680 = vmax.xlane.f32.xlu0 %v1679
        %v1681 = vpop.xlane.xlu0 %1680
        %v1682 = vsel %vm904, %v1678, -inf
        %1683 = vmax.xlane.f32.xlu0 %v1682
        %v1684 = vpop.xlane.xlu0 %1683
        %v1685 = vsub.f32 %v1677, %v1681
        %v1686 = vsub.f32 %v1678, %v1684
        %v1687 = vmul.f32 %v1685, 1.442695
        %v1688 = vpow.pop %v1687
        %v1689 = vmul.f32 %v1686, 1.442695
        %v1690 = vpow.pop %v1689
        %v1691 = vsel %vm904, %v1688, 0.0
        %1692 = vadd.xlane.f32.xlu0 %v1691
        %v1693 = vpop.xlane.xlu0 %1692
        %v1694 = vsel %vm904, %v1690, 0.0
        %1695 = vadd.xlane.f32.xlu0 %v1694
        %v1696 = vpop.xlane.xlu0 %1695
        %v1697 = vrcp.pop %v1693
        %v1698 = vmul.f32 %v1693, %v1697
        %v1699 = vsub.f32 1.0, %v1698
        %v1700 = vmul.f32 %v1697, %v1699
        %v1701 = vadd.f32 %v1697, %v1700
        %vm1702 = vweird.f32 %v1693
        %vm1703 = vweird.f32 %v1697
        %vm1704 = vmor %vm1702, %vm1703
        %v1705 = vsel %vm1704, %v1697, %v1701
        %v1706 = vand.u32 2147483647, %v1693
        %vm1707 = vcmp.eq.f32.partialorder %v1706, 8.507059e+37
        %v1708 = vand.u32 %v1693, 2147483648
        %v1709 = vor.u32 1.1754944e-38, %v1708
        %v1710 = vsel %vm1707, %v1709, %v1705
        %v1711 = vmul.f32 %v1688, %v1710
        %v1712 = vrcp.pop %v1696
        %v1713 = vmul.f32 %v1696, %v1712
        %v1714 = vsub.f32 1.0, %v1713
        %v1715 = vmul.f32 %v1712, %v1714
        %v1716 = vadd.f32 %v1712, %v1715
        %vm1717 = vweird.f32 %v1696
        %vm1718 = vweird.f32 %v1712
        %vm1719 = vmor %vm1717, %vm1718
        %v1720 = vsel %vm1719, %v1712, %v1716
        %v1721 = vand.u32 2147483647, %v1696
        %vm1722 = vcmp.eq.f32.partialorder %v1721, 8.507059e+37
        %v1723 = vand.u32 %v1696, 2147483648
        %v1724 = vor.u32 1.1754944e-38, %v1723
        %v1725 = vsel %vm1722, %v1724, %v1720
        %v1726 = vmul.f32 %v1690, %v1725
        %1727 = vrot.lane.b32.xlu0 %v1637, 96
        %v1728 = vpop.permute.xlu0 %1727
        %v1731 = vsel %vm904, %v1711, 0
        %v1734 = vsel %vm904, %v1726, 0
        %1736 = vmatpush.msra.mxu0 0.0
        %1737 = vmatpush.msra.mxu0 0.0
        %1738 = vmatpush.msra.mxu0 0.0
        %1739 = vmatpush.msra.mxu0 0.0
        %1740 = vmatpush.msra.mxu0 0.0
        %1741 = vmatpush.msra.mxu0 0.0
        %1742 = vmatpush.msra.mxu0 0.0
        %1743 = vmatpush.msra.mxu0 0.0
        %1744 = vmatpush.msra.mxu0 0.0
        %1745 = vmatpush.msra.mxu0 0.0
        %1746 = vmatpush.msra.mxu0 0.0
        %1747 = vmatpush.msra.mxu0 0.0
        %1748 = vmatpush.msra.mxu0 0.0
        %1749 = vmatpush.msra.mxu0 0.0
        %1750 = vmatpush.msra.mxu0 0.0
        %1751 = vmatpush.msra.mxu0 %v1728
        %1752 = vmatmul.f32.gmra.mxu0 %v1731
        %v1753 = vpop.f32.mrf.mxu0
        %v1754 = vadd.f32 0.0, %v1753
        %1755 = vmatmul.f32.gmra.mxu0 %v1734
        %v1756 = vpop.f32.mrf.mxu0
        %v1757 = vadd.f32 0.0, %v1756
        %1758 = vdwg.mxu0
        %1759 = vrot.lane.b32.xlu0 %v1608, 120
        %v1760 = vpop.permute.xlu0 %1759
        %1761 = vrot.lane.b32.xlu0 %v1611, 120
        %v1762 = vpop.permute.xlu0 %1761
        %1763 = vrot.lane.b32.xlu0 %v1637, 120
        %v1764 = vpop.permute.xlu0 %1763
        %v1765 = vsel %vm904, %v1760, 0
        %v1767 = vsel %vm904, %v1762, 0
        %v1769 = vsel %vm904, %v1764, 0
        %1771 = vmatpush.xpose.msra.mxu0 0.0
        %1772 = vmatpush.xpose.msra.mxu0 0.0
        %1773 = vmatpush.xpose.msra.mxu0 0.0
        %1774 = vmatpush.xpose.msra.mxu0 0.0
        %1775 = vmatpush.xpose.msra.mxu0 0.0
        %1776 = vmatpush.xpose.msra.mxu0 0.0
        %1777 = vmatpush.xpose.msra.mxu0 0.0
        %1778 = vmatpush.xpose.msra.mxu0 0.0
        %1779 = vmatpush.xpose.msra.mxu0 0.0
        %1780 = vmatpush.xpose.msra.mxu0 0.0
        %1781 = vmatpush.xpose.msra.mxu0 0.0
        %1782 = vmatpush.xpose.msra.mxu0 0.0
        %1783 = vmatpush.xpose.msra.mxu0 0.0
        %1784 = vmatpush.xpose.msra.mxu0 0.0
        %1785 = vmatpush.xpose.msra.mxu0 0.0
        %1786 = vmatpush.xpose.msra.mxu0 %v1769
        %1787 = vmatmul.f32.gmra.mxu0 %v1765
        %v1788 = vpop.f32.mrf.mxu0
        %v1789 = vadd.f32 0.0, %v1788
        %1790 = vmatmul.f32.gmra.mxu0 %v1767
        %v1791 = vpop.f32.mrf.mxu0
        %v1792 = vadd.f32 0.0, %v1791
        %1793 = vdwg.mxu0
        %v1794 = vmul.f32 %v1789, 0.35355338
        %v1795 = vmul.f32 %v1792, 0.35355338
        %v1796 = vsel %vm1676, -1e+09, %v1794
        %v1797 = vsel %vm1676, -1e+09, %v1795
        %v1798 = vsel %vm904, %v1796, -inf
        %1799 = vmax.xlane.f32.xlu0 %v1798
        %v1800 = vpop.xlane.xlu0 %1799
        %v1801 = vsel %vm904, %v1797, -inf
        %1802 = vmax.xlane.f32.xlu0 %v1801
        %v1803 = vpop.xlane.xlu0 %1802
        %v1804 = vsub.f32 %v1796, %v1800
        %v1805 = vsub.f32 %v1797, %v1803
        %v1806 = vmul.f32 %v1804, 1.442695
        %v1807 = vpow.pop %v1806
        %v1808 = vmul.f32 %v1805, 1.442695
        %v1809 = vpow.pop %v1808
        %v1810 = vsel %vm904, %v1807, 0.0
        %1811 = vadd.xlane.f32.xlu0 %v1810
        %v1812 = vpop.xlane.xlu0 %1811
        %v1813 = vsel %vm904, %v1809, 0.0
        %1814 = vadd.xlane.f32.xlu0 %v1813
        %v1815 = vpop.xlane.xlu0 %1814
        %v1816 = vrcp.pop %v1812
        %v1817 = vmul.f32 %v1812, %v1816
        %v1818 = vsub.f32 1.0, %v1817
        %v1819 = vmul.f32 %v1816, %v1818
        %v1820 = vadd.f32 %v1816, %v1819
        %vm1821 = vweird.f32 %v1812
        %vm1822 = vweird.f32 %v1816
        %vm1823 = vmor %vm1821, %vm1822
        %v1824 = vsel %vm1823, %v1816, %v1820
        %v1825 = vand.u32 2147483647, %v1812
        %vm1826 = vcmp.eq.f32.partialorder %v1825, 8.507059e+37
        %v1827 = vand.u32 %v1812, 2147483648
        %v1828 = vor.u32 1.1754944e-38, %v1827
        %v1829 = vsel %vm1826, %v1828, %v1824
        %v1830 = vmul.f32 %v1807, %v1829
        %v1831 = vrcp.pop %v1815
        %v1832 = vmul.f32 %v1815, %v1831
        %v1833 = vsub.f32 1.0, %v1832
        %v1834 = vmul.f32 %v1831, %v1833
        %v1835 = vadd.f32 %v1831, %v1834
        %vm1836 = vweird.f32 %v1815
        %vm1837 = vweird.f32 %v1831
        %vm1838 = vmor %vm1836, %vm1837
        %v1839 = vsel %vm1838, %v1831, %v1835
        %v1840 = vand.u32 2147483647, %v1815
        %vm1841 = vcmp.eq.f32.partialorder %v1840, 8.507059e+37
        %v1842 = vand.u32 %v1815, 2147483648
        %v1843 = vor.u32 1.1754944e-38, %v1842
        %v1844 = vsel %vm1841, %v1843, %v1839
        %v1845 = vmul.f32 %v1809, %v1844
        %1846 = vrot.lane.b32.xlu0 %v1637, 88
        %v1847 = vpop.permute.xlu0 %1846
        %v1850 = vsel %vm904, %v1830, 0
        %v1853 = vsel %vm904, %v1845, 0
        %1855 = vmatpush.msra.mxu0 0.0
        %1856 = vmatpush.msra.mxu0 0.0
        %1857 = vmatpush.msra.mxu0 0.0
        %1858 = vmatpush.msra.mxu0 0.0
        %1859 = vmatpush.msra.mxu0 0.0
        %1860 = vmatpush.msra.mxu0 0.0
        %1861 = vmatpush.msra.mxu0 0.0
        %1862 = vmatpush.msra.mxu0 0.0
        %1863 = vmatpush.msra.mxu0 0.0
        %1864 = vmatpush.msra.mxu0 0.0
        %1865 = vmatpush.msra.mxu0 0.0
        %1866 = vmatpush.msra.mxu0 0.0
        %1867 = vmatpush.msra.mxu0 0.0
        %1868 = vmatpush.msra.mxu0 0.0
        %1869 = vmatpush.msra.mxu0 0.0
        %1870 = vmatpush.msra.mxu0 %v1847
        %1871 = vmatmul.f32.gmra.mxu0 %v1850
        %v1872 = vpop.f32.mrf.mxu0
        %v1873 = vadd.f32 0.0, %v1872
        %1874 = vmatmul.f32.gmra.mxu0 %v1853
        %v1875 = vpop.f32.mrf.mxu0
        %v1876 = vadd.f32 0.0, %v1875
        %1877 = vdwg.mxu0
        %1878 = vrot.lane.b32.xlu0 %v1608, 112
        %v1879 = vpop.permute.xlu0 %1878
        %1880 = vrot.lane.b32.xlu0 %v1611, 112
        %v1881 = vpop.permute.xlu0 %1880
        %1882 = vrot.lane.b32.xlu0 %v1637, 112
        %v1883 = vpop.permute.xlu0 %1882
        %v1884 = vsel %vm904, %v1879, 0
        %v1886 = vsel %vm904, %v1881, 0
        %v1888 = vsel %vm904, %v1883, 0
        %1890 = vmatpush.xpose.msra.mxu0 0.0
        %1891 = vmatpush.xpose.msra.mxu0 0.0
        %1892 = vmatpush.xpose.msra.mxu0 0.0
        %1893 = vmatpush.xpose.msra.mxu0 0.0
        %1894 = vmatpush.xpose.msra.mxu0 0.0
        %1895 = vmatpush.xpose.msra.mxu0 0.0
        %1896 = vmatpush.xpose.msra.mxu0 0.0
        %1897 = vmatpush.xpose.msra.mxu0 0.0
        %1898 = vmatpush.xpose.msra.mxu0 0.0
        %1899 = vmatpush.xpose.msra.mxu0 0.0
        %1900 = vmatpush.xpose.msra.mxu0 0.0
        %1901 = vmatpush.xpose.msra.mxu0 0.0
        %1902 = vmatpush.xpose.msra.mxu0 0.0
        %1903 = vmatpush.xpose.msra.mxu0 0.0
        %1904 = vmatpush.xpose.msra.mxu0 0.0
        %1905 = vmatpush.xpose.msra.mxu0 %v1888
        %1906 = vmatmul.f32.gmra.mxu0 %v1884
        %v1907 = vpop.f32.mrf.mxu0
        %v1908 = vadd.f32 0.0, %v1907
        %1909 = vmatmul.f32.gmra.mxu0 %v1886
        %v1910 = vpop.f32.mrf.mxu0
        %v1911 = vadd.f32 0.0, %v1910
        %1912 = vdwg.mxu0
        %v1913 = vmul.f32 %v1908, 0.35355338
        %v1914 = vmul.f32 %v1911, 0.35355338
        %v1915 = vsel %vm1676, -1e+09, %v1913
        %v1916 = vsel %vm1676, -1e+09, %v1914
        %v1917 = vsel %vm904, %v1915, -inf
        %1918 = vmax.xlane.f32.xlu0 %v1917
        %v1919 = vpop.xlane.xlu0 %1918
        %v1920 = vsel %vm904, %v1916, -inf
        %1921 = vmax.xlane.f32.xlu0 %v1920
        %v1922 = vpop.xlane.xlu0 %1921
        %v1923 = vsub.f32 %v1915, %v1919
        %v1924 = vsub.f32 %v1916, %v1922
        %v1925 = vmul.f32 %v1923, 1.442695
        %v1926 = vpow.pop %v1925
        %v1927 = vmul.f32 %v1924, 1.442695
        %v1928 = vpow.pop %v1927
        %v1929 = vsel %vm904, %v1926, 0.0
        %1930 = vadd.xlane.f32.xlu0 %v1929
        %v1931 = vpop.xlane.xlu0 %1930
        %v1932 = vsel %vm904, %v1928, 0.0
        %1933 = vadd.xlane.f32.xlu0 %v1932
        %v1934 = vpop.xlane.xlu0 %1933
        %v1935 = vrcp.pop %v1931
        %v1936 = vmul.f32 %v1931, %v1935
        %v1937 = vsub.f32 1.0, %v1936
        %v1938 = vmul.f32 %v1935, %v1937
        %v1939 = vadd.f32 %v1935, %v1938
        %vm1940 = vweird.f32 %v1931
        %vm1941 = vweird.f32 %v1935
        %vm1942 = vmor %vm1940, %vm1941
        %v1943 = vsel %vm1942, %v1935, %v1939
        %v1944 = vand.u32 2147483647, %v1931
        %vm1945 = vcmp.eq.f32.partialorder %v1944, 8.507059e+37
        %v1946 = vand.u32 %v1931, 2147483648
        %v1947 = vor.u32 1.1754944e-38, %v1946
        %v1948 = vsel %vm1945, %v1947, %v1943
        %v1949 = vmul.f32 %v1926, %v1948
        %v1950 = vrcp.pop %v1934
        %v1951 = vmul.f32 %v1934, %v1950
        %v1952 = vsub.f32 1.0, %v1951
        %v1953 = vmul.f32 %v1950, %v1952
        %v1954 = vadd.f32 %v1950, %v1953
        %vm1955 = vweird.f32 %v1934
        %vm1956 = vweird.f32 %v1950
        %vm1957 = vmor %vm1955, %vm1956
        %v1958 = vsel %vm1957, %v1950, %v1954
        %v1959 = vand.u32 2147483647, %v1934
        %vm1960 = vcmp.eq.f32.partialorder %v1959, 8.507059e+37
        %v1961 = vand.u32 %v1934, 2147483648
        %v1962 = vor.u32 1.1754944e-38, %v1961
        %v1963 = vsel %vm1960, %v1962, %v1958
        %v1964 = vmul.f32 %v1928, %v1963
        %1965 = vrot.lane.b32.xlu0 %v1637, 80
        %v1966 = vpop.permute.xlu0 %1965
        %v1969 = vsel %vm904, %v1949, 0
        %v1972 = vsel %vm904, %v1964, 0
        %1974 = vmatpush.msra.mxu0 0.0
        %1975 = vmatpush.msra.mxu0 0.0
        %1976 = vmatpush.msra.mxu0 0.0
        %1977 = vmatpush.msra.mxu0 0.0
        %1978 = vmatpush.msra.mxu0 0.0
        %1979 = vmatpush.msra.mxu0 0.0
        %1980 = vmatpush.msra.mxu0 0.0
        %1981 = vmatpush.msra.mxu0 0.0
        %1982 = vmatpush.msra.mxu0 0.0
        %1983 = vmatpush.msra.mxu0 0.0
        %1984 = vmatpush.msra.mxu0 0.0
        %1985 = vmatpush.msra.mxu0 0.0
        %1986 = vmatpush.msra.mxu0 0.0
        %1987 = vmatpush.msra.mxu0 0.0
        %1988 = vmatpush.msra.mxu0 0.0
        %1989 = vmatpush.msra.mxu0 %v1966
        %1990 = vmatmul.f32.gmra.mxu0 %v1969
        %v1991 = vpop.f32.mrf.mxu0
        %v1992 = vadd.f32 0.0, %v1991
        %1993 = vmatmul.f32.gmra.mxu0 %v1972
        %v1994 = vpop.f32.mrf.mxu0
        %v1995 = vadd.f32 0.0, %v1994
        %1996 = vdwg.mxu0
        %1997 = vrot.lane.b32.xlu0 %v1608, 104
        %v1998 = vpop.permute.xlu0 %1997
        %1999 = vrot.lane.b32.xlu0 %v1611, 104
        %v2000 = vpop.permute.xlu0 %1999
        %2001 = vrot.lane.b32.xlu0 %v1637, 104
        %v2002 = vpop.permute.xlu0 %2001
        %v2003 = vsel %vm904, %v1998, 0
        %v2005 = vsel %vm904, %v2000, 0
        %v2007 = vsel %vm904, %v2002, 0
        %2009 = vmatpush.xpose.msra.mxu0 0.0
        %2010 = vmatpush.xpose.msra.mxu0 0.0
        %2011 = vmatpush.xpose.msra.mxu0 0.0
        %2012 = vmatpush.xpose.msra.mxu0 0.0
        %2013 = vmatpush.xpose.msra.mxu0 0.0
        %2014 = vmatpush.xpose.msra.mxu0 0.0
        %2015 = vmatpush.xpose.msra.mxu0 0.0
        %2016 = vmatpush.xpose.msra.mxu0 0.0
        %2017 = vmatpush.xpose.msra.mxu0 0.0
        %2018 = vmatpush.xpose.msra.mxu0 0.0
        %2019 = vmatpush.xpose.msra.mxu0 0.0
        %2020 = vmatpush.xpose.msra.mxu0 0.0
        %2021 = vmatpush.xpose.msra.mxu0 0.0
        %2022 = vmatpush.xpose.msra.mxu0 0.0
        %2023 = vmatpush.xpose.msra.mxu0 0.0
        %2024 = vmatpush.xpose.msra.mxu0 %v2007
        %2025 = vmatmul.f32.gmra.mxu0 %v2003
        %v2026 = vpop.f32.mrf.mxu0
        %v2027 = vadd.f32 0.0, %v2026
        %2028 = vmatmul.f32.gmra.mxu0 %v2005
        %v2029 = vpop.f32.mrf.mxu0
        %v2030 = vadd.f32 0.0, %v2029
        %2031 = vdwg.mxu0
        %v2032 = vmul.f32 %v2027, 0.35355338
        %v2033 = vmul.f32 %v2030, 0.35355338
        %v2034 = vsel %vm1676, -1e+09, %v2032
        %v2035 = vsel %vm1676, -1e+09, %v2033
        %v2036 = vsel %vm904, %v2034, -inf
        %2037 = vmax.xlane.f32.xlu0 %v2036
        %v2038 = vpop.xlane.xlu0 %2037
        %v2039 = vsel %vm904, %v2035, -inf
        %2040 = vmax.xlane.f32.xlu0 %v2039
        %v2041 = vpop.xlane.xlu0 %2040
        %v2042 = vsub.f32 %v2034, %v2038
        %v2043 = vsub.f32 %v2035, %v2041
        %v2044 = vmul.f32 %v2042, 1.442695
        %v2045 = vpow.pop %v2044
        %v2046 = vmul.f32 %v2043, 1.442695
        %v2047 = vpow.pop %v2046
        %v2048 = vsel %vm904, %v2045, 0.0
        %2049 = vadd.xlane.f32.xlu0 %v2048
        %v2050 = vpop.xlane.xlu0 %2049
        %v2051 = vsel %vm904, %v2047, 0.0
        %2052 = vadd.xlane.f32.xlu0 %v2051
        %v2053 = vpop.xlane.xlu0 %2052
        %v2054 = vrcp.pop %v2050
        %v2055 = vmul.f32 %v2050, %v2054
        %v2056 = vsub.f32 1.0, %v2055
        %v2057 = vmul.f32 %v2054, %v2056
        %v2058 = vadd.f32 %v2054, %v2057
        %vm2059 = vweird.f32 %v2050
        %vm2060 = vweird.f32 %v2054
        %vm2061 = vmor %vm2059, %vm2060
        %v2062 = vsel %vm2061, %v2054, %v2058
        %v2063 = vand.u32 2147483647, %v2050
        %vm2064 = vcmp.eq.f32.partialorder %v2063, 8.507059e+37
        %v2065 = vand.u32 %v2050, 2147483648
        %v2066 = vor.u32 1.1754944e-38, %v2065
        %v2067 = vsel %vm2064, %v2066, %v2062
        %v2068 = vmul.f32 %v2045, %v2067
        %v2069 = vrcp.pop %v2053
        %v2070 = vmul.f32 %v2053, %v2069
        %v2071 = vsub.f32 1.0, %v2070
        %v2072 = vmul.f32 %v2069, %v2071
        %v2073 = vadd.f32 %v2069, %v2072
        %vm2074 = vweird.f32 %v2053
        %vm2075 = vweird.f32 %v2069
        %vm2076 = vmor %vm2074, %vm2075
        %v2077 = vsel %vm2076, %v2069, %v2073
        %v2078 = vand.u32 2147483647, %v2053
        %vm2079 = vcmp.eq.f32.partialorder %v2078, 8.507059e+37
        %v2080 = vand.u32 %v2053, 2147483648
        %v2081 = vor.u32 1.1754944e-38, %v2080
        %v2082 = vsel %vm2079, %v2081, %v2077
        %v2083 = vmul.f32 %v2047, %v2082
        %2084 = vrot.lane.b32.xlu0 %v1637, 72
        %v2085 = vpop.permute.xlu0 %2084
        %v2088 = vsel %vm904, %v2068, 0
        %v2091 = vsel %vm904, %v2083, 0
        %2093 = vmatpush.msra.mxu0 0.0
        %2094 = vmatpush.msra.mxu0 0.0
        %2095 = vmatpush.msra.mxu0 0.0
        %2096 = vmatpush.msra.mxu0 0.0
        %2097 = vmatpush.msra.mxu0 0.0
        %2098 = vmatpush.msra.mxu0 0.0
        %2099 = vmatpush.msra.mxu0 0.0
        %2100 = vmatpush.msra.mxu0 0.0
        %2101 = vmatpush.msra.mxu0 0.0
        %2102 = vmatpush.msra.mxu0 0.0
        %2103 = vmatpush.msra.mxu0 0.0
        %2104 = vmatpush.msra.mxu0 0.0
        %2105 = vmatpush.msra.mxu0 0.0
        %2106 = vmatpush.msra.mxu0 0.0
        %2107 = vmatpush.msra.mxu0 0.0
        %2108 = vmatpush.msra.mxu0 %v2085
        %2109 = vmatmul.f32.gmra.mxu0 %v2088
        %v2110 = vpop.f32.mrf.mxu0
        %v2111 = vadd.f32 0.0, %v2110
        %2112 = vmatmul.f32.gmra.mxu0 %v2091
        %v2113 = vpop.f32.mrf.mxu0
        %v2114 = vadd.f32 0.0, %v2113
        %2115 = vdwg.mxu0
        %2118 = vrot.lane.b32.xlu0 %v1873, 8
        %v2119 = vpop.permute.xlu0 %2118
        %2120 = vrot.lane.b32.xlu0 %v1876, 8
        %v2121 = vpop.permute.xlu0 %2120
        %2126 = vrot.lane.b32.xlu0 %v1992, 16
        %v2127 = vpop.permute.xlu0 %2126
        %2128 = vrot.lane.b32.xlu0 %v1995, 16
        %v2129 = vpop.permute.xlu0 %2128
        %2134 = vrot.lane.b32.xlu0 %v2111, 24
        %v2135 = vpop.permute.xlu0 %2134
        %2136 = vrot.lane.b32.xlu0 %v2114, 24
        %v2137 = vpop.permute.xlu0 %2136
        %v2140 = vsel %vm904, %v1754, %v2119
        %v2141 = vsel %vm904, %v1757, %v2121
        %v2142 = vsel %vm944, %v2140, %v2127
        %v2143 = vsel %vm944, %v2141, %v2129
        %v2144 = vsel %vm1434, %v2142, %v2135
        %v2145 = vsel %vm1434, %v2143, %v2137
        %v2147 = vperm.slane %v1580, 0
        %v2150 = vsel %vm868, %v2144, 0
        %v2153 = vsel %vm868, %v2145, 0
        %2155 = vmatpush.msra.mxu0 0.0
        %2156 = vmatpush.msra.mxu0 0.0
        %2157 = vmatpush.msra.mxu0 0.0
        %2158 = vmatpush.msra.mxu0 0.0
        %2159 = vmatpush.msra.mxu0 0.0
        %2160 = vmatpush.msra.mxu0 0.0
        %2161 = vmatpush.msra.mxu0 0.0
        %2162 = vmatpush.msra.mxu0 0.0
        %2163 = vmatpush.msra.mxu0 0.0
        %2164 = vmatpush.msra.mxu0 0.0
        %2165 = vmatpush.msra.mxu0 0.0
        %2166 = vmatpush.msra.mxu0 0.0
        %2167 = vmatpush.msra.mxu0 %v1579
        %2168 = vmatpush.msra.mxu0 %v1578
        %2169 = vmatpush.msra.mxu0 %v1577
        %2170 = vmatpush.msra.mxu0 %v1576
        %2171 = vmatmul.f32.gmra.mxu0 %v2150
        %v2172 = vpop.f32.mrf.mxu0
        %v2173 = vadd.f32 %v2147, %v2172
        %2174 = vmatmul.f32.gmra.mxu0 %v2153
        %v2175 = vpop.f32.mrf.mxu0
        %v2176 = vadd.f32 %v2147, %v2175
        %2177 = vdwg.mxu0
        %v2178 = vadd.f32 %v1564, %v2173
        %v2179 = vadd.f32 %v1565, %v2176
        %v2180 = vld [vmem:[%s16] sm:$0x1]
        %v2181 = vld [vmem:[%s17] sm:$0x1]
        %v2182 = vsel %vm868, %v2178, 0.0
        %2183 = vadd.xlane.f32.xlu0 %v2182
        %v2184 = vpop.xlane.xlu0 %2183
        %v2185 = vsel %vm868, %v2179, 0.0
        %2186 = vadd.xlane.f32.xlu0 %v2185
        %v2187 = vpop.xlane.xlu0 %2186
        %v2188 = vmul.f32 %v2184, %v1485
        %v2189 = vmul.f32 %v2187, %v1485
        %v2190 = vsub.f32 %v2178, %v2188
        %v2191 = vsub.f32 %v2179, %v2189
        %v2192 = vmul.f32 %v2190, %v2190
        %v2193 = vmul.f32 %v2191, %v2191
        %v2194 = vsel %vm868, %v2192, 0.0
        %2195 = vadd.xlane.f32.xlu0 %v2194
        %v2196 = vpop.xlane.xlu0 %2195
        %v2197 = vsel %vm868, %v2193, 0.0
        %2198 = vadd.xlane.f32.xlu0 %v2197
        %v2199 = vpop.xlane.xlu0 %2198
        %v2200 = vmul.f32 %v2196, 0.032258064
        %v2201 = vmul.f32 %v2199, 0.032258064
        %v2203 = vperm.slane %v2180, 0
        %v2205 = vmul.f32 %v2203, %v2190
        %v2206 = vmul.f32 %v2203, %v2191
        %v2207 = vrsqrt.pop %v2200
        %v2208 = vmul.f32 %v2207, %v2200
        %v2209 = vmul.f32 %v2208, %v2207
        %v2210 = vmul.f32 0.5, %v2209
        %v2211 = vsub.f32 1.5, %v2210
        %v2212 = vmul.f32 %v2207, %v2211
        %v2213 = vmul.f32 %v2200, %v2212
        %vm2214 = vcmp.eq.f32.partialorder %v2200, inf
        %v2215 = vsel %vm2214, %v2200, %v2213
        %vm2216 = vcmp.eq.f32.partialorder %v2200, 0.0
        %v2217 = vand.u32 %v2200, 2147483648
        %v2218 = vsel %vm2216, %v2217, %v2215
        %v2219 = vrsqrt.pop %v2201
        %v2220 = vmul.f32 %v2219, %v2201
        %v2221 = vmul.f32 %v2220, %v2219
        %v2222 = vmul.f32 0.5, %v2221
        %v2223 = vsub.f32 1.5, %v2222
        %v2224 = vmul.f32 %v2219, %v2223
        %v2225 = vmul.f32 %v2201, %v2224
        %vm2226 = vcmp.eq.f32.partialorder %v2201, inf
        %v2227 = vsel %vm2226, %v2201, %v2225
        %vm2228 = vcmp.eq.f32.partialorder %v2201, 0.0
        %v2229 = vand.u32 %v2201, 2147483648
        %v2230 = vsel %vm2228, %v2229, %v2227
        %v2231 = vadd.f32 %v2218, 1e-06
        %v2232 = vadd.f32 %v2230, 1e-06
        %v2233 = vrcp.pop %v2231
        %v2234 = vmul.f32 %v2231, %v2233
        %v2235 = vsub.f32 1.0, %v2234
        %v2236 = vmul.f32 %v2233, %v2235
        %v2237 = vadd.f32 %v2233, %v2236
        %vm2238 = vweird.f32 %v2231
        %vm2239 = vweird.f32 %v2233
        %vm2240 = vmor %vm2238, %vm2239
        %v2241 = vsel %vm2240, %v2233, %v2237
        %v2242 = vand.u32 2147483647, %v2231
        %vm2243 = vcmp.eq.f32.partialorder %v2242, 8.507059e+37
        %v2244 = vand.u32 %v2231, 2147483648
        %v2245 = vor.u32 1.1754944e-38, %v2244
        %v2246 = vsel %vm2243, %v2245, %v2241
        %v2247 = vmul.f32 %v2205, %v2246
        %v2248 = vrcp.pop %v2232
        %v2249 = vmul.f32 %v2232, %v2248
        %v2250 = vsub.f32 1.0, %v2249
        %v2251 = vmul.f32 %v2248, %v2250
        %v2252 = vadd.f32 %v2248, %v2251
        %vm2253 = vweird.f32 %v2232
        %vm2254 = vweird.f32 %v2248
        %vm2255 = vmor %vm2253, %vm2254
        %v2256 = vsel %vm2255, %v2248, %v2252
        %v2257 = vand.u32 2147483647, %v2232
        %vm2258 = vcmp.eq.f32.partialorder %v2257, 8.507059e+37
        %v2259 = vand.u32 %v2232, 2147483648
        %v2260 = vor.u32 1.1754944e-38, %v2259
        %v2261 = vsel %vm2258, %v2260, %v2256
        %v2262 = vmul.f32 %v2206, %v2261
        %v2264 = vperm.slane %v2181, 0
        %v2266 = vadd.f32 %v2247, %v2264
        %v2267 = vadd.f32 %v2262, %v2264
        %v2268 = vld [vmem:[#allocation7] sm:$0xff]
        %v2269 = vld [vmem:[#allocation7 + $0x8] sm:$0xff]
        %v2270 = vld [vmem:[#allocation7 + $0x10] sm:$0xff]
        %v2271 = vld [vmem:[#allocation7 + $0x18] sm:$0xff]
        %v2272 = vld [vmem:[%s19] sm:$0x1]
        %v2273 = vld [vmem:[%s20] sm:$0xff]
        %v2274 = vld [vmem:[%s20 + $0x8] sm:$0xff]
        %v2275 = vld [vmem:[%s20 + $0x10] sm:$0xff]
        %v2276 = vld [vmem:[%s20 + $0x18] sm:$0xff]
        %v2277 = vld [vmem:[%s20 + $0x20] sm:$0xff]
        %v2278 = vld [vmem:[%s20 + $0x28] sm:$0xff]
        %v2279 = vld [vmem:[%s20 + $0x30] sm:$0xff]
        %v2280 = vld [vmem:[%s20 + $0x38] sm:$0xff]
        %v2281 = vld [vmem:[%s21] sm:$0x1]
        %v2283 = vperm.slane %v2272, 0
        %v2286 = vsel %vm868, %v2266, 0
        %v2289 = vsel %vm868, %v2267, 0
        %2291 = vmatpush.msra.mxu0 0.0
        %2292 = vmatpush.msra.mxu0 0.0
        %2293 = vmatpush.msra.mxu0 0.0
        %2294 = vmatpush.msra.mxu0 0.0
        %2295 = vmatpush.msra.mxu0 0.0
        %2296 = vmatpush.msra.mxu0 0.0
        %2297 = vmatpush.msra.mxu0 0.0
        %2298 = vmatpush.msra.mxu0 0.0
        %2299 = vmatpush.msra.mxu0 0.0
        %2300 = vmatpush.msra.mxu0 0.0
        %2301 = vmatpush.msra.mxu0 0.0
        %2302 = vmatpush.msra.mxu0 0.0
        %2303 = vmatpush.msra.mxu0 %v2271
        %2304 = vmatpush.msra.mxu0 %v2270
        %2305 = vmatpush.msra.mxu0 %v2269
        %2306 = vmatpush.msra.mxu0 %v2268
        %2307 = vmatmul.f32.gmra.mxu0 %v2286
        %v2308 = vpop.f32.mrf.mxu0
        %v2309 = vadd.f32 %v2283, %v2308
        %2310 = vmatmul.f32.gmra.mxu0 %v2289
        %v2311 = vpop.f32.mrf.mxu0
        %v2312 = vadd.f32 %v2283, %v2311
        %2313 = vdwg.mxu0
        %v2314 = vmax.f32 %v2309, 0.0
        %v2315 = vmax.f32 %v2312, 0.0
        %v2317 = vperm.slane %v2281, 0
        %vm2319 = vcmask 523264
        %v2321 = vsel %vm2319, %v2314, 0
        %v2324 = vsel %vm2319, %v2315, 0
        %2326 = vmatpush.msra.mxu0 0.0
        %2327 = vmatpush.msra.mxu0 0.0
        %2328 = vmatpush.msra.mxu0 0.0
        %2329 = vmatpush.msra.mxu0 0.0
        %2330 = vmatpush.msra.mxu0 0.0
        %2331 = vmatpush.msra.mxu0 0.0
        %2332 = vmatpush.msra.mxu0 0.0
        %2333 = vmatpush.msra.mxu0 0.0
        %2334 = vmatpush.msra.mxu0 %v2280
        %2335 = vmatpush.msra.mxu0 %v2279
        %2336 = vmatpush.msra.mxu0 %v2278
        %2337 = vmatpush.msra.mxu0 %v2277
        %2338 = vmatpush.msra.mxu0 %v2276
        %2339 = vmatpush.msra.mxu0 %v2275
        %2340 = vmatpush.msra.mxu0 %v2274
        %2341 = vmatpush.msra.mxu0 %v2273
        %2342 = vmatmul.f32.gmra.mxu0 %v2321
        %v2343 = vpop.f32.mrf.mxu0
        %v2344 = vadd.f32 %v2317, %v2343
        %2345 = vmatmul.f32.gmra.mxu0 %v2324
        %v2346 = vpop.f32.mrf.mxu0
        %v2347 = vadd.f32 %v2317, %v2346
        %2348 = vdwg.mxu0
        %v2349 = vadd.f32 %v2266, %v2344
        %v2350 = vadd.f32 %v2267, %v2347
        %v2351 = vld [vmem:[%s22] sm:$0x1]
        %v2352 = vld [vmem:[%s23] sm:$0x1]
        %v2353 = vsel %vm868, %v2349, 0.0
        %2354 = vadd.xlane.f32.xlu0 %v2353
        %v2355 = vpop.xlane.xlu0 %2354
        %v2356 = vsel %vm868, %v2350, 0.0
        %2357 = vadd.xlane.f32.xlu0 %v2356
        %v2358 = vpop.xlane.xlu0 %2357
        %v2359 = vmul.f32 %v2355, %v1485
        %v2360 = vmul.f32 %v2358, %v1485
        %v2361 = vsub.f32 %v2349, %v2359
        %v2362 = vsub.f32 %v2350, %v2360
        %v2363 = vmul.f32 %v2361, %v2361
        %v2364 = vmul.f32 %v2362, %v2362
        %v2365 = vsel %vm868, %v2363, 0.0
        %2366 = vadd.xlane.f32.xlu0 %v2365
        %v2367 = vpop.xlane.xlu0 %2366
        %v2368 = vsel %vm868, %v2364, 0.0
        %2369 = vadd.xlane.f32.xlu0 %v2368
        %v2370 = vpop.xlane.xlu0 %2369
        %v2371 = vmul.f32 %v2367, 0.032258064
        %v2372 = vmul.f32 %v2370, 0.032258064
        %v2374 = vperm.slane %v2351, 0
        %v2376 = vmul.f32 %v2374, %v2361
        %v2377 = vmul.f32 %v2374, %v2362
        %v2378 = vrsqrt.pop %v2371
        %v2379 = vmul.f32 %v2378, %v2371
        %v2380 = vmul.f32 %v2379, %v2378
        %v2381 = vmul.f32 0.5, %v2380
        %v2382 = vsub.f32 1.5, %v2381
        %v2383 = vmul.f32 %v2378, %v2382
        %v2384 = vmul.f32 %v2371, %v2383
        %vm2385 = vcmp.eq.f32.partialorder %v2371, inf
        %v2386 = vsel %vm2385, %v2371, %v2384
        %vm2387 = vcmp.eq.f32.partialorder %v2371, 0.0
        %v2388 = vand.u32 %v2371, 2147483648
        %v2389 = vsel %vm2387, %v2388, %v2386
        %v2390 = vrsqrt.pop %v2372
        %v2391 = vmul.f32 %v2390, %v2372
        %v2392 = vmul.f32 %v2391, %v2390
        %v2393 = vmul.f32 0.5, %v2392
        %v2394 = vsub.f32 1.5, %v2393
        %v2395 = vmul.f32 %v2390, %v2394
        %v2396 = vmul.f32 %v2372, %v2395
        %vm2397 = vcmp.eq.f32.partialorder %v2372, inf
        %v2398 = vsel %vm2397, %v2372, %v2396
        %vm2399 = vcmp.eq.f32.partialorder %v2372, 0.0
        %v2400 = vand.u32 %v2372, 2147483648
        %v2401 = vsel %vm2399, %v2400, %v2398
        %v2402 = vadd.f32 %v2389, 1e-06
        %v2403 = vadd.f32 %v2401, 1e-06
        %v2404 = vrcp.pop %v2402
        %v2405 = vmul.f32 %v2402, %v2404
        %v2406 = vsub.f32 1.0, %v2405
        %v2407 = vmul.f32 %v2404, %v2406
        %v2408 = vadd.f32 %v2404, %v2407
        %vm2409 = vweird.f32 %v2402
        %vm2410 = vweird.f32 %v2404
        %vm2411 = vmor %vm2409, %vm2410
        %v2412 = vsel %vm2411, %v2404, %v2408
        %v2413 = vand.u32 2147483647, %v2402
        %vm2414 = vcmp.eq.f32.partialorder %v2413, 8.507059e+37
        %v2415 = vand.u32 %v2402, 2147483648
        %v2416 = vor.u32 1.1754944e-38, %v2415
        %v2417 = vsel %vm2414, %v2416, %v2412
        %v2418 = vmul.f32 %v2376, %v2417
        %v2419 = vrcp.pop %v2403
        %v2420 = vmul.f32 %v2403, %v2419
        %v2421 = vsub.f32 1.0, %v2420
        %v2422 = vmul.f32 %v2419, %v2421
        %v2423 = vadd.f32 %v2419, %v2422
        %vm2424 = vweird.f32 %v2403
        %vm2425 = vweird.f32 %v2419
        %vm2426 = vmor %vm2424, %vm2425
        %v2427 = vsel %vm2426, %v2419, %v2423
        %v2428 = vand.u32 2147483647, %v2403
        %vm2429 = vcmp.eq.f32.partialorder %v2428, 8.507059e+37
        %v2430 = vand.u32 %v2403, 2147483648
        %v2431 = vor.u32 1.1754944e-38, %v2430
        %v2432 = vsel %vm2429, %v2431, %v2427
        %v2433 = vmul.f32 %v2377, %v2432
        %v2435 = vperm.slane %v2352, 0
        %v2437 = vadd.f32 %v2418, %v2435
        %v2438 = vadd.f32 %v2433, %v2435
        %2439 = vst.msk [vmem:[%s849] sm:$0xff] %vm868, %v2437
        %2440 = vst.msk [vmem:[%s849 + $0x8] sm:$0xff] %vm868, %v2438
        %p2441 = scmp.lt.s32.totalorder %s38, 1
        %s2442 = scalar_select %p2441, %s38, 1
        %s2443 = smul.addr %s2442, 2
        %s2444 = smul.addr %s2443, 8
        %s2445 = scalar_lea.vmem %s24, %s2444
        // Predicated region
        $region133: #{net_forward.12} parent=115 // pred_check
          %p2446 = pneg %p580
        $region134: #{net_forward.12} parent=115 // pred_check_branch
          %2448 = sbr.rel (%p2446) target = $region136
        $region135: #{net_forward.12} parent=115 // pred_region
          _
        $region136: #{net_forward.12} parent=115 // pred_fallthru
          _
      $region116: #{net_forward.12} parent=5 // pred_fallthru
        _
      %p2449 = scmp.le.s32.totalorder 2, %s33
      // Predicated region
      $region137: #{net_forward.12} parent=5 // pred_check
        %p2450 = pneg %p2449
      $region138: #{net_forward.12} parent=5 // pred_check_branch
        %2452 = sbr.rel (%p2450) target = $region140
      $region139: #{net_forward.12} parent=5 // pred_region
        %s2453 = ssub.s32 %s33, 2
        // Predicated region
        $region141: #{net_forward.12} parent=139 // pred_check
          %p2454 = pneg %p586
        $region142: #{net_forward.12} parent=139 // pred_check_branch
          %2456 = sbr.rel (%p2454) target = $region144
        $region143: #{net_forward.12} parent=139 // pred_region
          %p2457 = scmp.lt.s32.totalorder %s39, 1
          %s2458 = scalar_select %p2457, %s39, 1
          %s2459 = smul.addr %s2458, 2
          %s2460 = smul.addr %s2459, 8
          %s2461 = scalar_lea.vmem %s24, %s2460
        $region144: #{net_forward.12} parent=139 // pred_fallthru
          _
      $region140: #{net_forward.12} parent=5 // pred_fallthru
        _
    $region6: #{net_forward.12} parent=1 // loop_footer
      %s37 = sadd.s32 1, %s33
    $region7: #{net_forward.12} parent=1 // loop_footer_branch
      %32 = sbr.rel target = $region3
    $region8: #{net_forward.12} parent=1 // loop_exit
      _
    %2462 = vsyncpa [#allocation3], 1
    %s2463 = scalar_lea.sflag [#allocation3], 1
    %2464 = vsyncpa %s2463, 1
    %2465 = vsyncpa [#allocation5], 1
    %2466 = vsyncpa [#allocation8], 1

</llo_original>
